<compile_context>
chip_gen: v7x
topology: tpu7x:2x2x1
jax: 0.10.0
libtpu: 0.0.40
codegen_flags: <defaults>
</compile_context>

<pallas_src>
import functools
import math

import jax
import jax.numpy as jnp
from jax import lax
from jax.experimental import pallas as pl
from jax.experimental.pallas import tpu as pltpu

BN_EPS = 1e-5
TILE_P_MAX = 512          # rows of the im2col matrix per grid step (multiple of 8)
VMEM_LIMIT = 32 * 1024 * 1024


def _round_up(x, m):
    return ((x + m - 1) // m) * m


# ---------------------------------------------------------------- kernels ---

def _conv_stats_kernel(x_ref, w_ref, y_ref, st_ref, *, tile_p, p_valid):
    """One row-tile of: Y = X_bf16 @ W_bf16 (f32 accum) + per-channel partial stats.

    x_ref : (TILE_P, K)      bf16   im2col rows (previous BN+ReLU already folded in)
    w_ref : (K, Cout)        bf16   weights (1/std of previous BN folded in)
    y_ref : (TILE_P, Cout)   f32    raw (pre-BN) conv output tile
    st_ref: (8, Cout)        f32    row 0 = per-tile sum, row 1 = per-tile sum-of-squares
    """
    y = jnp.dot(x_ref[...], w_ref[...], preferred_element_type=jnp.float32)
    y_ref[...] = y

    # Mask rows that are only padding of P up to a tile multiple so they do not
    # pollute the BatchNorm batch statistics.
    row0 = pl.program_id(0) * tile_p
    rid = row0 + lax.broadcasted_iota(jnp.int32, (tile_p, 1), 0)
    valid = (rid < p_valid).astype(jnp.float32)
    ym = y * valid

    cout = y.shape[1]
    s = jnp.sum(ym, axis=0, keepdims=True)            # (1, Cout)
    sq = jnp.sum(ym * ym, axis=0, keepdims=True)      # (1, Cout)
    st_ref[...] = jnp.concatenate(
        [s, sq, jnp.zeros((6, cout), jnp.float32)], axis=0)


def _head_kernel(y_ref, mu_ref, s_ref, w_ref, b_ref, o_ref, *, inv_hw):
    """Final BatchNorm(16) (no ReLU) -> adaptive_avg_pool2d((1,1)) -> Linear(16,1).

    y_ref : (N, HW, C) f32 raw last-conv output
    mu_ref, s_ref, w_ref : (1, 1, C) f32  (BN mean, BN 1/std, Linear weight row)
    b_ref : (1, 1) f32 (Linear bias)
    o_ref : (N, 1) f32
    """
    yb = (y_ref[...] - mu_ref[...]) * s_ref[...]       # BN, gamma=1 / beta=0
    t = yb * w_ref[...]                                # fold Linear weight per-channel
    r = jnp.sum(t, axis=2)                             # (N, HW)  lane reduce
    o_ref[...] = jnp.sum(r, axis=1, keepdims=True) * inv_hw + b_ref[...]


# ------------------------------------------------------------ pallas calls ---

def _conv_call(x2d_bf16, w_bf16, p_valid, tile_p):
    p_pad, k = x2d_bf16.shape
    cout = w_bf16.shape[1]
    ntiles = p_pad // tile_p

    flops = 2 * p_pad * k * cout
    bytes_accessed = (p_pad * k * 2 + k * cout * 2          # bf16 inputs
                      + p_pad * cout * 4 + ntiles * 8 * cout * 4)  # f32 outputs

    kernel = functools.partial(_conv_stats_kernel, tile_p=tile_p, p_valid=p_valid)
    return pl.pallas_call(
        kernel,
        out_shape=(jax.ShapeDtypeStruct((p_pad, cout), jnp.float32),
                   jax.ShapeDtypeStruct((ntiles * 8, cout), jnp.float32)),
        grid_spec=pltpu.PrefetchScalarGridSpec(
            num_scalar_prefetch=0,
            grid=(ntiles,),
            in_specs=[pl.BlockSpec((tile_p, k), lambda i: (i, 0)),
                      pl.BlockSpec((k, cout), lambda i: (0, 0))],
            out_specs=[pl.BlockSpec((tile_p, cout), lambda i: (i, 0)),
                       pl.BlockSpec((8, cout), lambda i: (i, 0))]),
        compiler_params=pltpu.CompilerParams(
            dimension_semantics=("parallel",),
            vmem_limit_bytes=VMEM_LIMIT),
        cost_estimate=pl.CostEstimate(flops=flops, transcendentals=0,
                                      bytes_accessed=bytes_accessed),
    )(x2d_bf16, w_bf16)


def _head_call(y3, mu, inv_std, fc_w, fc_b, hw):
    n = y3.shape[0]
    vmem = pltpu.MemorySpace.VMEM
    kernel = functools.partial(_head_kernel, inv_hw=1.0 / float(hw))
    return pl.pallas_call(
        kernel,
        out_shape=jax.ShapeDtypeStruct((n, 1), jnp.float32),
        in_specs=[pl.BlockSpec(memory_space=vmem)] * 5,
        out_specs=pl.BlockSpec(memory_space=vmem),
        compiler_params=pltpu.CompilerParams(vmem_limit_bytes=4 * 1024 * 1024),
    )(y3, mu, inv_std, fc_w, fc_b)


# ------------------------------------------------------------------- glue ---

def _im2col3x3(x_nhwc):
    """3x3, stride 1, pad 1 patch extraction -> (N*H*W, 9*C), k-order (ky,kx,ci)."""
    n, h, w, c = x_nhwc.shape
    xp = jnp.pad(x_nhwc, ((0, 0), (1, 1), (1, 1), (0, 0)))
    patches = [xp[:, ky:ky + h, kx:kx + w, :] for ky in range(3) for kx in range(3)]
    p = jnp.stack(patches, axis=3)                   # (N, H, W, 9, C)
    return p.reshape(n * h * w, 9 * c)


def conv_bn_block(x_raw, stats_prev, w_oihw):
    """One Conv2d(3x3, pad=1) -> BatchNorm2d step on "deferred-BN" tensors.

    x_raw      : raw (pre-BN) activation of the previous step, NHWC f32
                 (the network input for the first conv).
    stats_prev : None for the network input, else (mean, inv_std) of the
                 previous conv output; that BN+ReLU is applied here:
                 center+ReLU fused into the im2col producer, 1/std folded into
                 the weight matrix.
    Returns (y_raw NHWC f32, (mean, inv_std)) for this conv's output.
    """
    n, h, w_, cin = x_raw.shape
    cout = w_oihw.shape[0]

    # PyTorch weight (Cout,Cin,3,3) -> (ky,kx,ci,Cout) -> (9*Cin, Cout), matching
    # the im2col k-order (patch-major, channel-minor).
    wmat = jnp.transpose(w_oihw, (2, 3, 1, 0)).reshape(9 * cin, cout)

    if stats_prev is None:
        a = x_raw
    else:
        mean_p, inv_std_p = stats_prev
        # relu((x-mu)*s) @ W == relu(x-mu) @ (diag(tile(s,9)) @ W)   (s > 0);
        # zero border padding is then correct in the post-activation domain.
        a = jnp.maximum(x_raw - mean_p.reshape(1, 1, 1, cin), 0.0)
        wmat = wmat * jnp.tile(inv_std_p, 9)[:, None]

    x2d = _im2col3x3(a).astype(jnp.bfloat16)          # bf16 halves im2col HBM bytes
    w_bf16 = wmat.astype(jnp.bfloat16)

    p = n * h * w_
    tile_p = min(TILE_P_MAX, _round_up(p, 8))
    p_pad = _round_up(p, tile_p)
    if p_pad > p:
        x2d = jnp.pad(x2d, ((0, p_pad - p), (0, 0)))

    y_pad, stats = _conv_call(x2d, w_bf16, p, tile_p)
    y = y_pad[:p].reshape(n, h, w_, cout)

    # Tiny (num_tiles x Cout) reduction of the per-tile partials -> BN stats.
    st = stats.reshape(-1, 8, cout)
    s = jnp.sum(st[:, 0, :], axis=0)
    sq = jnp.sum(st[:, 1, :], axis=0)
    mean = s / p
    var = jnp.maximum(sq / p - mean * mean, 0.0)      # biased variance (PyTorch BN)
    inv_std = lax.rsqrt(var + BN_EPS)
    return y, (mean, inv_std)


def maxpool2(x_nhwc):
    # Applied to the raw (pre-BN) conv output: commutes with the monotone
    # per-channel relu((x - mu) * s) applied at consumption time.
    n, h, w, c = x_nhwc.shape
    return x_nhwc.reshape(n, h // 2, 2, w // 2, 2, c).max(axis=(2, 4))


# ------------------------------------------------------------- parameters ---

def init_params(key):
    keys = iter(jax.random.split(key, 16))

    def conv_w(k, cin, cout):
        bound = 1.0 / math.sqrt(cin * 9)
        return jax.random.uniform(k, (cout, cin, 3, 3), jnp.float32, -bound, bound)

    p = {}
    # Conv biases are omitted: they cancel exactly under the following
    # default-init (gamma=1, beta=0) training-mode BatchNorm.
    p["ci0"] = conv_w(next(keys), 3, 32)      # conv_init
    p["ci1"] = conv_w(next(keys), 32, 32)
    p["c1_0"] = conv_w(next(keys), 32, 64)    # conv_1
    p["c1_1"] = conv_w(next(keys), 64, 64)
    p["c2_0"] = conv_w(next(keys), 64, 128)   # conv_2
    p["c2_1"] = conv_w(next(keys), 128, 128)
    p["cn_0"] = conv_w(next(keys), 128, 128)  # conv_nonlinear
    p["cn_1"] = conv_w(next(keys), 128, 16)
    kw, kb = jax.random.split(next(keys))
    bound = 1.0 / math.sqrt(16)
    p["fc_w"] = jax.random.uniform(kw, (1, 16), jnp.float32, -bound, bound)
    p["fc_b"] = jax.random.uniform(kb, (1,), jnp.float32, -bound, bound)
    return p


# ----------------------------------------------------------------- forward ---

def discriminator_sr_forward(p, x_nchw):
    x = jnp.transpose(x_nchw, (0, 2, 3, 1)).astype(jnp.float32)   # NCHW -> NHWC

    # conv_init: Conv+BN+ReLU, Conv+BN+ReLU, MaxPool(2)
    y, st = conv_bn_block(x, None, p["ci0"])
    y, st = conv_bn_block(y, st, p["ci1"])
    y = maxpool2(y)
    # conv_1
    y, st = conv_bn_block(y, st, p["c1_0"])
    y, st = conv_bn_block(y, st, p["c1_1"])
    y = maxpool2(y)
    # conv_2
    y, st = conv_bn_block(y, st, p["c2_0"])
    y, st = conv_bn_block(y, st, p["c2_1"])
    y = maxpool2(y)
    # conv_nonlinear: Conv+BN+ReLU, Conv+BN (no ReLU)
    y, st = conv_bn_block(y, st, p["cn_0"])
    y, st = conv_bn_block(y, st, p["cn_1"])

    # head: BN(16) -> adaptive_avg_pool2d((1,1)) -> view(-1,16) -> Linear(16,1)
    n, h, w_, c = y.shape
    mean, inv_std = st
    out = _head_call(y.reshape(n, h * w_, c),
                     mean.reshape(1, 1, c),
                     inv_std.reshape(1, 1, c),
                     p["fc_w"].reshape(1, 1, c),
                     p["fc_b"].reshape(1, 1),
                     hw=h * w_)
    return out                                                    # (N, 1)


# -------------------------------------------------------------------- main ---

if __name__ == "__main__":
    key = jax.random.PRNGKey(0)
    pkey, xkey = jax.random.split(key)
    params = init_params(pkey)

    # Small NCHW input: (batch=2, channels=3, 16, 16).  Spatial trace: 16->8->4->2.
    x = jax.random.normal(xkey, (2, 3, 16, 16), jnp.float32)

    fwd = jax.jit(discriminator_sr_forward)
    out = jax.block_until_ready(fwd(params, x))

    assert out.shape == (2, 1), out.shape
    assert bool(jnp.all(jnp.isfinite(out)))

    print("KERNEL_OK")
</pallas_src>

<mosaic_0001>
module attributes {stable_mosaic.version = 11 : i64} {
  func.func @_conv_stats_kernel(%arg0: i32, %arg1: memref<512x27xbf16, #tpu.memory_space<vmem>>, %arg2: memref<27x32xbf16, #tpu.memory_space<vmem>>, %arg3: memref<512x32xf32, #tpu.memory_space<vmem>>, %arg4: memref<8x32xf32, #tpu.memory_space<vmem>>) attributes {dimension_semantics = [#tpu.dimension_semantics<parallel>], iteration_bounds = array<i64: 1>, scalar_prefetch = 0 : i64, scratch_operands = 0 : i64, tpu.core_type = #tpu.core_type<tc>, window_params = [{transform_indices = @transform_0, window_bounds = array<i64: 512, 27>}, {pipeline_mode = #tpu.pipeline_mode<synchronous>, transform_indices = @transform_1, window_bounds = array<i64: 27, 32>}, {transform_indices = @transform_2, window_bounds = array<i64: 512, 32>}, {transform_indices = @transform_3, window_bounds = array<i64: 8, 32>}]} {
    %c0 = arith.constant 0 : index
    %c0_0 = arith.constant 0 : index
    %0 = vector.load %arg1[%c0, %c0_0] : memref<512x27xbf16, #tpu.memory_space<vmem>>, vector<512x27xbf16>
    %c0_1 = arith.constant 0 : index
    %c0_2 = arith.constant 0 : index
    %1 = vector.load %arg2[%c0_1, %c0_2] : memref<27x32xbf16, #tpu.memory_space<vmem>>, vector<27x32xbf16>
    %cst = arith.constant dense<0.000000e+00> : vector<512x32xf32>
    %2 = tpu.matmul %0, %1, %cst {dimension_numbers = #tpu.dot_dimension_numbers<[1], [0], [0], [1], [0, 0, 1, 1], [], []>} : vector<512x27xbf16>, vector<27x32xbf16>, vector<512x32xf32> -> vector<512x32xf32>
    %c0_3 = arith.constant 0 : index
    %c0_4 = arith.constant 0 : index
    %3 = vector.load %arg3[%c0_3, %c0_4] : memref<512x32xf32, #tpu.memory_space<vmem>>, vector<512x32xf32>
    tpu.vector_store %arg3[%c0_3, %c0_4], %2 {strides = array<i32>} : memref<512x32xf32, #tpu.memory_space<vmem>>, vector<512x32xf32>,
    %c512_i32 = arith.constant 512 : i32
    %4 = arith.muli %arg0, %c512_i32 : i32
    %5 = tpu.iota {dimensions = array<i32: 0>} : vector<512x1xi32>
    %6 = vector.broadcast %4 : i32 to vector<512x1xi32>
    %7 = arith.addi %6, %5 : vector<512x1xi32>
    %c512_i32_5 = arith.constant 512 : i32
    %8 = vector.broadcast %c512_i32_5 : i32 to vector<512x1xi32>
    %9 = arith.cmpi slt, %7, %8 : vector<512x1xi32>
    %10 = arith.extui %9 : vector<512x1xi1> to vector<512x1xi32>
    %11 = arith.sitofp %10 : vector<512x1xi32> to vector<512x1xf32>
    %12 = vector.broadcast %11 : vector<512x1xf32> to vector<512x32xf32>
    %13 = arith.mulf %2, %12 : vector<512x32xf32>
    %cst_6 = arith.constant dense<0.000000e+00> : vector<32xf32>
    %14 = vector.multi_reduction <add>, %13, %cst_6 [0] : vector<512x32xf32> to vector<32xf32>
    %15 = vector.shape_cast %14 : vector<32xf32> to vector<1x32xf32>
    %16 = arith.mulf %13, %13 : vector<512x32xf32>
    %cst_7 = arith.constant dense<0.000000e+00> : vector<32xf32>
    %17 = vector.multi_reduction <add>, %16, %cst_7 [0] : vector<512x32xf32> to vector<32xf32>
    %18 = vector.shape_cast %17 : vector<32xf32> to vector<1x32xf32>
    %cst_8 = arith.constant 0.000000e+00 : f32
    %19 = vector.broadcast %cst_8 : f32 to vector<6x32xf32>
    %20 = tpu.concatenate %15, %18, %19 in 0 : vector<1x32xf32>, vector<1x32xf32>, vector<6x32xf32> -> vector<8x32xf32>
    %c0_9 = arith.constant 0 : index
    %c0_10 = arith.constant 0 : index
    %21 = vector.load %arg4[%c0_9, %c0_10] : memref<8x32xf32, #tpu.memory_space<vmem>>, vector<8x32xf32>
    tpu.vector_store %arg4[%c0_9, %c0_10], %20 {strides = array<i32>} : memref<8x32xf32, #tpu.memory_space<vmem>>, vector<8x32xf32>,
    return
  }
  func.func @transform_0(%arg0: i32) -> (i32, i32) {
    %c0_i32 = arith.constant 0 : i32
    %c0_i32_0 = arith.constant 0 : i32
    return %arg0, %c0_i32 : i32, i32
  }
  func.func @transform_1(%arg0: i32) -> (i32, i32) {
    %c0_i32 = arith.constant 0 : i32
    %c0_i32_0 = arith.constant 0 : i32
    %c0_i32_1 = arith.constant 0 : i32
    return %c0_i32, %c0_i32_0 : i32, i32
  }
  func.func @transform_2(%arg0: i32) -> (i32, i32) {
    %c0_i32 = arith.constant 0 : i32
    %c0_i32_0 = arith.constant 0 : i32
    return %arg0, %c0_i32 : i32, i32
  }
  func.func @transform_3(%arg0: i32) -> (i32, i32) {
    %c0_i32 = arith.constant 0 : i32
    %c0_i32_0 = arith.constant 0 : i32
    return %arg0, %c0_i32 : i32, i32
  }
}

module attributes {stable_mosaic.version = 11 : i64} {
  func.func @_conv_stats_kernel(%arg0: i32, %arg1: memref<512x288xbf16, #tpu.memory_space<vmem>>, %arg2: memref<288x32xbf16, #tpu.memory_space<vmem>>, %arg3: memref<512x32xf32, #tpu.memory_space<vmem>>, %arg4: memref<8x32xf32, #tpu.memory_space<vmem>>) attributes {dimension_semantics = [#tpu.dimension_semantics<parallel>], iteration_bounds = array<i64: 1>, scalar_prefetch = 0 : i64, scratch_operands = 0 : i64, tpu.core_type = #tpu.core_type<tc>, window_params = [{transform_indices = @transform_0, window_bounds = array<i64: 512, 288>}, {pipeline_mode = #tpu.pipeline_mode<synchronous>, transform_indices = @transform_1, window_bounds = array<i64: 288, 32>}, {transform_indices = @transform_2, window_bounds = array<i64: 512, 32>}, {transform_indices = @transform_3, window_bounds = array<i64: 8, 32>}]} {
    %c0 = arith.constant 0 : index
    %c0_0 = arith.constant 0 : index
    %0 = vector.load %arg1[%c0, %c0_0] : memref<512x288xbf16, #tpu.memory_space<vmem>>, vector<512x288xbf16>
    %c0_1 = arith.constant 0 : index
    %c0_2 = arith.constant 0 : index
    %1 = vector.load %arg2[%c0_1, %c0_2] : memref<288x32xbf16, #tpu.memory_space<vmem>>, vector<288x32xbf16>
    %cst = arith.constant dense<0.000000e+00> : vector<512x32xf32>
    %2 = tpu.matmul %0, %1, %cst {dimension_numbers = #tpu.dot_dimension_numbers<[1], [0], [0], [1], [0, 0, 1, 1], [], []>} : vector<512x288xbf16>, vector<288x32xbf16>, vector<512x32xf32> -> vector<512x32xf32>
    %c0_3 = arith.constant 0 : index
    %c0_4 = arith.constant 0 : index
    %3 = vector.load %arg3[%c0_3, %c0_4] : memref<512x32xf32, #tpu.memory_space<vmem>>, vector<512x32xf32>
    tpu.vector_store %arg3[%c0_3, %c0_4], %2 {strides = array<i32>} : memref<512x32xf32, #tpu.memory_space<vmem>>, vector<512x32xf32>,
    %c512_i32 = arith.constant 512 : i32
    %4 = arith.muli %arg0, %c512_i32 : i32
    %5 = tpu.iota {dimensions = array<i32: 0>} : vector<512x1xi32>
    %6 = vector.broadcast %4 : i32 to vector<512x1xi32>
    %7 = arith.addi %6, %5 : vector<512x1xi32>
    %c512_i32_5 = arith.constant 512 : i32
    %8 = vector.broadcast %c512_i32_5 : i32 to vector<512x1xi32>
    %9 = arith.cmpi slt, %7, %8 : vector<512x1xi32>
    %10 = arith.extui %9 : vector<512x1xi1> to vector<512x1xi32>
    %11 = arith.sitofp %10 : vector<512x1xi32> to vector<512x1xf32>
    %12 = vector.broadcast %11 : vector<512x1xf32> to vector<512x32xf32>
    %13 = arith.mulf %2, %12 : vector<512x32xf32>
    %cst_6 = arith.constant dense<0.000000e+00> : vector<32xf32>
    %14 = vector.multi_reduction <add>, %13, %cst_6 [0] : vector<512x32xf32> to vector<32xf32>
    %15 = vector.shape_cast %14 : vector<32xf32> to vector<1x32xf32>
    %16 = arith.mulf %13, %13 : vector<512x32xf32>
    %cst_7 = arith.constant dense<0.000000e+00> : vector<32xf32>
    %17 = vector.multi_reduction <add>, %16, %cst_7 [0] : vector<512x32xf32> to vector<32xf32>
    %18 = vector.shape_cast %17 : vector<32xf32> to vector<1x32xf32>
    %cst_8 = arith.constant 0.000000e+00 : f32
    %19 = vector.broadcast %cst_8 : f32 to vector<6x32xf32>
    %20 = tpu.concatenate %15, %18, %19 in 0 : vector<1x32xf32>, vector<1x32xf32>, vector<6x32xf32> -> vector<8x32xf32>
    %c0_9 = arith.constant 0 : index
    %c0_10 = arith.constant 0 : index
    %21 = vector.load %arg4[%c0_9, %c0_10] : memref<8x32xf32, #tpu.memory_space<vmem>>, vector<8x32xf32>
    tpu.vector_store %arg4[%c0_9, %c0_10], %20 {strides = array<i32>} : memref<8x32xf32, #tpu.memory_space<vmem>>, vector<8x32xf32>,
    return
  }
  func.func @transform_0(%arg0: i32) -> (i32, i32) {
    %c0_i32 = arith.constant 0 : i32
    %c0_i32_0 = arith.constant 0 : i32
    return %arg0, %c0_i32 : i32, i32
  }
  func.func @transform_1(%arg0: i32) -> (i32, i32) {
    %c0_i32 = arith.constant 0 : i32
    %c0_i32_0 = arith.constant 0 : i32
    %c0_i32_1 = arith.constant 0 : i32
    return %c0_i32, %c0_i32_0 : i32, i32
  }
  func.func @transform_2(%arg0: i32) -> (i32, i32) {
    %c0_i32 = arith.constant 0 : i32
    %c0_i32_0 = arith.constant 0 : i32
    return %arg0, %c0_i32 : i32, i32
  }
  func.func @transform_3(%arg0: i32) -> (i32, i32) {
    %c0_i32 = arith.constant 0 : i32
    %c0_i32_0 = arith.constant 0 : i32
    return %arg0, %c0_i32 : i32, i32
  }
}

module attributes {stable_mosaic.version = 11 : i64} {
  func.func @_conv_stats_kernel(%arg0: i32, %arg1: memref<128x288xbf16, #tpu.memory_space<vmem>>, %arg2: memref<288x64xbf16, #tpu.memory_space<vmem>>, %arg3: memref<128x64xf32, #tpu.memory_space<vmem>>, %arg4: memref<8x64xf32, #tpu.memory_space<vmem>>) attributes {dimension_semantics = [#tpu.dimension_semantics<parallel>], iteration_bounds = array<i64: 1>, scalar_prefetch = 0 : i64, scratch_operands = 0 : i64, tpu.core_type = #tpu.core_type<tc>, window_params = [{transform_indices = @transform_0, window_bounds = array<i64: 128, 288>}, {pipeline_mode = #tpu.pipeline_mode<synchronous>, transform_indices = @transform_1, window_bounds = array<i64: 288, 64>}, {transform_indices = @transform_2, window_bounds = array<i64: 128, 64>}, {transform_indices = @transform_3, window_bounds = array<i64: 8, 64>}]} {
    %c0 = arith.constant 0 : index
    %c0_0 = arith.constant 0 : index
    %0 = vector.load %arg1[%c0, %c0_0] : memref<128x288xbf16, #tpu.memory_space<vmem>>, vector<128x288xbf16>
    %c0_1 = arith.constant 0 : index
    %c0_2 = arith.constant 0 : index
    %1 = vector.load %arg2[%c0_1, %c0_2] : memref<288x64xbf16, #tpu.memory_space<vmem>>, vector<288x64xbf16>
    %cst = arith.constant dense<0.000000e+00> : vector<128x64xf32>
    %2 = tpu.matmul %0, %1, %cst {dimension_numbers = #tpu.dot_dimension_numbers<[1], [0], [0], [1], [0, 0, 1, 1], [], []>} : vector<128x288xbf16>, vector<288x64xbf16>, vector<128x64xf32> -> vector<128x64xf32>
    %c0_3 = arith.constant 0 : index
    %c0_4 = arith.constant 0 : index
    %3 = vector.load %arg3[%c0_3, %c0_4] : memref<128x64xf32, #tpu.memory_space<vmem>>, vector<128x64xf32>
    tpu.vector_store %arg3[%c0_3, %c0_4], %2 {strides = array<i32>} : memref<128x64xf32, #tpu.memory_space<vmem>>, vector<128x64xf32>,
    %c128_i32 = arith.constant 128 : i32
    %4 = arith.muli %arg0, %c128_i32 : i32
    %5 = tpu.iota {dimensions = array<i32: 0>} : vector<128x1xi32>
    %6 = vector.broadcast %4 : i32 to vector<128x1xi32>
    %7 = arith.addi %6, %5 : vector<128x1xi32>
    %c128_i32_5 = arith.constant 128 : i32
    %8 = vector.broadcast %c128_i32_5 : i32 to vector<128x1xi32>
    %9 = arith.cmpi slt, %7, %8 : vector<128x1xi32>
    %10 = arith.extui %9 : vector<128x1xi1> to vector<128x1xi32>
    %11 = arith.sitofp %10 : vector<128x1xi32> to vector<128x1xf32>
    %12 = vector.broadcast %11 : vector<128x1xf32> to vector<128x64xf32>
    %13 = arith.mulf %2, %12 : vector<128x64xf32>
    %cst_6 = arith.constant dense<0.000000e+00> : vector<64xf32>
    %14 = vector.multi_reduction <add>, %13, %cst_6 [0] : vector<128x64xf32> to vector<64xf32>
    %15 = vector.shape_cast %14 : vector<64xf32> to vector<1x64xf32>
    %16 = arith.mulf %13, %13 : vector<128x64xf32>
    %cst_7 = arith.constant dense<0.000000e+00> : vector<64xf32>
    %17 = vector.multi_reduction <add>, %16, %cst_7 [0] : vector<128x64xf32> to vector<64xf32>
    %18 = vector.shape_cast %17 : vector<64xf32> to vector<1x64xf32>
    %cst_8 = arith.constant 0.000000e+00 : f32
    %19 = vector.broadcast %cst_8 : f32 to vector<6x64xf32>
    %20 = tpu.concatenate %15, %18, %19 in 0 : vector<1x64xf32>, vector<1x64xf32>, vector<6x64xf32> -> vector<8x64xf32>
    %c0_9 = arith.constant 0 : index
    %c0_10 = arith.constant 0 : index
    %21 = vector.load %arg4[%c0_9, %c0_10] : memref<8x64xf32, #tpu.memory_space<vmem>>, vector<8x64xf32>
    tpu.vector_store %arg4[%c0_9, %c0_10], %20 {strides = array<i32>} : memref<8x64xf32, #tpu.memory_space<vmem>>, vector<8x64xf32>,
    return
  }
  func.func @transform_0(%arg0: i32) -> (i32, i32) {
    %c0_i32 = arith.constant 0 : i32
    %c0_i32_0 = arith.constant 0 : i32
    return %arg0, %c0_i32 : i32, i32
  }
  func.func @transform_1(%arg0: i32) -> (i32, i32) {
    %c0_i32 = arith.constant 0 : i32
    %c0_i32_0 = arith.constant 0 : i32
    %c0_i32_1 = arith.constant 0 : i32
    return %c0_i32, %c0_i32_0 : i32, i32
  }
  func.func @transform_2(%arg0: i32) -> (i32, i32) {
    %c0_i32 = arith.constant 0 : i32
    %c0_i32_0 = arith.constant 0 : i32
    return %arg0, %c0_i32 : i32, i32
  }
  func.func @transform_3(%arg0: i32) -> (i32, i32) {
    %c0_i32 = arith.constant 0 : i32
    %c0_i32_0 = arith.constant 0 : i32
    return %arg0, %c0_i32 : i32, i32
  }
}

module attributes {stable_mosaic.version = 11 : i64} {
  func.func @_conv_stats_kernel(%arg0: i32, %arg1: memref<128x576xbf16, #tpu.memory_space<vmem>>, %arg2: memref<576x64xbf16, #tpu.memory_space<vmem>>, %arg3: memref<128x64xf32, #tpu.memory_space<vmem>>, %arg4: memref<8x64xf32, #tpu.memory_space<vmem>>) attributes {dimension_semantics = [#tpu.dimension_semantics<parallel>], iteration_bounds = array<i64: 1>, scalar_prefetch = 0 : i64, scratch_operands = 0 : i64, tpu.core_type = #tpu.core_type<tc>, window_params = [{transform_indices = @transform_0, window_bounds = array<i64: 128, 576>}, {pipeline_mode = #tpu.pipeline_mode<synchronous>, transform_indices = @transform_1, window_bounds = array<i64: 576, 64>}, {transform_indices = @transform_2, window_bounds = array<i64: 128, 64>}, {transform_indices = @transform_3, window_bounds = array<i64: 8, 64>}]} {
    %c0 = arith.constant 0 : index
    %c0_0 = arith.constant 0 : index
    %0 = vector.load %arg1[%c0, %c0_0] : memref<128x576xbf16, #tpu.memory_space<vmem>>, vector<128x576xbf16>
    %c0_1 = arith.constant 0 : index
    %c0_2 = arith.constant 0 : index
    %1 = vector.load %arg2[%c0_1, %c0_2] : memref<576x64xbf16, #tpu.memory_space<vmem>>, vector<576x64xbf16>
    %cst = arith.constant dense<0.000000e+00> : vector<128x64xf32>
    %2 = tpu.matmul %0, %1, %cst {dimension_numbers = #tpu.dot_dimension_numbers<[1], [0], [0], [1], [0, 0, 1, 1], [], []>} : vector<128x576xbf16>, vector<576x64xbf16>, vector<128x64xf32> -> vector<128x64xf32>
    %c0_3 = arith.constant 0 : index
    %c0_4 = arith.constant 0 : index
    %3 = vector.load %arg3[%c0_3, %c0_4] : memref<128x64xf32, #tpu.memory_space<vmem>>, vector<128x64xf32>
    tpu.vector_store %arg3[%c0_3, %c0_4], %2 {strides = array<i32>} : memref<128x64xf32, #tpu.memory_space<vmem>>, vector<128x64xf32>,
    %c128_i32 = arith.constant 128 : i32
    %4 = arith.muli %arg0, %c128_i32 : i32
    %5 = tpu.iota {dimensions = array<i32: 0>} : vector<128x1xi32>
    %6 = vector.broadcast %4 : i32 to vector<128x1xi32>
    %7 = arith.addi %6, %5 : vector<128x1xi32>
    %c128_i32_5 = arith.constant 128 : i32
    %8 = vector.broadcast %c128_i32_5 : i32 to vector<128x1xi32>
    %9 = arith.cmpi slt, %7, %8 : vector<128x1xi32>
    %10 = arith.extui %9 : vector<128x1xi1> to vector<128x1xi32>
    %11 = arith.sitofp %10 : vector<128x1xi32> to vector<128x1xf32>
    %12 = vector.broadcast %11 : vector<128x1xf32> to vector<128x64xf32>
    %13 = arith.mulf %2, %12 : vector<128x64xf32>
    %cst_6 = arith.constant dense<0.000000e+00> : vector<64xf32>
    %14 = vector.multi_reduction <add>, %13, %cst_6 [0] : vector<128x64xf32> to vector<64xf32>
    %15 = vector.shape_cast %14 : vector<64xf32> to vector<1x64xf32>
    %16 = arith.mulf %13, %13 : vector<128x64xf32>
    %cst_7 = arith.constant dense<0.000000e+00> : vector<64xf32>
    %17 = vector.multi_reduction <add>, %16, %cst_7 [0] : vector<128x64xf32> to vector<64xf32>
    %18 = vector.shape_cast %17 : vector<64xf32> to vector<1x64xf32>
    %cst_8 = arith.constant 0.000000e+00 : f32
    %19 = vector.broadcast %cst_8 : f32 to vector<6x64xf32>
    %20 = tpu.concatenate %15, %18, %19 in 0 : vector<1x64xf32>, vector<1x64xf32>, vector<6x64xf32> -> vector<8x64xf32>
    %c0_9 = arith.constant 0 : index
    %c0_10 = arith.constant 0 : index
    %21 = vector.load %arg4[%c0_9, %c0_10] : memref<8x64xf32, #tpu.memory_space<vmem>>, vector<8x64xf32>
    tpu.vector_store %arg4[%c0_9, %c0_10], %20 {strides = array<i32>} : memref<8x64xf32, #tpu.memory_space<vmem>>, vector<8x64xf32>,
    return
  }
  func.func @transform_0(%arg0: i32) -> (i32, i32) {
    %c0_i32 = arith.constant 0 : i32
    %c0_i32_0 = arith.constant 0 : i32
    return %arg0, %c0_i32 : i32, i32
  }
  func.func @transform_1(%arg0: i32) -> (i32, i32) {
    %c0_i32 = arith.constant 0 : i32
    %c0_i32_0 = arith.constant 0 : i32
    %c0_i32_1 = arith.constant 0 : i32
    return %c0_i32, %c0_i32_0 : i32, i32
  }
  func.func @transform_2(%arg0: i32) -> (i32, i32) {
    %c0_i32 = arith.constant 0 : i32
    %c0_i32_0 = arith.constant 0 : i32
    return %arg0, %c0_i32 : i32, i32
  }
  func.func @transform_3(%arg0: i32) -> (i32, i32) {
    %c0_i32 = arith.constant 0 : i32
    %c0_i32_0 = arith.constant 0 : i32
    return %arg0, %c0_i32 : i32, i32
  }
}

module attributes {stable_mosaic.version = 11 : i64} {
  func.func @_conv_stats_kernel(%arg0: i32, %arg1: memref<32x576xbf16, #tpu.memory_space<vmem>>, %arg2: memref<576x128xbf16, #tpu.memory_space<vmem>>, %arg3: memref<32x128xf32, #tpu.memory_space<vmem>>, %arg4: memref<8x128xf32, #tpu.memory_space<vmem>>) attributes {dimension_semantics = [#tpu.dimension_semantics<parallel>], iteration_bounds = array<i64: 1>, scalar_prefetch = 0 : i64, scratch_operands = 0 : i64, tpu.core_type = #tpu.core_type<tc>, window_params = [{transform_indices = @transform_0, window_bounds = array<i64: 32, 576>}, {pipeline_mode = #tpu.pipeline_mode<synchronous>, transform_indices = @transform_1, window_bounds = array<i64: 576, 128>}, {transform_indices = @transform_2, window_bounds = array<i64: 32, 128>}, {transform_indices = @transform_3, window_bounds = array<i64: 8, 128>}]} {
    %c0 = arith.constant 0 : index
    %c0_0 = arith.constant 0 : index
    %0 = vector.load %arg1[%c0, %c0_0] : memref<32x576xbf16, #tpu.memory_space<vmem>>, vector<32x576xbf16>
    %c0_1 = arith.constant 0 : index
    %c0_2 = arith.constant 0 : index
    %1 = vector.load %arg2[%c0_1, %c0_2] : memref<576x128xbf16, #tpu.memory_space<vmem>>, vector<576x128xbf16>
    %cst = arith.constant dense<0.000000e+00> : vector<32x128xf32>
    %2 = tpu.matmul %0, %1, %cst {dimension_numbers = #tpu.dot_dimension_numbers<[1], [0], [0], [1], [0, 0, 1, 1], [], []>} : vector<32x576xbf16>, vector<576x128xbf16>, vector<32x128xf32> -> vector<32x128xf32>
    %c0_3 = arith.constant 0 : index
    %c0_4 = arith.constant 0 : index
    %3 = vector.load %arg3[%c0_3, %c0_4] : memref<32x128xf32, #tpu.memory_space<vmem>>, vector<32x128xf32>
    tpu.vector_store %arg3[%c0_3, %c0_4], %2 {strides = array<i32>} : memref<32x128xf32, #tpu.memory_space<vmem>>, vector<32x128xf32>,
    %c32_i32 = arith.constant 32 : i32
    %4 = arith.muli %arg0, %c32_i32 : i32
    %5 = tpu.iota {dimensions = array<i32: 0>} : vector<32x1xi32>
    %6 = vector.broadcast %4 : i32 to vector<32x1xi32>
    %7 = arith.addi %6, %5 : vector<32x1xi32>
    %c32_i32_5 = arith.constant 32 : i32
    %8 = vector.broadcast %c32_i32_5 : i32 to vector<32x1xi32>
    %9 = arith.cmpi slt, %7, %8 : vector<32x1xi32>
    %10 = arith.extui %9 : vector<32x1xi1> to vector<32x1xi32>
    %11 = arith.sitofp %10 : vector<32x1xi32> to vector<32x1xf32>
    %12 = vector.broadcast %11 : vector<32x1xf32> to vector<32x128xf32>
    %13 = arith.mulf %2, %12 : vector<32x128xf32>
    %cst_6 = arith.constant dense<0.000000e+00> : vector<128xf32>
    %14 = vector.multi_reduction <add>, %13, %cst_6 [0] : vector<32x128xf32> to vector<128xf32>
    %15 = vector.shape_cast %14 : vector<128xf32> to vector<1x128xf32>
    %16 = arith.mulf %13, %13 : vector<32x128xf32>
    %cst_7 = arith.constant dense<0.000000e+00> : vector<128xf32>
    %17 = vector.multi_reduction <add>, %16, %cst_7 [0] : vector<32x128xf32> to vector<128xf32>
    %18 = vector.shape_cast %17 : vector<128xf32> to vector<1x128xf32>
    %cst_8 = arith.constant 0.000000e+00 : f32
    %19 = vector.broadcast %cst_8 : f32 to vector<6x128xf32>
    %20 = tpu.concatenate %15, %18, %19 in 0 : vector<1x128xf32>, vector<1x128xf32>, vector<6x128xf32> -> vector<8x128xf32>
    %c0_9 = arith.constant 0 : index
    %c0_10 = arith.constant 0 : index
    %21 = vector.load %arg4[%c0_9, %c0_10] : memref<8x128xf32, #tpu.memory_space<vmem>>, vector<8x128xf32>
    tpu.vector_store %arg4[%c0_9, %c0_10], %20 {strides = array<i32>} : memref<8x128xf32, #tpu.memory_space<vmem>>, vector<8x128xf32>,
    return
  }
  func.func @transform_0(%arg0: i32) -> (i32, i32) {
    %c0_i32 = arith.constant 0 : i32
    %c0_i32_0 = arith.constant 0 : i32
    return %arg0, %c0_i32 : i32, i32
  }
  func.func @transform_1(%arg0: i32) -> (i32, i32) {
    %c0_i32 = arith.constant 0 : i32
    %c0_i32_0 = arith.constant 0 : i32
    %c0_i32_1 = arith.constant 0 : i32
    return %c0_i32, %c0_i32_0 : i32, i32
  }
  func.func @transform_2(%arg0: i32) -> (i32, i32) {
    %c0_i32 = arith.constant 0 : i32
    %c0_i32_0 = arith.constant 0 : i32
    return %arg0, %c0_i32 : i32, i32
  }
  func.func @transform_3(%arg0: i32) -> (i32, i32) {
    %c0_i32 = arith.constant 0 : i32
    %c0_i32_0 = arith.constant 0 : i32
    return %arg0, %c0_i32 : i32, i32
  }
}

module attributes {stable_mosaic.version = 11 : i64} {
  func.func @_conv_stats_kernel(%arg0: i32, %arg1: memref<32x1152xbf16, #tpu.memory_space<vmem>>, %arg2: memref<1152x128xbf16, #tpu.memory_space<vmem>>, %arg3: memref<32x128xf32, #tpu.memory_space<vmem>>, %arg4: memref<8x128xf32, #tpu.memory_space<vmem>>) attributes {dimension_semantics = [#tpu.dimension_semantics<parallel>], iteration_bounds = array<i64: 1>, scalar_prefetch = 0 : i64, scratch_operands = 0 : i64, tpu.core_type = #tpu.core_type<tc>, window_params = [{transform_indices = @transform_0, window_bounds = array<i64: 32, 1152>}, {pipeline_mode = #tpu.pipeline_mode<synchronous>, transform_indices = @transform_1, window_bounds = array<i64: 1152, 128>}, {transform_indices = @transform_2, window_bounds = array<i64: 32, 128>}, {transform_indices = @transform_3, window_bounds = array<i64: 8, 128>}]} {
    %c0 = arith.constant 0 : index
    %c0_0 = arith.constant 0 : index
    %0 = vector.load %arg1[%c0, %c0_0] : memref<32x1152xbf16, #tpu.memory_space<vmem>>, vector<32x1152xbf16>
    %c0_1 = arith.constant 0 : index
    %c0_2 = arith.constant 0 : index
    %1 = vector.load %arg2[%c0_1, %c0_2] : memref<1152x128xbf16, #tpu.memory_space<vmem>>, vector<1152x128xbf16>
    %cst = arith.constant dense<0.000000e+00> : vector<32x128xf32>
    %2 = tpu.matmul %0, %1, %cst {dimension_numbers = #tpu.dot_dimension_numbers<[1], [0], [0], [1], [0, 0, 1, 1], [], []>} : vector<32x1152xbf16>, vector<1152x128xbf16>, vector<32x128xf32> -> vector<32x128xf32>
    %c0_3 = arith.constant 0 : index
    %c0_4 = arith.constant 0 : index
    %3 = vector.load %arg3[%c0_3, %c0_4] : memref<32x128xf32, #tpu.memory_space<vmem>>, vector<32x128xf32>
    tpu.vector_store %arg3[%c0_3, %c0_4], %2 {strides = array<i32>} : memref<32x128xf32, #tpu.memory_space<vmem>>, vector<32x128xf32>,
    %c32_i32 = arith.constant 32 : i32
    %4 = arith.muli %arg0, %c32_i32 : i32
    %5 = tpu.iota {dimensions = array<i32: 0>} : vector<32x1xi32>
    %6 = vector.broadcast %4 : i32 to vector<32x1xi32>
    %7 = arith.addi %6, %5 : vector<32x1xi32>
    %c32_i32_5 = arith.constant 32 : i32
    %8 = vector.broadcast %c32_i32_5 : i32 to vector<32x1xi32>
    %9 = arith.cmpi slt, %7, %8 : vector<32x1xi32>
    %10 = arith.extui %9 : vector<32x1xi1> to vector<32x1xi32>
    %11 = arith.sitofp %10 : vector<32x1xi32> to vector<32x1xf32>
    %12 = vector.broadcast %11 : vector<32x1xf32> to vector<32x128xf32>
    %13 = arith.mulf %2, %12 : vector<32x128xf32>
    %cst_6 = arith.constant dense<0.000000e+00> : vector<128xf32>
    %14 = vector.multi_reduction <add>, %13, %cst_6 [0] : vector<32x128xf32> to vector<128xf32>
    %15 = vector.shape_cast %14 : vector<128xf32> to vector<1x128xf32>
    %16 = arith.mulf %13, %13 : vector<32x128xf32>
    %cst_7 = arith.constant dense<0.000000e+00> : vector<128xf32>
    %17 = vector.multi_reduction <add>, %16, %cst_7 [0] : vector<32x128xf32> to vector<128xf32>
    %18 = vector.shape_cast %17 : vector<128xf32> to vector<1x128xf32>
    %cst_8 = arith.constant 0.000000e+00 : f32
    %19 = vector.broadcast %cst_8 : f32 to vector<6x128xf32>
    %20 = tpu.concatenate %15, %18, %19 in 0 : vector<1x128xf32>, vector<1x128xf32>, vector<6x128xf32> -> vector<8x128xf32>
    %c0_9 = arith.constant 0 : index
    %c0_10 = arith.constant 0 : index
    %21 = vector.load %arg4[%c0_9, %c0_10] : memref<8x128xf32, #tpu.memory_space<vmem>>, vector<8x128xf32>
    tpu.vector_store %arg4[%c0_9, %c0_10], %20 {strides = array<i32>} : memref<8x128xf32, #tpu.memory_space<vmem>>, vector<8x128xf32>,
    return
  }
  func.func @transform_0(%arg0: i32) -> (i32, i32) {
    %c0_i32 = arith.constant 0 : i32
    %c0_i32_0 = arith.constant 0 : i32
    return %arg0, %c0_i32 : i32, i32
  }
  func.func @transform_1(%arg0: i32) -> (i32, i32) {
    %c0_i32 = arith.constant 0 : i32
    %c0_i32_0 = arith.constant 0 : i32
    %c0_i32_1 = arith.constant 0 : i32
    return %c0_i32, %c0_i32_0 : i32, i32
  }
  func.func @transform_2(%arg0: i32) -> (i32, i32) {
    %c0_i32 = arith.constant 0 : i32
    %c0_i32_0 = arith.constant 0 : i32
    return %arg0, %c0_i32 : i32, i32
  }
  func.func @transform_3(%arg0: i32) -> (i32, i32) {
    %c0_i32 = arith.constant 0 : i32
    %c0_i32_0 = arith.constant 0 : i32
    return %arg0, %c0_i32 : i32, i32
  }
}

module attributes {stable_mosaic.version = 11 : i64} {
  func.func @_conv_stats_kernel(%arg0: i32, %arg1: memref<8x1152xbf16, #tpu.memory_space<vmem>>, %arg2: memref<1152x128xbf16, #tpu.memory_space<vmem>>, %arg3: memref<8x128xf32, #tpu.memory_space<vmem>>, %arg4: memref<8x128xf32, #tpu.memory_space<vmem>>) attributes {dimension_semantics = [#tpu.dimension_semantics<parallel>], iteration_bounds = array<i64: 1>, scalar_prefetch = 0 : i64, scratch_operands = 0 : i64, tpu.core_type = #tpu.core_type<tc>, window_params = [{transform_indices = @transform_0, window_bounds = array<i64: 8, 1152>}, {pipeline_mode = #tpu.pipeline_mode<synchronous>, transform_indices = @transform_1, window_bounds = array<i64: 1152, 128>}, {transform_indices = @transform_2, window_bounds = array<i64: 8, 128>}, {transform_indices = @transform_3, window_bounds = array<i64: 8, 128>}]} {
    %c0 = arith.constant 0 : index
    %c0_0 = arith.constant 0 : index
    %0 = vector.load %arg1[%c0, %c0_0] : memref<8x1152xbf16, #tpu.memory_space<vmem>>, vector<8x1152xbf16>
    %c0_1 = arith.constant 0 : index
    %c0_2 = arith.constant 0 : index
    %1 = vector.load %arg2[%c0_1, %c0_2] : memref<1152x128xbf16, #tpu.memory_space<vmem>>, vector<1152x128xbf16>
    %cst = arith.constant dense<0.000000e+00> : vector<8x128xf32>
    %2 = tpu.matmul %0, %1, %cst {dimension_numbers = #tpu.dot_dimension_numbers<[1], [0], [0], [1], [0, 0, 1, 1], [], []>} : vector<8x1152xbf16>, vector<1152x128xbf16>, vector<8x128xf32> -> vector<8x128xf32>
    %c0_3 = arith.constant 0 : index
    %c0_4 = arith.constant 0 : index
    %3 = vector.load %arg3[%c0_3, %c0_4] : memref<8x128xf32, #tpu.memory_space<vmem>>, vector<8x128xf32>
    tpu.vector_store %arg3[%c0_3, %c0_4], %2 {strides = array<i32>} : memref<8x128xf32, #tpu.memory_space<vmem>>, vector<8x128xf32>,
    %c8_i32 = arith.constant 8 : i32
    %4 = arith.muli %arg0, %c8_i32 : i32
    %5 = tpu.iota {dimensions = array<i32: 0>} : vector<8x1xi32>
    %6 = vector.broadcast %4 : i32 to vector<8x1xi32>
    %7 = arith.addi %6, %5 : vector<8x1xi32>
    %c8_i32_5 = arith.constant 8 : i32
    %8 = vector.broadcast %c8_i32_5 : i32 to vector<8x1xi32>
    %9 = arith.cmpi slt, %7, %8 : vector<8x1xi32>
    %10 = arith.extui %9 : vector<8x1xi1> to vector<8x1xi32>
    %11 = arith.sitofp %10 : vector<8x1xi32> to vector<8x1xf32>
    %12 = vector.broadcast %11 : vector<8x1xf32> to vector<8x128xf32>
    %13 = arith.mulf %2, %12 : vector<8x128xf32>
    %cst_6 = arith.constant dense<0.000000e+00> : vector<128xf32>
    %14 = vector.multi_reduction <add>, %13, %cst_6 [0] : vector<8x128xf32> to vector<128xf32>
    %15 = vector.shape_cast %14 : vector<128xf32> to vector<1x128xf32>
    %16 = arith.mulf %13, %13 : vector<8x128xf32>
    %cst_7 = arith.constant dense<0.000000e+00> : vector<128xf32>
    %17 = vector.multi_reduction <add>, %16, %cst_7 [0] : vector<8x128xf32> to vector<128xf32>
    %18 = vector.shape_cast %17 : vector<128xf32> to vector<1x128xf32>
    %cst_8 = arith.constant 0.000000e+00 : f32
    %19 = vector.broadcast %cst_8 : f32 to vector<6x128xf32>
    %20 = tpu.concatenate %15, %18, %19 in 0 : vector<1x128xf32>, vector<1x128xf32>, vector<6x128xf32> -> vector<8x128xf32>
    %c0_9 = arith.constant 0 : index
    %c0_10 = arith.constant 0 : index
    %21 = vector.load %arg4[%c0_9, %c0_10] : memref<8x128xf32, #tpu.memory_space<vmem>>, vector<8x128xf32>
    tpu.vector_store %arg4[%c0_9, %c0_10], %20 {strides = array<i32>} : memref<8x128xf32, #tpu.memory_space<vmem>>, vector<8x128xf32>,
    return
  }
  func.func @transform_0(%arg0: i32) -> (i32, i32) {
    %c0_i32 = arith.constant 0 : i32
    %c0_i32_0 = arith.constant 0 : i32
    return %arg0, %c0_i32 : i32, i32
  }
  func.func @transform_1(%arg0: i32) -> (i32, i32) {
    %c0_i32 = arith.constant 0 : i32
    %c0_i32_0 = arith.constant 0 : i32
    %c0_i32_1 = arith.constant 0 : i32
    return %c0_i32, %c0_i32_0 : i32, i32
  }
  func.func @transform_2(%arg0: i32) -> (i32, i32) {
    %c0_i32 = arith.constant 0 : i32
    %c0_i32_0 = arith.constant 0 : i32
    return %arg0, %c0_i32 : i32, i32
  }
  func.func @transform_3(%arg0: i32) -> (i32, i32) {
    %c0_i32 = arith.constant 0 : i32
    %c0_i32_0 = arith.constant 0 : i32
    return %arg0, %c0_i32 : i32, i32
  }
}

module attributes {stable_mosaic.version = 11 : i64} {
  func.func @_conv_stats_kernel(%arg0: i32, %arg1: memref<8x1152xbf16, #tpu.memory_space<vmem>>, %arg2: memref<1152x16xbf16, #tpu.memory_space<vmem>>, %arg3: memref<8x16xf32, #tpu.memory_space<vmem>>, %arg4: memref<8x16xf32, #tpu.memory_space<vmem>>) attributes {dimension_semantics = [#tpu.dimension_semantics<parallel>], iteration_bounds = array<i64: 1>, scalar_prefetch = 0 : i64, scratch_operands = 0 : i64, tpu.core_type = #tpu.core_type<tc>, window_params = [{transform_indices = @transform_0, window_bounds = array<i64: 8, 1152>}, {pipeline_mode = #tpu.pipeline_mode<synchronous>, transform_indices = @transform_1, window_bounds = array<i64: 1152, 16>}, {transform_indices = @transform_2, window_bounds = array<i64: 8, 16>}, {transform_indices = @transform_3, window_bounds = array<i64: 8, 16>}]} {
    %c0 = arith.constant 0 : index
    %c0_0 = arith.constant 0 : index
    %0 = vector.load %arg1[%c0, %c0_0] : memref<8x1152xbf16, #tpu.memory_space<vmem>>, vector<8x1152xbf16>
    %c0_1 = arith.constant 0 : index
    %c0_2 = arith.constant 0 : index
    %1 = vector.load %arg2[%c0_1, %c0_2] : memref<1152x16xbf16, #tpu.memory_space<vmem>>, vector<1152x16xbf16>
    %cst = arith.constant dense<0.000000e+00> : vector<8x16xf32>
    %2 = tpu.matmul %0, %1, %cst {dimension_numbers = #tpu.dot_dimension_numbers<[1], [0], [0], [1], [0, 0, 1, 1], [], []>} : vector<8x1152xbf16>, vector<1152x16xbf16>, vector<8x16xf32> -> vector<8x16xf32>
    %c0_3 = arith.constant 0 : index
    %c0_4 = arith.constant 0 : index
    %3 = vector.load %arg3[%c0_3, %c0_4] : memref<8x16xf32, #tpu.memory_space<vmem>>, vector<8x16xf32>
    tpu.vector_store %arg3[%c0_3, %c0_4], %2 {strides = array<i32>} : memref<8x16xf32, #tpu.memory_space<vmem>>, vector<8x16xf32>,
    %c8_i32 = arith.constant 8 : i32
    %4 = arith.muli %arg0, %c8_i32 : i32
    %5 = tpu.iota {dimensions = array<i32: 0>} : vector<8x1xi32>
    %6 = vector.broadcast %4 : i32 to vector<8x1xi32>
    %7 = arith.addi %6, %5 : vector<8x1xi32>
    %c8_i32_5 = arith.constant 8 : i32
    %8 = vector.broadcast %c8_i32_5 : i32 to vector<8x1xi32>
    %9 = arith.cmpi slt, %7, %8 : vector<8x1xi32>
    %10 = arith.extui %9 : vector<8x1xi1> to vector<8x1xi32>
    %11 = arith.sitofp %10 : vector<8x1xi32> to vector<8x1xf32>
    %12 = vector.broadcast %11 : vector<8x1xf32> to vector<8x16xf32>
    %13 = arith.mulf %2, %12 : vector<8x16xf32>
    %cst_6 = arith.constant dense<0.000000e+00> : vector<16xf32>
    %14 = vector.multi_reduction <add>, %13, %cst_6 [0] : vector<8x16xf32> to vector<16xf32>
    %15 = vector.shape_cast %14 : vector<16xf32> to vector<1x16xf32>
    %16 = arith.mulf %13, %13 : vector<8x16xf32>
    %cst_7 = arith.constant dense<0.000000e+00> : vector<16xf32>
    %17 = vector.multi_reduction <add>, %16, %cst_7 [0] : vector<8x16xf32> to vector<16xf32>
    %18 = vector.shape_cast %17 : vector<16xf32> to vector<1x16xf32>
    %cst_8 = arith.constant 0.000000e+00 : f32
    %19 = vector.broadcast %cst_8 : f32 to vector<6x16xf32>
    %20 = tpu.concatenate %15, %18, %19 in 0 : vector<1x16xf32>, vector<1x16xf32>, vector<6x16xf32> -> vector<8x16xf32>
    %c0_9 = arith.constant 0 : index
    %c0_10 = arith.constant 0 : index
    %21 = vector.load %arg4[%c0_9, %c0_10] : memref<8x16xf32, #tpu.memory_space<vmem>>, vector<8x16xf32>
    tpu.vector_store %arg4[%c0_9, %c0_10], %20 {strides = array<i32>} : memref<8x16xf32, #tpu.memory_space<vmem>>, vector<8x16xf32>,
    return
  }
  func.func @transform_0(%arg0: i32) -> (i32, i32) {
    %c0_i32 = arith.constant 0 : i32
    %c0_i32_0 = arith.constant 0 : i32
    return %arg0, %c0_i32 : i32, i32
  }
  func.func @transform_1(%arg0: i32) -> (i32, i32) {
    %c0_i32 = arith.constant 0 : i32
    %c0_i32_0 = arith.constant 0 : i32
    %c0_i32_1 = arith.constant 0 : i32
    return %c0_i32, %c0_i32_0 : i32, i32
  }
  func.func @transform_2(%arg0: i32) -> (i32, i32) {
    %c0_i32 = arith.constant 0 : i32
    %c0_i32_0 = arith.constant 0 : i32
    return %arg0, %c0_i32 : i32, i32
  }
  func.func @transform_3(%arg0: i32) -> (i32, i32) {
    %c0_i32 = arith.constant 0 : i32
    %c0_i32_0 = arith.constant 0 : i32
    return %arg0, %c0_i32 : i32, i32
  }
}

module attributes {stable_mosaic.version = 11 : i64} {
  func.func @_head_kernel(%arg0: memref<2x4x16xf32, #tpu.memory_space<vmem>>, %arg1: memref<1x1x16xf32, #tpu.memory_space<vmem>>, %arg2: memref<1x1x16xf32, #tpu.memory_space<vmem>>, %arg3: memref<1x1x16xf32, #tpu.memory_space<vmem>>, %arg4: memref<1x1xf32, #tpu.memory_space<vmem>>, %arg5: memref<2x1xf32, #tpu.memory_space<vmem>>) attributes {dimension_semantics = [], scalar_prefetch = 0 : i64, scratch_operands = 0 : i64, tpu.core_type = #tpu.core_type<tc>} {
    %c0 = arith.constant 0 : index
    %c0_0 = arith.constant 0 : index
    %c0_1 = arith.constant 0 : index
    %0 = vector.load %arg0[%c0, %c0_0, %c0_1] : memref<2x4x16xf32, #tpu.memory_space<vmem>>, vector<2x4x16xf32>
    %c0_2 = arith.constant 0 : index
    %c0_3 = arith.constant 0 : index
    %c0_4 = arith.constant 0 : index
    %1 = vector.load %arg1[%c0_2, %c0_3, %c0_4] : memref<1x1x16xf32, #tpu.memory_space<vmem>>, vector<1x1x16xf32>
    %2 = vector.broadcast %1 : vector<1x1x16xf32> to vector<2x4x16xf32>
    %3 = arith.subf %0, %2 : vector<2x4x16xf32>
    %c0_5 = arith.constant 0 : index
    %c0_6 = arith.constant 0 : index
    %c0_7 = arith.constant 0 : index
    %4 = vector.load %arg2[%c0_5, %c0_6, %c0_7] : memref<1x1x16xf32, #tpu.memory_space<vmem>>, vector<1x1x16xf32>
    %5 = vector.broadcast %4 : vector<1x1x16xf32> to vector<2x4x16xf32>
    %6 = arith.mulf %3, %5 : vector<2x4x16xf32>
    %c0_8 = arith.constant 0 : index
    %c0_9 = arith.constant 0 : index
    %c0_10 = arith.constant 0 : index
    %7 = vector.load %arg3[%c0_8, %c0_9, %c0_10] : memref<1x1x16xf32, #tpu.memory_space<vmem>>, vector<1x1x16xf32>
    %8 = vector.broadcast %7 : vector<1x1x16xf32> to vector<2x4x16xf32>
    %9 = arith.mulf %6, %8 : vector<2x4x16xf32>
    %cst = arith.constant dense<0.000000e+00> : vector<2x4xf32>
    %10 = vector.multi_reduction <add>, %9, %cst [2] : vector<2x4x16xf32> to vector<2x4xf32>
    %cst_11 = arith.constant dense<0.000000e+00> : vector<2xf32>
    %11 = vector.multi_reduction <add>, %10, %cst_11 [1] : vector<2x4xf32> to vector<2xf32>
    %12 = vector.shape_cast %11 : vector<2xf32> to vector<2x1xf32>
    %cst_12 = arith.constant 2.500000e-01 : f32
    %13 = vector.broadcast %cst_12 : f32 to vector<2x1xf32>
    %14 = arith.mulf %12, %13 : vector<2x1xf32>
    %c0_13 = arith.constant 0 : index
    %c0_14 = arith.constant 0 : index
    %15 = vector.load %arg4[%c0_13, %c0_14] : memref<1x1xf32, #tpu.memory_space<vmem>>, vector<1x1xf32>
    %16 = vector.broadcast %15 : vector<1x1xf32> to vector<2x1xf32>
    %17 = arith.addf %14, %16 : vector<2x1xf32>
    %c0_15 = arith.constant 0 : index
    %c0_16 = arith.constant 0 : index
    %18 = vector.load %arg5[%c0_15, %c0_16] : memref<2x1xf32, #tpu.memory_space<vmem>>, vector<2x1xf32>
    tpu.vector_store %arg5[%c0_15, %c0_16], %17 {strides = array<i32>} : memref<2x1xf32, #tpu.memory_space<vmem>>, vector<2x1xf32>,
    return
  }
}

</mosaic_0001>

<llo_original>
// kernel: tile.38
$region0: #{tile.38}
  #allocation0 [shape = 's32[1]{0}', space=sflag, size = 0x4, scoped, tag = 'scoped memory for tile.38']
  %s0 = inlined_call_operand.vmem [shape: f32[32], index: 0, kind: input, shape index: {}]
  %s1 = inlined_call_operand.vmem [shape: f32[9,32], index: 1, kind: output, shape index: {}]
  // Predicated region
  $region2: #{tile.38} parent=0 // pred_check
    _
  $region3: #{tile.38} parent=0 // pred_check_branch
    %3 = sbr.rel (0) target = $region5
  $region4: #{tile.38} parent=0 // pred_region
    _
  $region5: #{tile.38} parent=0 // pred_fallthru
    _
  %v4 = vld [vmem:[%s0] ss:$0 sm:$0xff]
  %5 = vst [vmem:[%s1] sm:$0xff] %v4
  %s6 = scalar_lea.vmem %s1, 8
  %7 = vst [vmem:[%s6] sm:$0xff] %v4

// kernel: mul.38
$region0: #{mul.38}
  %s0 = inlined_call_operand.vmem [shape: f32[9,32], index: 0, kind: input, shape index: {}]
  %s1 = inlined_call_operand.vmem [shape: f32[288], index: 1, kind: output, shape index: {}]
  $region1: #{mul.38} parent=0
    #allocation0 [shape = 'u8[4096]{0}', space=vmem, size = 0x1000, scoped, tag = 'scoped mem for output reshape']
    %v2 = vld [vmem:[%s0] ss:$4 sm:$0x7]
    %vm3 = vcmask 261120
    %4 = vst.msk [vmem:[#allocation0] sm:$0x7] %vm3, %v2
    %s5 = scalar_lea.vmem %s0, 3
    %s6 = smov 3
    %v7 = vld [vmem:[%s5] ss:$4 sm:%s6]
    %8 = vrot.lane.b32.xlu0 %v7, 96
    %v9 = vpop.permute.xlu0 %8
    %vm10 = vcmask 1048320
    %11 = vst.msk [vmem:[#allocation0] sm:$0x3] %vm10, %v9
    %s12 = scalar_lea.vmem %s0, 2
    %s13 = smov 3
    %v14 = vld [vmem:[%s12] ss:$4 sm:%s13]
    %15 = vrot.lane.b32.xlu0 %v14, 64
    %v16 = vpop.permute.xlu0 %15
    %vm17 = vcmask 785920
    %18 = vst.msk [vmem:[#allocation0] sm:$0x3] %vm17, %v16
    %s19 = scalar_lea.vmem %s0, 1
    %s20 = smov 3
    %v21 = vld [vmem:[%s19] ss:$4 sm:%s20]
    %22 = vrot.lane.b32.xlu0 %v21, 32
    %v23 = vpop.permute.xlu0 %22
    %vm24 = vcmask 523520
    %25 = vst.msk [vmem:[#allocation0] sm:$0x3] %vm24, %v23
    %s27 = sshllo.u32 0, 4
    %v29 = vld [vmem:[#allocation0] sm:%s27]
    %s30 = sshllo.u32 0, 4
    %31 = vst [vmem:[%s1] sm:%s30] %v29

// kernel: discriminator_sr_forward.9
$region0: #{discriminator_sr_forward.9}
  #allocation0 [shape = 'u32[]', space=smem, size = 0x4, offset = 0x4, fixed_abs, tag = 'smem constant byte address 0x4 - core index']
  #allocation1 [shape = 'u32[144,128]{1,0:T(1,128)}', space=vmem, size = 0x12000, scoped, tag = 'internal scratch']
  %s0 = inlined_call_operand.vmem [shape: bf16[512,27], index: 0, kind: input, shape index: {}]
  %s1 = inlined_call_operand.vmem [shape: bf16[27,32], index: 1, kind: input, shape index: {}]
  %s2 = inlined_call_operand.vmem [shape: f32[512,32], index: 2, kind: output, shape index: {0}]
  %s3 = inlined_call_operand.vmem [shape: f32[8,32], index: 3, kind: output, shape index: {1}]
  %4 = xla_tuple %s2, %s3
  %s5 = sld [smem:[#allocation0]]
  $region26: #{discriminator_sr_forward.9} parent=0
    _
  %s7 = ssub.s32 1, %s5
  %s8 = scalar_select 0, %s7, %s5
  // Predicated region
  $region2: #{discriminator_sr_forward.9} parent=0 // pred_check
    _
  $region3: #{discriminator_sr_forward.9} parent=0 // pred_check_branch
    %10 = sbr.rel (0) target = $region5
  $region4: #{discriminator_sr_forward.9} parent=0 // pred_region
    _
  $region5: #{discriminator_sr_forward.9} parent=0 // pred_fallthru
    _
  // Predicated region
  $region6: #{discriminator_sr_forward.9} parent=0 // pred_check
    _
  $region7: #{discriminator_sr_forward.9} parent=0 // pred_check_branch
    %12 = sbr.rel (0) target = $region9
  $region8: #{discriminator_sr_forward.9} parent=0 // pred_region
    _
  $region9: #{discriminator_sr_forward.9} parent=0 // pred_fallthru
    _
  %v14 = vld [vmem:[%s0] sm:$0xf]
  %v15 = vld [vmem:[%s0 + $0x4] sm:$0xf]
  %v16 = vld [vmem:[%s0 + $0x8] sm:$0xf]
  %v17 = vld [vmem:[%s0 + $0xc] sm:$0xf]
  %v18 = vld [vmem:[%s0 + $0x10] sm:$0xf]
  %v19 = vld [vmem:[%s0 + $0x14] sm:$0xf]
  %v20 = vld [vmem:[%s0 + $0x18] sm:$0xf]
  %v21 = vld [vmem:[%s0 + $0x1c] sm:$0xf]
  %v22 = vld [vmem:[%s0 + $0x20] sm:$0xf]
  %v23 = vld [vmem:[%s0 + $0x24] sm:$0xf]
  %v24 = vld [vmem:[%s0 + $0x28] sm:$0xf]
  %v25 = vld [vmem:[%s0 + $0x2c] sm:$0xf]
  %v26 = vld [vmem:[%s0 + $0x30] sm:$0xf]
  %v27 = vld [vmem:[%s0 + $0x34] sm:$0xf]
  %v28 = vld [vmem:[%s0 + $0x38] sm:$0xf]
  %v29 = vld [vmem:[%s0 + $0x3c] sm:$0xf]
  %v30 = vld [vmem:[%s0 + $0x40] sm:$0xf]
  %v31 = vld [vmem:[%s0 + $0x44] sm:$0xf]
  %v32 = vld [vmem:[%s0 + $0x48] sm:$0xf]
  %v33 = vld [vmem:[%s0 + $0x4c] sm:$0xf]
  %v34 = vld [vmem:[%s0 + $0x50] sm:$0xf]
  %v35 = vld [vmem:[%s0 + $0x54] sm:$0xf]
  %v36 = vld [vmem:[%s0 + $0x58] sm:$0xf]
  %v37 = vld [vmem:[%s0 + $0x5c] sm:$0xf]
  %v38 = vld [vmem:[%s0 + $0x60] sm:$0xf]
  %v39 = vld [vmem:[%s0 + $0x64] sm:$0xf]
  %v40 = vld [vmem:[%s0 + $0x68] sm:$0xf]
  %v41 = vld [vmem:[%s0 + $0x6c] sm:$0xf]
  %v42 = vld [vmem:[%s0 + $0x70] sm:$0xf]
  %v43 = vld [vmem:[%s0 + $0x74] sm:$0xf]
  %v44 = vld [vmem:[%s0 + $0x78] sm:$0xf]
  %v45 = vld [vmem:[%s0 + $0x7c] sm:$0xf]
  %v46 = vld [vmem:[%s0 + $0x80] sm:$0xf]
  %v47 = vld [vmem:[%s0 + $0x84] sm:$0xf]
  %v48 = vld [vmem:[%s0 + $0x88] sm:$0xf]
  %v49 = vld [vmem:[%s0 + $0x8c] sm:$0xf]
  %v50 = vld [vmem:[%s0 + $0x90] sm:$0xf]
  %v51 = vld [vmem:[%s0 + $0x94] sm:$0xf]
  %v52 = vld [vmem:[%s0 + $0x98] sm:$0xf]
  %v53 = vld [vmem:[%s0 + $0x9c] sm:$0xf]
  %v54 = vld [vmem:[%s0 + $0xa0] sm:$0xf]
  %v55 = vld [vmem:[%s0 + $0xa4] sm:$0xf]
  %v56 = vld [vmem:[%s0 + $0xa8] sm:$0xf]
  %v57 = vld [vmem:[%s0 + $0xac] sm:$0xf]
  %v58 = vld [vmem:[%s0 + $0xb0] sm:$0xf]
  %v59 = vld [vmem:[%s0 + $0xb4] sm:$0xf]
  %v60 = vld [vmem:[%s0 + $0xb8] sm:$0xf]
  %v61 = vld [vmem:[%s0 + $0xbc] sm:$0xf]
  %v62 = vld [vmem:[%s0 + $0xc0] sm:$0xf]
  %v63 = vld [vmem:[%s0 + $0xc4] sm:$0xf]
  %v64 = vld [vmem:[%s0 + $0xc8] sm:$0xf]
  %v65 = vld [vmem:[%s0 + $0xcc] sm:$0xf]
  %v66 = vld [vmem:[%s0 + $0xd0] sm:$0xf]
  %v67 = vld [vmem:[%s0 + $0xd4] sm:$0xf]
  %v68 = vld [vmem:[%s0 + $0xd8] sm:$0xf]
  %v69 = vld [vmem:[%s0 + $0xdc] sm:$0xf]
  %v70 = vld [vmem:[%s0 + $0xe0] sm:$0xf]
  %v71 = vld [vmem:[%s0 + $0xe4] sm:$0xf]
  %v72 = vld [vmem:[%s0 + $0xe8] sm:$0xf]
  %v73 = vld [vmem:[%s0 + $0xec] sm:$0xf]
  %v74 = vld [vmem:[%s0 + $0xf0] sm:$0xf]
  %v75 = vld [vmem:[%s0 + $0xf4] sm:$0xf]
  %v76 = vld [vmem:[%s0 + $0xf8] sm:$0xf]
  %v77 = vld [vmem:[%s0 + $0xfc] sm:$0xf]
  %v78 = vld [vmem:[%s1] sm:$0xf]
  %v79 = vld [vmem:[%s1 + $0x4] sm:$0xf]
  %v80 = vld [vmem:[%s1 + $0x8] sm:$0xf]
  %v81 = vld [vmem:[%s1 + $0xc] sm:$0x3]
  %v146 = vunpack.c.l.b16 %v14
  %v147 = vunpack.c.l.b16 %v15
  %v148 = vunpack.c.l.b16 %v16
  %v149 = vunpack.c.l.b16 %v17
  %v150 = vunpack.c.l.b16 %v18
  %v151 = vunpack.c.l.b16 %v19
  %v152 = vunpack.c.l.b16 %v20
  %v153 = vunpack.c.l.b16 %v21
  %v154 = vunpack.c.l.b16 %v22
  %v155 = vunpack.c.l.b16 %v23
  %v156 = vunpack.c.l.b16 %v24
  %v157 = vunpack.c.l.b16 %v25
  %v158 = vunpack.c.l.b16 %v26
  %v159 = vunpack.c.l.b16 %v27
  %v160 = vunpack.c.l.b16 %v28
  %v161 = vunpack.c.l.b16 %v29
  %v162 = vunpack.c.l.b16 %v30
  %v163 = vunpack.c.l.b16 %v31
  %v164 = vunpack.c.l.b16 %v32
  %v165 = vunpack.c.l.b16 %v33
  %v166 = vunpack.c.l.b16 %v34
  %v167 = vunpack.c.l.b16 %v35
  %v168 = vunpack.c.l.b16 %v36
  %v169 = vunpack.c.l.b16 %v37
  %v170 = vunpack.c.l.b16 %v38
  %v171 = vunpack.c.l.b16 %v39
  %v172 = vunpack.c.l.b16 %v40
  %v173 = vunpack.c.l.b16 %v41
  %v174 = vunpack.c.l.b16 %v42
  %v175 = vunpack.c.l.b16 %v43
  %v176 = vunpack.c.l.b16 %v44
  %v177 = vunpack.c.l.b16 %v45
  %v178 = vunpack.c.l.b16 %v46
  %v179 = vunpack.c.l.b16 %v47
  %v180 = vunpack.c.l.b16 %v48
  %v181 = vunpack.c.l.b16 %v49
  %v182 = vunpack.c.l.b16 %v50
  %v183 = vunpack.c.l.b16 %v51
  %v184 = vunpack.c.l.b16 %v52
  %v185 = vunpack.c.l.b16 %v53
  %v186 = vunpack.c.l.b16 %v54
  %v187 = vunpack.c.l.b16 %v55
  %v188 = vunpack.c.l.b16 %v56
  %v189 = vunpack.c.l.b16 %v57
  %v190 = vunpack.c.l.b16 %v58
  %v191 = vunpack.c.l.b16 %v59
  %v192 = vunpack.c.l.b16 %v60
  %v193 = vunpack.c.l.b16 %v61
  %v194 = vunpack.c.l.b16 %v62
  %v195 = vunpack.c.l.b16 %v63
  %v196 = vunpack.c.l.b16 %v64
  %v197 = vunpack.c.l.b16 %v65
  %v198 = vunpack.c.l.b16 %v66
  %v199 = vunpack.c.l.b16 %v67
  %v200 = vunpack.c.l.b16 %v68
  %v201 = vunpack.c.l.b16 %v69
  %v202 = vunpack.c.l.b16 %v70
  %v203 = vunpack.c.l.b16 %v71
  %v204 = vunpack.c.l.b16 %v72
  %v205 = vunpack.c.l.b16 %v73
  %v206 = vunpack.c.l.b16 %v74
  %v207 = vunpack.c.l.b16 %v75
  %v208 = vunpack.c.l.b16 %v76
  %v209 = vunpack.c.l.b16 %v77
  %v210 = vpack.c.b16 %v147, %v146
  %v211 = vpack.c.b16 %v149, %v148
  %v212 = vpack.c.b16 %v151, %v150
  %v213 = vpack.c.b16 %v153, %v152
  %v214 = vpack.c.b16 %v155, %v154
  %v215 = vpack.c.b16 %v157, %v156
  %v216 = vpack.c.b16 %v159, %v158
  %v217 = vpack.c.b16 %v161, %v160
  %v218 = vpack.c.b16 %v163, %v162
  %v219 = vpack.c.b16 %v165, %v164
  %v220 = vpack.c.b16 %v167, %v166
  %v221 = vpack.c.b16 %v169, %v168
  %v222 = vpack.c.b16 %v171, %v170
  %v223 = vpack.c.b16 %v173, %v172
  %v224 = vpack.c.b16 %v175, %v174
  %v225 = vpack.c.b16 %v177, %v176
  %v226 = vpack.c.b16 %v179, %v178
  %v227 = vpack.c.b16 %v181, %v180
  %v228 = vpack.c.b16 %v183, %v182
  %v229 = vpack.c.b16 %v185, %v184
  %v230 = vpack.c.b16 %v187, %v186
  %v231 = vpack.c.b16 %v189, %v188
  %v232 = vpack.c.b16 %v191, %v190
  %v233 = vpack.c.b16 %v193, %v192
  %v234 = vpack.c.b16 %v195, %v194
  %v235 = vpack.c.b16 %v197, %v196
  %v236 = vpack.c.b16 %v199, %v198
  %v237 = vpack.c.b16 %v201, %v200
  %v238 = vpack.c.b16 %v203, %v202
  %v239 = vpack.c.b16 %v205, %v204
  %v240 = vpack.c.b16 %v207, %v206
  %v241 = vpack.c.b16 %v209, %v208
  %v246 = vunpack.c.l.b16 %v78
  %v247 = vunpack.c.l.b16 %v79
  %v248 = vunpack.c.l.b16 %v80
  %v249 = vunpack.c.l.b16 %v81
  %v250 = vpack.c.b16 %v247, %v246
  %v251 = vpack.c.b16 %v249, %v248
  %vm253 = vcmask 220160
  %v255 = vsel %vm253, %v210, 0
  %v258 = vsel %vm253, %v211, 0
  %v261 = vsel %vm253, %v212, 0
  %v264 = vsel %vm253, %v213, 0
  %v267 = vsel %vm253, %v214, 0
  %v270 = vsel %vm253, %v215, 0
  %v273 = vsel %vm253, %v216, 0
  %v276 = vsel %vm253, %v217, 0
  %v279 = vsel %vm253, %v218, 0
  %v282 = vsel %vm253, %v219, 0
  %v285 = vsel %vm253, %v220, 0
  %v288 = vsel %vm253, %v221, 0
  %v291 = vsel %vm253, %v222, 0
  %v294 = vsel %vm253, %v223, 0
  %v297 = vsel %vm253, %v224, 0
  %v300 = vsel %vm253, %v225, 0
  %v303 = vsel %vm253, %v226, 0
  %v306 = vsel %vm253, %v227, 0
  %v309 = vsel %vm253, %v228, 0
  %v312 = vsel %vm253, %v229, 0
  %v315 = vsel %vm253, %v230, 0
  %v318 = vsel %vm253, %v231, 0
  %v321 = vsel %vm253, %v232, 0
  %v324 = vsel %vm253, %v233, 0
  %v327 = vsel %vm253, %v234, 0
  %v330 = vsel %vm253, %v235, 0
  %v333 = vsel %vm253, %v236, 0
  %v336 = vsel %vm253, %v237, 0
  %v339 = vsel %vm253, %v238, 0
  %v342 = vsel %vm253, %v239, 0
  %v345 = vsel %vm253, %v240, 0
  %v348 = vsel %vm253, %v241, 0
  %vm350 = vcmask 1044480
  %vm351 = vcmask 1045504
  %v352 = vsel %vm350, 4294967295, 65535
  %v353 = vsel %vm351, %v352, 0
  %v355 = vand.u32 %v251, %v353
  %357 = vmatprep.subr.bf16.mxu0 0
  %358 = vmatpush1.bf16.msra.mxu0 %v250
  %359 = vmatprep.subr.bf16.mxu0 0
  %360 = vmatpush1.bf16.msra.mxu0 %v355
  %361 = vmatprep.subr.bf16.mxu0 0
  %362 = vmatpush1.bf16.msra.mxu0 0
  %363 = vmatprep.subr.bf16.mxu0 0
  %364 = vmatpush1.bf16.msra.mxu0 0
  %365 = vmatprep.subr.bf16.mxu0 0
  %366 = vmatpush1.bf16.msra.mxu0 0
  %367 = vmatprep.subr.bf16.mxu0 0
  %368 = vmatpush1.bf16.msra.mxu0 0
  %369 = vmatprep.subr.bf16.mxu0 0
  %370 = vmatpush1.bf16.msra.mxu0 0
  %371 = vmatprep.subr.bf16.mxu0 0
  %372 = vmatpush1.bf16.msra.mxu0 0
  %373 = vmatprep.subr.bf16.mxu0 0
  %374 = vmatpush1.bf16.msra.mxu0 0
  %375 = vmatprep.subr.bf16.mxu0 0
  %376 = vmatpush1.bf16.msra.mxu0 0
  %377 = vmatprep.subr.bf16.mxu0 0
  %378 = vmatpush1.bf16.msra.mxu0 0
  %379 = vmatprep.subr.bf16.mxu0 0
  %380 = vmatpush1.bf16.msra.mxu0 0
  %381 = vmatprep.subr.bf16.mxu0 0
  %382 = vmatpush1.bf16.msra.mxu0 0
  %383 = vmatprep.subr.bf16.mxu0 0
  %384 = vmatpush1.bf16.msra.mxu0 0
  %385 = vmatprep.subr.bf16.mxu0 0
  %386 = vmatpush1.bf16.msra.mxu0 0
  %387 = vmatprep.subr.bf16.mxu0 0
  %388 = vmatpush1.bf16.msra.mxu0 0
  %389 = vmatprep.mubr.bf16.mxu0 0
  %390 = vmatmul.mubr.bf16.gmra.mrb[0].mxu0 %v255
  %v391 = vpop.f32.mrb[0].mxu0
  %v392 = vadd.f32 0.0, %v391
  %v393 = vpop.f32.mrb[0].mxu0
  %v394 = vpop.f32.mrb[0].mxu0
  %v395 = vadd.f32 0.0, %v394
  %v396 = vpop.f32.mrb[0].mxu0
  %397 = vmatprep.mubr.bf16.mxu0 0
  %398 = vmatmul.mubr.bf16.gmra.mrb[0].mxu0 %v258
  %v399 = vpop.f32.mrb[0].mxu0
  %v400 = vadd.f32 0.0, %v399
  %v401 = vpop.f32.mrb[0].mxu0
  %v402 = vpop.f32.mrb[0].mxu0
  %v403 = vadd.f32 0.0, %v402
  %v404 = vpop.f32.mrb[0].mxu0
  %405 = vmatprep.mubr.bf16.mxu0 0
  %406 = vmatmul.mubr.bf16.gmra.mrb[0].mxu0 %v261
  %v407 = vpop.f32.mrb[0].mxu0
  %v408 = vadd.f32 0.0, %v407
  %v409 = vpop.f32.mrb[0].mxu0
  %v410 = vpop.f32.mrb[0].mxu0
  %v411 = vadd.f32 0.0, %v410
  %v412 = vpop.f32.mrb[0].mxu0
  %413 = vmatprep.mubr.bf16.mxu0 0
  %414 = vmatmul.mubr.bf16.gmra.mrb[0].mxu0 %v264
  %v415 = vpop.f32.mrb[0].mxu0
  %v416 = vadd.f32 0.0, %v415
  %v417 = vpop.f32.mrb[0].mxu0
  %v418 = vpop.f32.mrb[0].mxu0
  %v419 = vadd.f32 0.0, %v418
  %v420 = vpop.f32.mrb[0].mxu0
  %421 = vmatprep.mubr.bf16.mxu0 0
  %422 = vmatmul.mubr.bf16.gmra.mrb[0].mxu0 %v267
  %v423 = vpop.f32.mrb[0].mxu0
  %v424 = vadd.f32 0.0, %v423
  %v425 = vpop.f32.mrb[0].mxu0
  %v426 = vpop.f32.mrb[0].mxu0
  %v427 = vadd.f32 0.0, %v426
  %v428 = vpop.f32.mrb[0].mxu0
  %429 = vmatprep.mubr.bf16.mxu0 0
  %430 = vmatmul.mubr.bf16.gmra.mrb[0].mxu0 %v270
  %v431 = vpop.f32.mrb[0].mxu0
  %v432 = vadd.f32 0.0, %v431
  %v433 = vpop.f32.mrb[0].mxu0
  %v434 = vpop.f32.mrb[0].mxu0
  %v435 = vadd.f32 0.0, %v434
  %v436 = vpop.f32.mrb[0].mxu0
  %437 = vmatprep.mubr.bf16.mxu0 0
  %438 = vmatmul.mubr.bf16.gmra.mrb[0].mxu0 %v273
  %v439 = vpop.f32.mrb[0].mxu0
  %v440 = vadd.f32 0.0, %v439
  %v441 = vpop.f32.mrb[0].mxu0
  %v442 = vpop.f32.mrb[0].mxu0
  %v443 = vadd.f32 0.0, %v442
  %v444 = vpop.f32.mrb[0].mxu0
  %445 = vmatprep.mubr.bf16.mxu0 0
  %446 = vmatmul.mubr.bf16.gmra.mrb[0].mxu0 %v276
  %v447 = vpop.f32.mrb[0].mxu0
  %v448 = vadd.f32 0.0, %v447
  %v449 = vpop.f32.mrb[0].mxu0
  %v450 = vpop.f32.mrb[0].mxu0
  %v451 = vadd.f32 0.0, %v450
  %v452 = vpop.f32.mrb[0].mxu0
  %453 = vmatprep.mubr.bf16.mxu0 0
  %454 = vmatmul.mubr.bf16.gmra.mrb[0].mxu0 %v279
  %v455 = vpop.f32.mrb[0].mxu0
  %v456 = vadd.f32 0.0, %v455
  %v457 = vpop.f32.mrb[0].mxu0
  %v458 = vpop.f32.mrb[0].mxu0
  %v459 = vadd.f32 0.0, %v458
  %v460 = vpop.f32.mrb[0].mxu0
  %461 = vmatprep.mubr.bf16.mxu0 0
  %462 = vmatmul.mubr.bf16.gmra.mrb[0].mxu0 %v282
  %v463 = vpop.f32.mrb[0].mxu0
  %v464 = vadd.f32 0.0, %v463
  %v465 = vpop.f32.mrb[0].mxu0
  %v466 = vpop.f32.mrb[0].mxu0
  %v467 = vadd.f32 0.0, %v466
  %v468 = vpop.f32.mrb[0].mxu0
  %469 = vmatprep.mubr.bf16.mxu0 0
  %470 = vmatmul.mubr.bf16.gmra.mrb[0].mxu0 %v285
  %v471 = vpop.f32.mrb[0].mxu0
  %v472 = vadd.f32 0.0, %v471
  %v473 = vpop.f32.mrb[0].mxu0
  %v474 = vpop.f32.mrb[0].mxu0
  %v475 = vadd.f32 0.0, %v474
  %v476 = vpop.f32.mrb[0].mxu0
  %477 = vmatprep.mubr.bf16.mxu0 0
  %478 = vmatmul.mubr.bf16.gmra.mrb[0].mxu0 %v288
  %v479 = vpop.f32.mrb[0].mxu0
  %v480 = vadd.f32 0.0, %v479
  %v481 = vpop.f32.mrb[0].mxu0
  %v482 = vpop.f32.mrb[0].mxu0
  %v483 = vadd.f32 0.0, %v482
  %v484 = vpop.f32.mrb[0].mxu0
  %485 = vmatprep.mubr.bf16.mxu0 0
  %486 = vmatmul.mubr.bf16.gmra.mrb[0].mxu0 %v291
  %v487 = vpop.f32.mrb[0].mxu0
  %v488 = vadd.f32 0.0, %v487
  %v489 = vpop.f32.mrb[0].mxu0
  %v490 = vpop.f32.mrb[0].mxu0
  %v491 = vadd.f32 0.0, %v490
  %v492 = vpop.f32.mrb[0].mxu0
  %493 = vmatprep.mubr.bf16.mxu0 0
  %494 = vmatmul.mubr.bf16.gmra.mrb[0].mxu0 %v294
  %v495 = vpop.f32.mrb[0].mxu0
  %v496 = vadd.f32 0.0, %v495
  %v497 = vpop.f32.mrb[0].mxu0
  %v498 = vpop.f32.mrb[0].mxu0
  %v499 = vadd.f32 0.0, %v498
  %v500 = vpop.f32.mrb[0].mxu0
  %501 = vmatprep.mubr.bf16.mxu0 0
  %502 = vmatmul.mubr.bf16.gmra.mrb[0].mxu0 %v297
  %v503 = vpop.f32.mrb[0].mxu0
  %v504 = vadd.f32 0.0, %v503
  %v505 = vpop.f32.mrb[0].mxu0
  %v506 = vpop.f32.mrb[0].mxu0
  %v507 = vadd.f32 0.0, %v506
  %v508 = vpop.f32.mrb[0].mxu0
  %509 = vmatprep.mubr.bf16.mxu0 0
  %510 = vmatmul.mubr.bf16.gmra.mrb[0].mxu0 %v300
  %v511 = vpop.f32.mrb[0].mxu0
  %v512 = vadd.f32 0.0, %v511
  %v513 = vpop.f32.mrb[0].mxu0
  %v514 = vpop.f32.mrb[0].mxu0
  %v515 = vadd.f32 0.0, %v514
  %v516 = vpop.f32.mrb[0].mxu0
  %517 = vmatprep.mubr.bf16.mxu0 0
  %518 = vmatmul.mubr.bf16.gmra.mrb[0].mxu0 %v303
  %v519 = vpop.f32.mrb[0].mxu0
  %v520 = vadd.f32 0.0, %v519
  %v521 = vpop.f32.mrb[0].mxu0
  %v522 = vpop.f32.mrb[0].mxu0
  %v523 = vadd.f32 0.0, %v522
  %v524 = vpop.f32.mrb[0].mxu0
  %525 = vmatprep.mubr.bf16.mxu0 0
  %526 = vmatmul.mubr.bf16.gmra.mrb[0].mxu0 %v306
  %v527 = vpop.f32.mrb[0].mxu0
  %v528 = vadd.f32 0.0, %v527
  %v529 = vpop.f32.mrb[0].mxu0
  %v530 = vpop.f32.mrb[0].mxu0
  %v531 = vadd.f32 0.0, %v530
  %v532 = vpop.f32.mrb[0].mxu0
  %533 = vmatprep.mubr.bf16.mxu0 0
  %534 = vmatmul.mubr.bf16.gmra.mrb[0].mxu0 %v309
  %v535 = vpop.f32.mrb[0].mxu0
  %v536 = vadd.f32 0.0, %v535
  %v537 = vpop.f32.mrb[0].mxu0
  %v538 = vpop.f32.mrb[0].mxu0
  %v539 = vadd.f32 0.0, %v538
  %v540 = vpop.f32.mrb[0].mxu0
  %541 = vmatprep.mubr.bf16.mxu0 0
  %542 = vmatmul.mubr.bf16.gmra.mrb[0].mxu0 %v312
  %v543 = vpop.f32.mrb[0].mxu0
  %v544 = vadd.f32 0.0, %v543
  %v545 = vpop.f32.mrb[0].mxu0
  %v546 = vpop.f32.mrb[0].mxu0
  %v547 = vadd.f32 0.0, %v546
  %v548 = vpop.f32.mrb[0].mxu0
  %549 = vmatprep.mubr.bf16.mxu0 0
  %550 = vmatmul.mubr.bf16.gmra.mrb[0].mxu0 %v315
  %v551 = vpop.f32.mrb[0].mxu0
  %v552 = vadd.f32 0.0, %v551
  %v553 = vpop.f32.mrb[0].mxu0
  %v554 = vpop.f32.mrb[0].mxu0
  %v555 = vadd.f32 0.0, %v554
  %v556 = vpop.f32.mrb[0].mxu0
  %557 = vmatprep.mubr.bf16.mxu0 0
  %558 = vmatmul.mubr.bf16.gmra.mrb[0].mxu0 %v318
  %v559 = vpop.f32.mrb[0].mxu0
  %v560 = vadd.f32 0.0, %v559
  %v561 = vpop.f32.mrb[0].mxu0
  %v562 = vpop.f32.mrb[0].mxu0
  %v563 = vadd.f32 0.0, %v562
  %v564 = vpop.f32.mrb[0].mxu0
  %565 = vmatprep.mubr.bf16.mxu0 0
  %566 = vmatmul.mubr.bf16.gmra.mrb[0].mxu0 %v321
  %v567 = vpop.f32.mrb[0].mxu0
  %v568 = vadd.f32 0.0, %v567
  %v569 = vpop.f32.mrb[0].mxu0
  %v570 = vpop.f32.mrb[0].mxu0
  %v571 = vadd.f32 0.0, %v570
  %v572 = vpop.f32.mrb[0].mxu0
  %573 = vmatprep.mubr.bf16.mxu0 0
  %574 = vmatmul.mubr.bf16.gmra.mrb[0].mxu0 %v324
  %v575 = vpop.f32.mrb[0].mxu0
  %v576 = vadd.f32 0.0, %v575
  %v577 = vpop.f32.mrb[0].mxu0
  %v578 = vpop.f32.mrb[0].mxu0
  %v579 = vadd.f32 0.0, %v578
  %v580 = vpop.f32.mrb[0].mxu0
  %581 = vmatprep.mubr.bf16.mxu0 0
  %582 = vmatmul.mubr.bf16.gmra.mrb[0].mxu0 %v327
  %v583 = vpop.f32.mrb[0].mxu0
  %v584 = vadd.f32 0.0, %v583
  %v585 = vpop.f32.mrb[0].mxu0
  %v586 = vpop.f32.mrb[0].mxu0
  %v587 = vadd.f32 0.0, %v586
  %v588 = vpop.f32.mrb[0].mxu0
  %589 = vmatprep.mubr.bf16.mxu0 0
  %590 = vmatmul.mubr.bf16.gmra.mrb[0].mxu0 %v330
  %v591 = vpop.f32.mrb[0].mxu0
  %v592 = vadd.f32 0.0, %v591
  %v593 = vpop.f32.mrb[0].mxu0
  %v594 = vpop.f32.mrb[0].mxu0
  %v595 = vadd.f32 0.0, %v594
  %v596 = vpop.f32.mrb[0].mxu0
  %597 = vmatprep.mubr.bf16.mxu0 0
  %598 = vmatmul.mubr.bf16.gmra.mrb[0].mxu0 %v333
  %v599 = vpop.f32.mrb[0].mxu0
  %v600 = vadd.f32 0.0, %v599
  %v601 = vpop.f32.mrb[0].mxu0
  %v602 = vpop.f32.mrb[0].mxu0
  %v603 = vadd.f32 0.0, %v602
  %v604 = vpop.f32.mrb[0].mxu0
  %605 = vmatprep.mubr.bf16.mxu0 0
  %606 = vmatmul.mubr.bf16.gmra.mrb[0].mxu0 %v336
  %v607 = vpop.f32.mrb[0].mxu0
  %v608 = vadd.f32 0.0, %v607
  %v609 = vpop.f32.mrb[0].mxu0
  %v610 = vpop.f32.mrb[0].mxu0
  %v611 = vadd.f32 0.0, %v610
  %v612 = vpop.f32.mrb[0].mxu0
  %613 = vmatprep.mubr.bf16.mxu0 0
  %614 = vmatmul.mubr.bf16.gmra.mrb[0].mxu0 %v339
  %v615 = vpop.f32.mrb[0].mxu0
  %v616 = vadd.f32 0.0, %v615
  %v617 = vpop.f32.mrb[0].mxu0
  %v618 = vpop.f32.mrb[0].mxu0
  %v619 = vadd.f32 0.0, %v618
  %v620 = vpop.f32.mrb[0].mxu0
  %621 = vmatprep.mubr.bf16.mxu0 0
  %622 = vmatmul.mubr.bf16.gmra.mrb[0].mxu0 %v342
  %v623 = vpop.f32.mrb[0].mxu0
  %v624 = vadd.f32 0.0, %v623
  %v625 = vpop.f32.mrb[0].mxu0
  %v626 = vpop.f32.mrb[0].mxu0
  %v627 = vadd.f32 0.0, %v626
  %v628 = vpop.f32.mrb[0].mxu0
  %629 = vmatprep.mubr.bf16.mxu0 0
  %630 = vmatmul.mubr.bf16.gmra.mrb[0].mxu0 %v345
  %v631 = vpop.f32.mrb[0].mxu0
  %v632 = vadd.f32 0.0, %v631
  %v633 = vpop.f32.mrb[0].mxu0
  %v634 = vpop.f32.mrb[0].mxu0
  %v635 = vadd.f32 0.0, %v634
  %v636 = vpop.f32.mrb[0].mxu0
  %637 = vmatprep.mubr.bf16.mxu0 0
  %638 = vmatmul.mubr.bf16.gmra.mrb[0].mxu0 %v348
  %v639 = vpop.f32.mrb[0].mxu0
  %v640 = vadd.f32 0.0, %v639
  %v641 = vpop.f32.mrb[0].mxu0
  %v642 = vpop.f32.mrb[0].mxu0
  %v643 = vadd.f32 0.0, %v642
  %v644 = vpop.f32.mrb[0].mxu0
  %645 = vdwg.mxu0
  %vm646 = vcmask 261120
  %647 = vst.msk [vmem:[%s2] sm:$0xff] %vm646, %v392
  %648 = vst.msk [vmem:[%s2 + $0x8] sm:$0xff] %vm646, %v395
  %649 = vst.msk [vmem:[%s2 + $0x10] sm:$0xff] %vm646, %v400
  %650 = vst.msk [vmem:[%s2 + $0x18] sm:$0xff] %vm646, %v403
  %651 = vst.msk [vmem:[%s2 + $0x20] sm:$0xff] %vm646, %v408
  %652 = vst.msk [vmem:[%s2 + $0x28] sm:$0xff] %vm646, %v411
  %653 = vst.msk [vmem:[%s2 + $0x30] sm:$0xff] %vm646, %v416
  %654 = vst.msk [vmem:[%s2 + $0x38] sm:$0xff] %vm646, %v419
  %655 = vst.msk [vmem:[%s2 + $0x40] sm:$0xff] %vm646, %v424
  %656 = vst.msk [vmem:[%s2 + $0x48] sm:$0xff] %vm646, %v427
  %657 = vst.msk [vmem:[%s2 + $0x50] sm:$0xff] %vm646, %v432
  %658 = vst.msk [vmem:[%s2 + $0x58] sm:$0xff] %vm646, %v435
  %659 = vst.msk [vmem:[%s2 + $0x60] sm:$0xff] %vm646, %v440
  %660 = vst.msk [vmem:[%s2 + $0x68] sm:$0xff] %vm646, %v443
  %661 = vst.msk [vmem:[%s2 + $0x70] sm:$0xff] %vm646, %v448
  %662 = vst.msk [vmem:[%s2 + $0x78] sm:$0xff] %vm646, %v451
  %663 = vst.msk [vmem:[%s2 + $0x80] sm:$0xff] %vm646, %v456
  %664 = vst.msk [vmem:[%s2 + $0x88] sm:$0xff] %vm646, %v459
  %665 = vst.msk [vmem:[%s2 + $0x90] sm:$0xff] %vm646, %v464
  %666 = vst.msk [vmem:[%s2 + $0x98] sm:$0xff] %vm646, %v467
  %667 = vst.msk [vmem:[%s2 + $0xa0] sm:$0xff] %vm646, %v472
  %668 = vst.msk [vmem:[%s2 + $0xa8] sm:$0xff] %vm646, %v475
  %669 = vst.msk [vmem:[%s2 + $0xb0] sm:$0xff] %vm646, %v480
  %670 = vst.msk [vmem:[%s2 + $0xb8] sm:$0xff] %vm646, %v483
  %671 = vst.msk [vmem:[%s2 + $0xc0] sm:$0xff] %vm646, %v488
  %672 = vst.msk [vmem:[%s2 + $0xc8] sm:$0xff] %vm646, %v491
  %673 = vst.msk [vmem:[%s2 + $0xd0] sm:$0xff] %vm646, %v496
  %674 = vst.msk [vmem:[%s2 + $0xd8] sm:$0xff] %vm646, %v499
  %675 = vst.msk [vmem:[%s2 + $0xe0] sm:$0xff] %vm646, %v504
  %676 = vst.msk [vmem:[%s2 + $0xe8] sm:$0xff] %vm646, %v507
  %677 = vst.msk [vmem:[%s2 + $0xf0] sm:$0xff] %vm646, %v512
  %678 = vst.msk [vmem:[%s2 + $0xf8] sm:$0xff] %vm646, %v515
  %679 = vst.msk [vmem:[%s2 + $0x100] sm:$0xff] %vm646, %v520
  %680 = vst.msk [vmem:[%s2 + $0x108] sm:$0xff] %vm646, %v523
  %681 = vst.msk [vmem:[%s2 + $0x110] sm:$0xff] %vm646, %v528
  %682 = vst.msk [vmem:[%s2 + $0x118] sm:$0xff] %vm646, %v531
  %683 = vst.msk [vmem:[%s2 + $0x120] sm:$0xff] %vm646, %v536
  %684 = vst.msk [vmem:[%s2 + $0x128] sm:$0xff] %vm646, %v539
  %685 = vst.msk [vmem:[%s2 + $0x130] sm:$0xff] %vm646, %v544
  %686 = vst.msk [vmem:[%s2 + $0x138] sm:$0xff] %vm646, %v547
  %687 = vst.msk [vmem:[%s2 + $0x140] sm:$0xff] %vm646, %v552
  %688 = vst.msk [vmem:[%s2 + $0x148] sm:$0xff] %vm646, %v555
  %689 = vst.msk [vmem:[%s2 + $0x150] sm:$0xff] %vm646, %v560
  %690 = vst.msk [vmem:[%s2 + $0x158] sm:$0xff] %vm646, %v563
  %691 = vst.msk [vmem:[%s2 + $0x160] sm:$0xff] %vm646, %v568
  %692 = vst.msk [vmem:[%s2 + $0x168] sm:$0xff] %vm646, %v571
  %693 = vst.msk [vmem:[%s2 + $0x170] sm:$0xff] %vm646, %v576
  %694 = vst.msk [vmem:[%s2 + $0x178] sm:$0xff] %vm646, %v579
  %695 = vst.msk [vmem:[%s2 + $0x180] sm:$0xff] %vm646, %v584
  %696 = vst.msk [vmem:[%s2 + $0x188] sm:$0xff] %vm646, %v587
  %697 = vst.msk [vmem:[%s2 + $0x190] sm:$0xff] %vm646, %v592
  %698 = vst.msk [vmem:[%s2 + $0x198] sm:$0xff] %vm646, %v595
  %699 = vst.msk [vmem:[%s2 + $0x1a0] sm:$0xff] %vm646, %v600
  %700 = vst.msk [vmem:[%s2 + $0x1a8] sm:$0xff] %vm646, %v603
  %701 = vst.msk [vmem:[%s2 + $0x1b0] sm:$0xff] %vm646, %v608
  %702 = vst.msk [vmem:[%s2 + $0x1b8] sm:$0xff] %vm646, %v611
  %703 = vst.msk [vmem:[%s2 + $0x1c0] sm:$0xff] %vm646, %v616
  %704 = vst.msk [vmem:[%s2 + $0x1c8] sm:$0xff] %vm646, %v619
  %705 = vst.msk [vmem:[%s2 + $0x1d0] sm:$0xff] %vm646, %v624
  %706 = vst.msk [vmem:[%s2 + $0x1d8] sm:$0xff] %vm646, %v627
  %707 = vst.msk [vmem:[%s2 + $0x1e0] sm:$0xff] %vm646, %v632
  %708 = vst.msk [vmem:[%s2 + $0x1e8] sm:$0xff] %vm646, %v635
  %709 = vst.msk [vmem:[%s2 + $0x1f0] sm:$0xff] %vm646, %v640
  %710 = vst.msk [vmem:[%s2 + $0x1f8] sm:$0xff] %vm646, %v643
  %s711 = smul.u32 0, 512
  %v712 = vlaneseq
  %v713 = vshrl.u32 %v712, 7
  %v714 = vadd.s32 %v713, 8
  %v715 = vadd.s32 %v713, 16
  %v716 = vadd.s32 %v713, 24
  %v717 = vadd.s32 %v713, 32
  %v718 = vadd.s32 %v713, 40
  %v719 = vadd.s32 %v713, 48
  %v720 = vadd.s32 %v713, 56
  %v721 = vadd.s32 %v713, 64
  %v722 = vadd.s32 %v713, 72
  %v723 = vadd.s32 %v713, 80
  %v724 = vadd.s32 %v713, 88
  %v725 = vadd.s32 %v713, 96
  %v726 = vadd.s32 %v713, 104
  %v727 = vadd.s32 %v713, 112
  %v728 = vadd.s32 %v713, 120
  %v729 = vadd.s32 %v713, 128
  %v730 = vadd.s32 %v713, 136
  %v731 = vadd.s32 %v713, 144
  %v732 = vadd.s32 %v713, 152
  %v733 = vadd.s32 %v713, 160
  %v734 = vadd.s32 %v713, 168
  %v735 = vadd.s32 %v713, 176
  %v736 = vadd.s32 %v713, 184
  %v737 = vadd.s32 %v713, 192
  %v738 = vadd.s32 %v713, 200
  %v739 = vadd.s32 %v713, 208
  %v740 = vadd.s32 %v713, 216
  %v741 = vadd.s32 %v713, 224
  %v742 = vadd.s32 %v713, 232
  %v743 = vadd.s32 %v713, 240
  %v744 = vadd.s32 %v713, 248
  %v745 = vadd.s32 %v713, 256
  %v746 = vadd.s32 %v713, 264
  %v747 = vadd.s32 %v713, 272
  %v748 = vadd.s32 %v713, 280
  %v749 = vadd.s32 %v713, 288
  %v750 = vadd.s32 %v713, 296
  %v751 = vadd.s32 %v713, 304
  %v752 = vadd.s32 %v713, 312
  %v753 = vadd.s32 %v713, 320
  %v754 = vadd.s32 %v713, 328
  %v755 = vadd.s32 %v713, 336
  %v756 = vadd.s32 %v713, 344
  %v757 = vadd.s32 %v713, 352
  %v758 = vadd.s32 %v713, 360
  %v759 = vadd.s32 %v713, 368
  %v760 = vadd.s32 %v713, 376
  %v761 = vadd.s32 %v713, 384
  %v762 = vadd.s32 %v713, 392
  %v763 = vadd.s32 %v713, 400
  %v764 = vadd.s32 %v713, 408
  %v765 = vadd.s32 %v713, 416
  %v766 = vadd.s32 %v713, 424
  %v767 = vadd.s32 %v713, 432
  %v768 = vadd.s32 %v713, 440
  %v769 = vadd.s32 %v713, 448
  %v770 = vadd.s32 %v713, 456
  %v771 = vadd.s32 %v713, 464
  %v772 = vadd.s32 %v713, 472
  %v773 = vadd.s32 %v713, 480
  %v774 = vadd.s32 %v713, 488
  %v775 = vadd.s32 %v713, 496
  %v776 = vadd.s32 %v713, 504
  %v777 = vstv %s711
  %v778 = vadd.s32 %v777, %v713
  %v779 = vadd.s32 %v777, %v714
  %v780 = vadd.s32 %v777, %v715
  %v781 = vadd.s32 %v777, %v716
  %v782 = vadd.s32 %v777, %v717
  %v783 = vadd.s32 %v777, %v718
  %v784 = vadd.s32 %v777, %v719
  %v785 = vadd.s32 %v777, %v720
  %v786 = vadd.s32 %v777, %v721
  %v787 = vadd.s32 %v777, %v722
  %v788 = vadd.s32 %v777, %v723
  %v789 = vadd.s32 %v777, %v724
  %v790 = vadd.s32 %v777, %v725
  %v791 = vadd.s32 %v777, %v726
  %v792 = vadd.s32 %v777, %v727
  %v793 = vadd.s32 %v777, %v728
  %v794 = vadd.s32 %v777, %v729
  %v795 = vadd.s32 %v777, %v730
  %v796 = vadd.s32 %v777, %v731
  %v797 = vadd.s32 %v777, %v732
  %v798 = vadd.s32 %v777, %v733
  %v799 = vadd.s32 %v777, %v734
  %v800 = vadd.s32 %v777, %v735
  %v801 = vadd.s32 %v777, %v736
  %v802 = vadd.s32 %v777, %v737
  %v803 = vadd.s32 %v777, %v738
  %v804 = vadd.s32 %v777, %v739
  %v805 = vadd.s32 %v777, %v740
  %v806 = vadd.s32 %v777, %v741
  %v807 = vadd.s32 %v777, %v742
  %v808 = vadd.s32 %v777, %v743
  %v809 = vadd.s32 %v777, %v744
  %v810 = vadd.s32 %v777, %v745
  %v811 = vadd.s32 %v777, %v746
  %v812 = vadd.s32 %v777, %v747
  %v813 = vadd.s32 %v777, %v748
  %v814 = vadd.s32 %v777, %v749
  %v815 = vadd.s32 %v777, %v750
  %v816 = vadd.s32 %v777, %v751
  %v817 = vadd.s32 %v777, %v752
  %v818 = vadd.s32 %v777, %v753
  %v819 = vadd.s32 %v777, %v754
  %v820 = vadd.s32 %v777, %v755
  %v821 = vadd.s32 %v777, %v756
  %v822 = vadd.s32 %v777, %v757
  %v823 = vadd.s32 %v777, %v758
  %v824 = vadd.s32 %v777, %v759
  %v825 = vadd.s32 %v777, %v760
  %v826 = vadd.s32 %v777, %v761
  %v827 = vadd.s32 %v777, %v762
  %v828 = vadd.s32 %v777, %v763
  %v829 = vadd.s32 %v777, %v764
  %v830 = vadd.s32 %v777, %v765
  %v831 = vadd.s32 %v777, %v766
  %v832 = vadd.s32 %v777, %v767
  %v833 = vadd.s32 %v777, %v768
  %v834 = vadd.s32 %v777, %v769
  %v835 = vadd.s32 %v777, %v770
  %v836 = vadd.s32 %v777, %v771
  %v837 = vadd.s32 %v777, %v772
  %v838 = vadd.s32 %v777, %v773
  %v839 = vadd.s32 %v777, %v774
  %v840 = vadd.s32 %v777, %v775
  %v841 = vadd.s32 %v777, %v776
  %vm842 = vcmp.lt.s32.totalorder %v778, 512
  %vm843 = vcmp.lt.s32.totalorder %v779, 512
  %vm844 = vcmp.lt.s32.totalorder %v780, 512
  %vm845 = vcmp.lt.s32.totalorder %v781, 512
  %vm846 = vcmp.lt.s32.totalorder %v782, 512
  %vm847 = vcmp.lt.s32.totalorder %v783, 512
  %vm848 = vcmp.lt.s32.totalorder %v784, 512
  %vm849 = vcmp.lt.s32.totalorder %v785, 512
  %vm850 = vcmp.lt.s32.totalorder %v786, 512
  %vm851 = vcmp.lt.s32.totalorder %v787, 512
  %vm852 = vcmp.lt.s32.totalorder %v788, 512
  %vm853 = vcmp.lt.s32.totalorder %v789, 512
  %vm854 = vcmp.lt.s32.totalorder %v790, 512
  %vm855 = vcmp.lt.s32.totalorder %v791, 512
  %vm856 = vcmp.lt.s32.totalorder %v792, 512
  %vm857 = vcmp.lt.s32.totalorder %v793, 512
  %vm858 = vcmp.lt.s32.totalorder %v794, 512
  %vm859 = vcmp.lt.s32.totalorder %v795, 512
  %vm860 = vcmp.lt.s32.totalorder %v796, 512
  %vm861 = vcmp.lt.s32.totalorder %v797, 512
  %vm862 = vcmp.lt.s32.totalorder %v798, 512
  %vm863 = vcmp.lt.s32.totalorder %v799, 512
  %vm864 = vcmp.lt.s32.totalorder %v800, 512
  %vm865 = vcmp.lt.s32.totalorder %v801, 512
  %vm866 = vcmp.lt.s32.totalorder %v802, 512
  %vm867 = vcmp.lt.s32.totalorder %v803, 512
  %vm868 = vcmp.lt.s32.totalorder %v804, 512
  %vm869 = vcmp.lt.s32.totalorder %v805, 512
  %vm870 = vcmp.lt.s32.totalorder %v806, 512
  %vm871 = vcmp.lt.s32.totalorder %v807, 512
  %vm872 = vcmp.lt.s32.totalorder %v808, 512
  %vm873 = vcmp.lt.s32.totalorder %v809, 512
  %vm874 = vcmp.lt.s32.totalorder %v810, 512
  %vm875 = vcmp.lt.s32.totalorder %v811, 512
  %vm876 = vcmp.lt.s32.totalorder %v812, 512
  %vm877 = vcmp.lt.s32.totalorder %v813, 512
  %vm878 = vcmp.lt.s32.totalorder %v814, 512
  %vm879 = vcmp.lt.s32.totalorder %v815, 512
  %vm880 = vcmp.lt.s32.totalorder %v816, 512
  %vm881 = vcmp.lt.s32.totalorder %v817, 512
  %vm882 = vcmp.lt.s32.totalorder %v818, 512
  %vm883 = vcmp.lt.s32.totalorder %v819, 512
  %vm884 = vcmp.lt.s32.totalorder %v820, 512
  %vm885 = vcmp.lt.s32.totalorder %v821, 512
  %vm886 = vcmp.lt.s32.totalorder %v822, 512
  %vm887 = vcmp.lt.s32.totalorder %v823, 512
  %vm888 = vcmp.lt.s32.totalorder %v824, 512
  %vm889 = vcmp.lt.s32.totalorder %v825, 512
  %vm890 = vcmp.lt.s32.totalorder %v826, 512
  %vm891 = vcmp.lt.s32.totalorder %v827, 512
  %vm892 = vcmp.lt.s32.totalorder %v828, 512
  %vm893 = vcmp.lt.s32.totalorder %v829, 512
  %vm894 = vcmp.lt.s32.totalorder %v830, 512
  %vm895 = vcmp.lt.s32.totalorder %v831, 512
  %vm896 = vcmp.lt.s32.totalorder %v832, 512
  %vm897 = vcmp.lt.s32.totalorder %v833, 512
  %vm898 = vcmp.lt.s32.totalorder %v834, 512
  %vm899 = vcmp.lt.s32.totalorder %v835, 512
  %vm900 = vcmp.lt.s32.totalorder %v836, 512
  %vm901 = vcmp.lt.s32.totalorder %v837, 512
  %vm902 = vcmp.lt.s32.totalorder %v838, 512
  %vm903 = vcmp.lt.s32.totalorder %v839, 512
  %vm904 = vcmp.lt.s32.totalorder %v840, 512
  %vm905 = vcmp.lt.s32.totalorder %v841, 512
  %v906 = vsel %vm842, 1, 0
  %v907 = vsel %vm843, 1, 0
  %v908 = vsel %vm844, 1, 0
  %v909 = vsel %vm845, 1, 0
  %v910 = vsel %vm846, 1, 0
  %v911 = vsel %vm847, 1, 0
  %v912 = vsel %vm848, 1, 0
  %v913 = vsel %vm849, 1, 0
  %v914 = vsel %vm850, 1, 0
  %v915 = vsel %vm851, 1, 0
  %v916 = vsel %vm852, 1, 0
  %v917 = vsel %vm853, 1, 0
  %v918 = vsel %vm854, 1, 0
  %v919 = vsel %vm855, 1, 0
  %v920 = vsel %vm856, 1, 0
  %v921 = vsel %vm857, 1, 0
  %v922 = vsel %vm858, 1, 0
  %v923 = vsel %vm859, 1, 0
  %v924 = vsel %vm860, 1, 0
  %v925 = vsel %vm861, 1, 0
  %v926 = vsel %vm862, 1, 0
  %v927 = vsel %vm863, 1, 0
  %v928 = vsel %vm864, 1, 0
  %v929 = vsel %vm865, 1, 0
  %v930 = vsel %vm866, 1, 0
  %v931 = vsel %vm867, 1, 0
  %v932 = vsel %vm868, 1, 0
  %v933 = vsel %vm869, 1, 0
  %v934 = vsel %vm870, 1, 0
  %v935 = vsel %vm871, 1, 0
  %v936 = vsel %vm872, 1, 0
  %v937 = vsel %vm873, 1, 0
  %v938 = vsel %vm874, 1, 0
  %v939 = vsel %vm875, 1, 0
  %v940 = vsel %vm876, 1, 0
  %v941 = vsel %vm877, 1, 0
  %v942 = vsel %vm878, 1, 0
  %v943 = vsel %vm879, 1, 0
  %v944 = vsel %vm880, 1, 0
  %v945 = vsel %vm881, 1, 0
  %v946 = vsel %vm882, 1, 0
  %v947 = vsel %vm883, 1, 0
  %v948 = vsel %vm884, 1, 0
  %v949 = vsel %vm885, 1, 0
  %v950 = vsel %vm886, 1, 0
  %v951 = vsel %vm887, 1, 0
  %v952 = vsel %vm888, 1, 0
  %v953 = vsel %vm889, 1, 0
  %v954 = vsel %vm890, 1, 0
  %v955 = vsel %vm891, 1, 0
  %v956 = vsel %vm892, 1, 0
  %v957 = vsel %vm893, 1, 0
  %v958 = vsel %vm894, 1, 0
  %v959 = vsel %vm895, 1, 0
  %v960 = vsel %vm896, 1, 0
  %v961 = vsel %vm897, 1, 0
  %v962 = vsel %vm898, 1, 0
  %v963 = vsel %vm899, 1, 0
  %v964 = vsel %vm900, 1, 0
  %v965 = vsel %vm901, 1, 0
  %v966 = vsel %vm902, 1, 0
  %v967 = vsel %vm903, 1, 0
  %v968 = vsel %vm904, 1, 0
  %v969 = vsel %vm905, 1, 0
  %v970 = vcvt.s32.f32 %v906
  %v971 = vcvt.s32.f32 %v907
  %v972 = vcvt.s32.f32 %v908
  %v973 = vcvt.s32.f32 %v909
  %v974 = vcvt.s32.f32 %v910
  %v975 = vcvt.s32.f32 %v911
  %v976 = vcvt.s32.f32 %v912
  %v977 = vcvt.s32.f32 %v913
  %v978 = vcvt.s32.f32 %v914
  %v979 = vcvt.s32.f32 %v915
  %v980 = vcvt.s32.f32 %v916
  %v981 = vcvt.s32.f32 %v917
  %v982 = vcvt.s32.f32 %v918
  %v983 = vcvt.s32.f32 %v919
  %v984 = vcvt.s32.f32 %v920
  %v985 = vcvt.s32.f32 %v921
  %v986 = vcvt.s32.f32 %v922
  %v987 = vcvt.s32.f32 %v923
  %v988 = vcvt.s32.f32 %v924
  %v989 = vcvt.s32.f32 %v925
  %v990 = vcvt.s32.f32 %v926
  %v991 = vcvt.s32.f32 %v927
  %v992 = vcvt.s32.f32 %v928
  %v993 = vcvt.s32.f32 %v929
  %v994 = vcvt.s32.f32 %v930
  %v995 = vcvt.s32.f32 %v931
  %v996 = vcvt.s32.f32 %v932
  %v997 = vcvt.s32.f32 %v933
  %v998 = vcvt.s32.f32 %v934
  %v999 = vcvt.s32.f32 %v935
  %v1000 = vcvt.s32.f32 %v936
  %v1001 = vcvt.s32.f32 %v937
  %v1002 = vcvt.s32.f32 %v938
  %v1003 = vcvt.s32.f32 %v939
  %v1004 = vcvt.s32.f32 %v940
  %v1005 = vcvt.s32.f32 %v941
  %v1006 = vcvt.s32.f32 %v942
  %v1007 = vcvt.s32.f32 %v943
  %v1008 = vcvt.s32.f32 %v944
  %v1009 = vcvt.s32.f32 %v945
  %v1010 = vcvt.s32.f32 %v946
  %v1011 = vcvt.s32.f32 %v947
  %v1012 = vcvt.s32.f32 %v948
  %v1013 = vcvt.s32.f32 %v949
  %v1014 = vcvt.s32.f32 %v950
  %v1015 = vcvt.s32.f32 %v951
  %v1016 = vcvt.s32.f32 %v952
  %v1017 = vcvt.s32.f32 %v953
  %v1018 = vcvt.s32.f32 %v954
  %v1019 = vcvt.s32.f32 %v955
  %v1020 = vcvt.s32.f32 %v956
  %v1021 = vcvt.s32.f32 %v957
  %v1022 = vcvt.s32.f32 %v958
  %v1023 = vcvt.s32.f32 %v959
  %v1024 = vcvt.s32.f32 %v960
  %v1025 = vcvt.s32.f32 %v961
  %v1026 = vcvt.s32.f32 %v962
  %v1027 = vcvt.s32.f32 %v963
  %v1028 = vcvt.s32.f32 %v964
  %v1029 = vcvt.s32.f32 %v965
  %v1030 = vcvt.s32.f32 %v966
  %v1031 = vcvt.s32.f32 %v967
  %v1032 = vcvt.s32.f32 %v968
  %v1033 = vcvt.s32.f32 %v969
  %v1034 = vmul.f32 %v392, %v970
  %v1035 = vmul.f32 %v395, %v971
  %v1036 = vmul.f32 %v400, %v972
  %v1037 = vmul.f32 %v403, %v973
  %v1038 = vmul.f32 %v408, %v974
  %v1039 = vmul.f32 %v411, %v975
  %v1040 = vmul.f32 %v416, %v976
  %v1041 = vmul.f32 %v419, %v977
  %v1042 = vmul.f32 %v424, %v978
  %v1043 = vmul.f32 %v427, %v979
  %v1044 = vmul.f32 %v432, %v980
  %v1045 = vmul.f32 %v435, %v981
  %v1046 = vmul.f32 %v440, %v982
  %v1047 = vmul.f32 %v443, %v983
  %v1048 = vmul.f32 %v448, %v984
  %v1049 = vmul.f32 %v451, %v985
  %v1050 = vmul.f32 %v456, %v986
  %v1051 = vmul.f32 %v459, %v987
  %v1052 = vmul.f32 %v464, %v988
  %v1053 = vmul.f32 %v467, %v989
  %v1054 = vmul.f32 %v472, %v990
  %v1055 = vmul.f32 %v475, %v991
  %v1056 = vmul.f32 %v480, %v992
  %v1057 = vmul.f32 %v483, %v993
  %v1058 = vmul.f32 %v488, %v994
  %v1059 = vmul.f32 %v491, %v995
  %v1060 = vmul.f32 %v496, %v996
  %v1061 = vmul.f32 %v499, %v997
  %v1062 = vmul.f32 %v504, %v998
  %v1063 = vmul.f32 %v507, %v999
  %v1064 = vmul.f32 %v512, %v1000
  %v1065 = vmul.f32 %v515, %v1001
  %v1066 = vmul.f32 %v520, %v1002
  %v1067 = vmul.f32 %v523, %v1003
  %v1068 = vmul.f32 %v528, %v1004
  %v1069 = vmul.f32 %v531, %v1005
  %v1070 = vmul.f32 %v536, %v1006
  %v1071 = vmul.f32 %v539, %v1007
  %v1072 = vmul.f32 %v544, %v1008
  %v1073 = vmul.f32 %v547, %v1009
  %v1074 = vmul.f32 %v552, %v1010
  %v1075 = vmul.f32 %v555, %v1011
  %v1076 = vmul.f32 %v560, %v1012
  %v1077 = vmul.f32 %v563, %v1013
  %v1078 = vmul.f32 %v568, %v1014
  %v1079 = vmul.f32 %v571, %v1015
  %v1080 = vmul.f32 %v576, %v1016
  %v1081 = vmul.f32 %v579, %v1017
  %v1082 = vmul.f32 %v584, %v1018
  %v1083 = vmul.f32 %v587, %v1019
  %v1084 = vmul.f32 %v592, %v1020
  %v1085 = vmul.f32 %v595, %v1021
  %v1086 = vmul.f32 %v600, %v1022
  %v1087 = vmul.f32 %v603, %v1023
  %v1088 = vmul.f32 %v608, %v1024
  %v1089 = vmul.f32 %v611, %v1025
  %v1090 = vmul.f32 %v616, %v1026
  %v1091 = vmul.f32 %v619, %v1027
  %v1092 = vmul.f32 %v624, %v1028
  %v1093 = vmul.f32 %v627, %v1029
  %v1094 = vmul.f32 %v632, %v1030
  %v1095 = vmul.f32 %v635, %v1031
  %v1096 = vmul.f32 %v640, %v1032
  %v1097 = vmul.f32 %v643, %v1033
  %v1098 = vsel %vm646, %v1034, 0.0
  %v1099 = vsel %vm646, %v1035, 0.0
  %v1100 = vadd.f32 %v1098, %v1099
  %v1101 = vsel %vm646, %v1036, 0.0
  %v1102 = vadd.f32 %v1100, %v1101
  %v1103 = vsel %vm646, %v1037, 0.0
  %v1104 = vadd.f32 %v1102, %v1103
  %v1105 = vsel %vm646, %v1038, 0.0
  %v1106 = vadd.f32 %v1104, %v1105
  %v1107 = vsel %vm646, %v1039, 0.0
  %v1108 = vadd.f32 %v1106, %v1107
  %v1109 = vsel %vm646, %v1040, 0.0
  %v1110 = vadd.f32 %v1108, %v1109
  %v1111 = vsel %vm646, %v1041, 0.0
  %v1112 = vadd.f32 %v1110, %v1111
  %v1113 = vsel %vm646, %v1042, 0.0
  %v1114 = vadd.f32 %v1112, %v1113
  %v1115 = vsel %vm646, %v1043, 0.0
  %v1116 = vadd.f32 %v1114, %v1115
  %v1117 = vsel %vm646, %v1044, 0.0
  %v1118 = vadd.f32 %v1116, %v1117
  %v1119 = vsel %vm646, %v1045, 0.0
  %v1120 = vadd.f32 %v1118, %v1119
  %v1121 = vsel %vm646, %v1046, 0.0
  %v1122 = vadd.f32 %v1120, %v1121
  %v1123 = vsel %vm646, %v1047, 0.0
  %v1124 = vadd.f32 %v1122, %v1123
  %v1125 = vsel %vm646, %v1048, 0.0
  %v1126 = vadd.f32 %v1124, %v1125
  %v1127 = vsel %vm646, %v1049, 0.0
  %v1128 = vadd.f32 %v1126, %v1127
  %v1129 = vsel %vm646, %v1050, 0.0
  %v1130 = vadd.f32 %v1128, %v1129
  %v1131 = vsel %vm646, %v1051, 0.0
  %v1132 = vadd.f32 %v1130, %v1131
  %v1133 = vsel %vm646, %v1052, 0.0
  %v1134 = vadd.f32 %v1132, %v1133
  %v1135 = vsel %vm646, %v1053, 0.0
  %v1136 = vadd.f32 %v1134, %v1135
  %v1137 = vsel %vm646, %v1054, 0.0
  %v1138 = vadd.f32 %v1136, %v1137
  %v1139 = vsel %vm646, %v1055, 0.0
  %v1140 = vadd.f32 %v1138, %v1139
  %v1141 = vsel %vm646, %v1056, 0.0
  %v1142 = vadd.f32 %v1140, %v1141
  %v1143 = vsel %vm646, %v1057, 0.0
  %v1144 = vadd.f32 %v1142, %v1143
  %v1145 = vsel %vm646, %v1058, 0.0
  %v1146 = vadd.f32 %v1144, %v1145
  %v1147 = vsel %vm646, %v1059, 0.0
  %v1148 = vadd.f32 %v1146, %v1147
  %v1149 = vsel %vm646, %v1060, 0.0
  %v1150 = vadd.f32 %v1148, %v1149
  %v1151 = vsel %vm646, %v1061, 0.0
  %v1152 = vadd.f32 %v1150, %v1151
  %v1153 = vsel %vm646, %v1062, 0.0
  %v1154 = vadd.f32 %v1152, %v1153
  %v1155 = vsel %vm646, %v1063, 0.0
  %v1156 = vadd.f32 %v1154, %v1155
  %v1157 = vsel %vm646, %v1064, 0.0
  %v1158 = vadd.f32 %v1156, %v1157
  %v1159 = vsel %vm646, %v1065, 0.0
  %v1160 = vadd.f32 %v1158, %v1159
  %v1161 = vsel %vm646, %v1066, 0.0
  %v1162 = vadd.f32 %v1160, %v1161
  %v1163 = vsel %vm646, %v1067, 0.0
  %v1164 = vadd.f32 %v1162, %v1163
  %v1165 = vsel %vm646, %v1068, 0.0
  %v1166 = vadd.f32 %v1164, %v1165
  %v1167 = vsel %vm646, %v1069, 0.0
  %v1168 = vadd.f32 %v1166, %v1167
  %v1169 = vsel %vm646, %v1070, 0.0
  %v1170 = vadd.f32 %v1168, %v1169
  %v1171 = vsel %vm646, %v1071, 0.0
  %v1172 = vadd.f32 %v1170, %v1171
  %v1173 = vsel %vm646, %v1072, 0.0
  %v1174 = vadd.f32 %v1172, %v1173
  %v1175 = vsel %vm646, %v1073, 0.0
  %v1176 = vadd.f32 %v1174, %v1175
  %v1177 = vsel %vm646, %v1074, 0.0
  %v1178 = vadd.f32 %v1176, %v1177
  %v1179 = vsel %vm646, %v1075, 0.0
  %v1180 = vadd.f32 %v1178, %v1179
  %v1181 = vsel %vm646, %v1076, 0.0
  %v1182 = vadd.f32 %v1180, %v1181
  %v1183 = vsel %vm646, %v1077, 0.0
  %v1184 = vadd.f32 %v1182, %v1183
  %v1185 = vsel %vm646, %v1078, 0.0
  %v1186 = vadd.f32 %v1184, %v1185
  %v1187 = vsel %vm646, %v1079, 0.0
  %v1188 = vadd.f32 %v1186, %v1187
  %v1189 = vsel %vm646, %v1080, 0.0
  %v1190 = vadd.f32 %v1188, %v1189
  %v1191 = vsel %vm646, %v1081, 0.0
  %v1192 = vadd.f32 %v1190, %v1191
  %v1193 = vsel %vm646, %v1082, 0.0
  %v1194 = vadd.f32 %v1192, %v1193
  %v1195 = vsel %vm646, %v1083, 0.0
  %v1196 = vadd.f32 %v1194, %v1195
  %v1197 = vsel %vm646, %v1084, 0.0
  %v1198 = vadd.f32 %v1196, %v1197
  %v1199 = vsel %vm646, %v1085, 0.0
  %v1200 = vadd.f32 %v1198, %v1199
  %v1201 = vsel %vm646, %v1086, 0.0
  %v1202 = vadd.f32 %v1200, %v1201
  %v1203 = vsel %vm646, %v1087, 0.0
  %v1204 = vadd.f32 %v1202, %v1203
  %v1205 = vsel %vm646, %v1088, 0.0
  %v1206 = vadd.f32 %v1204, %v1205
  %v1207 = vsel %vm646, %v1089, 0.0
  %v1208 = vadd.f32 %v1206, %v1207
  %v1209 = vsel %vm646, %v1090, 0.0
  %v1210 = vadd.f32 %v1208, %v1209
  %v1211 = vsel %vm646, %v1091, 0.0
  %v1212 = vadd.f32 %v1210, %v1211
  %v1213 = vsel %vm646, %v1092, 0.0
  %v1214 = vadd.f32 %v1212, %v1213
  %v1215 = vsel %vm646, %v1093, 0.0
  %v1216 = vadd.f32 %v1214, %v1215
  %v1217 = vsel %vm646, %v1094, 0.0
  %v1218 = vadd.f32 %v1216, %v1217
  %v1219 = vsel %vm646, %v1095, 0.0
  %v1220 = vadd.f32 %v1218, %v1219
  %v1221 = vsel %vm646, %v1096, 0.0
  %v1222 = vadd.f32 %v1220, %v1221
  %v1223 = vsel %vm646, %v1097, 0.0
  %v1224 = vadd.f32 %v1222, %v1223
  %v1225 = vrot.slane %v1224, 4
  %v1226 = vadd.f32 %v1224, %v1225
  %v1227 = vrot.slane %v1226, 2
  %v1228 = vadd.f32 %v1226, %v1227
  %v1229 = vrot.slane %v1228, 1
  %v1230 = vadd.f32 %v1228, %v1229
  %v1231 = vmul.f32 %v1034, %v1034
  %v1232 = vmul.f32 %v1035, %v1035
  %v1233 = vmul.f32 %v1036, %v1036
  %v1234 = vmul.f32 %v1037, %v1037
  %v1235 = vmul.f32 %v1038, %v1038
  %v1236 = vmul.f32 %v1039, %v1039
  %v1237 = vmul.f32 %v1040, %v1040
  %v1238 = vmul.f32 %v1041, %v1041
  %v1239 = vmul.f32 %v1042, %v1042
  %v1240 = vmul.f32 %v1043, %v1043
  %v1241 = vmul.f32 %v1044, %v1044
  %v1242 = vmul.f32 %v1045, %v1045
  %v1243 = vmul.f32 %v1046, %v1046
  %v1244 = vmul.f32 %v1047, %v1047
  %v1245 = vmul.f32 %v1048, %v1048
  %v1246 = vmul.f32 %v1049, %v1049
  %v1247 = vmul.f32 %v1050, %v1050
  %v1248 = vmul.f32 %v1051, %v1051
  %v1249 = vmul.f32 %v1052, %v1052
  %v1250 = vmul.f32 %v1053, %v1053
  %v1251 = vmul.f32 %v1054, %v1054
  %v1252 = vmul.f32 %v1055, %v1055
  %v1253 = vmul.f32 %v1056, %v1056
  %v1254 = vmul.f32 %v1057, %v1057
  %v1255 = vmul.f32 %v1058, %v1058
  %v1256 = vmul.f32 %v1059, %v1059
  %v1257 = vmul.f32 %v1060, %v1060
  %v1258 = vmul.f32 %v1061, %v1061
  %v1259 = vmul.f32 %v1062, %v1062
  %v1260 = vmul.f32 %v1063, %v1063
  %v1261 = vmul.f32 %v1064, %v1064
  %v1262 = vmul.f32 %v1065, %v1065
  %v1263 = vmul.f32 %v1066, %v1066
  %v1264 = vmul.f32 %v1067, %v1067
  %v1265 = vmul.f32 %v1068, %v1068
  %v1266 = vmul.f32 %v1069, %v1069
  %v1267 = vmul.f32 %v1070, %v1070
  %v1268 = vmul.f32 %v1071, %v1071
  %v1269 = vmul.f32 %v1072, %v1072
  %v1270 = vmul.f32 %v1073, %v1073
  %v1271 = vmul.f32 %v1074, %v1074
  %v1272 = vmul.f32 %v1075, %v1075
  %v1273 = vmul.f32 %v1076, %v1076
  %v1274 = vmul.f32 %v1077, %v1077
  %v1275 = vmul.f32 %v1078, %v1078
  %v1276 = vmul.f32 %v1079, %v1079
  %v1277 = vmul.f32 %v1080, %v1080
  %v1278 = vmul.f32 %v1081, %v1081
  %v1279 = vmul.f32 %v1082, %v1082
  %v1280 = vmul.f32 %v1083, %v1083
  %v1281 = vmul.f32 %v1084, %v1084
  %v1282 = vmul.f32 %v1085, %v1085
  %v1283 = vmul.f32 %v1086, %v1086
  %v1284 = vmul.f32 %v1087, %v1087
  %v1285 = vmul.f32 %v1088, %v1088
  %v1286 = vmul.f32 %v1089, %v1089
  %v1287 = vmul.f32 %v1090, %v1090
  %v1288 = vmul.f32 %v1091, %v1091
  %v1289 = vmul.f32 %v1092, %v1092
  %v1290 = vmul.f32 %v1093, %v1093
  %v1291 = vmul.f32 %v1094, %v1094
  %v1292 = vmul.f32 %v1095, %v1095
  %v1293 = vmul.f32 %v1096, %v1096
  %v1294 = vmul.f32 %v1097, %v1097
  %v1295 = vsel %vm646, %v1231, 0.0
  %v1296 = vsel %vm646, %v1232, 0.0
  %v1297 = vadd.f32 %v1295, %v1296
  %v1298 = vsel %vm646, %v1233, 0.0
  %v1299 = vadd.f32 %v1297, %v1298
  %v1300 = vsel %vm646, %v1234, 0.0
  %v1301 = vadd.f32 %v1299, %v1300
  %v1302 = vsel %vm646, %v1235, 0.0
  %v1303 = vadd.f32 %v1301, %v1302
  %v1304 = vsel %vm646, %v1236, 0.0
  %v1305 = vadd.f32 %v1303, %v1304
  %v1306 = vsel %vm646, %v1237, 0.0
  %v1307 = vadd.f32 %v1305, %v1306
  %v1308 = vsel %vm646, %v1238, 0.0
  %v1309 = vadd.f32 %v1307, %v1308
  %v1310 = vsel %vm646, %v1239, 0.0
  %v1311 = vadd.f32 %v1309, %v1310
  %v1312 = vsel %vm646, %v1240, 0.0
  %v1313 = vadd.f32 %v1311, %v1312
  %v1314 = vsel %vm646, %v1241, 0.0
  %v1315 = vadd.f32 %v1313, %v1314
  %v1316 = vsel %vm646, %v1242, 0.0
  %v1317 = vadd.f32 %v1315, %v1316
  %v1318 = vsel %vm646, %v1243, 0.0
  %v1319 = vadd.f32 %v1317, %v1318
  %v1320 = vsel %vm646, %v1244, 0.0
  %v1321 = vadd.f32 %v1319, %v1320
  %v1322 = vsel %vm646, %v1245, 0.0
  %v1323 = vadd.f32 %v1321, %v1322
  %v1324 = vsel %vm646, %v1246, 0.0
  %v1325 = vadd.f32 %v1323, %v1324
  %v1326 = vsel %vm646, %v1247, 0.0
  %v1327 = vadd.f32 %v1325, %v1326
  %v1328 = vsel %vm646, %v1248, 0.0
  %v1329 = vadd.f32 %v1327, %v1328
  %v1330 = vsel %vm646, %v1249, 0.0
  %v1331 = vadd.f32 %v1329, %v1330
  %v1332 = vsel %vm646, %v1250, 0.0
  %v1333 = vadd.f32 %v1331, %v1332
  %v1334 = vsel %vm646, %v1251, 0.0
  %v1335 = vadd.f32 %v1333, %v1334
  %v1336 = vsel %vm646, %v1252, 0.0
  %v1337 = vadd.f32 %v1335, %v1336
  %v1338 = vsel %vm646, %v1253, 0.0
  %v1339 = vadd.f32 %v1337, %v1338
  %v1340 = vsel %vm646, %v1254, 0.0
  %v1341 = vadd.f32 %v1339, %v1340
  %v1342 = vsel %vm646, %v1255, 0.0
  %v1343 = vadd.f32 %v1341, %v1342
  %v1344 = vsel %vm646, %v1256, 0.0
  %v1345 = vadd.f32 %v1343, %v1344
  %v1346 = vsel %vm646, %v1257, 0.0
  %v1347 = vadd.f32 %v1345, %v1346
  %v1348 = vsel %vm646, %v1258, 0.0
  %v1349 = vadd.f32 %v1347, %v1348
  %v1350 = vsel %vm646, %v1259, 0.0
  %v1351 = vadd.f32 %v1349, %v1350
  %v1352 = vsel %vm646, %v1260, 0.0
  %v1353 = vadd.f32 %v1351, %v1352
  %v1354 = vsel %vm646, %v1261, 0.0
  %v1355 = vadd.f32 %v1353, %v1354
  %v1356 = vsel %vm646, %v1262, 0.0
  %v1357 = vadd.f32 %v1355, %v1356
  %v1358 = vsel %vm646, %v1263, 0.0
  %v1359 = vadd.f32 %v1357, %v1358
  %v1360 = vsel %vm646, %v1264, 0.0
  %v1361 = vadd.f32 %v1359, %v1360
  %v1362 = vsel %vm646, %v1265, 0.0
  %v1363 = vadd.f32 %v1361, %v1362
  %v1364 = vsel %vm646, %v1266, 0.0
  %v1365 = vadd.f32 %v1363, %v1364
  %v1366 = vsel %vm646, %v1267, 0.0
  %v1367 = vadd.f32 %v1365, %v1366
  %v1368 = vsel %vm646, %v1268, 0.0
  %v1369 = vadd.f32 %v1367, %v1368
  %v1370 = vsel %vm646, %v1269, 0.0
  %v1371 = vadd.f32 %v1369, %v1370
  %v1372 = vsel %vm646, %v1270, 0.0
  %v1373 = vadd.f32 %v1371, %v1372
  %v1374 = vsel %vm646, %v1271, 0.0
  %v1375 = vadd.f32 %v1373, %v1374
  %v1376 = vsel %vm646, %v1272, 0.0
  %v1377 = vadd.f32 %v1375, %v1376
  %v1378 = vsel %vm646, %v1273, 0.0
  %v1379 = vadd.f32 %v1377, %v1378
  %v1380 = vsel %vm646, %v1274, 0.0
  %v1381 = vadd.f32 %v1379, %v1380
  %v1382 = vsel %vm646, %v1275, 0.0
  %v1383 = vadd.f32 %v1381, %v1382
  %v1384 = vsel %vm646, %v1276, 0.0
  %v1385 = vadd.f32 %v1383, %v1384
  %v1386 = vsel %vm646, %v1277, 0.0
  %v1387 = vadd.f32 %v1385, %v1386
  %v1388 = vsel %vm646, %v1278, 0.0
  %v1389 = vadd.f32 %v1387, %v1388
  %v1390 = vsel %vm646, %v1279, 0.0
  %v1391 = vadd.f32 %v1389, %v1390
  %v1392 = vsel %vm646, %v1280, 0.0
  %v1393 = vadd.f32 %v1391, %v1392
  %v1394 = vsel %vm646, %v1281, 0.0
  %v1395 = vadd.f32 %v1393, %v1394
  %v1396 = vsel %vm646, %v1282, 0.0
  %v1397 = vadd.f32 %v1395, %v1396
  %v1398 = vsel %vm646, %v1283, 0.0
  %v1399 = vadd.f32 %v1397, %v1398
  %v1400 = vsel %vm646, %v1284, 0.0
  %v1401 = vadd.f32 %v1399, %v1400
  %v1402 = vsel %vm646, %v1285, 0.0
  %v1403 = vadd.f32 %v1401, %v1402
  %v1404 = vsel %vm646, %v1286, 0.0
  %v1405 = vadd.f32 %v1403, %v1404
  %v1406 = vsel %vm646, %v1287, 0.0
  %v1407 = vadd.f32 %v1405, %v1406
  %v1408 = vsel %vm646, %v1288, 0.0
  %v1409 = vadd.f32 %v1407, %v1408
  %v1410 = vsel %vm646, %v1289, 0.0
  %v1411 = vadd.f32 %v1409, %v1410
  %v1412 = vsel %vm646, %v1290, 0.0
  %v1413 = vadd.f32 %v1411, %v1412
  %v1414 = vsel %vm646, %v1291, 0.0
  %v1415 = vadd.f32 %v1413, %v1414
  %v1416 = vsel %vm646, %v1292, 0.0
  %v1417 = vadd.f32 %v1415, %v1416
  %v1418 = vsel %vm646, %v1293, 0.0
  %v1419 = vadd.f32 %v1417, %v1418
  %v1420 = vsel %vm646, %v1294, 0.0
  %v1421 = vadd.f32 %v1419, %v1420
  %v1422 = vrot.slane %v1421, 4
  %v1423 = vadd.f32 %v1421, %v1422
  %v1424 = vrot.slane %v1423, 2
  %v1425 = vadd.f32 %v1423, %v1424
  %v1426 = vrot.slane %v1425, 1
  %v1427 = vadd.f32 %v1425, %v1426
  %vm1428 = vcmask 1040384
  %v1429 = vsel %vm1428, %v1230, %v1427
  %vm1430 = vcmask 1041408
  %v1431 = vsel %vm1430, %v1429, 0.0
  %1432 = vst.msk [vmem:[%s3] sm:$0xff] %vm646, %v1431
  // Predicated region
  $region10: #{discriminator_sr_forward.9} parent=0 // pred_check
    _
  $region11: #{discriminator_sr_forward.9} parent=0 // pred_check_branch
    %1434 = sbr.rel (0) target = $region13
  $region12: #{discriminator_sr_forward.9} parent=0 // pred_region
    _
  $region13: #{discriminator_sr_forward.9} parent=0 // pred_fallthru
    _
  // Predicated region
  $region14: #{discriminator_sr_forward.9} parent=0 // pred_check
    _
  $region15: #{discriminator_sr_forward.9} parent=0 // pred_check_branch
    %1436 = sbr.rel (0) target = $region17
  $region16: #{discriminator_sr_forward.9} parent=0 // pred_region
    _
  $region17: #{discriminator_sr_forward.9} parent=0 // pred_fallthru
    _
  // Predicated region
  $region18: #{discriminator_sr_forward.9} parent=0 // pred_check
    _
  $region19: #{discriminator_sr_forward.9} parent=0 // pred_check_branch
    %1438 = sbr.rel (0) target = $region21
  $region20: #{discriminator_sr_forward.9} parent=0 // pred_region
    _
  $region21: #{discriminator_sr_forward.9} parent=0 // pred_fallthru
    _
  // Predicated region
  $region22: #{discriminator_sr_forward.9} parent=0 // pred_check
    _
  $region23: #{discriminator_sr_forward.9} parent=0 // pred_check_branch
    %1440 = sbr.rel (0) target = $region25
  $region24: #{discriminator_sr_forward.9} parent=0 // pred_region
    _
  $region25: #{discriminator_sr_forward.9} parent=0 // pred_fallthru
    _

// kernel: discriminator_sr_forward.10
$region0: #{discriminator_sr_forward.10}
  #allocation0 [shape = 'u32[]', space=smem, size = 0x4, offset = 0x4, fixed_abs, tag = 'smem constant byte address 0x4 - core index']
  #allocation1 [shape = 'u32[144,128]{1,0:T(1,128)}', space=vmem, size = 0x12000, scoped, tag = 'internal scratch']
  %s0 = inlined_call_operand.vmem [shape: bf16[512,288], index: 0, kind: input, shape index: {}]
  %s1 = inlined_call_operand.vmem [shape: bf16[288,32], index: 1, kind: input, shape index: {}]
  %s2 = inlined_call_operand.vmem [shape: f32[512,32], index: 2, kind: output, shape index: {0}]
  %s3 = inlined_call_operand.vmem [shape: f32[8,32], index: 3, kind: output, shape index: {1}]
  %4 = xla_tuple %s2, %s3
  %s5 = sld [smem:[#allocation0]]
  $region26: #{discriminator_sr_forward.10} parent=0
    _
  %s7 = ssub.s32 1, %s5
  %s8 = scalar_select 0, %s7, %s5
  // Predicated region
  $region2: #{discriminator_sr_forward.10} parent=0 // pred_check
    _
  $region3: #{discriminator_sr_forward.10} parent=0 // pred_check_branch
    %10 = sbr.rel (0) target = $region5
  $region4: #{discriminator_sr_forward.10} parent=0 // pred_region
    _
  $region5: #{discriminator_sr_forward.10} parent=0 // pred_fallthru
    _
  // Predicated region
  $region6: #{discriminator_sr_forward.10} parent=0 // pred_check
    _
  $region7: #{discriminator_sr_forward.10} parent=0 // pred_check_branch
    %12 = sbr.rel (0) target = $region9
  $region8: #{discriminator_sr_forward.10} parent=0 // pred_region
    _
  $region9: #{discriminator_sr_forward.10} parent=0 // pred_fallthru
    _
  %v14 = vld [vmem:[%s0] sm:$0xff]
  %v15 = vld [vmem:[%s0 + $0x8] sm:$0xf]
  %v16 = vld [vmem:[%s0 + $0xc] sm:$0xff]
  %v17 = vld [vmem:[%s0 + $0x14] sm:$0xf]
  %v18 = vld [vmem:[%s0 + $0x18] sm:$0xff]
  %v19 = vld [vmem:[%s0 + $0x20] sm:$0xf]
  %v20 = vld [vmem:[%s0 + $0x24] sm:$0xff]
  %v21 = vld [vmem:[%s0 + $0x2c] sm:$0xf]
  %v22 = vld [vmem:[%s0 + $0x30] sm:$0xff]
  %v23 = vld [vmem:[%s0 + $0x38] sm:$0xf]
  %v24 = vld [vmem:[%s0 + $0x3c] sm:$0xff]
  %v25 = vld [vmem:[%s0 + $0x44] sm:$0xf]
  %v26 = vld [vmem:[%s0 + $0x48] sm:$0xff]
  %v27 = vld [vmem:[%s0 + $0x50] sm:$0xf]
  %v28 = vld [vmem:[%s0 + $0x54] sm:$0xff]
  %v29 = vld [vmem:[%s0 + $0x5c] sm:$0xf]
  %v30 = vld [vmem:[%s0 + $0x60] sm:$0xff]
  %v31 = vld [vmem:[%s0 + $0x68] sm:$0xf]
  %v32 = vld [vmem:[%s0 + $0x6c] sm:$0xff]
  %v33 = vld [vmem:[%s0 + $0x74] sm:$0xf]
  %v34 = vld [vmem:[%s0 + $0x78] sm:$0xff]
  %v35 = vld [vmem:[%s0 + $0x80] sm:$0xf]
  %v36 = vld [vmem:[%s0 + $0x84] sm:$0xff]
  %v37 = vld [vmem:[%s0 + $0x8c] sm:$0xf]
  %v38 = vld [vmem:[%s0 + $0x90] sm:$0xff]
  %v39 = vld [vmem:[%s0 + $0x98] sm:$0xf]
  %v40 = vld [vmem:[%s0 + $0x9c] sm:$0xff]
  %v41 = vld [vmem:[%s0 + $0xa4] sm:$0xf]
  %v42 = vld [vmem:[%s0 + $0xa8] sm:$0xff]
  %v43 = vld [vmem:[%s0 + $0xb0] sm:$0xf]
  %v44 = vld [vmem:[%s0 + $0xb4] sm:$0xff]
  %v45 = vld [vmem:[%s0 + $0xbc] sm:$0xf]
  %v46 = vld [vmem:[%s0 + $0xc0] sm:$0xff]
  %v47 = vld [vmem:[%s0 + $0xc8] sm:$0xf]
  %v48 = vld [vmem:[%s0 + $0xcc] sm:$0xff]
  %v49 = vld [vmem:[%s0 + $0xd4] sm:$0xf]
  %v50 = vld [vmem:[%s0 + $0xd8] sm:$0xff]
  %v51 = vld [vmem:[%s0 + $0xe0] sm:$0xf]
  %v52 = vld [vmem:[%s0 + $0xe4] sm:$0xff]
  %v53 = vld [vmem:[%s0 + $0xec] sm:$0xf]
  %v54 = vld [vmem:[%s0 + $0xf0] sm:$0xff]
  %v55 = vld [vmem:[%s0 + $0xf8] sm:$0xf]
  %v56 = vld [vmem:[%s0 + $0xfc] sm:$0xff]
  %v57 = vld [vmem:[%s0 + $0x104] sm:$0xf]
  %v58 = vld [vmem:[%s0 + $0x108] sm:$0xff]
  %v59 = vld [vmem:[%s0 + $0x110] sm:$0xf]
  %v60 = vld [vmem:[%s0 + $0x114] sm:$0xff]
  %v61 = vld [vmem:[%s0 + $0x11c] sm:$0xf]
  %v62 = vld [vmem:[%s0 + $0x120] sm:$0xff]
  %v63 = vld [vmem:[%s0 + $0x128] sm:$0xf]
  %v64 = vld [vmem:[%s0 + $0x12c] sm:$0xff]
  %v65 = vld [vmem:[%s0 + $0x134] sm:$0xf]
  %v66 = vld [vmem:[%s0 + $0x138] sm:$0xff]
  %v67 = vld [vmem:[%s0 + $0x140] sm:$0xf]
  %v68 = vld [vmem:[%s0 + $0x144] sm:$0xff]
  %v69 = vld [vmem:[%s0 + $0x14c] sm:$0xf]
  %v70 = vld [vmem:[%s0 + $0x150] sm:$0xff]
  %v71 = vld [vmem:[%s0 + $0x158] sm:$0xf]
  %v72 = vld [vmem:[%s0 + $0x15c] sm:$0xff]
  %v73 = vld [vmem:[%s0 + $0x164] sm:$0xf]
  %v74 = vld [vmem:[%s0 + $0x168] sm:$0xff]
  %v75 = vld [vmem:[%s0 + $0x170] sm:$0xf]
  %v76 = vld [vmem:[%s0 + $0x174] sm:$0xff]
  %v77 = vld [vmem:[%s0 + $0x17c] sm:$0xf]
  %v78 = vld [vmem:[%s0 + $0x180] sm:$0xff]
  %v79 = vld [vmem:[%s0 + $0x188] sm:$0xf]
  %v80 = vld [vmem:[%s0 + $0x18c] sm:$0xff]
  %v81 = vld [vmem:[%s0 + $0x194] sm:$0xf]
  %v82 = vld [vmem:[%s0 + $0x198] sm:$0xff]
  %v83 = vld [vmem:[%s0 + $0x1a0] sm:$0xf]
  %v84 = vld [vmem:[%s0 + $0x1a4] sm:$0xff]
  %v85 = vld [vmem:[%s0 + $0x1ac] sm:$0xf]
  %v86 = vld [vmem:[%s0 + $0x1b0] sm:$0xff]
  %v87 = vld [vmem:[%s0 + $0x1b8] sm:$0xf]
  %v88 = vld [vmem:[%s0 + $0x1bc] sm:$0xff]
  %v89 = vld [vmem:[%s0 + $0x1c4] sm:$0xf]
  %v90 = vld [vmem:[%s0 + $0x1c8] sm:$0xff]
  %v91 = vld [vmem:[%s0 + $0x1d0] sm:$0xf]
  %v92 = vld [vmem:[%s0 + $0x1d4] sm:$0xff]
  %v93 = vld [vmem:[%s0 + $0x1dc] sm:$0xf]
  %v94 = vld [vmem:[%s0 + $0x1e0] sm:$0xff]
  %v95 = vld [vmem:[%s0 + $0x1e8] sm:$0xf]
  %v96 = vld [vmem:[%s0 + $0x1ec] sm:$0xff]
  %v97 = vld [vmem:[%s0 + $0x1f4] sm:$0xf]
  %v98 = vld [vmem:[%s0 + $0x1f8] sm:$0xff]
  %v99 = vld [vmem:[%s0 + $0x200] sm:$0xf]
  %v100 = vld [vmem:[%s0 + $0x204] sm:$0xff]
  %v101 = vld [vmem:[%s0 + $0x20c] sm:$0xf]
  %v102 = vld [vmem:[%s0 + $0x210] sm:$0xff]
  %v103 = vld [vmem:[%s0 + $0x218] sm:$0xf]
  %v104 = vld [vmem:[%s0 + $0x21c] sm:$0xff]
  %v105 = vld [vmem:[%s0 + $0x224] sm:$0xf]
  %v106 = vld [vmem:[%s0 + $0x228] sm:$0xff]
  %v107 = vld [vmem:[%s0 + $0x230] sm:$0xf]
  %v108 = vld [vmem:[%s0 + $0x234] sm:$0xff]
  %v109 = vld [vmem:[%s0 + $0x23c] sm:$0xf]
  %v110 = vld [vmem:[%s0 + $0x240] sm:$0xff]
  %v111 = vld [vmem:[%s0 + $0x248] sm:$0xf]
  %v112 = vld [vmem:[%s0 + $0x24c] sm:$0xff]
  %v113 = vld [vmem:[%s0 + $0x254] sm:$0xf]
  %v114 = vld [vmem:[%s0 + $0x258] sm:$0xff]
  %v115 = vld [vmem:[%s0 + $0x260] sm:$0xf]
  %v116 = vld [vmem:[%s0 + $0x264] sm:$0xff]
  %v117 = vld [vmem:[%s0 + $0x26c] sm:$0xf]
  %v118 = vld [vmem:[%s0 + $0x270] sm:$0xff]
  %v119 = vld [vmem:[%s0 + $0x278] sm:$0xf]
  %v120 = vld [vmem:[%s0 + $0x27c] sm:$0xff]
  %v121 = vld [vmem:[%s0 + $0x284] sm:$0xf]
  %v122 = vld [vmem:[%s0 + $0x288] sm:$0xff]
  %v123 = vld [vmem:[%s0 + $0x290] sm:$0xf]
  %v124 = vld [vmem:[%s0 + $0x294] sm:$0xff]
  %v125 = vld [vmem:[%s0 + $0x29c] sm:$0xf]
  %v126 = vld [vmem:[%s0 + $0x2a0] sm:$0xff]
  %v127 = vld [vmem:[%s0 + $0x2a8] sm:$0xf]
  %v128 = vld [vmem:[%s0 + $0x2ac] sm:$0xff]
  %v129 = vld [vmem:[%s0 + $0x2b4] sm:$0xf]
  %v130 = vld [vmem:[%s0 + $0x2b8] sm:$0xff]
  %v131 = vld [vmem:[%s0 + $0x2c0] sm:$0xf]
  %v132 = vld [vmem:[%s0 + $0x2c4] sm:$0xff]
  %v133 = vld [vmem:[%s0 + $0x2cc] sm:$0xf]
  %v134 = vld [vmem:[%s0 + $0x2d0] sm:$0xff]
  %v135 = vld [vmem:[%s0 + $0x2d8] sm:$0xf]
  %v136 = vld [vmem:[%s0 + $0x2dc] sm:$0xff]
  %v137 = vld [vmem:[%s0 + $0x2e4] sm:$0xf]
  %v138 = vld [vmem:[%s0 + $0x2e8] sm:$0xff]
  %v139 = vld [vmem:[%s0 + $0x2f0] sm:$0xf]
  %v140 = vld [vmem:[%s0 + $0x2f4] sm:$0xff]
  %v141 = vld [vmem:[%s0 + $0x2fc] sm:$0xf]
  %v142 = vld [vmem:[%s1] sm:$0xf]
  %v143 = vld [vmem:[%s1 + $0x4] sm:$0xf]
  %v144 = vld [vmem:[%s1 + $0x8] sm:$0xf]
  %v145 = vld [vmem:[%s1 + $0xc] sm:$0xf]
  %v146 = vld [vmem:[%s1 + $0x10] sm:$0xf]
  %v147 = vld [vmem:[%s1 + $0x14] sm:$0xf]
  %v148 = vld [vmem:[%s1 + $0x18] sm:$0xf]
  %v149 = vld [vmem:[%s1 + $0x1c] sm:$0xf]
  %v150 = vld [vmem:[%s1 + $0x20] sm:$0xf]
  %v151 = vld [vmem:[%s1 + $0x24] sm:$0xf]
  %v152 = vld [vmem:[%s1 + $0x28] sm:$0xf]
  %v153 = vld [vmem:[%s1 + $0x2c] sm:$0xf]
  %v154 = vld [vmem:[%s1 + $0x30] sm:$0xf]
  %v155 = vld [vmem:[%s1 + $0x34] sm:$0xf]
  %v156 = vld [vmem:[%s1 + $0x38] sm:$0xf]
  %v157 = vld [vmem:[%s1 + $0x3c] sm:$0xf]
  %v158 = vld [vmem:[%s1 + $0x40] sm:$0xf]
  %v159 = vld [vmem:[%s1 + $0x44] sm:$0xf]
  %v160 = vld [vmem:[%s1 + $0x48] sm:$0xf]
  %v161 = vld [vmem:[%s1 + $0x4c] sm:$0xf]
  %v162 = vld [vmem:[%s1 + $0x50] sm:$0xf]
  %v163 = vld [vmem:[%s1 + $0x54] sm:$0xf]
  %v164 = vld [vmem:[%s1 + $0x58] sm:$0xf]
  %v165 = vld [vmem:[%s1 + $0x5c] sm:$0xf]
  %v166 = vld [vmem:[%s1 + $0x60] sm:$0xf]
  %v167 = vld [vmem:[%s1 + $0x64] sm:$0xf]
  %v168 = vld [vmem:[%s1 + $0x68] sm:$0xf]
  %v169 = vld [vmem:[%s1 + $0x6c] sm:$0xf]
  %v170 = vld [vmem:[%s1 + $0x70] sm:$0xf]
  %v171 = vld [vmem:[%s1 + $0x74] sm:$0xf]
  %v172 = vld [vmem:[%s1 + $0x78] sm:$0xf]
  %v173 = vld [vmem:[%s1 + $0x7c] sm:$0xf]
  %v174 = vld [vmem:[%s1 + $0x80] sm:$0xf]
  %v175 = vld [vmem:[%s1 + $0x84] sm:$0xf]
  %v176 = vld [vmem:[%s1 + $0x88] sm:$0xf]
  %v177 = vld [vmem:[%s1 + $0x8c] sm:$0xf]
  %v306 = vunpack.c.l.b16 %v14
  %v307 = vunpack.c.h.b16 %v14
  %v308 = vunpack.c.l.b16 %v15
  %v309 = vunpack.c.l.b16 %v16
  %v310 = vunpack.c.h.b16 %v16
  %v311 = vunpack.c.l.b16 %v17
  %v312 = vunpack.c.l.b16 %v18
  %v313 = vunpack.c.h.b16 %v18
  %v314 = vunpack.c.l.b16 %v19
  %v315 = vunpack.c.l.b16 %v20
  %v316 = vunpack.c.h.b16 %v20
  %v317 = vunpack.c.l.b16 %v21
  %v318 = vunpack.c.l.b16 %v22
  %v319 = vunpack.c.h.b16 %v22
  %v320 = vunpack.c.l.b16 %v23
  %v321 = vunpack.c.l.b16 %v24
  %v322 = vunpack.c.h.b16 %v24
  %v323 = vunpack.c.l.b16 %v25
  %v324 = vunpack.c.l.b16 %v26
  %v325 = vunpack.c.h.b16 %v26
  %v326 = vunpack.c.l.b16 %v27
  %v327 = vunpack.c.l.b16 %v28
  %v328 = vunpack.c.h.b16 %v28
  %v329 = vunpack.c.l.b16 %v29
  %v330 = vunpack.c.l.b16 %v30
  %v331 = vunpack.c.h.b16 %v30
  %v332 = vunpack.c.l.b16 %v31
  %v333 = vunpack.c.l.b16 %v32
  %v334 = vunpack.c.h.b16 %v32
  %v335 = vunpack.c.l.b16 %v33
  %v336 = vunpack.c.l.b16 %v34
  %v337 = vunpack.c.h.b16 %v34
  %v338 = vunpack.c.l.b16 %v35
  %v339 = vunpack.c.l.b16 %v36
  %v340 = vunpack.c.h.b16 %v36
  %v341 = vunpack.c.l.b16 %v37
  %v342 = vunpack.c.l.b16 %v38
  %v343 = vunpack.c.h.b16 %v38
  %v344 = vunpack.c.l.b16 %v39
  %v345 = vunpack.c.l.b16 %v40
  %v346 = vunpack.c.h.b16 %v40
  %v347 = vunpack.c.l.b16 %v41
  %v348 = vunpack.c.l.b16 %v42
  %v349 = vunpack.c.h.b16 %v42
  %v350 = vunpack.c.l.b16 %v43
  %v351 = vunpack.c.l.b16 %v44
  %v352 = vunpack.c.h.b16 %v44
  %v353 = vunpack.c.l.b16 %v45
  %v354 = vunpack.c.l.b16 %v46
  %v355 = vunpack.c.h.b16 %v46
  %v356 = vunpack.c.l.b16 %v47
  %v357 = vunpack.c.l.b16 %v48
  %v358 = vunpack.c.h.b16 %v48
  %v359 = vunpack.c.l.b16 %v49
  %v360 = vunpack.c.l.b16 %v50
  %v361 = vunpack.c.h.b16 %v50
  %v362 = vunpack.c.l.b16 %v51
  %v363 = vunpack.c.l.b16 %v52
  %v364 = vunpack.c.h.b16 %v52
  %v365 = vunpack.c.l.b16 %v53
  %v366 = vunpack.c.l.b16 %v54
  %v367 = vunpack.c.h.b16 %v54
  %v368 = vunpack.c.l.b16 %v55
  %v369 = vunpack.c.l.b16 %v56
  %v370 = vunpack.c.h.b16 %v56
  %v371 = vunpack.c.l.b16 %v57
  %v372 = vunpack.c.l.b16 %v58
  %v373 = vunpack.c.h.b16 %v58
  %v374 = vunpack.c.l.b16 %v59
  %v375 = vunpack.c.l.b16 %v60
  %v376 = vunpack.c.h.b16 %v60
  %v377 = vunpack.c.l.b16 %v61
  %v378 = vunpack.c.l.b16 %v62
  %v379 = vunpack.c.h.b16 %v62
  %v380 = vunpack.c.l.b16 %v63
  %v381 = vunpack.c.l.b16 %v64
  %v382 = vunpack.c.h.b16 %v64
  %v383 = vunpack.c.l.b16 %v65
  %v384 = vunpack.c.l.b16 %v66
  %v385 = vunpack.c.h.b16 %v66
  %v386 = vunpack.c.l.b16 %v67
  %v387 = vunpack.c.l.b16 %v68
  %v388 = vunpack.c.h.b16 %v68
  %v389 = vunpack.c.l.b16 %v69
  %v390 = vunpack.c.l.b16 %v70
  %v391 = vunpack.c.h.b16 %v70
  %v392 = vunpack.c.l.b16 %v71
  %v393 = vunpack.c.l.b16 %v72
  %v394 = vunpack.c.h.b16 %v72
  %v395 = vunpack.c.l.b16 %v73
  %v396 = vunpack.c.l.b16 %v74
  %v397 = vunpack.c.h.b16 %v74
  %v398 = vunpack.c.l.b16 %v75
  %v399 = vunpack.c.l.b16 %v76
  %v400 = vunpack.c.h.b16 %v76
  %v401 = vunpack.c.l.b16 %v77
  %v402 = vunpack.c.l.b16 %v78
  %v403 = vunpack.c.h.b16 %v78
  %v404 = vunpack.c.l.b16 %v79
  %v405 = vunpack.c.l.b16 %v80
  %v406 = vunpack.c.h.b16 %v80
  %v407 = vunpack.c.l.b16 %v81
  %v408 = vunpack.c.l.b16 %v82
  %v409 = vunpack.c.h.b16 %v82
  %v410 = vunpack.c.l.b16 %v83
  %v411 = vunpack.c.l.b16 %v84
  %v412 = vunpack.c.h.b16 %v84
  %v413 = vunpack.c.l.b16 %v85
  %v414 = vunpack.c.l.b16 %v86
  %v415 = vunpack.c.h.b16 %v86
  %v416 = vunpack.c.l.b16 %v87
  %v417 = vunpack.c.l.b16 %v88
  %v418 = vunpack.c.h.b16 %v88
  %v419 = vunpack.c.l.b16 %v89
  %v420 = vunpack.c.l.b16 %v90
  %v421 = vunpack.c.h.b16 %v90
  %v422 = vunpack.c.l.b16 %v91
  %v423 = vunpack.c.l.b16 %v92
  %v424 = vunpack.c.h.b16 %v92
  %v425 = vunpack.c.l.b16 %v93
  %v426 = vunpack.c.l.b16 %v94
  %v427 = vunpack.c.h.b16 %v94
  %v428 = vunpack.c.l.b16 %v95
  %v429 = vunpack.c.l.b16 %v96
  %v430 = vunpack.c.h.b16 %v96
  %v431 = vunpack.c.l.b16 %v97
  %v432 = vunpack.c.l.b16 %v98
  %v433 = vunpack.c.h.b16 %v98
  %v434 = vunpack.c.l.b16 %v99
  %v435 = vunpack.c.l.b16 %v100
  %v436 = vunpack.c.h.b16 %v100
  %v437 = vunpack.c.l.b16 %v101
  %v438 = vunpack.c.l.b16 %v102
  %v439 = vunpack.c.h.b16 %v102
  %v440 = vunpack.c.l.b16 %v103
  %v441 = vunpack.c.l.b16 %v104
  %v442 = vunpack.c.h.b16 %v104
  %v443 = vunpack.c.l.b16 %v105
  %v444 = vunpack.c.l.b16 %v106
  %v445 = vunpack.c.h.b16 %v106
  %v446 = vunpack.c.l.b16 %v107
  %v447 = vunpack.c.l.b16 %v108
  %v448 = vunpack.c.h.b16 %v108
  %v449 = vunpack.c.l.b16 %v109
  %v450 = vunpack.c.l.b16 %v110
  %v451 = vunpack.c.h.b16 %v110
  %v452 = vunpack.c.l.b16 %v111
  %v453 = vunpack.c.l.b16 %v112
  %v454 = vunpack.c.h.b16 %v112
  %v455 = vunpack.c.l.b16 %v113
  %v456 = vunpack.c.l.b16 %v114
  %v457 = vunpack.c.h.b16 %v114
  %v458 = vunpack.c.l.b16 %v115
  %v459 = vunpack.c.l.b16 %v116
  %v460 = vunpack.c.h.b16 %v116
  %v461 = vunpack.c.l.b16 %v117
  %v462 = vunpack.c.l.b16 %v118
  %v463 = vunpack.c.h.b16 %v118
  %v464 = vunpack.c.l.b16 %v119
  %v465 = vunpack.c.l.b16 %v120
  %v466 = vunpack.c.h.b16 %v120
  %v467 = vunpack.c.l.b16 %v121
  %v468 = vunpack.c.l.b16 %v122
  %v469 = vunpack.c.h.b16 %v122
  %v470 = vunpack.c.l.b16 %v123
  %v471 = vunpack.c.l.b16 %v124
  %v472 = vunpack.c.h.b16 %v124
  %v473 = vunpack.c.l.b16 %v125
  %v474 = vunpack.c.l.b16 %v126
  %v475 = vunpack.c.h.b16 %v126
  %v476 = vunpack.c.l.b16 %v127
  %v477 = vunpack.c.l.b16 %v128
  %v478 = vunpack.c.h.b16 %v128
  %v479 = vunpack.c.l.b16 %v129
  %v480 = vunpack.c.l.b16 %v130
  %v481 = vunpack.c.h.b16 %v130
  %v482 = vunpack.c.l.b16 %v131
  %v483 = vunpack.c.l.b16 %v132
  %v484 = vunpack.c.h.b16 %v132
  %v485 = vunpack.c.l.b16 %v133
  %v486 = vunpack.c.l.b16 %v134
  %v487 = vunpack.c.h.b16 %v134
  %v488 = vunpack.c.l.b16 %v135
  %v489 = vunpack.c.l.b16 %v136
  %v490 = vunpack.c.h.b16 %v136
  %v491 = vunpack.c.l.b16 %v137
  %v492 = vunpack.c.l.b16 %v138
  %v493 = vunpack.c.h.b16 %v138
  %v494 = vunpack.c.l.b16 %v139
  %v495 = vunpack.c.l.b16 %v140
  %v496 = vunpack.c.h.b16 %v140
  %v497 = vunpack.c.l.b16 %v141
  %v498 = vpack.c.b16 %v309, %v306
  %v499 = vpack.c.b16 %v310, %v307
  %v500 = vpack.c.b16 %v311, %v308
  %v501 = vpack.c.b16 %v315, %v312
  %v502 = vpack.c.b16 %v316, %v313
  %v503 = vpack.c.b16 %v317, %v314
  %v504 = vpack.c.b16 %v321, %v318
  %v505 = vpack.c.b16 %v322, %v319
  %v506 = vpack.c.b16 %v323, %v320
  %v507 = vpack.c.b16 %v327, %v324
  %v508 = vpack.c.b16 %v328, %v325
  %v509 = vpack.c.b16 %v329, %v326
  %v510 = vpack.c.b16 %v333, %v330
  %v511 = vpack.c.b16 %v334, %v331
  %v512 = vpack.c.b16 %v335, %v332
  %v513 = vpack.c.b16 %v339, %v336
  %v514 = vpack.c.b16 %v340, %v337
  %v515 = vpack.c.b16 %v341, %v338
  %v516 = vpack.c.b16 %v345, %v342
  %v517 = vpack.c.b16 %v346, %v343
  %v518 = vpack.c.b16 %v347, %v344
  %v519 = vpack.c.b16 %v351, %v348
  %v520 = vpack.c.b16 %v352, %v349
  %v521 = vpack.c.b16 %v353, %v350
  %v522 = vpack.c.b16 %v357, %v354
  %v523 = vpack.c.b16 %v358, %v355
  %v524 = vpack.c.b16 %v359, %v356
  %v525 = vpack.c.b16 %v363, %v360
  %v526 = vpack.c.b16 %v364, %v361
  %v527 = vpack.c.b16 %v365, %v362
  %v528 = vpack.c.b16 %v369, %v366
  %v529 = vpack.c.b16 %v370, %v367
  %v530 = vpack.c.b16 %v371, %v368
  %v531 = vpack.c.b16 %v375, %v372
  %v532 = vpack.c.b16 %v376, %v373
  %v533 = vpack.c.b16 %v377, %v374
  %v534 = vpack.c.b16 %v381, %v378
  %v535 = vpack.c.b16 %v382, %v379
  %v536 = vpack.c.b16 %v383, %v380
  %v537 = vpack.c.b16 %v387, %v384
  %v538 = vpack.c.b16 %v388, %v385
  %v539 = vpack.c.b16 %v389, %v386
  %v540 = vpack.c.b16 %v393, %v390
  %v541 = vpack.c.b16 %v394, %v391
  %v542 = vpack.c.b16 %v395, %v392
  %v543 = vpack.c.b16 %v399, %v396
  %v544 = vpack.c.b16 %v400, %v397
  %v545 = vpack.c.b16 %v401, %v398
  %v546 = vpack.c.b16 %v405, %v402
  %v547 = vpack.c.b16 %v406, %v403
  %v548 = vpack.c.b16 %v407, %v404
  %v549 = vpack.c.b16 %v411, %v408
  %v550 = vpack.c.b16 %v412, %v409
  %v551 = vpack.c.b16 %v413, %v410
  %v552 = vpack.c.b16 %v417, %v414
  %v553 = vpack.c.b16 %v418, %v415
  %v554 = vpack.c.b16 %v419, %v416
  %v555 = vpack.c.b16 %v423, %v420
  %v556 = vpack.c.b16 %v424, %v421
  %v557 = vpack.c.b16 %v425, %v422
  %v558 = vpack.c.b16 %v429, %v426
  %v559 = vpack.c.b16 %v430, %v427
  %v560 = vpack.c.b16 %v431, %v428
  %v561 = vpack.c.b16 %v435, %v432
  %v562 = vpack.c.b16 %v436, %v433
  %v563 = vpack.c.b16 %v437, %v434
  %v564 = vpack.c.b16 %v441, %v438
  %v565 = vpack.c.b16 %v442, %v439
  %v566 = vpack.c.b16 %v443, %v440
  %v567 = vpack.c.b16 %v447, %v444
  %v568 = vpack.c.b16 %v448, %v445
  %v569 = vpack.c.b16 %v449, %v446
  %v570 = vpack.c.b16 %v453, %v450
  %v571 = vpack.c.b16 %v454, %v451
  %v572 = vpack.c.b16 %v455, %v452
  %v573 = vpack.c.b16 %v459, %v456
  %v574 = vpack.c.b16 %v460, %v457
  %v575 = vpack.c.b16 %v461, %v458
  %v576 = vpack.c.b16 %v465, %v462
  %v577 = vpack.c.b16 %v466, %v463
  %v578 = vpack.c.b16 %v467, %v464
  %v579 = vpack.c.b16 %v471, %v468
  %v580 = vpack.c.b16 %v472, %v469
  %v581 = vpack.c.b16 %v473, %v470
  %v582 = vpack.c.b16 %v477, %v474
  %v583 = vpack.c.b16 %v478, %v475
  %v584 = vpack.c.b16 %v479, %v476
  %v585 = vpack.c.b16 %v483, %v480
  %v586 = vpack.c.b16 %v484, %v481
  %v587 = vpack.c.b16 %v485, %v482
  %v588 = vpack.c.b16 %v489, %v486
  %v589 = vpack.c.b16 %v490, %v487
  %v590 = vpack.c.b16 %v491, %v488
  %v591 = vpack.c.b16 %v495, %v492
  %v592 = vpack.c.b16 %v496, %v493
  %v593 = vpack.c.b16 %v497, %v494
  %v694 = vunpack.c.l.b16 %v142
  %v695 = vunpack.c.l.b16 %v143
  %v696 = vunpack.c.l.b16 %v144
  %v697 = vunpack.c.l.b16 %v145
  %v698 = vunpack.c.l.b16 %v146
  %v699 = vunpack.c.l.b16 %v147
  %v700 = vunpack.c.l.b16 %v148
  %v701 = vunpack.c.l.b16 %v149
  %v702 = vunpack.c.l.b16 %v150
  %v703 = vunpack.c.l.b16 %v151
  %v704 = vunpack.c.l.b16 %v152
  %v705 = vunpack.c.l.b16 %v153
  %v706 = vunpack.c.l.b16 %v154
  %v707 = vunpack.c.l.b16 %v155
  %v708 = vunpack.c.l.b16 %v156
  %v709 = vunpack.c.l.b16 %v157
  %v710 = vunpack.c.l.b16 %v158
  %v711 = vunpack.c.l.b16 %v159
  %v712 = vunpack.c.l.b16 %v160
  %v713 = vunpack.c.l.b16 %v161
  %v714 = vunpack.c.l.b16 %v162
  %v715 = vunpack.c.l.b16 %v163
  %v716 = vunpack.c.l.b16 %v164
  %v717 = vunpack.c.l.b16 %v165
  %v718 = vunpack.c.l.b16 %v166
  %v719 = vunpack.c.l.b16 %v167
  %v720 = vunpack.c.l.b16 %v168
  %v721 = vunpack.c.l.b16 %v169
  %v722 = vunpack.c.l.b16 %v170
  %v723 = vunpack.c.l.b16 %v171
  %v724 = vunpack.c.l.b16 %v172
  %v725 = vunpack.c.l.b16 %v173
  %v726 = vunpack.c.l.b16 %v174
  %v727 = vunpack.c.l.b16 %v175
  %v728 = vunpack.c.l.b16 %v176
  %v729 = vunpack.c.l.b16 %v177
  %v730 = vpack.c.b16 %v695, %v694
  %v731 = vpack.c.b16 %v697, %v696
  %v732 = vpack.c.b16 %v699, %v698
  %v733 = vpack.c.b16 %v701, %v700
  %v734 = vpack.c.b16 %v703, %v702
  %v735 = vpack.c.b16 %v705, %v704
  %v736 = vpack.c.b16 %v707, %v706
  %v737 = vpack.c.b16 %v709, %v708
  %v738 = vpack.c.b16 %v711, %v710
  %v739 = vpack.c.b16 %v713, %v712
  %v740 = vpack.c.b16 %v715, %v714
  %v741 = vpack.c.b16 %v717, %v716
  %v742 = vpack.c.b16 %v719, %v718
  %v743 = vpack.c.b16 %v721, %v720
  %v744 = vpack.c.b16 %v723, %v722
  %v745 = vpack.c.b16 %v725, %v724
  %v746 = vpack.c.b16 %v727, %v726
  %v747 = vpack.c.b16 %v729, %v728
  %vm766 = vcmask 261120
  %v768 = vsel %vm766, %v500, 0
  %v771 = vsel %vm766, %v503, 0
  %v774 = vsel %vm766, %v506, 0
  %v777 = vsel %vm766, %v509, 0
  %v780 = vsel %vm766, %v512, 0
  %v783 = vsel %vm766, %v515, 0
  %v786 = vsel %vm766, %v518, 0
  %v789 = vsel %vm766, %v521, 0
  %v792 = vsel %vm766, %v524, 0
  %v795 = vsel %vm766, %v527, 0
  %v798 = vsel %vm766, %v530, 0
  %v801 = vsel %vm766, %v533, 0
  %v804 = vsel %vm766, %v536, 0
  %v807 = vsel %vm766, %v539, 0
  %v810 = vsel %vm766, %v542, 0
  %v813 = vsel %vm766, %v545, 0
  %v816 = vsel %vm766, %v548, 0
  %v819 = vsel %vm766, %v551, 0
  %v822 = vsel %vm766, %v554, 0
  %v825 = vsel %vm766, %v557, 0
  %v828 = vsel %vm766, %v560, 0
  %v831 = vsel %vm766, %v563, 0
  %v834 = vsel %vm766, %v566, 0
  %v837 = vsel %vm766, %v569, 0
  %v840 = vsel %vm766, %v572, 0
  %v843 = vsel %vm766, %v575, 0
  %v846 = vsel %vm766, %v578, 0
  %v849 = vsel %vm766, %v581, 0
  %v852 = vsel %vm766, %v584, 0
  %v855 = vsel %vm766, %v587, 0
  %v858 = vsel %vm766, %v590, 0
  %v861 = vsel %vm766, %v593, 0
  %863 = vmatprep.subr.bf16.mxu0 0
  %864 = vmatpush1.bf16.msra.mxu0 %v730
  %865 = vmatprep.subr.bf16.mxu0 0
  %866 = vmatpush1.bf16.msra.mxu0 %v731
  %867 = vmatprep.subr.bf16.mxu0 0
  %868 = vmatpush1.bf16.msra.mxu0 %v732
  %869 = vmatprep.subr.bf16.mxu0 0
  %870 = vmatpush1.bf16.msra.mxu0 %v733
  %871 = vmatprep.subr.bf16.mxu0 0
  %872 = vmatpush1.bf16.msra.mxu0 %v734
  %873 = vmatprep.subr.bf16.mxu0 0
  %874 = vmatpush1.bf16.msra.mxu0 %v735
  %875 = vmatprep.subr.bf16.mxu0 0
  %876 = vmatpush1.bf16.msra.mxu0 %v736
  %877 = vmatprep.subr.bf16.mxu0 0
  %878 = vmatpush1.bf16.msra.mxu0 %v737
  %879 = vmatprep.subr.bf16.mxu0 0
  %880 = vmatpush1.bf16.msra.mxu0 %v738
  %881 = vmatprep.subr.bf16.mxu0 0
  %882 = vmatpush1.bf16.msra.mxu0 %v739
  %883 = vmatprep.subr.bf16.mxu0 0
  %884 = vmatpush1.bf16.msra.mxu0 %v740
  %885 = vmatprep.subr.bf16.mxu0 0
  %886 = vmatpush1.bf16.msra.mxu0 %v741
  %887 = vmatprep.subr.bf16.mxu0 0
  %888 = vmatpush1.bf16.msra.mxu0 %v742
  %889 = vmatprep.subr.bf16.mxu0 0
  %890 = vmatpush1.bf16.msra.mxu0 %v743
  %891 = vmatprep.subr.bf16.mxu0 0
  %892 = vmatpush1.bf16.msra.mxu0 %v744
  %893 = vmatprep.subr.bf16.mxu0 0
  %894 = vmatpush1.bf16.msra.mxu0 %v745
  %895 = vmatprep.mubr.bf16.mxu0 %v499
  %896 = vmatmul.mubr.bf16.gmra.mrb[0].mxu0 %v498
  %v897 = vpop.f32.mrb[0].mxu0
  %v898 = vadd.f32 0.0, %v897
  %v899 = vpop.f32.mrb[0].mxu0
  %v900 = vpop.f32.mrb[0].mxu0
  %v901 = vadd.f32 0.0, %v900
  %v902 = vpop.f32.mrb[0].mxu0
  %903 = vmatprep.mubr.bf16.mxu0 %v502
  %904 = vmatmul.mubr.bf16.gmra.mrb[0].mxu0 %v501
  %v905 = vpop.f32.mrb[0].mxu0
  %v906 = vadd.f32 0.0, %v905
  %v907 = vpop.f32.mrb[0].mxu0
  %v908 = vpop.f32.mrb[0].mxu0
  %v909 = vadd.f32 0.0, %v908
  %v910 = vpop.f32.mrb[0].mxu0
  %911 = vmatprep.mubr.bf16.mxu0 %v505
  %912 = vmatmul.mubr.bf16.gmra.mrb[0].mxu0 %v504
  %v913 = vpop.f32.mrb[0].mxu0
  %v914 = vadd.f32 0.0, %v913
  %v915 = vpop.f32.mrb[0].mxu0
  %v916 = vpop.f32.mrb[0].mxu0
  %v917 = vadd.f32 0.0, %v916
  %v918 = vpop.f32.mrb[0].mxu0
  %919 = vmatprep.mubr.bf16.mxu0 %v508
  %920 = vmatmul.mubr.bf16.gmra.mrb[0].mxu0 %v507
  %v921 = vpop.f32.mrb[0].mxu0
  %v922 = vadd.f32 0.0, %v921
  %v923 = vpop.f32.mrb[0].mxu0
  %v924 = vpop.f32.mrb[0].mxu0
  %v925 = vadd.f32 0.0, %v924
  %v926 = vpop.f32.mrb[0].mxu0
  %927 = vmatprep.mubr.bf16.mxu0 %v511
  %928 = vmatmul.mubr.bf16.gmra.mrb[0].mxu0 %v510
  %v929 = vpop.f32.mrb[0].mxu0
  %v930 = vadd.f32 0.0, %v929
  %v931 = vpop.f32.mrb[0].mxu0
  %v932 = vpop.f32.mrb[0].mxu0
  %v933 = vadd.f32 0.0, %v932
  %v934 = vpop.f32.mrb[0].mxu0
  %935 = vmatprep.mubr.bf16.mxu0 %v514
  %936 = vmatmul.mubr.bf16.gmra.mrb[0].mxu0 %v513
  %v937 = vpop.f32.mrb[0].mxu0
  %v938 = vadd.f32 0.0, %v937
  %v939 = vpop.f32.mrb[0].mxu0
  %v940 = vpop.f32.mrb[0].mxu0
  %v941 = vadd.f32 0.0, %v940
  %v942 = vpop.f32.mrb[0].mxu0
  %943 = vmatprep.mubr.bf16.mxu0 %v517
  %944 = vmatmul.mubr.bf16.gmra.mrb[0].mxu0 %v516
  %v945 = vpop.f32.mrb[0].mxu0
  %v946 = vadd.f32 0.0, %v945
  %v947 = vpop.f32.mrb[0].mxu0
  %v948 = vpop.f32.mrb[0].mxu0
  %v949 = vadd.f32 0.0, %v948
  %v950 = vpop.f32.mrb[0].mxu0
  %951 = vmatprep.mubr.bf16.mxu0 %v520
  %952 = vmatmul.mubr.bf16.gmra.mrb[0].mxu0 %v519
  %v953 = vpop.f32.mrb[0].mxu0
  %v954 = vadd.f32 0.0, %v953
  %v955 = vpop.f32.mrb[0].mxu0
  %v956 = vpop.f32.mrb[0].mxu0
  %v957 = vadd.f32 0.0, %v956
  %v958 = vpop.f32.mrb[0].mxu0
  %959 = vmatprep.mubr.bf16.mxu0 %v523
  %960 = vmatmul.mubr.bf16.gmra.mrb[0].mxu0 %v522
  %v961 = vpop.f32.mrb[0].mxu0
  %v962 = vadd.f32 0.0, %v961
  %v963 = vpop.f32.mrb[0].mxu0
  %v964 = vpop.f32.mrb[0].mxu0
  %v965 = vadd.f32 0.0, %v964
  %v966 = vpop.f32.mrb[0].mxu0
  %967 = vmatprep.mubr.bf16.mxu0 %v526
  %968 = vmatmul.mubr.bf16.gmra.mrb[0].mxu0 %v525
  %v969 = vpop.f32.mrb[0].mxu0
  %v970 = vadd.f32 0.0, %v969
  %v971 = vpop.f32.mrb[0].mxu0
  %v972 = vpop.f32.mrb[0].mxu0
  %v973 = vadd.f32 0.0, %v972
  %v974 = vpop.f32.mrb[0].mxu0
  %975 = vmatprep.mubr.bf16.mxu0 %v529
  %976 = vmatmul.mubr.bf16.gmra.mrb[0].mxu0 %v528
  %v977 = vpop.f32.mrb[0].mxu0
  %v978 = vadd.f32 0.0, %v977
  %v979 = vpop.f32.mrb[0].mxu0
  %v980 = vpop.f32.mrb[0].mxu0
  %v981 = vadd.f32 0.0, %v980
  %v982 = vpop.f32.mrb[0].mxu0
  %983 = vmatprep.mubr.bf16.mxu0 %v532
  %984 = vmatmul.mubr.bf16.gmra.mrb[0].mxu0 %v531
  %v985 = vpop.f32.mrb[0].mxu0
  %v986 = vadd.f32 0.0, %v985
  %v987 = vpop.f32.mrb[0].mxu0
  %v988 = vpop.f32.mrb[0].mxu0
  %v989 = vadd.f32 0.0, %v988
  %v990 = vpop.f32.mrb[0].mxu0
  %991 = vmatprep.mubr.bf16.mxu0 %v535
  %992 = vmatmul.mubr.bf16.gmra.mrb[0].mxu0 %v534
  %v993 = vpop.f32.mrb[0].mxu0
  %v994 = vadd.f32 0.0, %v993
  %v995 = vpop.f32.mrb[0].mxu0
  %v996 = vpop.f32.mrb[0].mxu0
  %v997 = vadd.f32 0.0, %v996
  %v998 = vpop.f32.mrb[0].mxu0
  %999 = vmatprep.mubr.bf16.mxu0 %v538
  %1000 = vmatmul.mubr.bf16.gmra.mrb[0].mxu0 %v537
  %v1001 = vpop.f32.mrb[0].mxu0
  %v1002 = vadd.f32 0.0, %v1001
  %v1003 = vpop.f32.mrb[0].mxu0
  %v1004 = vpop.f32.mrb[0].mxu0
  %v1005 = vadd.f32 0.0, %v1004
  %v1006 = vpop.f32.mrb[0].mxu0
  %1007 = vmatprep.mubr.bf16.mxu0 %v541
  %1008 = vmatmul.mubr.bf16.gmra.mrb[0].mxu0 %v540
  %v1009 = vpop.f32.mrb[0].mxu0
  %v1010 = vadd.f32 0.0, %v1009
  %v1011 = vpop.f32.mrb[0].mxu0
  %v1012 = vpop.f32.mrb[0].mxu0
  %v1013 = vadd.f32 0.0, %v1012
  %v1014 = vpop.f32.mrb[0].mxu0
  %1015 = vmatprep.mubr.bf16.mxu0 %v544
  %1016 = vmatmul.mubr.bf16.gmra.mrb[0].mxu0 %v543
  %v1017 = vpop.f32.mrb[0].mxu0
  %v1018 = vadd.f32 0.0, %v1017
  %v1019 = vpop.f32.mrb[0].mxu0
  %v1020 = vpop.f32.mrb[0].mxu0
  %v1021 = vadd.f32 0.0, %v1020
  %v1022 = vpop.f32.mrb[0].mxu0
  %1023 = vmatprep.mubr.bf16.mxu0 %v547
  %1024 = vmatmul.mubr.bf16.gmra.mrb[0].mxu0 %v546
  %v1025 = vpop.f32.mrb[0].mxu0
  %v1026 = vadd.f32 0.0, %v1025
  %v1027 = vpop.f32.mrb[0].mxu0
  %v1028 = vpop.f32.mrb[0].mxu0
  %v1029 = vadd.f32 0.0, %v1028
  %v1030 = vpop.f32.mrb[0].mxu0
  %1031 = vmatprep.mubr.bf16.mxu0 %v550
  %1032 = vmatmul.mubr.bf16.gmra.mrb[0].mxu0 %v549
  %v1033 = vpop.f32.mrb[0].mxu0
  %v1034 = vadd.f32 0.0, %v1033
  %v1035 = vpop.f32.mrb[0].mxu0
  %v1036 = vpop.f32.mrb[0].mxu0
  %v1037 = vadd.f32 0.0, %v1036
  %v1038 = vpop.f32.mrb[0].mxu0
  %1039 = vmatprep.mubr.bf16.mxu0 %v553
  %1040 = vmatmul.mubr.bf16.gmra.mrb[0].mxu0 %v552
  %v1041 = vpop.f32.mrb[0].mxu0
  %v1042 = vadd.f32 0.0, %v1041
  %v1043 = vpop.f32.mrb[0].mxu0
  %v1044 = vpop.f32.mrb[0].mxu0
  %v1045 = vadd.f32 0.0, %v1044
  %v1046 = vpop.f32.mrb[0].mxu0
  %1047 = vmatprep.mubr.bf16.mxu0 %v556
  %1048 = vmatmul.mubr.bf16.gmra.mrb[0].mxu0 %v555
  %v1049 = vpop.f32.mrb[0].mxu0
  %v1050 = vadd.f32 0.0, %v1049
  %v1051 = vpop.f32.mrb[0].mxu0
  %v1052 = vpop.f32.mrb[0].mxu0
  %v1053 = vadd.f32 0.0, %v1052
  %v1054 = vpop.f32.mrb[0].mxu0
  %1055 = vmatprep.mubr.bf16.mxu0 %v559
  %1056 = vmatmul.mubr.bf16.gmra.mrb[0].mxu0 %v558
  %v1057 = vpop.f32.mrb[0].mxu0
  %v1058 = vadd.f32 0.0, %v1057
  %v1059 = vpop.f32.mrb[0].mxu0
  %v1060 = vpop.f32.mrb[0].mxu0
  %v1061 = vadd.f32 0.0, %v1060
  %v1062 = vpop.f32.mrb[0].mxu0
  %1063 = vmatprep.mubr.bf16.mxu0 %v562
  %1064 = vmatmul.mubr.bf16.gmra.mrb[0].mxu0 %v561
  %v1065 = vpop.f32.mrb[0].mxu0
  %v1066 = vadd.f32 0.0, %v1065
  %v1067 = vpop.f32.mrb[0].mxu0
  %v1068 = vpop.f32.mrb[0].mxu0
  %v1069 = vadd.f32 0.0, %v1068
  %v1070 = vpop.f32.mrb[0].mxu0
  %1071 = vmatprep.mubr.bf16.mxu0 %v565
  %1072 = vmatmul.mubr.bf16.gmra.mrb[0].mxu0 %v564
  %v1073 = vpop.f32.mrb[0].mxu0
  %v1074 = vadd.f32 0.0, %v1073
  %v1075 = vpop.f32.mrb[0].mxu0
  %v1076 = vpop.f32.mrb[0].mxu0
  %v1077 = vadd.f32 0.0, %v1076
  %v1078 = vpop.f32.mrb[0].mxu0
  %1079 = vmatprep.mubr.bf16.mxu0 %v568
  %1080 = vmatmul.mubr.bf16.gmra.mrb[0].mxu0 %v567
  %v1081 = vpop.f32.mrb[0].mxu0
  %v1082 = vadd.f32 0.0, %v1081
  %v1083 = vpop.f32.mrb[0].mxu0
  %v1084 = vpop.f32.mrb[0].mxu0
  %v1085 = vadd.f32 0.0, %v1084
  %v1086 = vpop.f32.mrb[0].mxu0
  %1087 = vmatprep.mubr.bf16.mxu0 %v571
  %1088 = vmatmul.mubr.bf16.gmra.mrb[0].mxu0 %v570
  %v1089 = vpop.f32.mrb[0].mxu0
  %v1090 = vadd.f32 0.0, %v1089
  %v1091 = vpop.f32.mrb[0].mxu0
  %v1092 = vpop.f32.mrb[0].mxu0
  %v1093 = vadd.f32 0.0, %v1092
  %v1094 = vpop.f32.mrb[0].mxu0
  %1095 = vmatprep.mubr.bf16.mxu0 %v574
  %1096 = vmatmul.mubr.bf16.gmra.mrb[0].mxu0 %v573
  %v1097 = vpop.f32.mrb[0].mxu0
  %v1098 = vadd.f32 0.0, %v1097
  %v1099 = vpop.f32.mrb[0].mxu0
  %v1100 = vpop.f32.mrb[0].mxu0
  %v1101 = vadd.f32 0.0, %v1100
  %v1102 = vpop.f32.mrb[0].mxu0
  %1103 = vmatprep.mubr.bf16.mxu0 %v577
  %1104 = vmatmul.mubr.bf16.gmra.mrb[0].mxu0 %v576
  %v1105 = vpop.f32.mrb[0].mxu0
  %v1106 = vadd.f32 0.0, %v1105
  %v1107 = vpop.f32.mrb[0].mxu0
  %v1108 = vpop.f32.mrb[0].mxu0
  %v1109 = vadd.f32 0.0, %v1108
  %v1110 = vpop.f32.mrb[0].mxu0
  %1111 = vmatprep.mubr.bf16.mxu0 %v580
  %1112 = vmatmul.mubr.bf16.gmra.mrb[0].mxu0 %v579
  %v1113 = vpop.f32.mrb[0].mxu0
  %v1114 = vadd.f32 0.0, %v1113
  %v1115 = vpop.f32.mrb[0].mxu0
  %v1116 = vpop.f32.mrb[0].mxu0
  %v1117 = vadd.f32 0.0, %v1116
  %v1118 = vpop.f32.mrb[0].mxu0
  %1119 = vmatprep.mubr.bf16.mxu0 %v583
  %1120 = vmatmul.mubr.bf16.gmra.mrb[0].mxu0 %v582
  %v1121 = vpop.f32.mrb[0].mxu0
  %v1122 = vadd.f32 0.0, %v1121
  %v1123 = vpop.f32.mrb[0].mxu0
  %v1124 = vpop.f32.mrb[0].mxu0
  %v1125 = vadd.f32 0.0, %v1124
  %v1126 = vpop.f32.mrb[0].mxu0
  %1127 = vmatprep.mubr.bf16.mxu0 %v586
  %1128 = vmatmul.mubr.bf16.gmra.mrb[0].mxu0 %v585
  %v1129 = vpop.f32.mrb[0].mxu0
  %v1130 = vadd.f32 0.0, %v1129
  %v1131 = vpop.f32.mrb[0].mxu0
  %v1132 = vpop.f32.mrb[0].mxu0
  %v1133 = vadd.f32 0.0, %v1132
  %v1134 = vpop.f32.mrb[0].mxu0
  %1135 = vmatprep.mubr.bf16.mxu0 %v589
  %1136 = vmatmul.mubr.bf16.gmra.mrb[0].mxu0 %v588
  %v1137 = vpop.f32.mrb[0].mxu0
  %v1138 = vadd.f32 0.0, %v1137
  %v1139 = vpop.f32.mrb[0].mxu0
  %v1140 = vpop.f32.mrb[0].mxu0
  %v1141 = vadd.f32 0.0, %v1140
  %v1142 = vpop.f32.mrb[0].mxu0
  %1143 = vmatprep.mubr.bf16.mxu0 %v592
  %1144 = vmatmul.mubr.bf16.gmra.mrb[0].mxu0 %v591
  %v1145 = vpop.f32.mrb[0].mxu0
  %v1146 = vadd.f32 0.0, %v1145
  %v1147 = vpop.f32.mrb[0].mxu0
  %v1148 = vpop.f32.mrb[0].mxu0
  %v1149 = vadd.f32 0.0, %v1148
  %v1150 = vpop.f32.mrb[0].mxu0
  %1151 = vdwg.mxu0
  %1152 = vmatprep.subr.bf16.mxu0 0
  %1153 = vmatpush1.bf16.msra.mxu0 %v746
  %1154 = vmatprep.subr.bf16.mxu0 0
  %1155 = vmatpush1.bf16.msra.mxu0 %v747
  %1156 = vmatprep.subr.bf16.mxu0 0
  %1157 = vmatpush1.bf16.msra.mxu0 0
  %1158 = vmatprep.subr.bf16.mxu0 0
  %1159 = vmatpush1.bf16.msra.mxu0 0
  %1160 = vmatprep.subr.bf16.mxu0 0
  %1161 = vmatpush1.bf16.msra.mxu0 0
  %1162 = vmatprep.subr.bf16.mxu0 0
  %1163 = vmatpush1.bf16.msra.mxu0 0
  %1164 = vmatprep.subr.bf16.mxu0 0
  %1165 = vmatpush1.bf16.msra.mxu0 0
  %1166 = vmatprep.subr.bf16.mxu0 0
  %1167 = vmatpush1.bf16.msra.mxu0 0
  %1168 = vmatprep.subr.bf16.mxu0 0
  %1169 = vmatpush1.bf16.msra.mxu0 0
  %1170 = vmatprep.subr.bf16.mxu0 0
  %1171 = vmatpush1.bf16.msra.mxu0 0
  %1172 = vmatprep.subr.bf16.mxu0 0
  %1173 = vmatpush1.bf16.msra.mxu0 0
  %1174 = vmatprep.subr.bf16.mxu0 0
  %1175 = vmatpush1.bf16.msra.mxu0 0
  %1176 = vmatprep.subr.bf16.mxu0 0
  %1177 = vmatpush1.bf16.msra.mxu0 0
  %1178 = vmatprep.subr.bf16.mxu0 0
  %1179 = vmatpush1.bf16.msra.mxu0 0
  %1180 = vmatprep.subr.bf16.mxu0 0
  %1181 = vmatpush1.bf16.msra.mxu0 0
  %1182 = vmatprep.subr.bf16.mxu0 0
  %1183 = vmatpush1.bf16.msra.mxu0 0
  %1184 = vmatprep.mubr.bf16.mxu0 0
  %1185 = vmatmul.mubr.bf16.gmra.mrb[0].mxu0 %v768
  %v1186 = vpop.f32.mrb[0].mxu0
  %v1187 = vadd.f32 %v898, %v1186
  %v1188 = vpop.f32.mrb[0].mxu0
  %v1189 = vpop.f32.mrb[0].mxu0
  %v1190 = vadd.f32 %v901, %v1189
  %v1191 = vpop.f32.mrb[0].mxu0
  %1192 = vmatprep.mubr.bf16.mxu0 0
  %1193 = vmatmul.mubr.bf16.gmra.mrb[0].mxu0 %v771
  %v1194 = vpop.f32.mrb[0].mxu0
  %v1195 = vadd.f32 %v906, %v1194
  %v1196 = vpop.f32.mrb[0].mxu0
  %v1197 = vpop.f32.mrb[0].mxu0
  %v1198 = vadd.f32 %v909, %v1197
  %v1199 = vpop.f32.mrb[0].mxu0
  %1200 = vmatprep.mubr.bf16.mxu0 0
  %1201 = vmatmul.mubr.bf16.gmra.mrb[0].mxu0 %v774
  %v1202 = vpop.f32.mrb[0].mxu0
  %v1203 = vadd.f32 %v914, %v1202
  %v1204 = vpop.f32.mrb[0].mxu0
  %v1205 = vpop.f32.mrb[0].mxu0
  %v1206 = vadd.f32 %v917, %v1205
  %v1207 = vpop.f32.mrb[0].mxu0
  %1208 = vmatprep.mubr.bf16.mxu0 0
  %1209 = vmatmul.mubr.bf16.gmra.mrb[0].mxu0 %v777
  %v1210 = vpop.f32.mrb[0].mxu0
  %v1211 = vadd.f32 %v922, %v1210
  %v1212 = vpop.f32.mrb[0].mxu0
  %v1213 = vpop.f32.mrb[0].mxu0
  %v1214 = vadd.f32 %v925, %v1213
  %v1215 = vpop.f32.mrb[0].mxu0
  %1216 = vmatprep.mubr.bf16.mxu0 0
  %1217 = vmatmul.mubr.bf16.gmra.mrb[0].mxu0 %v780
  %v1218 = vpop.f32.mrb[0].mxu0
  %v1219 = vadd.f32 %v930, %v1218
  %v1220 = vpop.f32.mrb[0].mxu0
  %v1221 = vpop.f32.mrb[0].mxu0
  %v1222 = vadd.f32 %v933, %v1221
  %v1223 = vpop.f32.mrb[0].mxu0
  %1224 = vmatprep.mubr.bf16.mxu0 0
  %1225 = vmatmul.mubr.bf16.gmra.mrb[0].mxu0 %v783
  %v1226 = vpop.f32.mrb[0].mxu0
  %v1227 = vadd.f32 %v938, %v1226
  %v1228 = vpop.f32.mrb[0].mxu0
  %v1229 = vpop.f32.mrb[0].mxu0
  %v1230 = vadd.f32 %v941, %v1229
  %v1231 = vpop.f32.mrb[0].mxu0
  %1232 = vmatprep.mubr.bf16.mxu0 0
  %1233 = vmatmul.mubr.bf16.gmra.mrb[0].mxu0 %v786
  %v1234 = vpop.f32.mrb[0].mxu0
  %v1235 = vadd.f32 %v946, %v1234
  %v1236 = vpop.f32.mrb[0].mxu0
  %v1237 = vpop.f32.mrb[0].mxu0
  %v1238 = vadd.f32 %v949, %v1237
  %v1239 = vpop.f32.mrb[0].mxu0
  %1240 = vmatprep.mubr.bf16.mxu0 0
  %1241 = vmatmul.mubr.bf16.gmra.mrb[0].mxu0 %v789
  %v1242 = vpop.f32.mrb[0].mxu0
  %v1243 = vadd.f32 %v954, %v1242
  %v1244 = vpop.f32.mrb[0].mxu0
  %v1245 = vpop.f32.mrb[0].mxu0
  %v1246 = vadd.f32 %v957, %v1245
  %v1247 = vpop.f32.mrb[0].mxu0
  %1248 = vmatprep.mubr.bf16.mxu0 0
  %1249 = vmatmul.mubr.bf16.gmra.mrb[0].mxu0 %v792
  %v1250 = vpop.f32.mrb[0].mxu0
  %v1251 = vadd.f32 %v962, %v1250
  %v1252 = vpop.f32.mrb[0].mxu0
  %v1253 = vpop.f32.mrb[0].mxu0
  %v1254 = vadd.f32 %v965, %v1253
  %v1255 = vpop.f32.mrb[0].mxu0
  %1256 = vmatprep.mubr.bf16.mxu0 0
  %1257 = vmatmul.mubr.bf16.gmra.mrb[0].mxu0 %v795
  %v1258 = vpop.f32.mrb[0].mxu0
  %v1259 = vadd.f32 %v970, %v1258
  %v1260 = vpop.f32.mrb[0].mxu0
  %v1261 = vpop.f32.mrb[0].mxu0
  %v1262 = vadd.f32 %v973, %v1261
  %v1263 = vpop.f32.mrb[0].mxu0
  %1264 = vmatprep.mubr.bf16.mxu0 0
  %1265 = vmatmul.mubr.bf16.gmra.mrb[0].mxu0 %v798
  %v1266 = vpop.f32.mrb[0].mxu0
  %v1267 = vadd.f32 %v978, %v1266
  %v1268 = vpop.f32.mrb[0].mxu0
  %v1269 = vpop.f32.mrb[0].mxu0
  %v1270 = vadd.f32 %v981, %v1269
  %v1271 = vpop.f32.mrb[0].mxu0
  %1272 = vmatprep.mubr.bf16.mxu0 0
  %1273 = vmatmul.mubr.bf16.gmra.mrb[0].mxu0 %v801
  %v1274 = vpop.f32.mrb[0].mxu0
  %v1275 = vadd.f32 %v986, %v1274
  %v1276 = vpop.f32.mrb[0].mxu0
  %v1277 = vpop.f32.mrb[0].mxu0
  %v1278 = vadd.f32 %v989, %v1277
  %v1279 = vpop.f32.mrb[0].mxu0
  %1280 = vmatprep.mubr.bf16.mxu0 0
  %1281 = vmatmul.mubr.bf16.gmra.mrb[0].mxu0 %v804
  %v1282 = vpop.f32.mrb[0].mxu0
  %v1283 = vadd.f32 %v994, %v1282
  %v1284 = vpop.f32.mrb[0].mxu0
  %v1285 = vpop.f32.mrb[0].mxu0
  %v1286 = vadd.f32 %v997, %v1285
  %v1287 = vpop.f32.mrb[0].mxu0
  %1288 = vmatprep.mubr.bf16.mxu0 0
  %1289 = vmatmul.mubr.bf16.gmra.mrb[0].mxu0 %v807
  %v1290 = vpop.f32.mrb[0].mxu0
  %v1291 = vadd.f32 %v1002, %v1290
  %v1292 = vpop.f32.mrb[0].mxu0
  %v1293 = vpop.f32.mrb[0].mxu0
  %v1294 = vadd.f32 %v1005, %v1293
  %v1295 = vpop.f32.mrb[0].mxu0
  %1296 = vmatprep.mubr.bf16.mxu0 0
  %1297 = vmatmul.mubr.bf16.gmra.mrb[0].mxu0 %v810
  %v1298 = vpop.f32.mrb[0].mxu0
  %v1299 = vadd.f32 %v1010, %v1298
  %v1300 = vpop.f32.mrb[0].mxu0
  %v1301 = vpop.f32.mrb[0].mxu0
  %v1302 = vadd.f32 %v1013, %v1301
  %v1303 = vpop.f32.mrb[0].mxu0
  %1304 = vmatprep.mubr.bf16.mxu0 0
  %1305 = vmatmul.mubr.bf16.gmra.mrb[0].mxu0 %v813
  %v1306 = vpop.f32.mrb[0].mxu0
  %v1307 = vadd.f32 %v1018, %v1306
  %v1308 = vpop.f32.mrb[0].mxu0
  %v1309 = vpop.f32.mrb[0].mxu0
  %v1310 = vadd.f32 %v1021, %v1309
  %v1311 = vpop.f32.mrb[0].mxu0
  %1312 = vmatprep.mubr.bf16.mxu0 0
  %1313 = vmatmul.mubr.bf16.gmra.mrb[0].mxu0 %v816
  %v1314 = vpop.f32.mrb[0].mxu0
  %v1315 = vadd.f32 %v1026, %v1314
  %v1316 = vpop.f32.mrb[0].mxu0
  %v1317 = vpop.f32.mrb[0].mxu0
  %v1318 = vadd.f32 %v1029, %v1317
  %v1319 = vpop.f32.mrb[0].mxu0
  %1320 = vmatprep.mubr.bf16.mxu0 0
  %1321 = vmatmul.mubr.bf16.gmra.mrb[0].mxu0 %v819
  %v1322 = vpop.f32.mrb[0].mxu0
  %v1323 = vadd.f32 %v1034, %v1322
  %v1324 = vpop.f32.mrb[0].mxu0
  %v1325 = vpop.f32.mrb[0].mxu0
  %v1326 = vadd.f32 %v1037, %v1325
  %v1327 = vpop.f32.mrb[0].mxu0
  %1328 = vmatprep.mubr.bf16.mxu0 0
  %1329 = vmatmul.mubr.bf16.gmra.mrb[0].mxu0 %v822
  %v1330 = vpop.f32.mrb[0].mxu0
  %v1331 = vadd.f32 %v1042, %v1330
  %v1332 = vpop.f32.mrb[0].mxu0
  %v1333 = vpop.f32.mrb[0].mxu0
  %v1334 = vadd.f32 %v1045, %v1333
  %v1335 = vpop.f32.mrb[0].mxu0
  %1336 = vmatprep.mubr.bf16.mxu0 0
  %1337 = vmatmul.mubr.bf16.gmra.mrb[0].mxu0 %v825
  %v1338 = vpop.f32.mrb[0].mxu0
  %v1339 = vadd.f32 %v1050, %v1338
  %v1340 = vpop.f32.mrb[0].mxu0
  %v1341 = vpop.f32.mrb[0].mxu0
  %v1342 = vadd.f32 %v1053, %v1341
  %v1343 = vpop.f32.mrb[0].mxu0
  %1344 = vmatprep.mubr.bf16.mxu0 0
  %1345 = vmatmul.mubr.bf16.gmra.mrb[0].mxu0 %v828
  %v1346 = vpop.f32.mrb[0].mxu0
  %v1347 = vadd.f32 %v1058, %v1346
  %v1348 = vpop.f32.mrb[0].mxu0
  %v1349 = vpop.f32.mrb[0].mxu0
  %v1350 = vadd.f32 %v1061, %v1349
  %v1351 = vpop.f32.mrb[0].mxu0
  %1352 = vmatprep.mubr.bf16.mxu0 0
  %1353 = vmatmul.mubr.bf16.gmra.mrb[0].mxu0 %v831
  %v1354 = vpop.f32.mrb[0].mxu0
  %v1355 = vadd.f32 %v1066, %v1354
  %v1356 = vpop.f32.mrb[0].mxu0
  %v1357 = vpop.f32.mrb[0].mxu0
  %v1358 = vadd.f32 %v1069, %v1357
  %v1359 = vpop.f32.mrb[0].mxu0
  %1360 = vmatprep.mubr.bf16.mxu0 0
  %1361 = vmatmul.mubr.bf16.gmra.mrb[0].mxu0 %v834
  %v1362 = vpop.f32.mrb[0].mxu0
  %v1363 = vadd.f32 %v1074, %v1362
  %v1364 = vpop.f32.mrb[0].mxu0
  %v1365 = vpop.f32.mrb[0].mxu0
  %v1366 = vadd.f32 %v1077, %v1365
  %v1367 = vpop.f32.mrb[0].mxu0
  %1368 = vmatprep.mubr.bf16.mxu0 0
  %1369 = vmatmul.mubr.bf16.gmra.mrb[0].mxu0 %v837
  %v1370 = vpop.f32.mrb[0].mxu0
  %v1371 = vadd.f32 %v1082, %v1370
  %v1372 = vpop.f32.mrb[0].mxu0
  %v1373 = vpop.f32.mrb[0].mxu0
  %v1374 = vadd.f32 %v1085, %v1373
  %v1375 = vpop.f32.mrb[0].mxu0
  %1376 = vmatprep.mubr.bf16.mxu0 0
  %1377 = vmatmul.mubr.bf16.gmra.mrb[0].mxu0 %v840
  %v1378 = vpop.f32.mrb[0].mxu0
  %v1379 = vadd.f32 %v1090, %v1378
  %v1380 = vpop.f32.mrb[0].mxu0
  %v1381 = vpop.f32.mrb[0].mxu0
  %v1382 = vadd.f32 %v1093, %v1381
  %v1383 = vpop.f32.mrb[0].mxu0
  %1384 = vmatprep.mubr.bf16.mxu0 0
  %1385 = vmatmul.mubr.bf16.gmra.mrb[0].mxu0 %v843
  %v1386 = vpop.f32.mrb[0].mxu0
  %v1387 = vadd.f32 %v1098, %v1386
  %v1388 = vpop.f32.mrb[0].mxu0
  %v1389 = vpop.f32.mrb[0].mxu0
  %v1390 = vadd.f32 %v1101, %v1389
  %v1391 = vpop.f32.mrb[0].mxu0
  %1392 = vmatprep.mubr.bf16.mxu0 0
  %1393 = vmatmul.mubr.bf16.gmra.mrb[0].mxu0 %v846
  %v1394 = vpop.f32.mrb[0].mxu0
  %v1395 = vadd.f32 %v1106, %v1394
  %v1396 = vpop.f32.mrb[0].mxu0
  %v1397 = vpop.f32.mrb[0].mxu0
  %v1398 = vadd.f32 %v1109, %v1397
  %v1399 = vpop.f32.mrb[0].mxu0
  %1400 = vmatprep.mubr.bf16.mxu0 0
  %1401 = vmatmul.mubr.bf16.gmra.mrb[0].mxu0 %v849
  %v1402 = vpop.f32.mrb[0].mxu0
  %v1403 = vadd.f32 %v1114, %v1402
  %v1404 = vpop.f32.mrb[0].mxu0
  %v1405 = vpop.f32.mrb[0].mxu0
  %v1406 = vadd.f32 %v1117, %v1405
  %v1407 = vpop.f32.mrb[0].mxu0
  %1408 = vmatprep.mubr.bf16.mxu0 0
  %1409 = vmatmul.mubr.bf16.gmra.mrb[0].mxu0 %v852
  %v1410 = vpop.f32.mrb[0].mxu0
  %v1411 = vadd.f32 %v1122, %v1410
  %v1412 = vpop.f32.mrb[0].mxu0
  %v1413 = vpop.f32.mrb[0].mxu0
  %v1414 = vadd.f32 %v1125, %v1413
  %v1415 = vpop.f32.mrb[0].mxu0
  %1416 = vmatprep.mubr.bf16.mxu0 0
  %1417 = vmatmul.mubr.bf16.gmra.mrb[0].mxu0 %v855
  %v1418 = vpop.f32.mrb[0].mxu0
  %v1419 = vadd.f32 %v1130, %v1418
  %v1420 = vpop.f32.mrb[0].mxu0
  %v1421 = vpop.f32.mrb[0].mxu0
  %v1422 = vadd.f32 %v1133, %v1421
  %v1423 = vpop.f32.mrb[0].mxu0
  %1424 = vmatprep.mubr.bf16.mxu0 0
  %1425 = vmatmul.mubr.bf16.gmra.mrb[0].mxu0 %v858
  %v1426 = vpop.f32.mrb[0].mxu0
  %v1427 = vadd.f32 %v1138, %v1426
  %v1428 = vpop.f32.mrb[0].mxu0
  %v1429 = vpop.f32.mrb[0].mxu0
  %v1430 = vadd.f32 %v1141, %v1429
  %v1431 = vpop.f32.mrb[0].mxu0
  %1432 = vmatprep.mubr.bf16.mxu0 0
  %1433 = vmatmul.mubr.bf16.gmra.mrb[0].mxu0 %v861
  %v1434 = vpop.f32.mrb[0].mxu0
  %v1435 = vadd.f32 %v1146, %v1434
  %v1436 = vpop.f32.mrb[0].mxu0
  %v1437 = vpop.f32.mrb[0].mxu0
  %v1438 = vadd.f32 %v1149, %v1437
  %v1439 = vpop.f32.mrb[0].mxu0
  %1440 = vdwg.mxu0
  %1441 = vst.msk [vmem:[%s2] sm:$0xff] %vm766, %v1187
  %1442 = vst.msk [vmem:[%s2 + $0x8] sm:$0xff] %vm766, %v1190
  %1443 = vst.msk [vmem:[%s2 + $0x10] sm:$0xff] %vm766, %v1195
  %1444 = vst.msk [vmem:[%s2 + $0x18] sm:$0xff] %vm766, %v1198
  %1445 = vst.msk [vmem:[%s2 + $0x20] sm:$0xff] %vm766, %v1203
  %1446 = vst.msk [vmem:[%s2 + $0x28] sm:$0xff] %vm766, %v1206
  %1447 = vst.msk [vmem:[%s2 + $0x30] sm:$0xff] %vm766, %v1211
  %1448 = vst.msk [vmem:[%s2 + $0x38] sm:$0xff] %vm766, %v1214
  %1449 = vst.msk [vmem:[%s2 + $0x40] sm:$0xff] %vm766, %v1219
  %1450 = vst.msk [vmem:[%s2 + $0x48] sm:$0xff] %vm766, %v1222
  %1451 = vst.msk [vmem:[%s2 + $0x50] sm:$0xff] %vm766, %v1227
  %1452 = vst.msk [vmem:[%s2 + $0x58] sm:$0xff] %vm766, %v1230
  %1453 = vst.msk [vmem:[%s2 + $0x60] sm:$0xff] %vm766, %v1235
  %1454 = vst.msk [vmem:[%s2 + $0x68] sm:$0xff] %vm766, %v1238
  %1455 = vst.msk [vmem:[%s2 + $0x70] sm:$0xff] %vm766, %v1243
  %1456 = vst.msk [vmem:[%s2 + $0x78] sm:$0xff] %vm766, %v1246
  %1457 = vst.msk [vmem:[%s2 + $0x80] sm:$0xff] %vm766, %v1251
  %1458 = vst.msk [vmem:[%s2 + $0x88] sm:$0xff] %vm766, %v1254
  %1459 = vst.msk [vmem:[%s2 + $0x90] sm:$0xff] %vm766, %v1259
  %1460 = vst.msk [vmem:[%s2 + $0x98] sm:$0xff] %vm766, %v1262
  %1461 = vst.msk [vmem:[%s2 + $0xa0] sm:$0xff] %vm766, %v1267
  %1462 = vst.msk [vmem:[%s2 + $0xa8] sm:$0xff] %vm766, %v1270
  %1463 = vst.msk [vmem:[%s2 + $0xb0] sm:$0xff] %vm766, %v1275
  %1464 = vst.msk [vmem:[%s2 + $0xb8] sm:$0xff] %vm766, %v1278
  %1465 = vst.msk [vmem:[%s2 + $0xc0] sm:$0xff] %vm766, %v1283
  %1466 = vst.msk [vmem:[%s2 + $0xc8] sm:$0xff] %vm766, %v1286
  %1467 = vst.msk [vmem:[%s2 + $0xd0] sm:$0xff] %vm766, %v1291
  %1468 = vst.msk [vmem:[%s2 + $0xd8] sm:$0xff] %vm766, %v1294
  %1469 = vst.msk [vmem:[%s2 + $0xe0] sm:$0xff] %vm766, %v1299
  %1470 = vst.msk [vmem:[%s2 + $0xe8] sm:$0xff] %vm766, %v1302
  %1471 = vst.msk [vmem:[%s2 + $0xf0] sm:$0xff] %vm766, %v1307
  %1472 = vst.msk [vmem:[%s2 + $0xf8] sm:$0xff] %vm766, %v1310
  %1473 = vst.msk [vmem:[%s2 + $0x100] sm:$0xff] %vm766, %v1315
  %1474 = vst.msk [vmem:[%s2 + $0x108] sm:$0xff] %vm766, %v1318
  %1475 = vst.msk [vmem:[%s2 + $0x110] sm:$0xff] %vm766, %v1323
  %1476 = vst.msk [vmem:[%s2 + $0x118] sm:$0xff] %vm766, %v1326
  %1477 = vst.msk [vmem:[%s2 + $0x120] sm:$0xff] %vm766, %v1331
  %1478 = vst.msk [vmem:[%s2 + $0x128] sm:$0xff] %vm766, %v1334
  %1479 = vst.msk [vmem:[%s2 + $0x130] sm:$0xff] %vm766, %v1339
  %1480 = vst.msk [vmem:[%s2 + $0x138] sm:$0xff] %vm766, %v1342
  %1481 = vst.msk [vmem:[%s2 + $0x140] sm:$0xff] %vm766, %v1347
  %1482 = vst.msk [vmem:[%s2 + $0x148] sm:$0xff] %vm766, %v1350
  %1483 = vst.msk [vmem:[%s2 + $0x150] sm:$0xff] %vm766, %v1355
  %1484 = vst.msk [vmem:[%s2 + $0x158] sm:$0xff] %vm766, %v1358
  %1485 = vst.msk [vmem:[%s2 + $0x160] sm:$0xff] %vm766, %v1363
  %1486 = vst.msk [vmem:[%s2 + $0x168] sm:$0xff] %vm766, %v1366
  %1487 = vst.msk [vmem:[%s2 + $0x170] sm:$0xff] %vm766, %v1371
  %1488 = vst.msk [vmem:[%s2 + $0x178] sm:$0xff] %vm766, %v1374
  %1489 = vst.msk [vmem:[%s2 + $0x180] sm:$0xff] %vm766, %v1379
  %1490 = vst.msk [vmem:[%s2 + $0x188] sm:$0xff] %vm766, %v1382
  %1491 = vst.msk [vmem:[%s2 + $0x190] sm:$0xff] %vm766, %v1387
  %1492 = vst.msk [vmem:[%s2 + $0x198] sm:$0xff] %vm766, %v1390
  %1493 = vst.msk [vmem:[%s2 + $0x1a0] sm:$0xff] %vm766, %v1395
  %1494 = vst.msk [vmem:[%s2 + $0x1a8] sm:$0xff] %vm766, %v1398
  %1495 = vst.msk [vmem:[%s2 + $0x1b0] sm:$0xff] %vm766, %v1403
  %1496 = vst.msk [vmem:[%s2 + $0x1b8] sm:$0xff] %vm766, %v1406
  %1497 = vst.msk [vmem:[%s2 + $0x1c0] sm:$0xff] %vm766, %v1411
  %1498 = vst.msk [vmem:[%s2 + $0x1c8] sm:$0xff] %vm766, %v1414
  %1499 = vst.msk [vmem:[%s2 + $0x1d0] sm:$0xff] %vm766, %v1419
  %1500 = vst.msk [vmem:[%s2 + $0x1d8] sm:$0xff] %vm766, %v1422
  %1501 = vst.msk [vmem:[%s2 + $0x1e0] sm:$0xff] %vm766, %v1427
  %1502 = vst.msk [vmem:[%s2 + $0x1e8] sm:$0xff] %vm766, %v1430
  %1503 = vst.msk [vmem:[%s2 + $0x1f0] sm:$0xff] %vm766, %v1435
  %1504 = vst.msk [vmem:[%s2 + $0x1f8] sm:$0xff] %vm766, %v1438
  %s1505 = smul.u32 0, 512
  %v1506 = vlaneseq
  %v1507 = vshrl.u32 %v1506, 7
  %v1508 = vadd.s32 %v1507, 8
  %v1509 = vadd.s32 %v1507, 16
  %v1510 = vadd.s32 %v1507, 24
  %v1511 = vadd.s32 %v1507, 32
  %v1512 = vadd.s32 %v1507, 40
  %v1513 = vadd.s32 %v1507, 48
  %v1514 = vadd.s32 %v1507, 56
  %v1515 = vadd.s32 %v1507, 64
  %v1516 = vadd.s32 %v1507, 72
  %v1517 = vadd.s32 %v1507, 80
  %v1518 = vadd.s32 %v1507, 88
  %v1519 = vadd.s32 %v1507, 96
  %v1520 = vadd.s32 %v1507, 104
  %v1521 = vadd.s32 %v1507, 112
  %v1522 = vadd.s32 %v1507, 120
  %v1523 = vadd.s32 %v1507, 128
  %v1524 = vadd.s32 %v1507, 136
  %v1525 = vadd.s32 %v1507, 144
  %v1526 = vadd.s32 %v1507, 152
  %v1527 = vadd.s32 %v1507, 160
  %v1528 = vadd.s32 %v1507, 168
  %v1529 = vadd.s32 %v1507, 176
  %v1530 = vadd.s32 %v1507, 184
  %v1531 = vadd.s32 %v1507, 192
  %v1532 = vadd.s32 %v1507, 200
  %v1533 = vadd.s32 %v1507, 208
  %v1534 = vadd.s32 %v1507, 216
  %v1535 = vadd.s32 %v1507, 224
  %v1536 = vadd.s32 %v1507, 232
  %v1537 = vadd.s32 %v1507, 240
  %v1538 = vadd.s32 %v1507, 248
  %v1539 = vadd.s32 %v1507, 256
  %v1540 = vadd.s32 %v1507, 264
  %v1541 = vadd.s32 %v1507, 272
  %v1542 = vadd.s32 %v1507, 280
  %v1543 = vadd.s32 %v1507, 288
  %v1544 = vadd.s32 %v1507, 296
  %v1545 = vadd.s32 %v1507, 304
  %v1546 = vadd.s32 %v1507, 312
  %v1547 = vadd.s32 %v1507, 320
  %v1548 = vadd.s32 %v1507, 328
  %v1549 = vadd.s32 %v1507, 336
  %v1550 = vadd.s32 %v1507, 344
  %v1551 = vadd.s32 %v1507, 352
  %v1552 = vadd.s32 %v1507, 360
  %v1553 = vadd.s32 %v1507, 368
  %v1554 = vadd.s32 %v1507, 376
  %v1555 = vadd.s32 %v1507, 384
  %v1556 = vadd.s32 %v1507, 392
  %v1557 = vadd.s32 %v1507, 400
  %v1558 = vadd.s32 %v1507, 408
  %v1559 = vadd.s32 %v1507, 416
  %v1560 = vadd.s32 %v1507, 424
  %v1561 = vadd.s32 %v1507, 432
  %v1562 = vadd.s32 %v1507, 440
  %v1563 = vadd.s32 %v1507, 448
  %v1564 = vadd.s32 %v1507, 456
  %v1565 = vadd.s32 %v1507, 464
  %v1566 = vadd.s32 %v1507, 472
  %v1567 = vadd.s32 %v1507, 480
  %v1568 = vadd.s32 %v1507, 488
  %v1569 = vadd.s32 %v1507, 496
  %v1570 = vadd.s32 %v1507, 504
  %v1571 = vstv %s1505
  %v1572 = vadd.s32 %v1571, %v1507
  %v1573 = vadd.s32 %v1571, %v1508
  %v1574 = vadd.s32 %v1571, %v1509
  %v1575 = vadd.s32 %v1571, %v1510
  %v1576 = vadd.s32 %v1571, %v1511
  %v1577 = vadd.s32 %v1571, %v1512
  %v1578 = vadd.s32 %v1571, %v1513
  %v1579 = vadd.s32 %v1571, %v1514
  %v1580 = vadd.s32 %v1571, %v1515
  %v1581 = vadd.s32 %v1571, %v1516
  %v1582 = vadd.s32 %v1571, %v1517
  %v1583 = vadd.s32 %v1571, %v1518
  %v1584 = vadd.s32 %v1571, %v1519
  %v1585 = vadd.s32 %v1571, %v1520
  %v1586 = vadd.s32 %v1571, %v1521
  %v1587 = vadd.s32 %v1571, %v1522
  %v1588 = vadd.s32 %v1571, %v1523
  %v1589 = vadd.s32 %v1571, %v1524
  %v1590 = vadd.s32 %v1571, %v1525
  %v1591 = vadd.s32 %v1571, %v1526
  %v1592 = vadd.s32 %v1571, %v1527
  %v1593 = vadd.s32 %v1571, %v1528
  %v1594 = vadd.s32 %v1571, %v1529
  %v1595 = vadd.s32 %v1571, %v1530
  %v1596 = vadd.s32 %v1571, %v1531
  %v1597 = vadd.s32 %v1571, %v1532
  %v1598 = vadd.s32 %v1571, %v1533
  %v1599 = vadd.s32 %v1571, %v1534
  %v1600 = vadd.s32 %v1571, %v1535
  %v1601 = vadd.s32 %v1571, %v1536
  %v1602 = vadd.s32 %v1571, %v1537
  %v1603 = vadd.s32 %v1571, %v1538
  %v1604 = vadd.s32 %v1571, %v1539
  %v1605 = vadd.s32 %v1571, %v1540
  %v1606 = vadd.s32 %v1571, %v1541
  %v1607 = vadd.s32 %v1571, %v1542
  %v1608 = vadd.s32 %v1571, %v1543
  %v1609 = vadd.s32 %v1571, %v1544
  %v1610 = vadd.s32 %v1571, %v1545
  %v1611 = vadd.s32 %v1571, %v1546
  %v1612 = vadd.s32 %v1571, %v1547
  %v1613 = vadd.s32 %v1571, %v1548
  %v1614 = vadd.s32 %v1571, %v1549
  %v1615 = vadd.s32 %v1571, %v1550
  %v1616 = vadd.s32 %v1571, %v1551
  %v1617 = vadd.s32 %v1571, %v1552
  %v1618 = vadd.s32 %v1571, %v1553
  %v1619 = vadd.s32 %v1571, %v1554
  %v1620 = vadd.s32 %v1571, %v1555
  %v1621 = vadd.s32 %v1571, %v1556
  %v1622 = vadd.s32 %v1571, %v1557
  %v1623 = vadd.s32 %v1571, %v1558
  %v1624 = vadd.s32 %v1571, %v1559
  %v1625 = vadd.s32 %v1571, %v1560
  %v1626 = vadd.s32 %v1571, %v1561
  %v1627 = vadd.s32 %v1571, %v1562
  %v1628 = vadd.s32 %v1571, %v1563
  %v1629 = vadd.s32 %v1571, %v1564
  %v1630 = vadd.s32 %v1571, %v1565
  %v1631 = vadd.s32 %v1571, %v1566
  %v1632 = vadd.s32 %v1571, %v1567
  %v1633 = vadd.s32 %v1571, %v1568
  %v1634 = vadd.s32 %v1571, %v1569
  %v1635 = vadd.s32 %v1571, %v1570
  %vm1636 = vcmp.lt.s32.totalorder %v1572, 512
  %vm1637 = vcmp.lt.s32.totalorder %v1573, 512
  %vm1638 = vcmp.lt.s32.totalorder %v1574, 512
  %vm1639 = vcmp.lt.s32.totalorder %v1575, 512
  %vm1640 = vcmp.lt.s32.totalorder %v1576, 512
  %vm1641 = vcmp.lt.s32.totalorder %v1577, 512
  %vm1642 = vcmp.lt.s32.totalorder %v1578, 512
  %vm1643 = vcmp.lt.s32.totalorder %v1579, 512
  %vm1644 = vcmp.lt.s32.totalorder %v1580, 512
  %vm1645 = vcmp.lt.s32.totalorder %v1581, 512
  %vm1646 = vcmp.lt.s32.totalorder %v1582, 512
  %vm1647 = vcmp.lt.s32.totalorder %v1583, 512
  %vm1648 = vcmp.lt.s32.totalorder %v1584, 512
  %vm1649 = vcmp.lt.s32.totalorder %v1585, 512
  %vm1650 = vcmp.lt.s32.totalorder %v1586, 512
  %vm1651 = vcmp.lt.s32.totalorder %v1587, 512
  %vm1652 = vcmp.lt.s32.totalorder %v1588, 512
  %vm1653 = vcmp.lt.s32.totalorder %v1589, 512
  %vm1654 = vcmp.lt.s32.totalorder %v1590, 512
  %vm1655 = vcmp.lt.s32.totalorder %v1591, 512
  %vm1656 = vcmp.lt.s32.totalorder %v1592, 512
  %vm1657 = vcmp.lt.s32.totalorder %v1593, 512
  %vm1658 = vcmp.lt.s32.totalorder %v1594, 512
  %vm1659 = vcmp.lt.s32.totalorder %v1595, 512
  %vm1660 = vcmp.lt.s32.totalorder %v1596, 512
  %vm1661 = vcmp.lt.s32.totalorder %v1597, 512
  %vm1662 = vcmp.lt.s32.totalorder %v1598, 512
  %vm1663 = vcmp.lt.s32.totalorder %v1599, 512
  %vm1664 = vcmp.lt.s32.totalorder %v1600, 512
  %vm1665 = vcmp.lt.s32.totalorder %v1601, 512
  %vm1666 = vcmp.lt.s32.totalorder %v1602, 512
  %vm1667 = vcmp.lt.s32.totalorder %v1603, 512
  %vm1668 = vcmp.lt.s32.totalorder %v1604, 512
  %vm1669 = vcmp.lt.s32.totalorder %v1605, 512
  %vm1670 = vcmp.lt.s32.totalorder %v1606, 512
  %vm1671 = vcmp.lt.s32.totalorder %v1607, 512
  %vm1672 = vcmp.lt.s32.totalorder %v1608, 512
  %vm1673 = vcmp.lt.s32.totalorder %v1609, 512
  %vm1674 = vcmp.lt.s32.totalorder %v1610, 512
  %vm1675 = vcmp.lt.s32.totalorder %v1611, 512
  %vm1676 = vcmp.lt.s32.totalorder %v1612, 512
  %vm1677 = vcmp.lt.s32.totalorder %v1613, 512
  %vm1678 = vcmp.lt.s32.totalorder %v1614, 512
  %vm1679 = vcmp.lt.s32.totalorder %v1615, 512
  %vm1680 = vcmp.lt.s32.totalorder %v1616, 512
  %vm1681 = vcmp.lt.s32.totalorder %v1617, 512
  %vm1682 = vcmp.lt.s32.totalorder %v1618, 512
  %vm1683 = vcmp.lt.s32.totalorder %v1619, 512
  %vm1684 = vcmp.lt.s32.totalorder %v1620, 512
  %vm1685 = vcmp.lt.s32.totalorder %v1621, 512
  %vm1686 = vcmp.lt.s32.totalorder %v1622, 512
  %vm1687 = vcmp.lt.s32.totalorder %v1623, 512
  %vm1688 = vcmp.lt.s32.totalorder %v1624, 512
  %vm1689 = vcmp.lt.s32.totalorder %v1625, 512
  %vm1690 = vcmp.lt.s32.totalorder %v1626, 512
  %vm1691 = vcmp.lt.s32.totalorder %v1627, 512
  %vm1692 = vcmp.lt.s32.totalorder %v1628, 512
  %vm1693 = vcmp.lt.s32.totalorder %v1629, 512
  %vm1694 = vcmp.lt.s32.totalorder %v1630, 512
  %vm1695 = vcmp.lt.s32.totalorder %v1631, 512
  %vm1696 = vcmp.lt.s32.totalorder %v1632, 512
  %vm1697 = vcmp.lt.s32.totalorder %v1633, 512
  %vm1698 = vcmp.lt.s32.totalorder %v1634, 512
  %vm1699 = vcmp.lt.s32.totalorder %v1635, 512
  %v1700 = vsel %vm1636, 1, 0
  %v1701 = vsel %vm1637, 1, 0
  %v1702 = vsel %vm1638, 1, 0
  %v1703 = vsel %vm1639, 1, 0
  %v1704 = vsel %vm1640, 1, 0
  %v1705 = vsel %vm1641, 1, 0
  %v1706 = vsel %vm1642, 1, 0
  %v1707 = vsel %vm1643, 1, 0
  %v1708 = vsel %vm1644, 1, 0
  %v1709 = vsel %vm1645, 1, 0
  %v1710 = vsel %vm1646, 1, 0
  %v1711 = vsel %vm1647, 1, 0
  %v1712 = vsel %vm1648, 1, 0
  %v1713 = vsel %vm1649, 1, 0
  %v1714 = vsel %vm1650, 1, 0
  %v1715 = vsel %vm1651, 1, 0
  %v1716 = vsel %vm1652, 1, 0
  %v1717 = vsel %vm1653, 1, 0
  %v1718 = vsel %vm1654, 1, 0
  %v1719 = vsel %vm1655, 1, 0
  %v1720 = vsel %vm1656, 1, 0
  %v1721 = vsel %vm1657, 1, 0
  %v1722 = vsel %vm1658, 1, 0
  %v1723 = vsel %vm1659, 1, 0
  %v1724 = vsel %vm1660, 1, 0
  %v1725 = vsel %vm1661, 1, 0
  %v1726 = vsel %vm1662, 1, 0
  %v1727 = vsel %vm1663, 1, 0
  %v1728 = vsel %vm1664, 1, 0
  %v1729 = vsel %vm1665, 1, 0
  %v1730 = vsel %vm1666, 1, 0
  %v1731 = vsel %vm1667, 1, 0
  %v1732 = vsel %vm1668, 1, 0
  %v1733 = vsel %vm1669, 1, 0
  %v1734 = vsel %vm1670, 1, 0
  %v1735 = vsel %vm1671, 1, 0
  %v1736 = vsel %vm1672, 1, 0
  %v1737 = vsel %vm1673, 1, 0
  %v1738 = vsel %vm1674, 1, 0
  %v1739 = vsel %vm1675, 1, 0
  %v1740 = vsel %vm1676, 1, 0
  %v1741 = vsel %vm1677, 1, 0
  %v1742 = vsel %vm1678, 1, 0
  %v1743 = vsel %vm1679, 1, 0
  %v1744 = vsel %vm1680, 1, 0
  %v1745 = vsel %vm1681, 1, 0
  %v1746 = vsel %vm1682, 1, 0
  %v1747 = vsel %vm1683, 1, 0
  %v1748 = vsel %vm1684, 1, 0
  %v1749 = vsel %vm1685, 1, 0
  %v1750 = vsel %vm1686, 1, 0
  %v1751 = vsel %vm1687, 1, 0
  %v1752 = vsel %vm1688, 1, 0
  %v1753 = vsel %vm1689, 1, 0
  %v1754 = vsel %vm1690, 1, 0
  %v1755 = vsel %vm1691, 1, 0
  %v1756 = vsel %vm1692, 1, 0
  %v1757 = vsel %vm1693, 1, 0
  %v1758 = vsel %vm1694, 1, 0
  %v1759 = vsel %vm1695, 1, 0
  %v1760 = vsel %vm1696, 1, 0
  %v1761 = vsel %vm1697, 1, 0
  %v1762 = vsel %vm1698, 1, 0
  %v1763 = vsel %vm1699, 1, 0
  %v1764 = vcvt.s32.f32 %v1700
  %v1765 = vcvt.s32.f32 %v1701
  %v1766 = vcvt.s32.f32 %v1702
  %v1767 = vcvt.s32.f32 %v1703
  %v1768 = vcvt.s32.f32 %v1704
  %v1769 = vcvt.s32.f32 %v1705
  %v1770 = vcvt.s32.f32 %v1706
  %v1771 = vcvt.s32.f32 %v1707
  %v1772 = vcvt.s32.f32 %v1708
  %v1773 = vcvt.s32.f32 %v1709
  %v1774 = vcvt.s32.f32 %v1710
  %v1775 = vcvt.s32.f32 %v1711
  %v1776 = vcvt.s32.f32 %v1712
  %v1777 = vcvt.s32.f32 %v1713
  %v1778 = vcvt.s32.f32 %v1714
  %v1779 = vcvt.s32.f32 %v1715
  %v1780 = vcvt.s32.f32 %v1716
  %v1781 = vcvt.s32.f32 %v1717
  %v1782 = vcvt.s32.f32 %v1718
  %v1783 = vcvt.s32.f32 %v1719
  %v1784 = vcvt.s32.f32 %v1720
  %v1785 = vcvt.s32.f32 %v1721
  %v1786 = vcvt.s32.f32 %v1722
  %v1787 = vcvt.s32.f32 %v1723
  %v1788 = vcvt.s32.f32 %v1724
  %v1789 = vcvt.s32.f32 %v1725
  %v1790 = vcvt.s32.f32 %v1726
  %v1791 = vcvt.s32.f32 %v1727
  %v1792 = vcvt.s32.f32 %v1728
  %v1793 = vcvt.s32.f32 %v1729
  %v1794 = vcvt.s32.f32 %v1730
  %v1795 = vcvt.s32.f32 %v1731
  %v1796 = vcvt.s32.f32 %v1732
  %v1797 = vcvt.s32.f32 %v1733
  %v1798 = vcvt.s32.f32 %v1734
  %v1799 = vcvt.s32.f32 %v1735
  %v1800 = vcvt.s32.f32 %v1736
  %v1801 = vcvt.s32.f32 %v1737
  %v1802 = vcvt.s32.f32 %v1738
  %v1803 = vcvt.s32.f32 %v1739
  %v1804 = vcvt.s32.f32 %v1740
  %v1805 = vcvt.s32.f32 %v1741
  %v1806 = vcvt.s32.f32 %v1742
  %v1807 = vcvt.s32.f32 %v1743
  %v1808 = vcvt.s32.f32 %v1744
  %v1809 = vcvt.s32.f32 %v1745
  %v1810 = vcvt.s32.f32 %v1746
  %v1811 = vcvt.s32.f32 %v1747
  %v1812 = vcvt.s32.f32 %v1748
  %v1813 = vcvt.s32.f32 %v1749
  %v1814 = vcvt.s32.f32 %v1750
  %v1815 = vcvt.s32.f32 %v1751
  %v1816 = vcvt.s32.f32 %v1752
  %v1817 = vcvt.s32.f32 %v1753
  %v1818 = vcvt.s32.f32 %v1754
  %v1819 = vcvt.s32.f32 %v1755
  %v1820 = vcvt.s32.f32 %v1756
  %v1821 = vcvt.s32.f32 %v1757
  %v1822 = vcvt.s32.f32 %v1758
  %v1823 = vcvt.s32.f32 %v1759
  %v1824 = vcvt.s32.f32 %v1760
  %v1825 = vcvt.s32.f32 %v1761
  %v1826 = vcvt.s32.f32 %v1762
  %v1827 = vcvt.s32.f32 %v1763
  %v1828 = vmul.f32 %v1187, %v1764
  %v1829 = vmul.f32 %v1190, %v1765
  %v1830 = vmul.f32 %v1195, %v1766
  %v1831 = vmul.f32 %v1198, %v1767
  %v1832 = vmul.f32 %v1203, %v1768
  %v1833 = vmul.f32 %v1206, %v1769
  %v1834 = vmul.f32 %v1211, %v1770
  %v1835 = vmul.f32 %v1214, %v1771
  %v1836 = vmul.f32 %v1219, %v1772
  %v1837 = vmul.f32 %v1222, %v1773
  %v1838 = vmul.f32 %v1227, %v1774
  %v1839 = vmul.f32 %v1230, %v1775
  %v1840 = vmul.f32 %v1235, %v1776
  %v1841 = vmul.f32 %v1238, %v1777
  %v1842 = vmul.f32 %v1243, %v1778
  %v1843 = vmul.f32 %v1246, %v1779
  %v1844 = vmul.f32 %v1251, %v1780
  %v1845 = vmul.f32 %v1254, %v1781
  %v1846 = vmul.f32 %v1259, %v1782
  %v1847 = vmul.f32 %v1262, %v1783
  %v1848 = vmul.f32 %v1267, %v1784
  %v1849 = vmul.f32 %v1270, %v1785
  %v1850 = vmul.f32 %v1275, %v1786
  %v1851 = vmul.f32 %v1278, %v1787
  %v1852 = vmul.f32 %v1283, %v1788
  %v1853 = vmul.f32 %v1286, %v1789
  %v1854 = vmul.f32 %v1291, %v1790
  %v1855 = vmul.f32 %v1294, %v1791
  %v1856 = vmul.f32 %v1299, %v1792
  %v1857 = vmul.f32 %v1302, %v1793
  %v1858 = vmul.f32 %v1307, %v1794
  %v1859 = vmul.f32 %v1310, %v1795
  %v1860 = vmul.f32 %v1315, %v1796
  %v1861 = vmul.f32 %v1318, %v1797
  %v1862 = vmul.f32 %v1323, %v1798
  %v1863 = vmul.f32 %v1326, %v1799
  %v1864 = vmul.f32 %v1331, %v1800
  %v1865 = vmul.f32 %v1334, %v1801
  %v1866 = vmul.f32 %v1339, %v1802
  %v1867 = vmul.f32 %v1342, %v1803
  %v1868 = vmul.f32 %v1347, %v1804
  %v1869 = vmul.f32 %v1350, %v1805
  %v1870 = vmul.f32 %v1355, %v1806
  %v1871 = vmul.f32 %v1358, %v1807
  %v1872 = vmul.f32 %v1363, %v1808
  %v1873 = vmul.f32 %v1366, %v1809
  %v1874 = vmul.f32 %v1371, %v1810
  %v1875 = vmul.f32 %v1374, %v1811
  %v1876 = vmul.f32 %v1379, %v1812
  %v1877 = vmul.f32 %v1382, %v1813
  %v1878 = vmul.f32 %v1387, %v1814
  %v1879 = vmul.f32 %v1390, %v1815
  %v1880 = vmul.f32 %v1395, %v1816
  %v1881 = vmul.f32 %v1398, %v1817
  %v1882 = vmul.f32 %v1403, %v1818
  %v1883 = vmul.f32 %v1406, %v1819
  %v1884 = vmul.f32 %v1411, %v1820
  %v1885 = vmul.f32 %v1414, %v1821
  %v1886 = vmul.f32 %v1419, %v1822
  %v1887 = vmul.f32 %v1422, %v1823
  %v1888 = vmul.f32 %v1427, %v1824
  %v1889 = vmul.f32 %v1430, %v1825
  %v1890 = vmul.f32 %v1435, %v1826
  %v1891 = vmul.f32 %v1438, %v1827
  %v1892 = vsel %vm766, %v1828, 0.0
  %v1893 = vsel %vm766, %v1829, 0.0
  %v1894 = vadd.f32 %v1892, %v1893
  %v1895 = vsel %vm766, %v1830, 0.0
  %v1896 = vadd.f32 %v1894, %v1895
  %v1897 = vsel %vm766, %v1831, 0.0
  %v1898 = vadd.f32 %v1896, %v1897
  %v1899 = vsel %vm766, %v1832, 0.0
  %v1900 = vadd.f32 %v1898, %v1899
  %v1901 = vsel %vm766, %v1833, 0.0
  %v1902 = vadd.f32 %v1900, %v1901
  %v1903 = vsel %vm766, %v1834, 0.0
  %v1904 = vadd.f32 %v1902, %v1903
  %v1905 = vsel %vm766, %v1835, 0.0
  %v1906 = vadd.f32 %v1904, %v1905
  %v1907 = vsel %vm766, %v1836, 0.0
  %v1908 = vadd.f32 %v1906, %v1907
  %v1909 = vsel %vm766, %v1837, 0.0
  %v1910 = vadd.f32 %v1908, %v1909
  %v1911 = vsel %vm766, %v1838, 0.0
  %v1912 = vadd.f32 %v1910, %v1911
  %v1913 = vsel %vm766, %v1839, 0.0
  %v1914 = vadd.f32 %v1912, %v1913
  %v1915 = vsel %vm766, %v1840, 0.0
  %v1916 = vadd.f32 %v1914, %v1915
  %v1917 = vsel %vm766, %v1841, 0.0
  %v1918 = vadd.f32 %v1916, %v1917
  %v1919 = vsel %vm766, %v1842, 0.0
  %v1920 = vadd.f32 %v1918, %v1919
  %v1921 = vsel %vm766, %v1843, 0.0
  %v1922 = vadd.f32 %v1920, %v1921
  %v1923 = vsel %vm766, %v1844, 0.0
  %v1924 = vadd.f32 %v1922, %v1923
  %v1925 = vsel %vm766, %v1845, 0.0
  %v1926 = vadd.f32 %v1924, %v1925
  %v1927 = vsel %vm766, %v1846, 0.0
  %v1928 = vadd.f32 %v1926, %v1927
  %v1929 = vsel %vm766, %v1847, 0.0
  %v1930 = vadd.f32 %v1928, %v1929
  %v1931 = vsel %vm766, %v1848, 0.0
  %v1932 = vadd.f32 %v1930, %v1931
  %v1933 = vsel %vm766, %v1849, 0.0
  %v1934 = vadd.f32 %v1932, %v1933
  %v1935 = vsel %vm766, %v1850, 0.0
  %v1936 = vadd.f32 %v1934, %v1935
  %v1937 = vsel %vm766, %v1851, 0.0
  %v1938 = vadd.f32 %v1936, %v1937
  %v1939 = vsel %vm766, %v1852, 0.0
  %v1940 = vadd.f32 %v1938, %v1939
  %v1941 = vsel %vm766, %v1853, 0.0
  %v1942 = vadd.f32 %v1940, %v1941
  %v1943 = vsel %vm766, %v1854, 0.0
  %v1944 = vadd.f32 %v1942, %v1943
  %v1945 = vsel %vm766, %v1855, 0.0
  %v1946 = vadd.f32 %v1944, %v1945
  %v1947 = vsel %vm766, %v1856, 0.0
  %v1948 = vadd.f32 %v1946, %v1947
  %v1949 = vsel %vm766, %v1857, 0.0
  %v1950 = vadd.f32 %v1948, %v1949
  %v1951 = vsel %vm766, %v1858, 0.0
  %v1952 = vadd.f32 %v1950, %v1951
  %v1953 = vsel %vm766, %v1859, 0.0
  %v1954 = vadd.f32 %v1952, %v1953
  %v1955 = vsel %vm766, %v1860, 0.0
  %v1956 = vadd.f32 %v1954, %v1955
  %v1957 = vsel %vm766, %v1861, 0.0
  %v1958 = vadd.f32 %v1956, %v1957
  %v1959 = vsel %vm766, %v1862, 0.0
  %v1960 = vadd.f32 %v1958, %v1959
  %v1961 = vsel %vm766, %v1863, 0.0
  %v1962 = vadd.f32 %v1960, %v1961
  %v1963 = vsel %vm766, %v1864, 0.0
  %v1964 = vadd.f32 %v1962, %v1963
  %v1965 = vsel %vm766, %v1865, 0.0
  %v1966 = vadd.f32 %v1964, %v1965
  %v1967 = vsel %vm766, %v1866, 0.0
  %v1968 = vadd.f32 %v1966, %v1967
  %v1969 = vsel %vm766, %v1867, 0.0
  %v1970 = vadd.f32 %v1968, %v1969
  %v1971 = vsel %vm766, %v1868, 0.0
  %v1972 = vadd.f32 %v1970, %v1971
  %v1973 = vsel %vm766, %v1869, 0.0
  %v1974 = vadd.f32 %v1972, %v1973
  %v1975 = vsel %vm766, %v1870, 0.0
  %v1976 = vadd.f32 %v1974, %v1975
  %v1977 = vsel %vm766, %v1871, 0.0
  %v1978 = vadd.f32 %v1976, %v1977
  %v1979 = vsel %vm766, %v1872, 0.0
  %v1980 = vadd.f32 %v1978, %v1979
  %v1981 = vsel %vm766, %v1873, 0.0
  %v1982 = vadd.f32 %v1980, %v1981
  %v1983 = vsel %vm766, %v1874, 0.0
  %v1984 = vadd.f32 %v1982, %v1983
  %v1985 = vsel %vm766, %v1875, 0.0
  %v1986 = vadd.f32 %v1984, %v1985
  %v1987 = vsel %vm766, %v1876, 0.0
  %v1988 = vadd.f32 %v1986, %v1987
  %v1989 = vsel %vm766, %v1877, 0.0
  %v1990 = vadd.f32 %v1988, %v1989
  %v1991 = vsel %vm766, %v1878, 0.0
  %v1992 = vadd.f32 %v1990, %v1991
  %v1993 = vsel %vm766, %v1879, 0.0
  %v1994 = vadd.f32 %v1992, %v1993
  %v1995 = vsel %vm766, %v1880, 0.0
  %v1996 = vadd.f32 %v1994, %v1995
  %v1997 = vsel %vm766, %v1881, 0.0
  %v1998 = vadd.f32 %v1996, %v1997
  %v1999 = vsel %vm766, %v1882, 0.0
  %v2000 = vadd.f32 %v1998, %v1999
  %v2001 = vsel %vm766, %v1883, 0.0
  %v2002 = vadd.f32 %v2000, %v2001
  %v2003 = vsel %vm766, %v1884, 0.0
  %v2004 = vadd.f32 %v2002, %v2003
  %v2005 = vsel %vm766, %v1885, 0.0
  %v2006 = vadd.f32 %v2004, %v2005
  %v2007 = vsel %vm766, %v1886, 0.0
  %v2008 = vadd.f32 %v2006, %v2007
  %v2009 = vsel %vm766, %v1887, 0.0
  %v2010 = vadd.f32 %v2008, %v2009
  %v2011 = vsel %vm766, %v1888, 0.0
  %v2012 = vadd.f32 %v2010, %v2011
  %v2013 = vsel %vm766, %v1889, 0.0
  %v2014 = vadd.f32 %v2012, %v2013
  %v2015 = vsel %vm766, %v1890, 0.0
  %v2016 = vadd.f32 %v2014, %v2015
  %v2017 = vsel %vm766, %v1891, 0.0
  %v2018 = vadd.f32 %v2016, %v2017
  %v2019 = vrot.slane %v2018, 4
  %v2020 = vadd.f32 %v2018, %v2019
  %v2021 = vrot.slane %v2020, 2
  %v2022 = vadd.f32 %v2020, %v2021
  %v2023 = vrot.slane %v2022, 1
  %v2024 = vadd.f32 %v2022, %v2023
  %v2025 = vmul.f32 %v1828, %v1828
  %v2026 = vmul.f32 %v1829, %v1829
  %v2027 = vmul.f32 %v1830, %v1830
  %v2028 = vmul.f32 %v1831, %v1831
  %v2029 = vmul.f32 %v1832, %v1832
  %v2030 = vmul.f32 %v1833, %v1833
  %v2031 = vmul.f32 %v1834, %v1834
  %v2032 = vmul.f32 %v1835, %v1835
  %v2033 = vmul.f32 %v1836, %v1836
  %v2034 = vmul.f32 %v1837, %v1837
  %v2035 = vmul.f32 %v1838, %v1838
  %v2036 = vmul.f32 %v1839, %v1839
  %v2037 = vmul.f32 %v1840, %v1840
  %v2038 = vmul.f32 %v1841, %v1841
  %v2039 = vmul.f32 %v1842, %v1842
  %v2040 = vmul.f32 %v1843, %v1843
  %v2041 = vmul.f32 %v1844, %v1844
  %v2042 = vmul.f32 %v1845, %v1845
  %v2043 = vmul.f32 %v1846, %v1846
  %v2044 = vmul.f32 %v1847, %v1847
  %v2045 = vmul.f32 %v1848, %v1848
  %v2046 = vmul.f32 %v1849, %v1849
  %v2047 = vmul.f32 %v1850, %v1850
  %v2048 = vmul.f32 %v1851, %v1851
  %v2049 = vmul.f32 %v1852, %v1852
  %v2050 = vmul.f32 %v1853, %v1853
  %v2051 = vmul.f32 %v1854, %v1854
  %v2052 = vmul.f32 %v1855, %v1855
  %v2053 = vmul.f32 %v1856, %v1856
  %v2054 = vmul.f32 %v1857, %v1857
  %v2055 = vmul.f32 %v1858, %v1858
  %v2056 = vmul.f32 %v1859, %v1859
  %v2057 = vmul.f32 %v1860, %v1860
  %v2058 = vmul.f32 %v1861, %v1861
  %v2059 = vmul.f32 %v1862, %v1862
  %v2060 = vmul.f32 %v1863, %v1863
  %v2061 = vmul.f32 %v1864, %v1864
  %v2062 = vmul.f32 %v1865, %v1865
  %v2063 = vmul.f32 %v1866, %v1866
  %v2064 = vmul.f32 %v1867, %v1867
  %v2065 = vmul.f32 %v1868, %v1868
  %v2066 = vmul.f32 %v1869, %v1869
  %v2067 = vmul.f32 %v1870, %v1870
  %v2068 = vmul.f32 %v1871, %v1871
  %v2069 = vmul.f32 %v1872, %v1872
  %v2070 = vmul.f32 %v1873, %v1873
  %v2071 = vmul.f32 %v1874, %v1874
  %v2072 = vmul.f32 %v1875, %v1875
  %v2073 = vmul.f32 %v1876, %v1876
  %v2074 = vmul.f32 %v1877, %v1877
  %v2075 = vmul.f32 %v1878, %v1878
  %v2076 = vmul.f32 %v1879, %v1879
  %v2077 = vmul.f32 %v1880, %v1880
  %v2078 = vmul.f32 %v1881, %v1881
  %v2079 = vmul.f32 %v1882, %v1882
  %v2080 = vmul.f32 %v1883, %v1883
  %v2081 = vmul.f32 %v1884, %v1884
  %v2082 = vmul.f32 %v1885, %v1885
  %v2083 = vmul.f32 %v1886, %v1886
  %v2084 = vmul.f32 %v1887, %v1887
  %v2085 = vmul.f32 %v1888, %v1888
  %v2086 = vmul.f32 %v1889, %v1889
  %v2087 = vmul.f32 %v1890, %v1890
  %v2088 = vmul.f32 %v1891, %v1891
  %v2089 = vsel %vm766, %v2025, 0.0
  %v2090 = vsel %vm766, %v2026, 0.0
  %v2091 = vadd.f32 %v2089, %v2090
  %v2092 = vsel %vm766, %v2027, 0.0
  %v2093 = vadd.f32 %v2091, %v2092
  %v2094 = vsel %vm766, %v2028, 0.0
  %v2095 = vadd.f32 %v2093, %v2094
  %v2096 = vsel %vm766, %v2029, 0.0
  %v2097 = vadd.f32 %v2095, %v2096
  %v2098 = vsel %vm766, %v2030, 0.0
  %v2099 = vadd.f32 %v2097, %v2098
  %v2100 = vsel %vm766, %v2031, 0.0
  %v2101 = vadd.f32 %v2099, %v2100
  %v2102 = vsel %vm766, %v2032, 0.0
  %v2103 = vadd.f32 %v2101, %v2102
  %v2104 = vsel %vm766, %v2033, 0.0
  %v2105 = vadd.f32 %v2103, %v2104
  %v2106 = vsel %vm766, %v2034, 0.0
  %v2107 = vadd.f32 %v2105, %v2106
  %v2108 = vsel %vm766, %v2035, 0.0
  %v2109 = vadd.f32 %v2107, %v2108
  %v2110 = vsel %vm766, %v2036, 0.0
  %v2111 = vadd.f32 %v2109, %v2110
  %v2112 = vsel %vm766, %v2037, 0.0
  %v2113 = vadd.f32 %v2111, %v2112
  %v2114 = vsel %vm766, %v2038, 0.0
  %v2115 = vadd.f32 %v2113, %v2114
  %v2116 = vsel %vm766, %v2039, 0.0
  %v2117 = vadd.f32 %v2115, %v2116
  %v2118 = vsel %vm766, %v2040, 0.0
  %v2119 = vadd.f32 %v2117, %v2118
  %v2120 = vsel %vm766, %v2041, 0.0
  %v2121 = vadd.f32 %v2119, %v2120
  %v2122 = vsel %vm766, %v2042, 0.0
  %v2123 = vadd.f32 %v2121, %v2122
  %v2124 = vsel %vm766, %v2043, 0.0
  %v2125 = vadd.f32 %v2123, %v2124
  %v2126 = vsel %vm766, %v2044, 0.0
  %v2127 = vadd.f32 %v2125, %v2126
  %v2128 = vsel %vm766, %v2045, 0.0
  %v2129 = vadd.f32 %v2127, %v2128
  %v2130 = vsel %vm766, %v2046, 0.0
  %v2131 = vadd.f32 %v2129, %v2130
  %v2132 = vsel %vm766, %v2047, 0.0
  %v2133 = vadd.f32 %v2131, %v2132
  %v2134 = vsel %vm766, %v2048, 0.0
  %v2135 = vadd.f32 %v2133, %v2134
  %v2136 = vsel %vm766, %v2049, 0.0
  %v2137 = vadd.f32 %v2135, %v2136
  %v2138 = vsel %vm766, %v2050, 0.0
  %v2139 = vadd.f32 %v2137, %v2138
  %v2140 = vsel %vm766, %v2051, 0.0
  %v2141 = vadd.f32 %v2139, %v2140
  %v2142 = vsel %vm766, %v2052, 0.0
  %v2143 = vadd.f32 %v2141, %v2142
  %v2144 = vsel %vm766, %v2053, 0.0
  %v2145 = vadd.f32 %v2143, %v2144
  %v2146 = vsel %vm766, %v2054, 0.0
  %v2147 = vadd.f32 %v2145, %v2146
  %v2148 = vsel %vm766, %v2055, 0.0
  %v2149 = vadd.f32 %v2147, %v2148
  %v2150 = vsel %vm766, %v2056, 0.0
  %v2151 = vadd.f32 %v2149, %v2150
  %v2152 = vsel %vm766, %v2057, 0.0
  %v2153 = vadd.f32 %v2151, %v2152
  %v2154 = vsel %vm766, %v2058, 0.0
  %v2155 = vadd.f32 %v2153, %v2154
  %v2156 = vsel %vm766, %v2059, 0.0
  %v2157 = vadd.f32 %v2155, %v2156
  %v2158 = vsel %vm766, %v2060, 0.0
  %v2159 = vadd.f32 %v2157, %v2158
  %v2160 = vsel %vm766, %v2061, 0.0
  %v2161 = vadd.f32 %v2159, %v2160
  %v2162 = vsel %vm766, %v2062, 0.0
  %v2163 = vadd.f32 %v2161, %v2162
  %v2164 = vsel %vm766, %v2063, 0.0
  %v2165 = vadd.f32 %v2163, %v2164
  %v2166 = vsel %vm766, %v2064, 0.0
  %v2167 = vadd.f32 %v2165, %v2166
  %v2168 = vsel %vm766, %v2065, 0.0
  %v2169 = vadd.f32 %v2167, %v2168
  %v2170 = vsel %vm766, %v2066, 0.0
  %v2171 = vadd.f32 %v2169, %v2170
  %v2172 = vsel %vm766, %v2067, 0.0
  %v2173 = vadd.f32 %v2171, %v2172
  %v2174 = vsel %vm766, %v2068, 0.0
  %v2175 = vadd.f32 %v2173, %v2174
  %v2176 = vsel %vm766, %v2069, 0.0
  %v2177 = vadd.f32 %v2175, %v2176
  %v2178 = vsel %vm766, %v2070, 0.0
  %v2179 = vadd.f32 %v2177, %v2178
  %v2180 = vsel %vm766, %v2071, 0.0
  %v2181 = vadd.f32 %v2179, %v2180
  %v2182 = vsel %vm766, %v2072, 0.0
  %v2183 = vadd.f32 %v2181, %v2182
  %v2184 = vsel %vm766, %v2073, 0.0
  %v2185 = vadd.f32 %v2183, %v2184
  %v2186 = vsel %vm766, %v2074, 0.0
  %v2187 = vadd.f32 %v2185, %v2186
  %v2188 = vsel %vm766, %v2075, 0.0
  %v2189 = vadd.f32 %v2187, %v2188
  %v2190 = vsel %vm766, %v2076, 0.0
  %v2191 = vadd.f32 %v2189, %v2190
  %v2192 = vsel %vm766, %v2077, 0.0
  %v2193 = vadd.f32 %v2191, %v2192
  %v2194 = vsel %vm766, %v2078, 0.0
  %v2195 = vadd.f32 %v2193, %v2194
  %v2196 = vsel %vm766, %v2079, 0.0
  %v2197 = vadd.f32 %v2195, %v2196
  %v2198 = vsel %vm766, %v2080, 0.0
  %v2199 = vadd.f32 %v2197, %v2198
  %v2200 = vsel %vm766, %v2081, 0.0
  %v2201 = vadd.f32 %v2199, %v2200
  %v2202 = vsel %vm766, %v2082, 0.0
  %v2203 = vadd.f32 %v2201, %v2202
  %v2204 = vsel %vm766, %v2083, 0.0
  %v2205 = vadd.f32 %v2203, %v2204
  %v2206 = vsel %vm766, %v2084, 0.0
  %v2207 = vadd.f32 %v2205, %v2206
  %v2208 = vsel %vm766, %v2085, 0.0
  %v2209 = vadd.f32 %v2207, %v2208
  %v2210 = vsel %vm766, %v2086, 0.0
  %v2211 = vadd.f32 %v2209, %v2210
  %v2212 = vsel %vm766, %v2087, 0.0
  %v2213 = vadd.f32 %v2211, %v2212
  %v2214 = vsel %vm766, %v2088, 0.0
  %v2215 = vadd.f32 %v2213, %v2214
  %v2216 = vrot.slane %v2215, 4
  %v2217 = vadd.f32 %v2215, %v2216
  %v2218 = vrot.slane %v2217, 2
  %v2219 = vadd.f32 %v2217, %v2218
  %v2220 = vrot.slane %v2219, 1
  %v2221 = vadd.f32 %v2219, %v2220
  %vm2222 = vcmask 1040384
  %v2223 = vsel %vm2222, %v2024, %v2221
  %vm2224 = vcmask 1041408
  %v2225 = vsel %vm2224, %v2223, 0.0
  %2226 = vst.msk [vmem:[%s3] sm:$0xff] %vm766, %v2225
  // Predicated region
  $region10: #{discriminator_sr_forward.10} parent=0 // pred_check
    _
  $region11: #{discriminator_sr_forward.10} parent=0 // pred_check_branch
    %2228 = sbr.rel (0) target = $region13
  $region12: #{discriminator_sr_forward.10} parent=0 // pred_region
    _
  $region13: #{discriminator_sr_forward.10} parent=0 // pred_fallthru
    _
  // Predicated region
  $region14: #{discriminator_sr_forward.10} parent=0 // pred_check
    _
  $region15: #{discriminator_sr_forward.10} parent=0 // pred_check_branch
    %2230 = sbr.rel (0) target = $region17
  $region16: #{discriminator_sr_forward.10} parent=0 // pred_region
    _
  $region17: #{discriminator_sr_forward.10} parent=0 // pred_fallthru
    _
  // Predicated region
  $region18: #{discriminator_sr_forward.10} parent=0 // pred_check
    _
  $region19: #{discriminator_sr_forward.10} parent=0 // pred_check_branch
    %2232 = sbr.rel (0) target = $region21
  $region20: #{discriminator_sr_forward.10} parent=0 // pred_region
    _
  $region21: #{discriminator_sr_forward.10} parent=0 // pred_fallthru
    _
  // Predicated region
  $region22: #{discriminator_sr_forward.10} parent=0 // pred_check
    _
  $region23: #{discriminator_sr_forward.10} parent=0 // pred_check_branch
    %2234 = sbr.rel (0) target = $region25
  $region24: #{discriminator_sr_forward.10} parent=0 // pred_region
    _
  $region25: #{discriminator_sr_forward.10} parent=0 // pred_fallthru
    _

// kernel: discriminator_sr_forward.11
$region0: #{discriminator_sr_forward.11}
  #allocation0 [shape = 'u32[]', space=smem, size = 0x4, offset = 0x4, fixed_abs, tag = 'smem constant byte address 0x4 - core index']
  #allocation1 [shape = 'u32[144,128]{1,0:T(1,128)}', space=vmem, size = 0x12000, scoped, tag = 'internal scratch']
  %s0 = inlined_call_operand.vmem [shape: bf16[128,288], index: 0, kind: input, shape index: {}]
  %s1 = inlined_call_operand.vmem [shape: bf16[288,64], index: 1, kind: input, shape index: {}]
  %s2 = inlined_call_operand.vmem [shape: f32[128,64], index: 2, kind: output, shape index: {0}]
  %s3 = inlined_call_operand.vmem [shape: f32[8,64], index: 3, kind: output, shape index: {1}]
  %4 = xla_tuple %s2, %s3
  %s5 = sld [smem:[#allocation0]]
  $region26: #{discriminator_sr_forward.11} parent=0
    _
  %s7 = ssub.s32 1, %s5
  %s8 = scalar_select 0, %s7, %s5
  // Predicated region
  $region2: #{discriminator_sr_forward.11} parent=0 // pred_check
    _
  $region3: #{discriminator_sr_forward.11} parent=0 // pred_check_branch
    %10 = sbr.rel (0) target = $region5
  $region4: #{discriminator_sr_forward.11} parent=0 // pred_region
    _
  $region5: #{discriminator_sr_forward.11} parent=0 // pred_fallthru
    _
  // Predicated region
  $region6: #{discriminator_sr_forward.11} parent=0 // pred_check
    _
  $region7: #{discriminator_sr_forward.11} parent=0 // pred_check_branch
    %12 = sbr.rel (0) target = $region9
  $region8: #{discriminator_sr_forward.11} parent=0 // pred_region
    _
  $region9: #{discriminator_sr_forward.11} parent=0 // pred_fallthru
    _
  %v14 = vld [vmem:[%s0] sm:$0xff]
  %v15 = vld [vmem:[%s0 + $0x8] sm:$0xf]
  %v16 = vld [vmem:[%s0 + $0xc] sm:$0xff]
  %v17 = vld [vmem:[%s0 + $0x14] sm:$0xf]
  %v18 = vld [vmem:[%s0 + $0x18] sm:$0xff]
  %v19 = vld [vmem:[%s0 + $0x20] sm:$0xf]
  %v20 = vld [vmem:[%s0 + $0x24] sm:$0xff]
  %v21 = vld [vmem:[%s0 + $0x2c] sm:$0xf]
  %v22 = vld [vmem:[%s0 + $0x30] sm:$0xff]
  %v23 = vld [vmem:[%s0 + $0x38] sm:$0xf]
  %v24 = vld [vmem:[%s0 + $0x3c] sm:$0xff]
  %v25 = vld [vmem:[%s0 + $0x44] sm:$0xf]
  %v26 = vld [vmem:[%s0 + $0x48] sm:$0xff]
  %v27 = vld [vmem:[%s0 + $0x50] sm:$0xf]
  %v28 = vld [vmem:[%s0 + $0x54] sm:$0xff]
  %v29 = vld [vmem:[%s0 + $0x5c] sm:$0xf]
  %v30 = vld [vmem:[%s0 + $0x60] sm:$0xff]
  %v31 = vld [vmem:[%s0 + $0x68] sm:$0xf]
  %v32 = vld [vmem:[%s0 + $0x6c] sm:$0xff]
  %v33 = vld [vmem:[%s0 + $0x74] sm:$0xf]
  %v34 = vld [vmem:[%s0 + $0x78] sm:$0xff]
  %v35 = vld [vmem:[%s0 + $0x80] sm:$0xf]
  %v36 = vld [vmem:[%s0 + $0x84] sm:$0xff]
  %v37 = vld [vmem:[%s0 + $0x8c] sm:$0xf]
  %v38 = vld [vmem:[%s0 + $0x90] sm:$0xff]
  %v39 = vld [vmem:[%s0 + $0x98] sm:$0xf]
  %v40 = vld [vmem:[%s0 + $0x9c] sm:$0xff]
  %v41 = vld [vmem:[%s0 + $0xa4] sm:$0xf]
  %v42 = vld [vmem:[%s0 + $0xa8] sm:$0xff]
  %v43 = vld [vmem:[%s0 + $0xb0] sm:$0xf]
  %v44 = vld [vmem:[%s0 + $0xb4] sm:$0xff]
  %v45 = vld [vmem:[%s0 + $0xbc] sm:$0xf]
  %v46 = vld [vmem:[%s1] sm:$0xf]
  %v47 = vld [vmem:[%s1 + $0x4] sm:$0xf]
  %v48 = vld [vmem:[%s1 + $0x8] sm:$0xf]
  %v49 = vld [vmem:[%s1 + $0xc] sm:$0xf]
  %v50 = vld [vmem:[%s1 + $0x10] sm:$0xf]
  %v51 = vld [vmem:[%s1 + $0x14] sm:$0xf]
  %v52 = vld [vmem:[%s1 + $0x18] sm:$0xf]
  %v53 = vld [vmem:[%s1 + $0x1c] sm:$0xf]
  %v54 = vld [vmem:[%s1 + $0x20] sm:$0xf]
  %v55 = vld [vmem:[%s1 + $0x24] sm:$0xf]
  %v56 = vld [vmem:[%s1 + $0x28] sm:$0xf]
  %v57 = vld [vmem:[%s1 + $0x2c] sm:$0xf]
  %v58 = vld [vmem:[%s1 + $0x30] sm:$0xf]
  %v59 = vld [vmem:[%s1 + $0x34] sm:$0xf]
  %v60 = vld [vmem:[%s1 + $0x38] sm:$0xf]
  %v61 = vld [vmem:[%s1 + $0x3c] sm:$0xf]
  %v62 = vld [vmem:[%s1 + $0x40] sm:$0xf]
  %v63 = vld [vmem:[%s1 + $0x44] sm:$0xf]
  %v64 = vld [vmem:[%s1 + $0x48] sm:$0xf]
  %v65 = vld [vmem:[%s1 + $0x4c] sm:$0xf]
  %v66 = vld [vmem:[%s1 + $0x50] sm:$0xf]
  %v67 = vld [vmem:[%s1 + $0x54] sm:$0xf]
  %v68 = vld [vmem:[%s1 + $0x58] sm:$0xf]
  %v69 = vld [vmem:[%s1 + $0x5c] sm:$0xf]
  %v70 = vld [vmem:[%s1 + $0x60] sm:$0xf]
  %v71 = vld [vmem:[%s1 + $0x64] sm:$0xf]
  %v72 = vld [vmem:[%s1 + $0x68] sm:$0xf]
  %v73 = vld [vmem:[%s1 + $0x6c] sm:$0xf]
  %v74 = vld [vmem:[%s1 + $0x70] sm:$0xf]
  %v75 = vld [vmem:[%s1 + $0x74] sm:$0xf]
  %v76 = vld [vmem:[%s1 + $0x78] sm:$0xf]
  %v77 = vld [vmem:[%s1 + $0x7c] sm:$0xf]
  %v78 = vld [vmem:[%s1 + $0x80] sm:$0xf]
  %v79 = vld [vmem:[%s1 + $0x84] sm:$0xf]
  %v80 = vld [vmem:[%s1 + $0x88] sm:$0xf]
  %v81 = vld [vmem:[%s1 + $0x8c] sm:$0xf]
  %v114 = vunpack.c.l.b16 %v14
  %v115 = vunpack.c.h.b16 %v14
  %v116 = vunpack.c.l.b16 %v15
  %v117 = vunpack.c.l.b16 %v16
  %v118 = vunpack.c.h.b16 %v16
  %v119 = vunpack.c.l.b16 %v17
  %v120 = vunpack.c.l.b16 %v18
  %v121 = vunpack.c.h.b16 %v18
  %v122 = vunpack.c.l.b16 %v19
  %v123 = vunpack.c.l.b16 %v20
  %v124 = vunpack.c.h.b16 %v20
  %v125 = vunpack.c.l.b16 %v21
  %v126 = vunpack.c.l.b16 %v22
  %v127 = vunpack.c.h.b16 %v22
  %v128 = vunpack.c.l.b16 %v23
  %v129 = vunpack.c.l.b16 %v24
  %v130 = vunpack.c.h.b16 %v24
  %v131 = vunpack.c.l.b16 %v25
  %v132 = vunpack.c.l.b16 %v26
  %v133 = vunpack.c.h.b16 %v26
  %v134 = vunpack.c.l.b16 %v27
  %v135 = vunpack.c.l.b16 %v28
  %v136 = vunpack.c.h.b16 %v28
  %v137 = vunpack.c.l.b16 %v29
  %v138 = vunpack.c.l.b16 %v30
  %v139 = vunpack.c.h.b16 %v30
  %v140 = vunpack.c.l.b16 %v31
  %v141 = vunpack.c.l.b16 %v32
  %v142 = vunpack.c.h.b16 %v32
  %v143 = vunpack.c.l.b16 %v33
  %v144 = vunpack.c.l.b16 %v34
  %v145 = vunpack.c.h.b16 %v34
  %v146 = vunpack.c.l.b16 %v35
  %v147 = vunpack.c.l.b16 %v36
  %v148 = vunpack.c.h.b16 %v36
  %v149 = vunpack.c.l.b16 %v37
  %v150 = vunpack.c.l.b16 %v38
  %v151 = vunpack.c.h.b16 %v38
  %v152 = vunpack.c.l.b16 %v39
  %v153 = vunpack.c.l.b16 %v40
  %v154 = vunpack.c.h.b16 %v40
  %v155 = vunpack.c.l.b16 %v41
  %v156 = vunpack.c.l.b16 %v42
  %v157 = vunpack.c.h.b16 %v42
  %v158 = vunpack.c.l.b16 %v43
  %v159 = vunpack.c.l.b16 %v44
  %v160 = vunpack.c.h.b16 %v44
  %v161 = vunpack.c.l.b16 %v45
  %v162 = vpack.c.b16 %v117, %v114
  %v163 = vpack.c.b16 %v118, %v115
  %v164 = vpack.c.b16 %v119, %v116
  %v165 = vpack.c.b16 %v123, %v120
  %v166 = vpack.c.b16 %v124, %v121
  %v167 = vpack.c.b16 %v125, %v122
  %v168 = vpack.c.b16 %v129, %v126
  %v169 = vpack.c.b16 %v130, %v127
  %v170 = vpack.c.b16 %v131, %v128
  %v171 = vpack.c.b16 %v135, %v132
  %v172 = vpack.c.b16 %v136, %v133
  %v173 = vpack.c.b16 %v137, %v134
  %v174 = vpack.c.b16 %v141, %v138
  %v175 = vpack.c.b16 %v142, %v139
  %v176 = vpack.c.b16 %v143, %v140
  %v177 = vpack.c.b16 %v147, %v144
  %v178 = vpack.c.b16 %v148, %v145
  %v179 = vpack.c.b16 %v149, %v146
  %v180 = vpack.c.b16 %v153, %v150
  %v181 = vpack.c.b16 %v154, %v151
  %v182 = vpack.c.b16 %v155, %v152
  %v183 = vpack.c.b16 %v159, %v156
  %v184 = vpack.c.b16 %v160, %v157
  %v185 = vpack.c.b16 %v161, %v158
  %v238 = vunpack.c.l.b16 %v46
  %v239 = vunpack.c.l.b16 %v47
  %v240 = vunpack.c.l.b16 %v48
  %v241 = vunpack.c.l.b16 %v49
  %v242 = vunpack.c.l.b16 %v50
  %v243 = vunpack.c.l.b16 %v51
  %v244 = vunpack.c.l.b16 %v52
  %v245 = vunpack.c.l.b16 %v53
  %v246 = vunpack.c.l.b16 %v54
  %v247 = vunpack.c.l.b16 %v55
  %v248 = vunpack.c.l.b16 %v56
  %v249 = vunpack.c.l.b16 %v57
  %v250 = vunpack.c.l.b16 %v58
  %v251 = vunpack.c.l.b16 %v59
  %v252 = vunpack.c.l.b16 %v60
  %v253 = vunpack.c.l.b16 %v61
  %v254 = vunpack.c.l.b16 %v62
  %v255 = vunpack.c.l.b16 %v63
  %v256 = vunpack.c.l.b16 %v64
  %v257 = vunpack.c.l.b16 %v65
  %v258 = vunpack.c.l.b16 %v66
  %v259 = vunpack.c.l.b16 %v67
  %v260 = vunpack.c.l.b16 %v68
  %v261 = vunpack.c.l.b16 %v69
  %v262 = vunpack.c.l.b16 %v70
  %v263 = vunpack.c.l.b16 %v71
  %v264 = vunpack.c.l.b16 %v72
  %v265 = vunpack.c.l.b16 %v73
  %v266 = vunpack.c.l.b16 %v74
  %v267 = vunpack.c.l.b16 %v75
  %v268 = vunpack.c.l.b16 %v76
  %v269 = vunpack.c.l.b16 %v77
  %v270 = vunpack.c.l.b16 %v78
  %v271 = vunpack.c.l.b16 %v79
  %v272 = vunpack.c.l.b16 %v80
  %v273 = vunpack.c.l.b16 %v81
  %v274 = vpack.c.b16 %v239, %v238
  %v275 = vpack.c.b16 %v241, %v240
  %v276 = vpack.c.b16 %v243, %v242
  %v277 = vpack.c.b16 %v245, %v244
  %v278 = vpack.c.b16 %v247, %v246
  %v279 = vpack.c.b16 %v249, %v248
  %v280 = vpack.c.b16 %v251, %v250
  %v281 = vpack.c.b16 %v253, %v252
  %v282 = vpack.c.b16 %v255, %v254
  %v283 = vpack.c.b16 %v257, %v256
  %v284 = vpack.c.b16 %v259, %v258
  %v285 = vpack.c.b16 %v261, %v260
  %v286 = vpack.c.b16 %v263, %v262
  %v287 = vpack.c.b16 %v265, %v264
  %v288 = vpack.c.b16 %v267, %v266
  %v289 = vpack.c.b16 %v269, %v268
  %v290 = vpack.c.b16 %v271, %v270
  %v291 = vpack.c.b16 %v273, %v272
  %vm310 = vcmask 261120
  %v312 = vsel %vm310, %v164, 0
  %v315 = vsel %vm310, %v167, 0
  %v318 = vsel %vm310, %v170, 0
  %v321 = vsel %vm310, %v173, 0
  %v324 = vsel %vm310, %v176, 0
  %v327 = vsel %vm310, %v179, 0
  %v330 = vsel %vm310, %v182, 0
  %v333 = vsel %vm310, %v185, 0
  %335 = vmatprep.subr.bf16.mxu0 0
  %336 = vmatpush1.bf16.msra.mxu0 %v274
  %337 = vmatprep.subr.bf16.mxu0 0
  %338 = vmatpush1.bf16.msra.mxu0 %v275
  %339 = vmatprep.subr.bf16.mxu0 0
  %340 = vmatpush1.bf16.msra.mxu0 %v276
  %341 = vmatprep.subr.bf16.mxu0 0
  %342 = vmatpush1.bf16.msra.mxu0 %v277
  %343 = vmatprep.subr.bf16.mxu0 0
  %344 = vmatpush1.bf16.msra.mxu0 %v278
  %345 = vmatprep.subr.bf16.mxu0 0
  %346 = vmatpush1.bf16.msra.mxu0 %v279
  %347 = vmatprep.subr.bf16.mxu0 0
  %348 = vmatpush1.bf16.msra.mxu0 %v280
  %349 = vmatprep.subr.bf16.mxu0 0
  %350 = vmatpush1.bf16.msra.mxu0 %v281
  %351 = vmatprep.subr.bf16.mxu0 0
  %352 = vmatpush1.bf16.msra.mxu0 %v282
  %353 = vmatprep.subr.bf16.mxu0 0
  %354 = vmatpush1.bf16.msra.mxu0 %v283
  %355 = vmatprep.subr.bf16.mxu0 0
  %356 = vmatpush1.bf16.msra.mxu0 %v284
  %357 = vmatprep.subr.bf16.mxu0 0
  %358 = vmatpush1.bf16.msra.mxu0 %v285
  %359 = vmatprep.subr.bf16.mxu0 0
  %360 = vmatpush1.bf16.msra.mxu0 %v286
  %361 = vmatprep.subr.bf16.mxu0 0
  %362 = vmatpush1.bf16.msra.mxu0 %v287
  %363 = vmatprep.subr.bf16.mxu0 0
  %364 = vmatpush1.bf16.msra.mxu0 %v288
  %365 = vmatprep.subr.bf16.mxu0 0
  %366 = vmatpush1.bf16.msra.mxu0 %v289
  %367 = vmatprep.mubr.bf16.mxu0 %v163
  %368 = vmatmul.mubr.bf16.gmra.mrb[0].mxu0 %v162
  %v369 = vpop.f32.mrb[0].mxu0
  %v370 = vadd.f32 0.0, %v369
  %v371 = vpop.f32.mrb[0].mxu0
  %v372 = vpop.f32.mrb[0].mxu0
  %v373 = vadd.f32 0.0, %v372
  %v374 = vpop.f32.mrb[0].mxu0
  %375 = vmatprep.mubr.bf16.mxu0 %v166
  %376 = vmatmul.mubr.bf16.gmra.mrb[0].mxu0 %v165
  %v377 = vpop.f32.mrb[0].mxu0
  %v378 = vadd.f32 0.0, %v377
  %v379 = vpop.f32.mrb[0].mxu0
  %v380 = vpop.f32.mrb[0].mxu0
  %v381 = vadd.f32 0.0, %v380
  %v382 = vpop.f32.mrb[0].mxu0
  %383 = vmatprep.mubr.bf16.mxu0 %v169
  %384 = vmatmul.mubr.bf16.gmra.mrb[0].mxu0 %v168
  %v385 = vpop.f32.mrb[0].mxu0
  %v386 = vadd.f32 0.0, %v385
  %v387 = vpop.f32.mrb[0].mxu0
  %v388 = vpop.f32.mrb[0].mxu0
  %v389 = vadd.f32 0.0, %v388
  %v390 = vpop.f32.mrb[0].mxu0
  %391 = vmatprep.mubr.bf16.mxu0 %v172
  %392 = vmatmul.mubr.bf16.gmra.mrb[0].mxu0 %v171
  %v393 = vpop.f32.mrb[0].mxu0
  %v394 = vadd.f32 0.0, %v393
  %v395 = vpop.f32.mrb[0].mxu0
  %v396 = vpop.f32.mrb[0].mxu0
  %v397 = vadd.f32 0.0, %v396
  %v398 = vpop.f32.mrb[0].mxu0
  %399 = vmatprep.mubr.bf16.mxu0 %v175
  %400 = vmatmul.mubr.bf16.gmra.mrb[0].mxu0 %v174
  %v401 = vpop.f32.mrb[0].mxu0
  %v402 = vadd.f32 0.0, %v401
  %v403 = vpop.f32.mrb[0].mxu0
  %v404 = vpop.f32.mrb[0].mxu0
  %v405 = vadd.f32 0.0, %v404
  %v406 = vpop.f32.mrb[0].mxu0
  %407 = vmatprep.mubr.bf16.mxu0 %v178
  %408 = vmatmul.mubr.bf16.gmra.mrb[0].mxu0 %v177
  %v409 = vpop.f32.mrb[0].mxu0
  %v410 = vadd.f32 0.0, %v409
  %v411 = vpop.f32.mrb[0].mxu0
  %v412 = vpop.f32.mrb[0].mxu0
  %v413 = vadd.f32 0.0, %v412
  %v414 = vpop.f32.mrb[0].mxu0
  %415 = vmatprep.mubr.bf16.mxu0 %v181
  %416 = vmatmul.mubr.bf16.gmra.mrb[0].mxu0 %v180
  %v417 = vpop.f32.mrb[0].mxu0
  %v418 = vadd.f32 0.0, %v417
  %v419 = vpop.f32.mrb[0].mxu0
  %v420 = vpop.f32.mrb[0].mxu0
  %v421 = vadd.f32 0.0, %v420
  %v422 = vpop.f32.mrb[0].mxu0
  %423 = vmatprep.mubr.bf16.mxu0 %v184
  %424 = vmatmul.mubr.bf16.gmra.mrb[0].mxu0 %v183
  %v425 = vpop.f32.mrb[0].mxu0
  %v426 = vadd.f32 0.0, %v425
  %v427 = vpop.f32.mrb[0].mxu0
  %v428 = vpop.f32.mrb[0].mxu0
  %v429 = vadd.f32 0.0, %v428
  %v430 = vpop.f32.mrb[0].mxu0
  %431 = vdwg.mxu0
  %432 = vmatprep.subr.bf16.mxu0 0
  %433 = vmatpush1.bf16.msra.mxu0 %v290
  %434 = vmatprep.subr.bf16.mxu0 0
  %435 = vmatpush1.bf16.msra.mxu0 %v291
  %436 = vmatprep.subr.bf16.mxu0 0
  %437 = vmatpush1.bf16.msra.mxu0 0
  %438 = vmatprep.subr.bf16.mxu0 0
  %439 = vmatpush1.bf16.msra.mxu0 0
  %440 = vmatprep.subr.bf16.mxu0 0
  %441 = vmatpush1.bf16.msra.mxu0 0
  %442 = vmatprep.subr.bf16.mxu0 0
  %443 = vmatpush1.bf16.msra.mxu0 0
  %444 = vmatprep.subr.bf16.mxu0 0
  %445 = vmatpush1.bf16.msra.mxu0 0
  %446 = vmatprep.subr.bf16.mxu0 0
  %447 = vmatpush1.bf16.msra.mxu0 0
  %448 = vmatprep.subr.bf16.mxu0 0
  %449 = vmatpush1.bf16.msra.mxu0 0
  %450 = vmatprep.subr.bf16.mxu0 0
  %451 = vmatpush1.bf16.msra.mxu0 0
  %452 = vmatprep.subr.bf16.mxu0 0
  %453 = vmatpush1.bf16.msra.mxu0 0
  %454 = vmatprep.subr.bf16.mxu0 0
  %455 = vmatpush1.bf16.msra.mxu0 0
  %456 = vmatprep.subr.bf16.mxu0 0
  %457 = vmatpush1.bf16.msra.mxu0 0
  %458 = vmatprep.subr.bf16.mxu0 0
  %459 = vmatpush1.bf16.msra.mxu0 0
  %460 = vmatprep.subr.bf16.mxu0 0
  %461 = vmatpush1.bf16.msra.mxu0 0
  %462 = vmatprep.subr.bf16.mxu0 0
  %463 = vmatpush1.bf16.msra.mxu0 0
  %464 = vmatprep.mubr.bf16.mxu0 0
  %465 = vmatmul.mubr.bf16.gmra.mrb[0].mxu0 %v312
  %v466 = vpop.f32.mrb[0].mxu0
  %v467 = vadd.f32 %v370, %v466
  %v468 = vpop.f32.mrb[0].mxu0
  %v469 = vpop.f32.mrb[0].mxu0
  %v470 = vadd.f32 %v373, %v469
  %v471 = vpop.f32.mrb[0].mxu0
  %472 = vmatprep.mubr.bf16.mxu0 0
  %473 = vmatmul.mubr.bf16.gmra.mrb[0].mxu0 %v315
  %v474 = vpop.f32.mrb[0].mxu0
  %v475 = vadd.f32 %v378, %v474
  %v476 = vpop.f32.mrb[0].mxu0
  %v477 = vpop.f32.mrb[0].mxu0
  %v478 = vadd.f32 %v381, %v477
  %v479 = vpop.f32.mrb[0].mxu0
  %480 = vmatprep.mubr.bf16.mxu0 0
  %481 = vmatmul.mubr.bf16.gmra.mrb[0].mxu0 %v318
  %v482 = vpop.f32.mrb[0].mxu0
  %v483 = vadd.f32 %v386, %v482
  %v484 = vpop.f32.mrb[0].mxu0
  %v485 = vpop.f32.mrb[0].mxu0
  %v486 = vadd.f32 %v389, %v485
  %v487 = vpop.f32.mrb[0].mxu0
  %488 = vmatprep.mubr.bf16.mxu0 0
  %489 = vmatmul.mubr.bf16.gmra.mrb[0].mxu0 %v321
  %v490 = vpop.f32.mrb[0].mxu0
  %v491 = vadd.f32 %v394, %v490
  %v492 = vpop.f32.mrb[0].mxu0
  %v493 = vpop.f32.mrb[0].mxu0
  %v494 = vadd.f32 %v397, %v493
  %v495 = vpop.f32.mrb[0].mxu0
  %496 = vmatprep.mubr.bf16.mxu0 0
  %497 = vmatmul.mubr.bf16.gmra.mrb[0].mxu0 %v324
  %v498 = vpop.f32.mrb[0].mxu0
  %v499 = vadd.f32 %v402, %v498
  %v500 = vpop.f32.mrb[0].mxu0
  %v501 = vpop.f32.mrb[0].mxu0
  %v502 = vadd.f32 %v405, %v501
  %v503 = vpop.f32.mrb[0].mxu0
  %504 = vmatprep.mubr.bf16.mxu0 0
  %505 = vmatmul.mubr.bf16.gmra.mrb[0].mxu0 %v327
  %v506 = vpop.f32.mrb[0].mxu0
  %v507 = vadd.f32 %v410, %v506
  %v508 = vpop.f32.mrb[0].mxu0
  %v509 = vpop.f32.mrb[0].mxu0
  %v510 = vadd.f32 %v413, %v509
  %v511 = vpop.f32.mrb[0].mxu0
  %512 = vmatprep.mubr.bf16.mxu0 0
  %513 = vmatmul.mubr.bf16.gmra.mrb[0].mxu0 %v330
  %v514 = vpop.f32.mrb[0].mxu0
  %v515 = vadd.f32 %v418, %v514
  %v516 = vpop.f32.mrb[0].mxu0
  %v517 = vpop.f32.mrb[0].mxu0
  %v518 = vadd.f32 %v421, %v517
  %v519 = vpop.f32.mrb[0].mxu0
  %520 = vmatprep.mubr.bf16.mxu0 0
  %521 = vmatmul.mubr.bf16.gmra.mrb[0].mxu0 %v333
  %v522 = vpop.f32.mrb[0].mxu0
  %v523 = vadd.f32 %v426, %v522
  %v524 = vpop.f32.mrb[0].mxu0
  %v525 = vpop.f32.mrb[0].mxu0
  %v526 = vadd.f32 %v429, %v525
  %v527 = vpop.f32.mrb[0].mxu0
  %528 = vdwg.mxu0
  %vm529 = vcmask 523264
  %530 = vst.msk [vmem:[%s2] sm:$0xff] %vm529, %v467
  %531 = vst.msk [vmem:[%s2 + $0x8] sm:$0xff] %vm529, %v470
  %532 = vst.msk [vmem:[%s2 + $0x10] sm:$0xff] %vm529, %v475
  %533 = vst.msk [vmem:[%s2 + $0x18] sm:$0xff] %vm529, %v478
  %534 = vst.msk [vmem:[%s2 + $0x20] sm:$0xff] %vm529, %v483
  %535 = vst.msk [vmem:[%s2 + $0x28] sm:$0xff] %vm529, %v486
  %536 = vst.msk [vmem:[%s2 + $0x30] sm:$0xff] %vm529, %v491
  %537 = vst.msk [vmem:[%s2 + $0x38] sm:$0xff] %vm529, %v494
  %538 = vst.msk [vmem:[%s2 + $0x40] sm:$0xff] %vm529, %v499
  %539 = vst.msk [vmem:[%s2 + $0x48] sm:$0xff] %vm529, %v502
  %540 = vst.msk [vmem:[%s2 + $0x50] sm:$0xff] %vm529, %v507
  %541 = vst.msk [vmem:[%s2 + $0x58] sm:$0xff] %vm529, %v510
  %542 = vst.msk [vmem:[%s2 + $0x60] sm:$0xff] %vm529, %v515
  %543 = vst.msk [vmem:[%s2 + $0x68] sm:$0xff] %vm529, %v518
  %544 = vst.msk [vmem:[%s2 + $0x70] sm:$0xff] %vm529, %v523
  %545 = vst.msk [vmem:[%s2 + $0x78] sm:$0xff] %vm529, %v526
  %s546 = smul.u32 0, 128
  %v547 = vlaneseq
  %v548 = vshrl.u32 %v547, 7
  %v549 = vadd.s32 %v548, 8
  %v550 = vadd.s32 %v548, 16
  %v551 = vadd.s32 %v548, 24
  %v552 = vadd.s32 %v548, 32
  %v553 = vadd.s32 %v548, 40
  %v554 = vadd.s32 %v548, 48
  %v555 = vadd.s32 %v548, 56
  %v556 = vadd.s32 %v548, 64
  %v557 = vadd.s32 %v548, 72
  %v558 = vadd.s32 %v548, 80
  %v559 = vadd.s32 %v548, 88
  %v560 = vadd.s32 %v548, 96
  %v561 = vadd.s32 %v548, 104
  %v562 = vadd.s32 %v548, 112
  %v563 = vadd.s32 %v548, 120
  %v564 = vstv %s546
  %v565 = vadd.s32 %v564, %v548
  %v566 = vadd.s32 %v564, %v549
  %v567 = vadd.s32 %v564, %v550
  %v568 = vadd.s32 %v564, %v551
  %v569 = vadd.s32 %v564, %v552
  %v570 = vadd.s32 %v564, %v553
  %v571 = vadd.s32 %v564, %v554
  %v572 = vadd.s32 %v564, %v555
  %v573 = vadd.s32 %v564, %v556
  %v574 = vadd.s32 %v564, %v557
  %v575 = vadd.s32 %v564, %v558
  %v576 = vadd.s32 %v564, %v559
  %v577 = vadd.s32 %v564, %v560
  %v578 = vadd.s32 %v564, %v561
  %v579 = vadd.s32 %v564, %v562
  %v580 = vadd.s32 %v564, %v563
  %vm581 = vcmp.lt.s32.totalorder %v565, 128
  %vm582 = vcmp.lt.s32.totalorder %v566, 128
  %vm583 = vcmp.lt.s32.totalorder %v567, 128
  %vm584 = vcmp.lt.s32.totalorder %v568, 128
  %vm585 = vcmp.lt.s32.totalorder %v569, 128
  %vm586 = vcmp.lt.s32.totalorder %v570, 128
  %vm587 = vcmp.lt.s32.totalorder %v571, 128
  %vm588 = vcmp.lt.s32.totalorder %v572, 128
  %vm589 = vcmp.lt.s32.totalorder %v573, 128
  %vm590 = vcmp.lt.s32.totalorder %v574, 128
  %vm591 = vcmp.lt.s32.totalorder %v575, 128
  %vm592 = vcmp.lt.s32.totalorder %v576, 128
  %vm593 = vcmp.lt.s32.totalorder %v577, 128
  %vm594 = vcmp.lt.s32.totalorder %v578, 128
  %vm595 = vcmp.lt.s32.totalorder %v579, 128
  %vm596 = vcmp.lt.s32.totalorder %v580, 128
  %v597 = vsel %vm581, 1, 0
  %v598 = vsel %vm582, 1, 0
  %v599 = vsel %vm583, 1, 0
  %v600 = vsel %vm584, 1, 0
  %v601 = vsel %vm585, 1, 0
  %v602 = vsel %vm586, 1, 0
  %v603 = vsel %vm587, 1, 0
  %v604 = vsel %vm588, 1, 0
  %v605 = vsel %vm589, 1, 0
  %v606 = vsel %vm590, 1, 0
  %v607 = vsel %vm591, 1, 0
  %v608 = vsel %vm592, 1, 0
  %v609 = vsel %vm593, 1, 0
  %v610 = vsel %vm594, 1, 0
  %v611 = vsel %vm595, 1, 0
  %v612 = vsel %vm596, 1, 0
  %v613 = vcvt.s32.f32 %v597
  %v614 = vcvt.s32.f32 %v598
  %v615 = vcvt.s32.f32 %v599
  %v616 = vcvt.s32.f32 %v600
  %v617 = vcvt.s32.f32 %v601
  %v618 = vcvt.s32.f32 %v602
  %v619 = vcvt.s32.f32 %v603
  %v620 = vcvt.s32.f32 %v604
  %v621 = vcvt.s32.f32 %v605
  %v622 = vcvt.s32.f32 %v606
  %v623 = vcvt.s32.f32 %v607
  %v624 = vcvt.s32.f32 %v608
  %v625 = vcvt.s32.f32 %v609
  %v626 = vcvt.s32.f32 %v610
  %v627 = vcvt.s32.f32 %v611
  %v628 = vcvt.s32.f32 %v612
  %v629 = vmul.f32 %v467, %v613
  %v630 = vmul.f32 %v470, %v614
  %v631 = vmul.f32 %v475, %v615
  %v632 = vmul.f32 %v478, %v616
  %v633 = vmul.f32 %v483, %v617
  %v634 = vmul.f32 %v486, %v618
  %v635 = vmul.f32 %v491, %v619
  %v636 = vmul.f32 %v494, %v620
  %v637 = vmul.f32 %v499, %v621
  %v638 = vmul.f32 %v502, %v622
  %v639 = vmul.f32 %v507, %v623
  %v640 = vmul.f32 %v510, %v624
  %v641 = vmul.f32 %v515, %v625
  %v642 = vmul.f32 %v518, %v626
  %v643 = vmul.f32 %v523, %v627
  %v644 = vmul.f32 %v526, %v628
  %v645 = vsel %vm529, %v629, 0.0
  %v646 = vsel %vm529, %v630, 0.0
  %v647 = vadd.f32 %v645, %v646
  %v648 = vsel %vm529, %v631, 0.0
  %v649 = vadd.f32 %v647, %v648
  %v650 = vsel %vm529, %v632, 0.0
  %v651 = vadd.f32 %v649, %v650
  %v652 = vsel %vm529, %v633, 0.0
  %v653 = vadd.f32 %v651, %v652
  %v654 = vsel %vm529, %v634, 0.0
  %v655 = vadd.f32 %v653, %v654
  %v656 = vsel %vm529, %v635, 0.0
  %v657 = vadd.f32 %v655, %v656
  %v658 = vsel %vm529, %v636, 0.0
  %v659 = vadd.f32 %v657, %v658
  %v660 = vsel %vm529, %v637, 0.0
  %v661 = vadd.f32 %v659, %v660
  %v662 = vsel %vm529, %v638, 0.0
  %v663 = vadd.f32 %v661, %v662
  %v664 = vsel %vm529, %v639, 0.0
  %v665 = vadd.f32 %v663, %v664
  %v666 = vsel %vm529, %v640, 0.0
  %v667 = vadd.f32 %v665, %v666
  %v668 = vsel %vm529, %v641, 0.0
  %v669 = vadd.f32 %v667, %v668
  %v670 = vsel %vm529, %v642, 0.0
  %v671 = vadd.f32 %v669, %v670
  %v672 = vsel %vm529, %v643, 0.0
  %v673 = vadd.f32 %v671, %v672
  %v674 = vsel %vm529, %v644, 0.0
  %v675 = vadd.f32 %v673, %v674
  %v676 = vrot.slane %v675, 4
  %v677 = vadd.f32 %v675, %v676
  %v678 = vrot.slane %v677, 2
  %v679 = vadd.f32 %v677, %v678
  %v680 = vrot.slane %v679, 1
  %v681 = vadd.f32 %v679, %v680
  %v682 = vmul.f32 %v629, %v629
  %v683 = vmul.f32 %v630, %v630
  %v684 = vmul.f32 %v631, %v631
  %v685 = vmul.f32 %v632, %v632
  %v686 = vmul.f32 %v633, %v633
  %v687 = vmul.f32 %v634, %v634
  %v688 = vmul.f32 %v635, %v635
  %v689 = vmul.f32 %v636, %v636
  %v690 = vmul.f32 %v637, %v637
  %v691 = vmul.f32 %v638, %v638
  %v692 = vmul.f32 %v639, %v639
  %v693 = vmul.f32 %v640, %v640
  %v694 = vmul.f32 %v641, %v641
  %v695 = vmul.f32 %v642, %v642
  %v696 = vmul.f32 %v643, %v643
  %v697 = vmul.f32 %v644, %v644
  %v698 = vsel %vm529, %v682, 0.0
  %v699 = vsel %vm529, %v683, 0.0
  %v700 = vadd.f32 %v698, %v699
  %v701 = vsel %vm529, %v684, 0.0
  %v702 = vadd.f32 %v700, %v701
  %v703 = vsel %vm529, %v685, 0.0
  %v704 = vadd.f32 %v702, %v703
  %v705 = vsel %vm529, %v686, 0.0
  %v706 = vadd.f32 %v704, %v705
  %v707 = vsel %vm529, %v687, 0.0
  %v708 = vadd.f32 %v706, %v707
  %v709 = vsel %vm529, %v688, 0.0
  %v710 = vadd.f32 %v708, %v709
  %v711 = vsel %vm529, %v689, 0.0
  %v712 = vadd.f32 %v710, %v711
  %v713 = vsel %vm529, %v690, 0.0
  %v714 = vadd.f32 %v712, %v713
  %v715 = vsel %vm529, %v691, 0.0
  %v716 = vadd.f32 %v714, %v715
  %v717 = vsel %vm529, %v692, 0.0
  %v718 = vadd.f32 %v716, %v717
  %v719 = vsel %vm529, %v693, 0.0
  %v720 = vadd.f32 %v718, %v719
  %v721 = vsel %vm529, %v694, 0.0
  %v722 = vadd.f32 %v720, %v721
  %v723 = vsel %vm529, %v695, 0.0
  %v724 = vadd.f32 %v722, %v723
  %v725 = vsel %vm529, %v696, 0.0
  %v726 = vadd.f32 %v724, %v725
  %v727 = vsel %vm529, %v697, 0.0
  %v728 = vadd.f32 %v726, %v727
  %v729 = vrot.slane %v728, 4
  %v730 = vadd.f32 %v728, %v729
  %v731 = vrot.slane %v730, 2
  %v732 = vadd.f32 %v730, %v731
  %v733 = vrot.slane %v732, 1
  %v734 = vadd.f32 %v732, %v733
  %vm735 = vcmask 1040384
  %v736 = vsel %vm735, %v681, %v734
  %vm737 = vcmask 1041408
  %v738 = vsel %vm737, %v736, 0.0
  %739 = vst.msk [vmem:[%s3] sm:$0xff] %vm529, %v738
  // Predicated region
  $region10: #{discriminator_sr_forward.11} parent=0 // pred_check
    _
  $region11: #{discriminator_sr_forward.11} parent=0 // pred_check_branch
    %741 = sbr.rel (0) target = $region13
  $region12: #{discriminator_sr_forward.11} parent=0 // pred_region
    _
  $region13: #{discriminator_sr_forward.11} parent=0 // pred_fallthru
    _
  // Predicated region
  $region14: #{discriminator_sr_forward.11} parent=0 // pred_check
    _
  $region15: #{discriminator_sr_forward.11} parent=0 // pred_check_branch
    %743 = sbr.rel (0) target = $region17
  $region16: #{discriminator_sr_forward.11} parent=0 // pred_region
    _
  $region17: #{discriminator_sr_forward.11} parent=0 // pred_fallthru
    _
  // Predicated region
  $region18: #{discriminator_sr_forward.11} parent=0 // pred_check
    _
  $region19: #{discriminator_sr_forward.11} parent=0 // pred_check_branch
    %745 = sbr.rel (0) target = $region21
  $region20: #{discriminator_sr_forward.11} parent=0 // pred_region
    _
  $region21: #{discriminator_sr_forward.11} parent=0 // pred_fallthru
    _
  // Predicated region
  $region22: #{discriminator_sr_forward.11} parent=0 // pred_check
    _
  $region23: #{discriminator_sr_forward.11} parent=0 // pred_check_branch
    %747 = sbr.rel (0) target = $region25
  $region24: #{discriminator_sr_forward.11} parent=0 // pred_region
    _
  $region25: #{discriminator_sr_forward.11} parent=0 // pred_fallthru
    _

// kernel: tile.48
$region0: #{tile.48}
  #allocation0 [shape = 's32[1]{0}', space=sflag, size = 0x4, scoped, tag = 'scoped memory for tile.48']
  %s0 = inlined_call_operand.vmem [shape: f32[64], index: 0, kind: input, shape index: {}]
  %s1 = inlined_call_operand.vmem [shape: f32[9,64], index: 1, kind: output, shape index: {}]
  // Predicated region
  $region2: #{tile.48} parent=0 // pred_check
    _
  $region3: #{tile.48} parent=0 // pred_check_branch
    %3 = sbr.rel (0) target = $region5
  $region4: #{tile.48} parent=0 // pred_region
    _
  $region5: #{tile.48} parent=0 // pred_fallthru
    _
  %v4 = vld [vmem:[%s0] ss:$0 sm:$0xff]
  %5 = vst [vmem:[%s1] sm:$0xff] %v4
  %s6 = scalar_lea.vmem %s1, 8
  %7 = vst [vmem:[%s6] sm:$0xff] %v4

// kernel: mul.48
$region0: #{mul.48}
  %s0 = inlined_call_operand.vmem [shape: f32[9,64], index: 0, kind: input, shape index: {}]
  %s1 = inlined_call_operand.vmem [shape: f32[576], index: 1, kind: output, shape index: {}]
  %v2 = vld [vmem:[%s0] ss:$2 sm:$0x1f]
  %vm3 = vcmask 523264
  %4 = vst.msk [vmem:[%s1] sm:$0x1f] %vm3, %v2
  %s5 = scalar_lea.vmem %s0, 1
  %v6 = vld [vmem:[%s5] ss:$2 sm:$0xf]
  %7 = vrot.lane.b32.xlu0 %v6, 64
  %v8 = vpop.permute.xlu0 %7
  %vm9 = vcmask 1048064
  %10 = vst.msk [vmem:[%s1] sm:$0xf] %vm9, %v8

// kernel: discriminator_sr_forward.12
$region0: #{discriminator_sr_forward.12}
  #allocation0 [shape = 'u32[]', space=smem, size = 0x4, offset = 0x4, fixed_abs, tag = 'smem constant byte address 0x4 - core index']
  #allocation1 [shape = 'u32[144,128]{1,0:T(1,128)}', space=vmem, size = 0x12000, scoped, tag = 'internal scratch']
  %s0 = inlined_call_operand.vmem [shape: bf16[128,576], index: 0, kind: input, shape index: {}]
  %s1 = inlined_call_operand.vmem [shape: bf16[576,64], index: 1, kind: input, shape index: {}]
  %s2 = inlined_call_operand.vmem [shape: f32[128,64], index: 2, kind: output, shape index: {0}]
  %s3 = inlined_call_operand.vmem [shape: f32[8,64], index: 3, kind: output, shape index: {1}]
  %4 = xla_tuple %s2, %s3
  %s5 = sld [smem:[#allocation0]]
  $region26: #{discriminator_sr_forward.12} parent=0
    _
  %s7 = ssub.s32 1, %s5
  %s8 = scalar_select 0, %s7, %s5
  // Predicated region
  $region2: #{discriminator_sr_forward.12} parent=0 // pred_check
    _
  $region3: #{discriminator_sr_forward.12} parent=0 // pred_check_branch
    %10 = sbr.rel (0) target = $region5
  $region4: #{discriminator_sr_forward.12} parent=0 // pred_region
    _
  $region5: #{discriminator_sr_forward.12} parent=0 // pred_fallthru
    _
  // Predicated region
  $region6: #{discriminator_sr_forward.12} parent=0 // pred_check
    _
  $region7: #{discriminator_sr_forward.12} parent=0 // pred_check_branch
    %12 = sbr.rel (0) target = $region9
  $region8: #{discriminator_sr_forward.12} parent=0 // pred_region
    _
  $region9: #{discriminator_sr_forward.12} parent=0 // pred_fallthru
    _
  %v14 = vld [vmem:[%s0] sm:$0xff]
  %v15 = vld [vmem:[%s0 + $0x8] sm:$0xff]
  %v16 = vld [vmem:[%s0 + $0x10] sm:$0xf]
  %v17 = vld [vmem:[%s0 + $0x14] sm:$0xff]
  %v18 = vld [vmem:[%s0 + $0x1c] sm:$0xff]
  %v19 = vld [vmem:[%s0 + $0x24] sm:$0xf]
  %v20 = vld [vmem:[%s0 + $0x28] sm:$0xff]
  %v21 = vld [vmem:[%s0 + $0x30] sm:$0xff]
  %v22 = vld [vmem:[%s0 + $0x38] sm:$0xf]
  %v23 = vld [vmem:[%s0 + $0x3c] sm:$0xff]
  %v24 = vld [vmem:[%s0 + $0x44] sm:$0xff]
  %v25 = vld [vmem:[%s0 + $0x4c] sm:$0xf]
  %v26 = vld [vmem:[%s0 + $0x50] sm:$0xff]
  %v27 = vld [vmem:[%s0 + $0x58] sm:$0xff]
  %v28 = vld [vmem:[%s0 + $0x60] sm:$0xf]
  %v29 = vld [vmem:[%s0 + $0x64] sm:$0xff]
  %v30 = vld [vmem:[%s0 + $0x6c] sm:$0xff]
  %v31 = vld [vmem:[%s0 + $0x74] sm:$0xf]
  %v32 = vld [vmem:[%s0 + $0x78] sm:$0xff]
  %v33 = vld [vmem:[%s0 + $0x80] sm:$0xff]
  %v34 = vld [vmem:[%s0 + $0x88] sm:$0xf]
  %v35 = vld [vmem:[%s0 + $0x8c] sm:$0xff]
  %v36 = vld [vmem:[%s0 + $0x94] sm:$0xff]
  %v37 = vld [vmem:[%s0 + $0x9c] sm:$0xf]
  %v38 = vld [vmem:[%s0 + $0xa0] sm:$0xff]
  %v39 = vld [vmem:[%s0 + $0xa8] sm:$0xff]
  %v40 = vld [vmem:[%s0 + $0xb0] sm:$0xf]
  %v41 = vld [vmem:[%s0 + $0xb4] sm:$0xff]
  %v42 = vld [vmem:[%s0 + $0xbc] sm:$0xff]
  %v43 = vld [vmem:[%s0 + $0xc4] sm:$0xf]
  %v44 = vld [vmem:[%s0 + $0xc8] sm:$0xff]
  %v45 = vld [vmem:[%s0 + $0xd0] sm:$0xff]
  %v46 = vld [vmem:[%s0 + $0xd8] sm:$0xf]
  %v47 = vld [vmem:[%s0 + $0xdc] sm:$0xff]
  %v48 = vld [vmem:[%s0 + $0xe4] sm:$0xff]
  %v49 = vld [vmem:[%s0 + $0xec] sm:$0xf]
  %v50 = vld [vmem:[%s0 + $0xf0] sm:$0xff]
  %v51 = vld [vmem:[%s0 + $0xf8] sm:$0xff]
  %v52 = vld [vmem:[%s0 + $0x100] sm:$0xf]
  %v53 = vld [vmem:[%s0 + $0x104] sm:$0xff]
  %v54 = vld [vmem:[%s0 + $0x10c] sm:$0xff]
  %v55 = vld [vmem:[%s0 + $0x114] sm:$0xf]
  %v56 = vld [vmem:[%s0 + $0x118] sm:$0xff]
  %v57 = vld [vmem:[%s0 + $0x120] sm:$0xff]
  %v58 = vld [vmem:[%s0 + $0x128] sm:$0xf]
  %v59 = vld [vmem:[%s0 + $0x12c] sm:$0xff]
  %v60 = vld [vmem:[%s0 + $0x134] sm:$0xff]
  %v61 = vld [vmem:[%s0 + $0x13c] sm:$0xf]
  %v62 = vld [vmem:[%s1] sm:$0xf]
  %v63 = vld [vmem:[%s1 + $0x4] sm:$0xf]
  %v64 = vld [vmem:[%s1 + $0x8] sm:$0xf]
  %v65 = vld [vmem:[%s1 + $0xc] sm:$0xf]
  %v66 = vld [vmem:[%s1 + $0x10] sm:$0xf]
  %v67 = vld [vmem:[%s1 + $0x14] sm:$0xf]
  %v68 = vld [vmem:[%s1 + $0x18] sm:$0xf]
  %v69 = vld [vmem:[%s1 + $0x1c] sm:$0xf]
  %v70 = vld [vmem:[%s1 + $0x20] sm:$0xf]
  %v71 = vld [vmem:[%s1 + $0x24] sm:$0xf]
  %v72 = vld [vmem:[%s1 + $0x28] sm:$0xf]
  %v73 = vld [vmem:[%s1 + $0x2c] sm:$0xf]
  %v74 = vld [vmem:[%s1 + $0x30] sm:$0xf]
  %v75 = vld [vmem:[%s1 + $0x34] sm:$0xf]
  %v76 = vld [vmem:[%s1 + $0x38] sm:$0xf]
  %v77 = vld [vmem:[%s1 + $0x3c] sm:$0xf]
  %v78 = vld [vmem:[%s1 + $0x40] sm:$0xf]
  %v79 = vld [vmem:[%s1 + $0x44] sm:$0xf]
  %v80 = vld [vmem:[%s1 + $0x48] sm:$0xf]
  %v81 = vld [vmem:[%s1 + $0x4c] sm:$0xf]
  %v82 = vld [vmem:[%s1 + $0x50] sm:$0xf]
  %v83 = vld [vmem:[%s1 + $0x54] sm:$0xf]
  %v84 = vld [vmem:[%s1 + $0x58] sm:$0xf]
  %v85 = vld [vmem:[%s1 + $0x5c] sm:$0xf]
  %v86 = vld [vmem:[%s1 + $0x60] sm:$0xf]
  %v87 = vld [vmem:[%s1 + $0x64] sm:$0xf]
  %v88 = vld [vmem:[%s1 + $0x68] sm:$0xf]
  %v89 = vld [vmem:[%s1 + $0x6c] sm:$0xf]
  %v90 = vld [vmem:[%s1 + $0x70] sm:$0xf]
  %v91 = vld [vmem:[%s1 + $0x74] sm:$0xf]
  %v92 = vld [vmem:[%s1 + $0x78] sm:$0xf]
  %v93 = vld [vmem:[%s1 + $0x7c] sm:$0xf]
  %v94 = vld [vmem:[%s1 + $0x80] sm:$0xf]
  %v95 = vld [vmem:[%s1 + $0x84] sm:$0xf]
  %v96 = vld [vmem:[%s1 + $0x88] sm:$0xf]
  %v97 = vld [vmem:[%s1 + $0x8c] sm:$0xf]
  %v98 = vld [vmem:[%s1 + $0x90] sm:$0xf]
  %v99 = vld [vmem:[%s1 + $0x94] sm:$0xf]
  %v100 = vld [vmem:[%s1 + $0x98] sm:$0xf]
  %v101 = vld [vmem:[%s1 + $0x9c] sm:$0xf]
  %v102 = vld [vmem:[%s1 + $0xa0] sm:$0xf]
  %v103 = vld [vmem:[%s1 + $0xa4] sm:$0xf]
  %v104 = vld [vmem:[%s1 + $0xa8] sm:$0xf]
  %v105 = vld [vmem:[%s1 + $0xac] sm:$0xf]
  %v106 = vld [vmem:[%s1 + $0xb0] sm:$0xf]
  %v107 = vld [vmem:[%s1 + $0xb4] sm:$0xf]
  %v108 = vld [vmem:[%s1 + $0xb8] sm:$0xf]
  %v109 = vld [vmem:[%s1 + $0xbc] sm:$0xf]
  %v110 = vld [vmem:[%s1 + $0xc0] sm:$0xf]
  %v111 = vld [vmem:[%s1 + $0xc4] sm:$0xf]
  %v112 = vld [vmem:[%s1 + $0xc8] sm:$0xf]
  %v113 = vld [vmem:[%s1 + $0xcc] sm:$0xf]
  %v114 = vld [vmem:[%s1 + $0xd0] sm:$0xf]
  %v115 = vld [vmem:[%s1 + $0xd4] sm:$0xf]
  %v116 = vld [vmem:[%s1 + $0xd8] sm:$0xf]
  %v117 = vld [vmem:[%s1 + $0xdc] sm:$0xf]
  %v118 = vld [vmem:[%s1 + $0xe0] sm:$0xf]
  %v119 = vld [vmem:[%s1 + $0xe4] sm:$0xf]
  %v120 = vld [vmem:[%s1 + $0xe8] sm:$0xf]
  %v121 = vld [vmem:[%s1 + $0xec] sm:$0xf]
  %v122 = vld [vmem:[%s1 + $0xf0] sm:$0xf]
  %v123 = vld [vmem:[%s1 + $0xf4] sm:$0xf]
  %v124 = vld [vmem:[%s1 + $0xf8] sm:$0xf]
  %v125 = vld [vmem:[%s1 + $0xfc] sm:$0xf]
  %v126 = vld [vmem:[%s1 + $0x100] sm:$0xf]
  %v127 = vld [vmem:[%s1 + $0x104] sm:$0xf]
  %v128 = vld [vmem:[%s1 + $0x108] sm:$0xf]
  %v129 = vld [vmem:[%s1 + $0x10c] sm:$0xf]
  %v130 = vld [vmem:[%s1 + $0x110] sm:$0xf]
  %v131 = vld [vmem:[%s1 + $0x114] sm:$0xf]
  %v132 = vld [vmem:[%s1 + $0x118] sm:$0xf]
  %v133 = vld [vmem:[%s1 + $0x11c] sm:$0xf]
  %v182 = vunpack.c.l.b16 %v14
  %v183 = vunpack.c.h.b16 %v14
  %v184 = vunpack.c.l.b16 %v15
  %v185 = vunpack.c.h.b16 %v15
  %v186 = vunpack.c.l.b16 %v16
  %v187 = vunpack.c.l.b16 %v17
  %v188 = vunpack.c.h.b16 %v17
  %v189 = vunpack.c.l.b16 %v18
  %v190 = vunpack.c.h.b16 %v18
  %v191 = vunpack.c.l.b16 %v19
  %v192 = vunpack.c.l.b16 %v20
  %v193 = vunpack.c.h.b16 %v20
  %v194 = vunpack.c.l.b16 %v21
  %v195 = vunpack.c.h.b16 %v21
  %v196 = vunpack.c.l.b16 %v22
  %v197 = vunpack.c.l.b16 %v23
  %v198 = vunpack.c.h.b16 %v23
  %v199 = vunpack.c.l.b16 %v24
  %v200 = vunpack.c.h.b16 %v24
  %v201 = vunpack.c.l.b16 %v25
  %v202 = vunpack.c.l.b16 %v26
  %v203 = vunpack.c.h.b16 %v26
  %v204 = vunpack.c.l.b16 %v27
  %v205 = vunpack.c.h.b16 %v27
  %v206 = vunpack.c.l.b16 %v28
  %v207 = vunpack.c.l.b16 %v29
  %v208 = vunpack.c.h.b16 %v29
  %v209 = vunpack.c.l.b16 %v30
  %v210 = vunpack.c.h.b16 %v30
  %v211 = vunpack.c.l.b16 %v31
  %v212 = vunpack.c.l.b16 %v32
  %v213 = vunpack.c.h.b16 %v32
  %v214 = vunpack.c.l.b16 %v33
  %v215 = vunpack.c.h.b16 %v33
  %v216 = vunpack.c.l.b16 %v34
  %v217 = vunpack.c.l.b16 %v35
  %v218 = vunpack.c.h.b16 %v35
  %v219 = vunpack.c.l.b16 %v36
  %v220 = vunpack.c.h.b16 %v36
  %v221 = vunpack.c.l.b16 %v37
  %v222 = vunpack.c.l.b16 %v38
  %v223 = vunpack.c.h.b16 %v38
  %v224 = vunpack.c.l.b16 %v39
  %v225 = vunpack.c.h.b16 %v39
  %v226 = vunpack.c.l.b16 %v40
  %v227 = vunpack.c.l.b16 %v41
  %v228 = vunpack.c.h.b16 %v41
  %v229 = vunpack.c.l.b16 %v42
  %v230 = vunpack.c.h.b16 %v42
  %v231 = vunpack.c.l.b16 %v43
  %v232 = vunpack.c.l.b16 %v44
  %v233 = vunpack.c.h.b16 %v44
  %v234 = vunpack.c.l.b16 %v45
  %v235 = vunpack.c.h.b16 %v45
  %v236 = vunpack.c.l.b16 %v46
  %v237 = vunpack.c.l.b16 %v47
  %v238 = vunpack.c.h.b16 %v47
  %v239 = vunpack.c.l.b16 %v48
  %v240 = vunpack.c.h.b16 %v48
  %v241 = vunpack.c.l.b16 %v49
  %v242 = vunpack.c.l.b16 %v50
  %v243 = vunpack.c.h.b16 %v50
  %v244 = vunpack.c.l.b16 %v51
  %v245 = vunpack.c.h.b16 %v51
  %v246 = vunpack.c.l.b16 %v52
  %v247 = vunpack.c.l.b16 %v53
  %v248 = vunpack.c.h.b16 %v53
  %v249 = vunpack.c.l.b16 %v54
  %v250 = vunpack.c.h.b16 %v54
  %v251 = vunpack.c.l.b16 %v55
  %v252 = vunpack.c.l.b16 %v56
  %v253 = vunpack.c.h.b16 %v56
  %v254 = vunpack.c.l.b16 %v57
  %v255 = vunpack.c.h.b16 %v57
  %v256 = vunpack.c.l.b16 %v58
  %v257 = vunpack.c.l.b16 %v59
  %v258 = vunpack.c.h.b16 %v59
  %v259 = vunpack.c.l.b16 %v60
  %v260 = vunpack.c.h.b16 %v60
  %v261 = vunpack.c.l.b16 %v61
  %v262 = vpack.c.b16 %v187, %v182
  %v263 = vpack.c.b16 %v188, %v183
  %v264 = vpack.c.b16 %v189, %v184
  %v265 = vpack.c.b16 %v190, %v185
  %v266 = vpack.c.b16 %v191, %v186
  %v267 = vpack.c.b16 %v197, %v192
  %v268 = vpack.c.b16 %v198, %v193
  %v269 = vpack.c.b16 %v199, %v194
  %v270 = vpack.c.b16 %v200, %v195
  %v271 = vpack.c.b16 %v201, %v196
  %v272 = vpack.c.b16 %v207, %v202
  %v273 = vpack.c.b16 %v208, %v203
  %v274 = vpack.c.b16 %v209, %v204
  %v275 = vpack.c.b16 %v210, %v205
  %v276 = vpack.c.b16 %v211, %v206
  %v277 = vpack.c.b16 %v217, %v212
  %v278 = vpack.c.b16 %v218, %v213
  %v279 = vpack.c.b16 %v219, %v214
  %v280 = vpack.c.b16 %v220, %v215
  %v281 = vpack.c.b16 %v221, %v216
  %v282 = vpack.c.b16 %v227, %v222
  %v283 = vpack.c.b16 %v228, %v223
  %v284 = vpack.c.b16 %v229, %v224
  %v285 = vpack.c.b16 %v230, %v225
  %v286 = vpack.c.b16 %v231, %v226
  %v287 = vpack.c.b16 %v237, %v232
  %v288 = vpack.c.b16 %v238, %v233
  %v289 = vpack.c.b16 %v239, %v234
  %v290 = vpack.c.b16 %v240, %v235
  %v291 = vpack.c.b16 %v241, %v236
  %v292 = vpack.c.b16 %v247, %v242
  %v293 = vpack.c.b16 %v248, %v243
  %v294 = vpack.c.b16 %v249, %v244
  %v295 = vpack.c.b16 %v250, %v245
  %v296 = vpack.c.b16 %v251, %v246
  %v297 = vpack.c.b16 %v257, %v252
  %v298 = vpack.c.b16 %v258, %v253
  %v299 = vpack.c.b16 %v259, %v254
  %v300 = vpack.c.b16 %v260, %v255
  %v301 = vpack.c.b16 %v261, %v256
  %v406 = vunpack.c.l.b16 %v62
  %v407 = vunpack.c.l.b16 %v63
  %v408 = vunpack.c.l.b16 %v64
  %v409 = vunpack.c.l.b16 %v65
  %v410 = vunpack.c.l.b16 %v66
  %v411 = vunpack.c.l.b16 %v67
  %v412 = vunpack.c.l.b16 %v68
  %v413 = vunpack.c.l.b16 %v69
  %v414 = vunpack.c.l.b16 %v70
  %v415 = vunpack.c.l.b16 %v71
  %v416 = vunpack.c.l.b16 %v72
  %v417 = vunpack.c.l.b16 %v73
  %v418 = vunpack.c.l.b16 %v74
  %v419 = vunpack.c.l.b16 %v75
  %v420 = vunpack.c.l.b16 %v76
  %v421 = vunpack.c.l.b16 %v77
  %v422 = vunpack.c.l.b16 %v78
  %v423 = vunpack.c.l.b16 %v79
  %v424 = vunpack.c.l.b16 %v80
  %v425 = vunpack.c.l.b16 %v81
  %v426 = vunpack.c.l.b16 %v82
  %v427 = vunpack.c.l.b16 %v83
  %v428 = vunpack.c.l.b16 %v84
  %v429 = vunpack.c.l.b16 %v85
  %v430 = vunpack.c.l.b16 %v86
  %v431 = vunpack.c.l.b16 %v87
  %v432 = vunpack.c.l.b16 %v88
  %v433 = vunpack.c.l.b16 %v89
  %v434 = vunpack.c.l.b16 %v90
  %v435 = vunpack.c.l.b16 %v91
  %v436 = vunpack.c.l.b16 %v92
  %v437 = vunpack.c.l.b16 %v93
  %v438 = vunpack.c.l.b16 %v94
  %v439 = vunpack.c.l.b16 %v95
  %v440 = vunpack.c.l.b16 %v96
  %v441 = vunpack.c.l.b16 %v97
  %v442 = vunpack.c.l.b16 %v98
  %v443 = vunpack.c.l.b16 %v99
  %v444 = vunpack.c.l.b16 %v100
  %v445 = vunpack.c.l.b16 %v101
  %v446 = vunpack.c.l.b16 %v102
  %v447 = vunpack.c.l.b16 %v103
  %v448 = vunpack.c.l.b16 %v104
  %v449 = vunpack.c.l.b16 %v105
  %v450 = vunpack.c.l.b16 %v106
  %v451 = vunpack.c.l.b16 %v107
  %v452 = vunpack.c.l.b16 %v108
  %v453 = vunpack.c.l.b16 %v109
  %v454 = vunpack.c.l.b16 %v110
  %v455 = vunpack.c.l.b16 %v111
  %v456 = vunpack.c.l.b16 %v112
  %v457 = vunpack.c.l.b16 %v113
  %v458 = vunpack.c.l.b16 %v114
  %v459 = vunpack.c.l.b16 %v115
  %v460 = vunpack.c.l.b16 %v116
  %v461 = vunpack.c.l.b16 %v117
  %v462 = vunpack.c.l.b16 %v118
  %v463 = vunpack.c.l.b16 %v119
  %v464 = vunpack.c.l.b16 %v120
  %v465 = vunpack.c.l.b16 %v121
  %v466 = vunpack.c.l.b16 %v122
  %v467 = vunpack.c.l.b16 %v123
  %v468 = vunpack.c.l.b16 %v124
  %v469 = vunpack.c.l.b16 %v125
  %v470 = vunpack.c.l.b16 %v126
  %v471 = vunpack.c.l.b16 %v127
  %v472 = vunpack.c.l.b16 %v128
  %v473 = vunpack.c.l.b16 %v129
  %v474 = vunpack.c.l.b16 %v130
  %v475 = vunpack.c.l.b16 %v131
  %v476 = vunpack.c.l.b16 %v132
  %v477 = vunpack.c.l.b16 %v133
  %v478 = vpack.c.b16 %v407, %v406
  %v479 = vpack.c.b16 %v409, %v408
  %v480 = vpack.c.b16 %v411, %v410
  %v481 = vpack.c.b16 %v413, %v412
  %v482 = vpack.c.b16 %v415, %v414
  %v483 = vpack.c.b16 %v417, %v416
  %v484 = vpack.c.b16 %v419, %v418
  %v485 = vpack.c.b16 %v421, %v420
  %v486 = vpack.c.b16 %v423, %v422
  %v487 = vpack.c.b16 %v425, %v424
  %v488 = vpack.c.b16 %v427, %v426
  %v489 = vpack.c.b16 %v429, %v428
  %v490 = vpack.c.b16 %v431, %v430
  %v491 = vpack.c.b16 %v433, %v432
  %v492 = vpack.c.b16 %v435, %v434
  %v493 = vpack.c.b16 %v437, %v436
  %v494 = vpack.c.b16 %v439, %v438
  %v495 = vpack.c.b16 %v441, %v440
  %v496 = vpack.c.b16 %v443, %v442
  %v497 = vpack.c.b16 %v445, %v444
  %v498 = vpack.c.b16 %v447, %v446
  %v499 = vpack.c.b16 %v449, %v448
  %v500 = vpack.c.b16 %v451, %v450
  %v501 = vpack.c.b16 %v453, %v452
  %v502 = vpack.c.b16 %v455, %v454
  %v503 = vpack.c.b16 %v457, %v456
  %v504 = vpack.c.b16 %v459, %v458
  %v505 = vpack.c.b16 %v461, %v460
  %v506 = vpack.c.b16 %v463, %v462
  %v507 = vpack.c.b16 %v465, %v464
  %v508 = vpack.c.b16 %v467, %v466
  %v509 = vpack.c.b16 %v469, %v468
  %v510 = vpack.c.b16 %v471, %v470
  %v511 = vpack.c.b16 %v473, %v472
  %v512 = vpack.c.b16 %v475, %v474
  %v513 = vpack.c.b16 %v477, %v476
  %vm550 = vcmask 523264
  %v552 = vsel %vm550, %v266, 0
  %v555 = vsel %vm550, %v271, 0
  %v558 = vsel %vm550, %v276, 0
  %v561 = vsel %vm550, %v281, 0
  %v564 = vsel %vm550, %v286, 0
  %v567 = vsel %vm550, %v291, 0
  %v570 = vsel %vm550, %v296, 0
  %v573 = vsel %vm550, %v301, 0
  %575 = vmatprep.subr.bf16.mxu0 0
  %576 = vmatpush1.bf16.msra.mxu0 %v478
  %577 = vmatprep.subr.bf16.mxu0 0
  %578 = vmatpush1.bf16.msra.mxu0 %v479
  %579 = vmatprep.subr.bf16.mxu0 0
  %580 = vmatpush1.bf16.msra.mxu0 %v480
  %581 = vmatprep.subr.bf16.mxu0 0
  %582 = vmatpush1.bf16.msra.mxu0 %v481
  %583 = vmatprep.subr.bf16.mxu0 0
  %584 = vmatpush1.bf16.msra.mxu0 %v482
  %585 = vmatprep.subr.bf16.mxu0 0
  %586 = vmatpush1.bf16.msra.mxu0 %v483
  %587 = vmatprep.subr.bf16.mxu0 0
  %588 = vmatpush1.bf16.msra.mxu0 %v484
  %589 = vmatprep.subr.bf16.mxu0 0
  %590 = vmatpush1.bf16.msra.mxu0 %v485
  %591 = vmatprep.subr.bf16.mxu0 0
  %592 = vmatpush1.bf16.msra.mxu0 %v486
  %593 = vmatprep.subr.bf16.mxu0 0
  %594 = vmatpush1.bf16.msra.mxu0 %v487
  %595 = vmatprep.subr.bf16.mxu0 0
  %596 = vmatpush1.bf16.msra.mxu0 %v488
  %597 = vmatprep.subr.bf16.mxu0 0
  %598 = vmatpush1.bf16.msra.mxu0 %v489
  %599 = vmatprep.subr.bf16.mxu0 0
  %600 = vmatpush1.bf16.msra.mxu0 %v490
  %601 = vmatprep.subr.bf16.mxu0 0
  %602 = vmatpush1.bf16.msra.mxu0 %v491
  %603 = vmatprep.subr.bf16.mxu0 0
  %604 = vmatpush1.bf16.msra.mxu0 %v492
  %605 = vmatprep.subr.bf16.mxu0 0
  %606 = vmatpush1.bf16.msra.mxu0 %v493
  %607 = vmatprep.mubr.bf16.mxu0 %v263
  %608 = vmatmul.mubr.bf16.gmra.mrb[0].mxu0 %v262
  %v609 = vpop.f32.mrb[0].mxu0
  %v610 = vadd.f32 0.0, %v609
  %v611 = vpop.f32.mrb[0].mxu0
  %v612 = vpop.f32.mrb[0].mxu0
  %v613 = vadd.f32 0.0, %v612
  %v614 = vpop.f32.mrb[0].mxu0
  %615 = vmatprep.mubr.bf16.mxu0 %v268
  %616 = vmatmul.mubr.bf16.gmra.mrb[0].mxu0 %v267
  %v617 = vpop.f32.mrb[0].mxu0
  %v618 = vadd.f32 0.0, %v617
  %v619 = vpop.f32.mrb[0].mxu0
  %v620 = vpop.f32.mrb[0].mxu0
  %v621 = vadd.f32 0.0, %v620
  %v622 = vpop.f32.mrb[0].mxu0
  %623 = vmatprep.mubr.bf16.mxu0 %v273
  %624 = vmatmul.mubr.bf16.gmra.mrb[0].mxu0 %v272
  %v625 = vpop.f32.mrb[0].mxu0
  %v626 = vadd.f32 0.0, %v625
  %v627 = vpop.f32.mrb[0].mxu0
  %v628 = vpop.f32.mrb[0].mxu0
  %v629 = vadd.f32 0.0, %v628
  %v630 = vpop.f32.mrb[0].mxu0
  %631 = vmatprep.mubr.bf16.mxu0 %v278
  %632 = vmatmul.mubr.bf16.gmra.mrb[0].mxu0 %v277
  %v633 = vpop.f32.mrb[0].mxu0
  %v634 = vadd.f32 0.0, %v633
  %v635 = vpop.f32.mrb[0].mxu0
  %v636 = vpop.f32.mrb[0].mxu0
  %v637 = vadd.f32 0.0, %v636
  %v638 = vpop.f32.mrb[0].mxu0
  %639 = vmatprep.mubr.bf16.mxu0 %v283
  %640 = vmatmul.mubr.bf16.gmra.mrb[0].mxu0 %v282
  %v641 = vpop.f32.mrb[0].mxu0
  %v642 = vadd.f32 0.0, %v641
  %v643 = vpop.f32.mrb[0].mxu0
  %v644 = vpop.f32.mrb[0].mxu0
  %v645 = vadd.f32 0.0, %v644
  %v646 = vpop.f32.mrb[0].mxu0
  %647 = vmatprep.mubr.bf16.mxu0 %v288
  %648 = vmatmul.mubr.bf16.gmra.mrb[0].mxu0 %v287
  %v649 = vpop.f32.mrb[0].mxu0
  %v650 = vadd.f32 0.0, %v649
  %v651 = vpop.f32.mrb[0].mxu0
  %v652 = vpop.f32.mrb[0].mxu0
  %v653 = vadd.f32 0.0, %v652
  %v654 = vpop.f32.mrb[0].mxu0
  %655 = vmatprep.mubr.bf16.mxu0 %v293
  %656 = vmatmul.mubr.bf16.gmra.mrb[0].mxu0 %v292
  %v657 = vpop.f32.mrb[0].mxu0
  %v658 = vadd.f32 0.0, %v657
  %v659 = vpop.f32.mrb[0].mxu0
  %v660 = vpop.f32.mrb[0].mxu0
  %v661 = vadd.f32 0.0, %v660
  %v662 = vpop.f32.mrb[0].mxu0
  %663 = vmatprep.mubr.bf16.mxu0 %v298
  %664 = vmatmul.mubr.bf16.gmra.mrb[0].mxu0 %v297
  %v665 = vpop.f32.mrb[0].mxu0
  %v666 = vadd.f32 0.0, %v665
  %v667 = vpop.f32.mrb[0].mxu0
  %v668 = vpop.f32.mrb[0].mxu0
  %v669 = vadd.f32 0.0, %v668
  %v670 = vpop.f32.mrb[0].mxu0
  %671 = vdwg.mxu0
  %672 = vmatprep.subr.bf16.mxu0 0
  %673 = vmatpush1.bf16.msra.mxu0 %v494
  %674 = vmatprep.subr.bf16.mxu0 0
  %675 = vmatpush1.bf16.msra.mxu0 %v495
  %676 = vmatprep.subr.bf16.mxu0 0
  %677 = vmatpush1.bf16.msra.mxu0 %v496
  %678 = vmatprep.subr.bf16.mxu0 0
  %679 = vmatpush1.bf16.msra.mxu0 %v497
  %680 = vmatprep.subr.bf16.mxu0 0
  %681 = vmatpush1.bf16.msra.mxu0 %v498
  %682 = vmatprep.subr.bf16.mxu0 0
  %683 = vmatpush1.bf16.msra.mxu0 %v499
  %684 = vmatprep.subr.bf16.mxu0 0
  %685 = vmatpush1.bf16.msra.mxu0 %v500
  %686 = vmatprep.subr.bf16.mxu0 0
  %687 = vmatpush1.bf16.msra.mxu0 %v501
  %688 = vmatprep.subr.bf16.mxu0 0
  %689 = vmatpush1.bf16.msra.mxu0 %v502
  %690 = vmatprep.subr.bf16.mxu0 0
  %691 = vmatpush1.bf16.msra.mxu0 %v503
  %692 = vmatprep.subr.bf16.mxu0 0
  %693 = vmatpush1.bf16.msra.mxu0 %v504
  %694 = vmatprep.subr.bf16.mxu0 0
  %695 = vmatpush1.bf16.msra.mxu0 %v505
  %696 = vmatprep.subr.bf16.mxu0 0
  %697 = vmatpush1.bf16.msra.mxu0 %v506
  %698 = vmatprep.subr.bf16.mxu0 0
  %699 = vmatpush1.bf16.msra.mxu0 %v507
  %700 = vmatprep.subr.bf16.mxu0 0
  %701 = vmatpush1.bf16.msra.mxu0 %v508
  %702 = vmatprep.subr.bf16.mxu0 0
  %703 = vmatpush1.bf16.msra.mxu0 %v509
  %704 = vmatprep.mubr.bf16.mxu0 %v265
  %705 = vmatmul.mubr.bf16.gmra.mrb[0].mxu0 %v264
  %v706 = vpop.f32.mrb[0].mxu0
  %v707 = vadd.f32 %v610, %v706
  %v708 = vpop.f32.mrb[0].mxu0
  %v709 = vpop.f32.mrb[0].mxu0
  %v710 = vadd.f32 %v613, %v709
  %v711 = vpop.f32.mrb[0].mxu0
  %712 = vmatprep.mubr.bf16.mxu0 %v270
  %713 = vmatmul.mubr.bf16.gmra.mrb[0].mxu0 %v269
  %v714 = vpop.f32.mrb[0].mxu0
  %v715 = vadd.f32 %v618, %v714
  %v716 = vpop.f32.mrb[0].mxu0
  %v717 = vpop.f32.mrb[0].mxu0
  %v718 = vadd.f32 %v621, %v717
  %v719 = vpop.f32.mrb[0].mxu0
  %720 = vmatprep.mubr.bf16.mxu0 %v275
  %721 = vmatmul.mubr.bf16.gmra.mrb[0].mxu0 %v274
  %v722 = vpop.f32.mrb[0].mxu0
  %v723 = vadd.f32 %v626, %v722
  %v724 = vpop.f32.mrb[0].mxu0
  %v725 = vpop.f32.mrb[0].mxu0
  %v726 = vadd.f32 %v629, %v725
  %v727 = vpop.f32.mrb[0].mxu0
  %728 = vmatprep.mubr.bf16.mxu0 %v280
  %729 = vmatmul.mubr.bf16.gmra.mrb[0].mxu0 %v279
  %v730 = vpop.f32.mrb[0].mxu0
  %v731 = vadd.f32 %v634, %v730
  %v732 = vpop.f32.mrb[0].mxu0
  %v733 = vpop.f32.mrb[0].mxu0
  %v734 = vadd.f32 %v637, %v733
  %v735 = vpop.f32.mrb[0].mxu0
  %736 = vmatprep.mubr.bf16.mxu0 %v285
  %737 = vmatmul.mubr.bf16.gmra.mrb[0].mxu0 %v284
  %v738 = vpop.f32.mrb[0].mxu0
  %v739 = vadd.f32 %v642, %v738
  %v740 = vpop.f32.mrb[0].mxu0
  %v741 = vpop.f32.mrb[0].mxu0
  %v742 = vadd.f32 %v645, %v741
  %v743 = vpop.f32.mrb[0].mxu0
  %744 = vmatprep.mubr.bf16.mxu0 %v290
  %745 = vmatmul.mubr.bf16.gmra.mrb[0].mxu0 %v289
  %v746 = vpop.f32.mrb[0].mxu0
  %v747 = vadd.f32 %v650, %v746
  %v748 = vpop.f32.mrb[0].mxu0
  %v749 = vpop.f32.mrb[0].mxu0
  %v750 = vadd.f32 %v653, %v749
  %v751 = vpop.f32.mrb[0].mxu0
  %752 = vmatprep.mubr.bf16.mxu0 %v295
  %753 = vmatmul.mubr.bf16.gmra.mrb[0].mxu0 %v294
  %v754 = vpop.f32.mrb[0].mxu0
  %v755 = vadd.f32 %v658, %v754
  %v756 = vpop.f32.mrb[0].mxu0
  %v757 = vpop.f32.mrb[0].mxu0
  %v758 = vadd.f32 %v661, %v757
  %v759 = vpop.f32.mrb[0].mxu0
  %760 = vmatprep.mubr.bf16.mxu0 %v300
  %761 = vmatmul.mubr.bf16.gmra.mrb[0].mxu0 %v299
  %v762 = vpop.f32.mrb[0].mxu0
  %v763 = vadd.f32 %v666, %v762
  %v764 = vpop.f32.mrb[0].mxu0
  %v765 = vpop.f32.mrb[0].mxu0
  %v766 = vadd.f32 %v669, %v765
  %v767 = vpop.f32.mrb[0].mxu0
  %768 = vdwg.mxu0
  %769 = vmatprep.subr.bf16.mxu0 0
  %770 = vmatpush1.bf16.msra.mxu0 %v510
  %771 = vmatprep.subr.bf16.mxu0 0
  %772 = vmatpush1.bf16.msra.mxu0 %v511
  %773 = vmatprep.subr.bf16.mxu0 0
  %774 = vmatpush1.bf16.msra.mxu0 %v512
  %775 = vmatprep.subr.bf16.mxu0 0
  %776 = vmatpush1.bf16.msra.mxu0 %v513
  %777 = vmatprep.subr.bf16.mxu0 0
  %778 = vmatpush1.bf16.msra.mxu0 0
  %779 = vmatprep.subr.bf16.mxu0 0
  %780 = vmatpush1.bf16.msra.mxu0 0
  %781 = vmatprep.subr.bf16.mxu0 0
  %782 = vmatpush1.bf16.msra.mxu0 0
  %783 = vmatprep.subr.bf16.mxu0 0
  %784 = vmatpush1.bf16.msra.mxu0 0
  %785 = vmatprep.subr.bf16.mxu0 0
  %786 = vmatpush1.bf16.msra.mxu0 0
  %787 = vmatprep.subr.bf16.mxu0 0
  %788 = vmatpush1.bf16.msra.mxu0 0
  %789 = vmatprep.subr.bf16.mxu0 0
  %790 = vmatpush1.bf16.msra.mxu0 0
  %791 = vmatprep.subr.bf16.mxu0 0
  %792 = vmatpush1.bf16.msra.mxu0 0
  %793 = vmatprep.subr.bf16.mxu0 0
  %794 = vmatpush1.bf16.msra.mxu0 0
  %795 = vmatprep.subr.bf16.mxu0 0
  %796 = vmatpush1.bf16.msra.mxu0 0
  %797 = vmatprep.subr.bf16.mxu0 0
  %798 = vmatpush1.bf16.msra.mxu0 0
  %799 = vmatprep.subr.bf16.mxu0 0
  %800 = vmatpush1.bf16.msra.mxu0 0
  %801 = vmatprep.mubr.bf16.mxu0 0
  %802 = vmatmul.mubr.bf16.gmra.mrb[0].mxu0 %v552
  %v803 = vpop.f32.mrb[0].mxu0
  %v804 = vadd.f32 %v707, %v803
  %v805 = vpop.f32.mrb[0].mxu0
  %v806 = vpop.f32.mrb[0].mxu0
  %v807 = vadd.f32 %v710, %v806
  %v808 = vpop.f32.mrb[0].mxu0
  %809 = vmatprep.mubr.bf16.mxu0 0
  %810 = vmatmul.mubr.bf16.gmra.mrb[0].mxu0 %v555
  %v811 = vpop.f32.mrb[0].mxu0
  %v812 = vadd.f32 %v715, %v811
  %v813 = vpop.f32.mrb[0].mxu0
  %v814 = vpop.f32.mrb[0].mxu0
  %v815 = vadd.f32 %v718, %v814
  %v816 = vpop.f32.mrb[0].mxu0
  %817 = vmatprep.mubr.bf16.mxu0 0
  %818 = vmatmul.mubr.bf16.gmra.mrb[0].mxu0 %v558
  %v819 = vpop.f32.mrb[0].mxu0
  %v820 = vadd.f32 %v723, %v819
  %v821 = vpop.f32.mrb[0].mxu0
  %v822 = vpop.f32.mrb[0].mxu0
  %v823 = vadd.f32 %v726, %v822
  %v824 = vpop.f32.mrb[0].mxu0
  %825 = vmatprep.mubr.bf16.mxu0 0
  %826 = vmatmul.mubr.bf16.gmra.mrb[0].mxu0 %v561
  %v827 = vpop.f32.mrb[0].mxu0
  %v828 = vadd.f32 %v731, %v827
  %v829 = vpop.f32.mrb[0].mxu0
  %v830 = vpop.f32.mrb[0].mxu0
  %v831 = vadd.f32 %v734, %v830
  %v832 = vpop.f32.mrb[0].mxu0
  %833 = vmatprep.mubr.bf16.mxu0 0
  %834 = vmatmul.mubr.bf16.gmra.mrb[0].mxu0 %v564
  %v835 = vpop.f32.mrb[0].mxu0
  %v836 = vadd.f32 %v739, %v835
  %v837 = vpop.f32.mrb[0].mxu0
  %v838 = vpop.f32.mrb[0].mxu0
  %v839 = vadd.f32 %v742, %v838
  %v840 = vpop.f32.mrb[0].mxu0
  %841 = vmatprep.mubr.bf16.mxu0 0
  %842 = vmatmul.mubr.bf16.gmra.mrb[0].mxu0 %v567
  %v843 = vpop.f32.mrb[0].mxu0
  %v844 = vadd.f32 %v747, %v843
  %v845 = vpop.f32.mrb[0].mxu0
  %v846 = vpop.f32.mrb[0].mxu0
  %v847 = vadd.f32 %v750, %v846
  %v848 = vpop.f32.mrb[0].mxu0
  %849 = vmatprep.mubr.bf16.mxu0 0
  %850 = vmatmul.mubr.bf16.gmra.mrb[0].mxu0 %v570
  %v851 = vpop.f32.mrb[0].mxu0
  %v852 = vadd.f32 %v755, %v851
  %v853 = vpop.f32.mrb[0].mxu0
  %v854 = vpop.f32.mrb[0].mxu0
  %v855 = vadd.f32 %v758, %v854
  %v856 = vpop.f32.mrb[0].mxu0
  %857 = vmatprep.mubr.bf16.mxu0 0
  %858 = vmatmul.mubr.bf16.gmra.mrb[0].mxu0 %v573
  %v859 = vpop.f32.mrb[0].mxu0
  %v860 = vadd.f32 %v763, %v859
  %v861 = vpop.f32.mrb[0].mxu0
  %v862 = vpop.f32.mrb[0].mxu0
  %v863 = vadd.f32 %v766, %v862
  %v864 = vpop.f32.mrb[0].mxu0
  %865 = vdwg.mxu0
  %866 = vst.msk [vmem:[%s2] sm:$0xff] %vm550, %v804
  %867 = vst.msk [vmem:[%s2 + $0x8] sm:$0xff] %vm550, %v807
  %868 = vst.msk [vmem:[%s2 + $0x10] sm:$0xff] %vm550, %v812
  %869 = vst.msk [vmem:[%s2 + $0x18] sm:$0xff] %vm550, %v815
  %870 = vst.msk [vmem:[%s2 + $0x20] sm:$0xff] %vm550, %v820
  %871 = vst.msk [vmem:[%s2 + $0x28] sm:$0xff] %vm550, %v823
  %872 = vst.msk [vmem:[%s2 + $0x30] sm:$0xff] %vm550, %v828
  %873 = vst.msk [vmem:[%s2 + $0x38] sm:$0xff] %vm550, %v831
  %874 = vst.msk [vmem:[%s2 + $0x40] sm:$0xff] %vm550, %v836
  %875 = vst.msk [vmem:[%s2 + $0x48] sm:$0xff] %vm550, %v839
  %876 = vst.msk [vmem:[%s2 + $0x50] sm:$0xff] %vm550, %v844
  %877 = vst.msk [vmem:[%s2 + $0x58] sm:$0xff] %vm550, %v847
  %878 = vst.msk [vmem:[%s2 + $0x60] sm:$0xff] %vm550, %v852
  %879 = vst.msk [vmem:[%s2 + $0x68] sm:$0xff] %vm550, %v855
  %880 = vst.msk [vmem:[%s2 + $0x70] sm:$0xff] %vm550, %v860
  %881 = vst.msk [vmem:[%s2 + $0x78] sm:$0xff] %vm550, %v863
  %s882 = smul.u32 0, 128
  %v883 = vlaneseq
  %v884 = vshrl.u32 %v883, 7
  %v885 = vadd.s32 %v884, 8
  %v886 = vadd.s32 %v884, 16
  %v887 = vadd.s32 %v884, 24
  %v888 = vadd.s32 %v884, 32
  %v889 = vadd.s32 %v884, 40
  %v890 = vadd.s32 %v884, 48
  %v891 = vadd.s32 %v884, 56
  %v892 = vadd.s32 %v884, 64
  %v893 = vadd.s32 %v884, 72
  %v894 = vadd.s32 %v884, 80
  %v895 = vadd.s32 %v884, 88
  %v896 = vadd.s32 %v884, 96
  %v897 = vadd.s32 %v884, 104
  %v898 = vadd.s32 %v884, 112
  %v899 = vadd.s32 %v884, 120
  %v900 = vstv %s882
  %v901 = vadd.s32 %v900, %v884
  %v902 = vadd.s32 %v900, %v885
  %v903 = vadd.s32 %v900, %v886
  %v904 = vadd.s32 %v900, %v887
  %v905 = vadd.s32 %v900, %v888
  %v906 = vadd.s32 %v900, %v889
  %v907 = vadd.s32 %v900, %v890
  %v908 = vadd.s32 %v900, %v891
  %v909 = vadd.s32 %v900, %v892
  %v910 = vadd.s32 %v900, %v893
  %v911 = vadd.s32 %v900, %v894
  %v912 = vadd.s32 %v900, %v895
  %v913 = vadd.s32 %v900, %v896
  %v914 = vadd.s32 %v900, %v897
  %v915 = vadd.s32 %v900, %v898
  %v916 = vadd.s32 %v900, %v899
  %vm917 = vcmp.lt.s32.totalorder %v901, 128
  %vm918 = vcmp.lt.s32.totalorder %v902, 128
  %vm919 = vcmp.lt.s32.totalorder %v903, 128
  %vm920 = vcmp.lt.s32.totalorder %v904, 128
  %vm921 = vcmp.lt.s32.totalorder %v905, 128
  %vm922 = vcmp.lt.s32.totalorder %v906, 128
  %vm923 = vcmp.lt.s32.totalorder %v907, 128
  %vm924 = vcmp.lt.s32.totalorder %v908, 128
  %vm925 = vcmp.lt.s32.totalorder %v909, 128
  %vm926 = vcmp.lt.s32.totalorder %v910, 128
  %vm927 = vcmp.lt.s32.totalorder %v911, 128
  %vm928 = vcmp.lt.s32.totalorder %v912, 128
  %vm929 = vcmp.lt.s32.totalorder %v913, 128
  %vm930 = vcmp.lt.s32.totalorder %v914, 128
  %vm931 = vcmp.lt.s32.totalorder %v915, 128
  %vm932 = vcmp.lt.s32.totalorder %v916, 128
  %v933 = vsel %vm917, 1, 0
  %v934 = vsel %vm918, 1, 0
  %v935 = vsel %vm919, 1, 0
  %v936 = vsel %vm920, 1, 0
  %v937 = vsel %vm921, 1, 0
  %v938 = vsel %vm922, 1, 0
  %v939 = vsel %vm923, 1, 0
  %v940 = vsel %vm924, 1, 0
  %v941 = vsel %vm925, 1, 0
  %v942 = vsel %vm926, 1, 0
  %v943 = vsel %vm927, 1, 0
  %v944 = vsel %vm928, 1, 0
  %v945 = vsel %vm929, 1, 0
  %v946 = vsel %vm930, 1, 0
  %v947 = vsel %vm931, 1, 0
  %v948 = vsel %vm932, 1, 0
  %v949 = vcvt.s32.f32 %v933
  %v950 = vcvt.s32.f32 %v934
  %v951 = vcvt.s32.f32 %v935
  %v952 = vcvt.s32.f32 %v936
  %v953 = vcvt.s32.f32 %v937
  %v954 = vcvt.s32.f32 %v938
  %v955 = vcvt.s32.f32 %v939
  %v956 = vcvt.s32.f32 %v940
  %v957 = vcvt.s32.f32 %v941
  %v958 = vcvt.s32.f32 %v942
  %v959 = vcvt.s32.f32 %v943
  %v960 = vcvt.s32.f32 %v944
  %v961 = vcvt.s32.f32 %v945
  %v962 = vcvt.s32.f32 %v946
  %v963 = vcvt.s32.f32 %v947
  %v964 = vcvt.s32.f32 %v948
  %v965 = vmul.f32 %v804, %v949
  %v966 = vmul.f32 %v807, %v950
  %v967 = vmul.f32 %v812, %v951
  %v968 = vmul.f32 %v815, %v952
  %v969 = vmul.f32 %v820, %v953
  %v970 = vmul.f32 %v823, %v954
  %v971 = vmul.f32 %v828, %v955
  %v972 = vmul.f32 %v831, %v956
  %v973 = vmul.f32 %v836, %v957
  %v974 = vmul.f32 %v839, %v958
  %v975 = vmul.f32 %v844, %v959
  %v976 = vmul.f32 %v847, %v960
  %v977 = vmul.f32 %v852, %v961
  %v978 = vmul.f32 %v855, %v962
  %v979 = vmul.f32 %v860, %v963
  %v980 = vmul.f32 %v863, %v964
  %v981 = vsel %vm550, %v965, 0.0
  %v982 = vsel %vm550, %v966, 0.0
  %v983 = vadd.f32 %v981, %v982
  %v984 = vsel %vm550, %v967, 0.0
  %v985 = vadd.f32 %v983, %v984
  %v986 = vsel %vm550, %v968, 0.0
  %v987 = vadd.f32 %v985, %v986
  %v988 = vsel %vm550, %v969, 0.0
  %v989 = vadd.f32 %v987, %v988
  %v990 = vsel %vm550, %v970, 0.0
  %v991 = vadd.f32 %v989, %v990
  %v992 = vsel %vm550, %v971, 0.0
  %v993 = vadd.f32 %v991, %v992
  %v994 = vsel %vm550, %v972, 0.0
  %v995 = vadd.f32 %v993, %v994
  %v996 = vsel %vm550, %v973, 0.0
  %v997 = vadd.f32 %v995, %v996
  %v998 = vsel %vm550, %v974, 0.0
  %v999 = vadd.f32 %v997, %v998
  %v1000 = vsel %vm550, %v975, 0.0
  %v1001 = vadd.f32 %v999, %v1000
  %v1002 = vsel %vm550, %v976, 0.0
  %v1003 = vadd.f32 %v1001, %v1002
  %v1004 = vsel %vm550, %v977, 0.0
  %v1005 = vadd.f32 %v1003, %v1004
  %v1006 = vsel %vm550, %v978, 0.0
  %v1007 = vadd.f32 %v1005, %v1006
  %v1008 = vsel %vm550, %v979, 0.0
  %v1009 = vadd.f32 %v1007, %v1008
  %v1010 = vsel %vm550, %v980, 0.0
  %v1011 = vadd.f32 %v1009, %v1010
  %v1012 = vrot.slane %v1011, 4
  %v1013 = vadd.f32 %v1011, %v1012
  %v1014 = vrot.slane %v1013, 2
  %v1015 = vadd.f32 %v1013, %v1014
  %v1016 = vrot.slane %v1015, 1
  %v1017 = vadd.f32 %v1015, %v1016
  %v1018 = vmul.f32 %v965, %v965
  %v1019 = vmul.f32 %v966, %v966
  %v1020 = vmul.f32 %v967, %v967
  %v1021 = vmul.f32 %v968, %v968
  %v1022 = vmul.f32 %v969, %v969
  %v1023 = vmul.f32 %v970, %v970
  %v1024 = vmul.f32 %v971, %v971
  %v1025 = vmul.f32 %v972, %v972
  %v1026 = vmul.f32 %v973, %v973
  %v1027 = vmul.f32 %v974, %v974
  %v1028 = vmul.f32 %v975, %v975
  %v1029 = vmul.f32 %v976, %v976
  %v1030 = vmul.f32 %v977, %v977
  %v1031 = vmul.f32 %v978, %v978
  %v1032 = vmul.f32 %v979, %v979
  %v1033 = vmul.f32 %v980, %v980
  %v1034 = vsel %vm550, %v1018, 0.0
  %v1035 = vsel %vm550, %v1019, 0.0
  %v1036 = vadd.f32 %v1034, %v1035
  %v1037 = vsel %vm550, %v1020, 0.0
  %v1038 = vadd.f32 %v1036, %v1037
  %v1039 = vsel %vm550, %v1021, 0.0
  %v1040 = vadd.f32 %v1038, %v1039
  %v1041 = vsel %vm550, %v1022, 0.0
  %v1042 = vadd.f32 %v1040, %v1041
  %v1043 = vsel %vm550, %v1023, 0.0
  %v1044 = vadd.f32 %v1042, %v1043
  %v1045 = vsel %vm550, %v1024, 0.0
  %v1046 = vadd.f32 %v1044, %v1045
  %v1047 = vsel %vm550, %v1025, 0.0
  %v1048 = vadd.f32 %v1046, %v1047
  %v1049 = vsel %vm550, %v1026, 0.0
  %v1050 = vadd.f32 %v1048, %v1049
  %v1051 = vsel %vm550, %v1027, 0.0
  %v1052 = vadd.f32 %v1050, %v1051
  %v1053 = vsel %vm550, %v1028, 0.0
  %v1054 = vadd.f32 %v1052, %v1053
  %v1055 = vsel %vm550, %v1029, 0.0
  %v1056 = vadd.f32 %v1054, %v1055
  %v1057 = vsel %vm550, %v1030, 0.0
  %v1058 = vadd.f32 %v1056, %v1057
  %v1059 = vsel %vm550, %v1031, 0.0
  %v1060 = vadd.f32 %v1058, %v1059
  %v1061 = vsel %vm550, %v1032, 0.0
  %v1062 = vadd.f32 %v1060, %v1061
  %v1063 = vsel %vm550, %v1033, 0.0
  %v1064 = vadd.f32 %v1062, %v1063
  %v1065 = vrot.slane %v1064, 4
  %v1066 = vadd.f32 %v1064, %v1065
  %v1067 = vrot.slane %v1066, 2
  %v1068 = vadd.f32 %v1066, %v1067
  %v1069 = vrot.slane %v1068, 1
  %v1070 = vadd.f32 %v1068, %v1069
  %vm1071 = vcmask 1040384
  %v1072 = vsel %vm1071, %v1017, %v1070
  %vm1073 = vcmask 1041408
  %v1074 = vsel %vm1073, %v1072, 0.0
  %1075 = vst.msk [vmem:[%s3] sm:$0xff] %vm550, %v1074
  // Predicated region
  $region10: #{discriminator_sr_forward.12} parent=0 // pred_check
    _
  $region11: #{discriminator_sr_forward.12} parent=0 // pred_check_branch
    %1077 = sbr.rel (0) target = $region13
  $region12: #{discriminator_sr_forward.12} parent=0 // pred_region
    _
  $region13: #{discriminator_sr_forward.12} parent=0 // pred_fallthru
    _
  // Predicated region
  $region14: #{discriminator_sr_forward.12} parent=0 // pred_check
    _
  $region15: #{discriminator_sr_forward.12} parent=0 // pred_check_branch
    %1079 = sbr.rel (0) target = $region17
  $region16: #{discriminator_sr_forward.12} parent=0 // pred_region
    _
  $region17: #{discriminator_sr_forward.12} parent=0 // pred_fallthru
    _
  // Predicated region
  $region18: #{discriminator_sr_forward.12} parent=0 // pred_check
    _
  $region19: #{discriminator_sr_forward.12} parent=0 // pred_check_branch
    %1081 = sbr.rel (0) target = $region21
  $region20: #{discriminator_sr_forward.12} parent=0 // pred_region
    _
  $region21: #{discriminator_sr_forward.12} parent=0 // pred_fallthru
    _
  // Predicated region
  $region22: #{discriminator_sr_forward.12} parent=0 // pred_check
    _
  $region23: #{discriminator_sr_forward.12} parent=0 // pred_check_branch
    %1083 = sbr.rel (0) target = $region25
  $region24: #{discriminator_sr_forward.12} parent=0 // pred_region
    _
  $region25: #{discriminator_sr_forward.12} parent=0 // pred_fallthru
    _

// kernel: discriminator_sr_forward.13
$region0: #{discriminator_sr_forward.13}
  #allocation0 [shape = 'u32[]', space=smem, size = 0x4, offset = 0x4, fixed_abs, tag = 'smem constant byte address 0x4 - core index']
  #allocation1 [shape = 'u32[144,128]{1,0:T(1,128)}', space=vmem, size = 0x12000, scoped, tag = 'internal scratch']
  %s0 = inlined_call_operand.vmem [shape: bf16[32,576], index: 0, kind: input, shape index: {}]
  %s1 = inlined_call_operand.vmem [shape: bf16[576,128], index: 1, kind: input, shape index: {}]
  %s2 = inlined_call_operand.vmem [shape: f32[32,128], index: 2, kind: output, shape index: {0}]
  %s3 = inlined_call_operand.vmem [shape: f32[8,128], index: 3, kind: output, shape index: {1}]
  %4 = xla_tuple %s2, %s3
  %s5 = sld [smem:[#allocation0]]
  $region26: #{discriminator_sr_forward.13} parent=0
    _
  %s7 = ssub.s32 1, %s5
  %s8 = scalar_select 0, %s7, %s5
  // Predicated region
  $region2: #{discriminator_sr_forward.13} parent=0 // pred_check
    _
  $region3: #{discriminator_sr_forward.13} parent=0 // pred_check_branch
    %10 = sbr.rel (0) target = $region5
  $region4: #{discriminator_sr_forward.13} parent=0 // pred_region
    _
  $region5: #{discriminator_sr_forward.13} parent=0 // pred_fallthru
    _
  // Predicated region
  $region6: #{discriminator_sr_forward.13} parent=0 // pred_check
    _
  $region7: #{discriminator_sr_forward.13} parent=0 // pred_check_branch
    %12 = sbr.rel (0) target = $region9
  $region8: #{discriminator_sr_forward.13} parent=0 // pred_region
    _
  $region9: #{discriminator_sr_forward.13} parent=0 // pred_fallthru
    _
  %v14 = vld [vmem:[%s0] sm:$0xff]
  %v15 = vld [vmem:[%s0 + $0x8] sm:$0xff]
  %v16 = vld [vmem:[%s0 + $0x10] sm:$0xf]
  %v17 = vld [vmem:[%s0 + $0x14] sm:$0xff]
  %v18 = vld [vmem:[%s0 + $0x1c] sm:$0xff]
  %v19 = vld [vmem:[%s0 + $0x24] sm:$0xf]
  %v20 = vld [vmem:[%s0 + $0x28] sm:$0xff]
  %v21 = vld [vmem:[%s0 + $0x30] sm:$0xff]
  %v22 = vld [vmem:[%s0 + $0x38] sm:$0xf]
  %v23 = vld [vmem:[%s0 + $0x3c] sm:$0xff]
  %v24 = vld [vmem:[%s0 + $0x44] sm:$0xff]
  %v25 = vld [vmem:[%s0 + $0x4c] sm:$0xf]
  %v26 = vld [vmem:[%s1] sm:$0xf]
  %v27 = vld [vmem:[%s1 + $0x4] sm:$0xf]
  %v28 = vld [vmem:[%s1 + $0x8] sm:$0xf]
  %v29 = vld [vmem:[%s1 + $0xc] sm:$0xf]
  %v30 = vld [vmem:[%s1 + $0x10] sm:$0xf]
  %v31 = vld [vmem:[%s1 + $0x14] sm:$0xf]
  %v32 = vld [vmem:[%s1 + $0x18] sm:$0xf]
  %v33 = vld [vmem:[%s1 + $0x1c] sm:$0xf]
  %v34 = vld [vmem:[%s1 + $0x20] sm:$0xf]
  %v35 = vld [vmem:[%s1 + $0x24] sm:$0xf]
  %v36 = vld [vmem:[%s1 + $0x28] sm:$0xf]
  %v37 = vld [vmem:[%s1 + $0x2c] sm:$0xf]
  %v38 = vld [vmem:[%s1 + $0x30] sm:$0xf]
  %v39 = vld [vmem:[%s1 + $0x34] sm:$0xf]
  %v40 = vld [vmem:[%s1 + $0x38] sm:$0xf]
  %v41 = vld [vmem:[%s1 + $0x3c] sm:$0xf]
  %v42 = vld [vmem:[%s1 + $0x40] sm:$0xf]
  %v43 = vld [vmem:[%s1 + $0x44] sm:$0xf]
  %v44 = vld [vmem:[%s1 + $0x48] sm:$0xf]
  %v45 = vld [vmem:[%s1 + $0x4c] sm:$0xf]
  %v46 = vld [vmem:[%s1 + $0x50] sm:$0xf]
  %v47 = vld [vmem:[%s1 + $0x54] sm:$0xf]
  %v48 = vld [vmem:[%s1 + $0x58] sm:$0xf]
  %v49 = vld [vmem:[%s1 + $0x5c] sm:$0xf]
  %v50 = vld [vmem:[%s1 + $0x60] sm:$0xf]
  %v51 = vld [vmem:[%s1 + $0x64] sm:$0xf]
  %v52 = vld [vmem:[%s1 + $0x68] sm:$0xf]
  %v53 = vld [vmem:[%s1 + $0x6c] sm:$0xf]
  %v54 = vld [vmem:[%s1 + $0x70] sm:$0xf]
  %v55 = vld [vmem:[%s1 + $0x74] sm:$0xf]
  %v56 = vld [vmem:[%s1 + $0x78] sm:$0xf]
  %v57 = vld [vmem:[%s1 + $0x7c] sm:$0xf]
  %v58 = vld [vmem:[%s1 + $0x80] sm:$0xf]
  %v59 = vld [vmem:[%s1 + $0x84] sm:$0xf]
  %v60 = vld [vmem:[%s1 + $0x88] sm:$0xf]
  %v61 = vld [vmem:[%s1 + $0x8c] sm:$0xf]
  %v62 = vld [vmem:[%s1 + $0x90] sm:$0xf]
  %v63 = vld [vmem:[%s1 + $0x94] sm:$0xf]
  %v64 = vld [vmem:[%s1 + $0x98] sm:$0xf]
  %v65 = vld [vmem:[%s1 + $0x9c] sm:$0xf]
  %v66 = vld [vmem:[%s1 + $0xa0] sm:$0xf]
  %v67 = vld [vmem:[%s1 + $0xa4] sm:$0xf]
  %v68 = vld [vmem:[%s1 + $0xa8] sm:$0xf]
  %v69 = vld [vmem:[%s1 + $0xac] sm:$0xf]
  %v70 = vld [vmem:[%s1 + $0xb0] sm:$0xf]
  %v71 = vld [vmem:[%s1 + $0xb4] sm:$0xf]
  %v72 = vld [vmem:[%s1 + $0xb8] sm:$0xf]
  %v73 = vld [vmem:[%s1 + $0xbc] sm:$0xf]
  %v74 = vld [vmem:[%s1 + $0xc0] sm:$0xf]
  %v75 = vld [vmem:[%s1 + $0xc4] sm:$0xf]
  %v76 = vld [vmem:[%s1 + $0xc8] sm:$0xf]
  %v77 = vld [vmem:[%s1 + $0xcc] sm:$0xf]
  %v78 = vld [vmem:[%s1 + $0xd0] sm:$0xf]
  %v79 = vld [vmem:[%s1 + $0xd4] sm:$0xf]
  %v80 = vld [vmem:[%s1 + $0xd8] sm:$0xf]
  %v81 = vld [vmem:[%s1 + $0xdc] sm:$0xf]
  %v82 = vld [vmem:[%s1 + $0xe0] sm:$0xf]
  %v83 = vld [vmem:[%s1 + $0xe4] sm:$0xf]
  %v84 = vld [vmem:[%s1 + $0xe8] sm:$0xf]
  %v85 = vld [vmem:[%s1 + $0xec] sm:$0xf]
  %v86 = vld [vmem:[%s1 + $0xf0] sm:$0xf]
  %v87 = vld [vmem:[%s1 + $0xf4] sm:$0xf]
  %v88 = vld [vmem:[%s1 + $0xf8] sm:$0xf]
  %v89 = vld [vmem:[%s1 + $0xfc] sm:$0xf]
  %v90 = vld [vmem:[%s1 + $0x100] sm:$0xf]
  %v91 = vld [vmem:[%s1 + $0x104] sm:$0xf]
  %v92 = vld [vmem:[%s1 + $0x108] sm:$0xf]
  %v93 = vld [vmem:[%s1 + $0x10c] sm:$0xf]
  %v94 = vld [vmem:[%s1 + $0x110] sm:$0xf]
  %v95 = vld [vmem:[%s1 + $0x114] sm:$0xf]
  %v96 = vld [vmem:[%s1 + $0x118] sm:$0xf]
  %v97 = vld [vmem:[%s1 + $0x11c] sm:$0xf]
  %v110 = vunpack.c.l.b16 %v14
  %v111 = vunpack.c.h.b16 %v14
  %v112 = vunpack.c.l.b16 %v15
  %v113 = vunpack.c.h.b16 %v15
  %v114 = vunpack.c.l.b16 %v16
  %v115 = vunpack.c.l.b16 %v17
  %v116 = vunpack.c.h.b16 %v17
  %v117 = vunpack.c.l.b16 %v18
  %v118 = vunpack.c.h.b16 %v18
  %v119 = vunpack.c.l.b16 %v19
  %v120 = vunpack.c.l.b16 %v20
  %v121 = vunpack.c.h.b16 %v20
  %v122 = vunpack.c.l.b16 %v21
  %v123 = vunpack.c.h.b16 %v21
  %v124 = vunpack.c.l.b16 %v22
  %v125 = vunpack.c.l.b16 %v23
  %v126 = vunpack.c.h.b16 %v23
  %v127 = vunpack.c.l.b16 %v24
  %v128 = vunpack.c.h.b16 %v24
  %v129 = vunpack.c.l.b16 %v25
  %v130 = vpack.c.b16 %v115, %v110
  %v131 = vpack.c.b16 %v116, %v111
  %v132 = vpack.c.b16 %v117, %v112
  %v133 = vpack.c.b16 %v118, %v113
  %v134 = vpack.c.b16 %v119, %v114
  %v135 = vpack.c.b16 %v125, %v120
  %v136 = vpack.c.b16 %v126, %v121
  %v137 = vpack.c.b16 %v127, %v122
  %v138 = vpack.c.b16 %v128, %v123
  %v139 = vpack.c.b16 %v129, %v124
  %v220 = vunpack.c.l.b16 %v26
  %v221 = vunpack.c.l.b16 %v27
  %v222 = vunpack.c.l.b16 %v28
  %v223 = vunpack.c.l.b16 %v29
  %v224 = vunpack.c.l.b16 %v30
  %v225 = vunpack.c.l.b16 %v31
  %v226 = vunpack.c.l.b16 %v32
  %v227 = vunpack.c.l.b16 %v33
  %v228 = vunpack.c.l.b16 %v34
  %v229 = vunpack.c.l.b16 %v35
  %v230 = vunpack.c.l.b16 %v36
  %v231 = vunpack.c.l.b16 %v37
  %v232 = vunpack.c.l.b16 %v38
  %v233 = vunpack.c.l.b16 %v39
  %v234 = vunpack.c.l.b16 %v40
  %v235 = vunpack.c.l.b16 %v41
  %v236 = vunpack.c.l.b16 %v42
  %v237 = vunpack.c.l.b16 %v43
  %v238 = vunpack.c.l.b16 %v44
  %v239 = vunpack.c.l.b16 %v45
  %v240 = vunpack.c.l.b16 %v46
  %v241 = vunpack.c.l.b16 %v47
  %v242 = vunpack.c.l.b16 %v48
  %v243 = vunpack.c.l.b16 %v49
  %v244 = vunpack.c.l.b16 %v50
  %v245 = vunpack.c.l.b16 %v51
  %v246 = vunpack.c.l.b16 %v52
  %v247 = vunpack.c.l.b16 %v53
  %v248 = vunpack.c.l.b16 %v54
  %v249 = vunpack.c.l.b16 %v55
  %v250 = vunpack.c.l.b16 %v56
  %v251 = vunpack.c.l.b16 %v57
  %v252 = vunpack.c.l.b16 %v58
  %v253 = vunpack.c.l.b16 %v59
  %v254 = vunpack.c.l.b16 %v60
  %v255 = vunpack.c.l.b16 %v61
  %v256 = vunpack.c.l.b16 %v62
  %v257 = vunpack.c.l.b16 %v63
  %v258 = vunpack.c.l.b16 %v64
  %v259 = vunpack.c.l.b16 %v65
  %v260 = vunpack.c.l.b16 %v66
  %v261 = vunpack.c.l.b16 %v67
  %v262 = vunpack.c.l.b16 %v68
  %v263 = vunpack.c.l.b16 %v69
  %v264 = vunpack.c.l.b16 %v70
  %v265 = vunpack.c.l.b16 %v71
  %v266 = vunpack.c.l.b16 %v72
  %v267 = vunpack.c.l.b16 %v73
  %v268 = vunpack.c.l.b16 %v74
  %v269 = vunpack.c.l.b16 %v75
  %v270 = vunpack.c.l.b16 %v76
  %v271 = vunpack.c.l.b16 %v77
  %v272 = vunpack.c.l.b16 %v78
  %v273 = vunpack.c.l.b16 %v79
  %v274 = vunpack.c.l.b16 %v80
  %v275 = vunpack.c.l.b16 %v81
  %v276 = vunpack.c.l.b16 %v82
  %v277 = vunpack.c.l.b16 %v83
  %v278 = vunpack.c.l.b16 %v84
  %v279 = vunpack.c.l.b16 %v85
  %v280 = vunpack.c.l.b16 %v86
  %v281 = vunpack.c.l.b16 %v87
  %v282 = vunpack.c.l.b16 %v88
  %v283 = vunpack.c.l.b16 %v89
  %v284 = vunpack.c.l.b16 %v90
  %v285 = vunpack.c.l.b16 %v91
  %v286 = vunpack.c.l.b16 %v92
  %v287 = vunpack.c.l.b16 %v93
  %v288 = vunpack.c.l.b16 %v94
  %v289 = vunpack.c.l.b16 %v95
  %v290 = vunpack.c.l.b16 %v96
  %v291 = vunpack.c.l.b16 %v97
  %v292 = vpack.c.b16 %v221, %v220
  %v293 = vpack.c.b16 %v223, %v222
  %v294 = vpack.c.b16 %v225, %v224
  %v295 = vpack.c.b16 %v227, %v226
  %v296 = vpack.c.b16 %v229, %v228
  %v297 = vpack.c.b16 %v231, %v230
  %v298 = vpack.c.b16 %v233, %v232
  %v299 = vpack.c.b16 %v235, %v234
  %v300 = vpack.c.b16 %v237, %v236
  %v301 = vpack.c.b16 %v239, %v238
  %v302 = vpack.c.b16 %v241, %v240
  %v303 = vpack.c.b16 %v243, %v242
  %v304 = vpack.c.b16 %v245, %v244
  %v305 = vpack.c.b16 %v247, %v246
  %v306 = vpack.c.b16 %v249, %v248
  %v307 = vpack.c.b16 %v251, %v250
  %v308 = vpack.c.b16 %v253, %v252
  %v309 = vpack.c.b16 %v255, %v254
  %v310 = vpack.c.b16 %v257, %v256
  %v311 = vpack.c.b16 %v259, %v258
  %v312 = vpack.c.b16 %v261, %v260
  %v313 = vpack.c.b16 %v263, %v262
  %v314 = vpack.c.b16 %v265, %v264
  %v315 = vpack.c.b16 %v267, %v266
  %v316 = vpack.c.b16 %v269, %v268
  %v317 = vpack.c.b16 %v271, %v270
  %v318 = vpack.c.b16 %v273, %v272
  %v319 = vpack.c.b16 %v275, %v274
  %v320 = vpack.c.b16 %v277, %v276
  %v321 = vpack.c.b16 %v279, %v278
  %v322 = vpack.c.b16 %v281, %v280
  %v323 = vpack.c.b16 %v283, %v282
  %v324 = vpack.c.b16 %v285, %v284
  %v325 = vpack.c.b16 %v287, %v286
  %v326 = vpack.c.b16 %v289, %v288
  %v327 = vpack.c.b16 %v291, %v290
  %vm364 = vcmask 523264
  %v366 = vsel %vm364, %v134, 0
  %v369 = vsel %vm364, %v139, 0
  %371 = vmatprep.subr.bf16.mxu0 0
  %372 = vmatpush1.bf16.msra.mxu0 %v292
  %373 = vmatprep.subr.bf16.mxu0 0
  %374 = vmatpush1.bf16.msra.mxu0 %v293
  %375 = vmatprep.subr.bf16.mxu0 0
  %376 = vmatpush1.bf16.msra.mxu0 %v294
  %377 = vmatprep.subr.bf16.mxu0 0
  %378 = vmatpush1.bf16.msra.mxu0 %v295
  %379 = vmatprep.subr.bf16.mxu0 0
  %380 = vmatpush1.bf16.msra.mxu0 %v296
  %381 = vmatprep.subr.bf16.mxu0 0
  %382 = vmatpush1.bf16.msra.mxu0 %v297
  %383 = vmatprep.subr.bf16.mxu0 0
  %384 = vmatpush1.bf16.msra.mxu0 %v298
  %385 = vmatprep.subr.bf16.mxu0 0
  %386 = vmatpush1.bf16.msra.mxu0 %v299
  %387 = vmatprep.subr.bf16.mxu0 0
  %388 = vmatpush1.bf16.msra.mxu0 %v300
  %389 = vmatprep.subr.bf16.mxu0 0
  %390 = vmatpush1.bf16.msra.mxu0 %v301
  %391 = vmatprep.subr.bf16.mxu0 0
  %392 = vmatpush1.bf16.msra.mxu0 %v302
  %393 = vmatprep.subr.bf16.mxu0 0
  %394 = vmatpush1.bf16.msra.mxu0 %v303
  %395 = vmatprep.subr.bf16.mxu0 0
  %396 = vmatpush1.bf16.msra.mxu0 %v304
  %397 = vmatprep.subr.bf16.mxu0 0
  %398 = vmatpush1.bf16.msra.mxu0 %v305
  %399 = vmatprep.subr.bf16.mxu0 0
  %400 = vmatpush1.bf16.msra.mxu0 %v306
  %401 = vmatprep.subr.bf16.mxu0 0
  %402 = vmatpush1.bf16.msra.mxu0 %v307
  %403 = vmatprep.mubr.bf16.mxu0 %v131
  %404 = vmatmul.mubr.bf16.gmra.mrb[0].mxu0 %v130
  %v405 = vpop.f32.mrb[0].mxu0
  %v406 = vadd.f32 0.0, %v405
  %v407 = vpop.f32.mrb[0].mxu0
  %v408 = vpop.f32.mrb[0].mxu0
  %v409 = vadd.f32 0.0, %v408
  %v410 = vpop.f32.mrb[0].mxu0
  %411 = vmatprep.mubr.bf16.mxu0 %v136
  %412 = vmatmul.mubr.bf16.gmra.mrb[0].mxu0 %v135
  %v413 = vpop.f32.mrb[0].mxu0
  %v414 = vadd.f32 0.0, %v413
  %v415 = vpop.f32.mrb[0].mxu0
  %v416 = vpop.f32.mrb[0].mxu0
  %v417 = vadd.f32 0.0, %v416
  %v418 = vpop.f32.mrb[0].mxu0
  %419 = vdwg.mxu0
  %420 = vmatprep.subr.bf16.mxu0 0
  %421 = vmatpush1.bf16.msra.mxu0 %v308
  %422 = vmatprep.subr.bf16.mxu0 0
  %423 = vmatpush1.bf16.msra.mxu0 %v309
  %424 = vmatprep.subr.bf16.mxu0 0
  %425 = vmatpush1.bf16.msra.mxu0 %v310
  %426 = vmatprep.subr.bf16.mxu0 0
  %427 = vmatpush1.bf16.msra.mxu0 %v311
  %428 = vmatprep.subr.bf16.mxu0 0
  %429 = vmatpush1.bf16.msra.mxu0 %v312
  %430 = vmatprep.subr.bf16.mxu0 0
  %431 = vmatpush1.bf16.msra.mxu0 %v313
  %432 = vmatprep.subr.bf16.mxu0 0
  %433 = vmatpush1.bf16.msra.mxu0 %v314
  %434 = vmatprep.subr.bf16.mxu0 0
  %435 = vmatpush1.bf16.msra.mxu0 %v315
  %436 = vmatprep.subr.bf16.mxu0 0
  %437 = vmatpush1.bf16.msra.mxu0 %v316
  %438 = vmatprep.subr.bf16.mxu0 0
  %439 = vmatpush1.bf16.msra.mxu0 %v317
  %440 = vmatprep.subr.bf16.mxu0 0
  %441 = vmatpush1.bf16.msra.mxu0 %v318
  %442 = vmatprep.subr.bf16.mxu0 0
  %443 = vmatpush1.bf16.msra.mxu0 %v319
  %444 = vmatprep.subr.bf16.mxu0 0
  %445 = vmatpush1.bf16.msra.mxu0 %v320
  %446 = vmatprep.subr.bf16.mxu0 0
  %447 = vmatpush1.bf16.msra.mxu0 %v321
  %448 = vmatprep.subr.bf16.mxu0 0
  %449 = vmatpush1.bf16.msra.mxu0 %v322
  %450 = vmatprep.subr.bf16.mxu0 0
  %451 = vmatpush1.bf16.msra.mxu0 %v323
  %452 = vmatprep.mubr.bf16.mxu0 %v133
  %453 = vmatmul.mubr.bf16.gmra.mrb[0].mxu0 %v132
  %v454 = vpop.f32.mrb[0].mxu0
  %v455 = vadd.f32 %v406, %v454
  %v456 = vpop.f32.mrb[0].mxu0
  %v457 = vpop.f32.mrb[0].mxu0
  %v458 = vadd.f32 %v409, %v457
  %v459 = vpop.f32.mrb[0].mxu0
  %460 = vmatprep.mubr.bf16.mxu0 %v138
  %461 = vmatmul.mubr.bf16.gmra.mrb[0].mxu0 %v137
  %v462 = vpop.f32.mrb[0].mxu0
  %v463 = vadd.f32 %v414, %v462
  %v464 = vpop.f32.mrb[0].mxu0
  %v465 = vpop.f32.mrb[0].mxu0
  %v466 = vadd.f32 %v417, %v465
  %v467 = vpop.f32.mrb[0].mxu0
  %468 = vdwg.mxu0
  %469 = vmatprep.subr.bf16.mxu0 0
  %470 = vmatpush1.bf16.msra.mxu0 %v324
  %471 = vmatprep.subr.bf16.mxu0 0
  %472 = vmatpush1.bf16.msra.mxu0 %v325
  %473 = vmatprep.subr.bf16.mxu0 0
  %474 = vmatpush1.bf16.msra.mxu0 %v326
  %475 = vmatprep.subr.bf16.mxu0 0
  %476 = vmatpush1.bf16.msra.mxu0 %v327
  %477 = vmatprep.subr.bf16.mxu0 0
  %478 = vmatpush1.bf16.msra.mxu0 0
  %479 = vmatprep.subr.bf16.mxu0 0
  %480 = vmatpush1.bf16.msra.mxu0 0
  %481 = vmatprep.subr.bf16.mxu0 0
  %482 = vmatpush1.bf16.msra.mxu0 0
  %483 = vmatprep.subr.bf16.mxu0 0
  %484 = vmatpush1.bf16.msra.mxu0 0
  %485 = vmatprep.subr.bf16.mxu0 0
  %486 = vmatpush1.bf16.msra.mxu0 0
  %487 = vmatprep.subr.bf16.mxu0 0
  %488 = vmatpush1.bf16.msra.mxu0 0
  %489 = vmatprep.subr.bf16.mxu0 0
  %490 = vmatpush1.bf16.msra.mxu0 0
  %491 = vmatprep.subr.bf16.mxu0 0
  %492 = vmatpush1.bf16.msra.mxu0 0
  %493 = vmatprep.subr.bf16.mxu0 0
  %494 = vmatpush1.bf16.msra.mxu0 0
  %495 = vmatprep.subr.bf16.mxu0 0
  %496 = vmatpush1.bf16.msra.mxu0 0
  %497 = vmatprep.subr.bf16.mxu0 0
  %498 = vmatpush1.bf16.msra.mxu0 0
  %499 = vmatprep.subr.bf16.mxu0 0
  %500 = vmatpush1.bf16.msra.mxu0 0
  %501 = vmatprep.mubr.bf16.mxu0 0
  %502 = vmatmul.mubr.bf16.gmra.mrb[0].mxu0 %v366
  %v503 = vpop.f32.mrb[0].mxu0
  %v504 = vadd.f32 %v455, %v503
  %v505 = vpop.f32.mrb[0].mxu0
  %v506 = vpop.f32.mrb[0].mxu0
  %v507 = vadd.f32 %v458, %v506
  %v508 = vpop.f32.mrb[0].mxu0
  %509 = vmatprep.mubr.bf16.mxu0 0
  %510 = vmatmul.mubr.bf16.gmra.mrb[0].mxu0 %v369
  %v511 = vpop.f32.mrb[0].mxu0
  %v512 = vadd.f32 %v463, %v511
  %v513 = vpop.f32.mrb[0].mxu0
  %v514 = vpop.f32.mrb[0].mxu0
  %v515 = vadd.f32 %v466, %v514
  %v516 = vpop.f32.mrb[0].mxu0
  %517 = vdwg.mxu0
  %518 = vst [vmem:[%s2] sm:$0xff] %v504
  %519 = vst [vmem:[%s2 + $0x8] sm:$0xff] %v507
  %520 = vst [vmem:[%s2 + $0x10] sm:$0xff] %v512
  %521 = vst [vmem:[%s2 + $0x18] sm:$0xff] %v515
  %s522 = smul.u32 0, 32
  %v523 = vlaneseq
  %v524 = vshrl.u32 %v523, 7
  %v525 = vadd.s32 %v524, 8
  %v526 = vadd.s32 %v524, 16
  %v527 = vadd.s32 %v524, 24
  %v528 = vstv %s522
  %v529 = vadd.s32 %v528, %v524
  %v530 = vadd.s32 %v528, %v525
  %v531 = vadd.s32 %v528, %v526
  %v532 = vadd.s32 %v528, %v527
  %vm533 = vcmp.lt.s32.totalorder %v529, 32
  %vm534 = vcmp.lt.s32.totalorder %v530, 32
  %vm535 = vcmp.lt.s32.totalorder %v531, 32
  %vm536 = vcmp.lt.s32.totalorder %v532, 32
  %v537 = vsel %vm533, 1, 0
  %v538 = vsel %vm534, 1, 0
  %v539 = vsel %vm535, 1, 0
  %v540 = vsel %vm536, 1, 0
  %v541 = vcvt.s32.f32 %v537
  %v542 = vcvt.s32.f32 %v538
  %v543 = vcvt.s32.f32 %v539
  %v544 = vcvt.s32.f32 %v540
  %v545 = vmul.f32 %v504, %v541
  %v546 = vmul.f32 %v507, %v542
  %v547 = vmul.f32 %v512, %v543
  %v548 = vmul.f32 %v515, %v544
  %v549 = vadd.f32 %v545, %v546
  %v550 = vadd.f32 %v549, %v547
  %v551 = vadd.f32 %v550, %v548
  %v552 = vrot.slane %v551, 4
  %v553 = vadd.f32 %v551, %v552
  %v554 = vrot.slane %v553, 2
  %v555 = vadd.f32 %v553, %v554
  %v556 = vrot.slane %v555, 1
  %v557 = vadd.f32 %v555, %v556
  %v558 = vmul.f32 %v545, %v545
  %v559 = vmul.f32 %v546, %v546
  %v560 = vmul.f32 %v547, %v547
  %v561 = vmul.f32 %v548, %v548
  %v562 = vadd.f32 %v558, %v559
  %v563 = vadd.f32 %v562, %v560
  %v564 = vadd.f32 %v563, %v561
  %v565 = vrot.slane %v564, 4
  %v566 = vadd.f32 %v564, %v565
  %v567 = vrot.slane %v566, 2
  %v568 = vadd.f32 %v566, %v567
  %v569 = vrot.slane %v568, 1
  %v570 = vadd.f32 %v568, %v569
  %vm571 = vcmask 1040384
  %v572 = vsel %vm571, %v557, %v570
  %vm573 = vcmask 1041408
  %v574 = vsel %vm573, %v572, 0.0
  %575 = vst [vmem:[%s3] sm:$0xff] %v574
  // Predicated region
  $region10: #{discriminator_sr_forward.13} parent=0 // pred_check
    _
  $region11: #{discriminator_sr_forward.13} parent=0 // pred_check_branch
    %577 = sbr.rel (0) target = $region13
  $region12: #{discriminator_sr_forward.13} parent=0 // pred_region
    _
  $region13: #{discriminator_sr_forward.13} parent=0 // pred_fallthru
    _
  // Predicated region
  $region14: #{discriminator_sr_forward.13} parent=0 // pred_check
    _
  $region15: #{discriminator_sr_forward.13} parent=0 // pred_check_branch
    %579 = sbr.rel (0) target = $region17
  $region16: #{discriminator_sr_forward.13} parent=0 // pred_region
    _
  $region17: #{discriminator_sr_forward.13} parent=0 // pred_fallthru
    _
  // Predicated region
  $region18: #{discriminator_sr_forward.13} parent=0 // pred_check
    _
  $region19: #{discriminator_sr_forward.13} parent=0 // pred_check_branch
    %581 = sbr.rel (0) target = $region21
  $region20: #{discriminator_sr_forward.13} parent=0 // pred_region
    _
  $region21: #{discriminator_sr_forward.13} parent=0 // pred_fallthru
    _
  // Predicated region
  $region22: #{discriminator_sr_forward.13} parent=0 // pred_check
    _
  $region23: #{discriminator_sr_forward.13} parent=0 // pred_check_branch
    %583 = sbr.rel (0) target = $region25
  $region24: #{discriminator_sr_forward.13} parent=0 // pred_region
    _
  $region25: #{discriminator_sr_forward.13} parent=0 // pred_fallthru
    _

// kernel: discriminator_sr_forward.14
$region0: #{discriminator_sr_forward.14}
  #allocation0 [shape = 'u32[]', space=smem, size = 0x4, offset = 0x4, fixed_abs, tag = 'smem constant byte address 0x4 - core index']
  #allocation1 [shape = 'u32[144,128]{1,0:T(1,128)}', space=vmem, size = 0x12000, scoped, tag = 'internal scratch']
  %s0 = inlined_call_operand.vmem [shape: bf16[32,1152], index: 0, kind: input, shape index: {}]
  %s1 = inlined_call_operand.vmem [shape: bf16[1152,128], index: 1, kind: input, shape index: {}]
  %s2 = inlined_call_operand.vmem [shape: f32[32,128], index: 2, kind: output, shape index: {0}]
  %s3 = inlined_call_operand.vmem [shape: f32[8,128], index: 3, kind: output, shape index: {1}]
  %4 = xla_tuple %s2, %s3
  %s5 = sld [smem:[#allocation0]]
  $region26: #{discriminator_sr_forward.14} parent=0
    _
  %s7 = ssub.s32 1, %s5
  %s8 = scalar_select 0, %s7, %s5
  // Predicated region
  $region2: #{discriminator_sr_forward.14} parent=0 // pred_check
    _
  $region3: #{discriminator_sr_forward.14} parent=0 // pred_check_branch
    %10 = sbr.rel (0) target = $region5
  $region4: #{discriminator_sr_forward.14} parent=0 // pred_region
    _
  $region5: #{discriminator_sr_forward.14} parent=0 // pred_fallthru
    _
  // Predicated region
  $region6: #{discriminator_sr_forward.14} parent=0 // pred_check
    _
  $region7: #{discriminator_sr_forward.14} parent=0 // pred_check_branch
    %12 = sbr.rel (0) target = $region9
  $region8: #{discriminator_sr_forward.14} parent=0 // pred_region
    _
  $region9: #{discriminator_sr_forward.14} parent=0 // pred_fallthru
    _
  %v14 = vld [vmem:[%s0] sm:$0xff]
  %v15 = vld [vmem:[%s0 + $0x8] sm:$0xff]
  %v16 = vld [vmem:[%s0 + $0x10] sm:$0xff]
  %v17 = vld [vmem:[%s0 + $0x18] sm:$0xff]
  %v18 = vld [vmem:[%s0 + $0x20] sm:$0xf]
  %v19 = vld [vmem:[%s0 + $0x24] sm:$0xff]
  %v20 = vld [vmem:[%s0 + $0x2c] sm:$0xff]
  %v21 = vld [vmem:[%s0 + $0x34] sm:$0xff]
  %v22 = vld [vmem:[%s0 + $0x3c] sm:$0xff]
  %v23 = vld [vmem:[%s0 + $0x44] sm:$0xf]
  %v24 = vld [vmem:[%s0 + $0x48] sm:$0xff]
  %v25 = vld [vmem:[%s0 + $0x50] sm:$0xff]
  %v26 = vld [vmem:[%s0 + $0x58] sm:$0xff]
  %v27 = vld [vmem:[%s0 + $0x60] sm:$0xff]
  %v28 = vld [vmem:[%s0 + $0x68] sm:$0xf]
  %v29 = vld [vmem:[%s0 + $0x6c] sm:$0xff]
  %v30 = vld [vmem:[%s0 + $0x74] sm:$0xff]
  %v31 = vld [vmem:[%s0 + $0x7c] sm:$0xff]
  %v32 = vld [vmem:[%s0 + $0x84] sm:$0xff]
  %v33 = vld [vmem:[%s0 + $0x8c] sm:$0xf]
  %v34 = vld [vmem:[%s1] sm:$0xf]
  %v35 = vld [vmem:[%s1 + $0x4] sm:$0xf]
  %v36 = vld [vmem:[%s1 + $0x8] sm:$0xf]
  %v37 = vld [vmem:[%s1 + $0xc] sm:$0xf]
  %v38 = vld [vmem:[%s1 + $0x10] sm:$0xf]
  %v39 = vld [vmem:[%s1 + $0x14] sm:$0xf]
  %v40 = vld [vmem:[%s1 + $0x18] sm:$0xf]
  %v41 = vld [vmem:[%s1 + $0x1c] sm:$0xf]
  %v42 = vld [vmem:[%s1 + $0x20] sm:$0xf]
  %v43 = vld [vmem:[%s1 + $0x24] sm:$0xf]
  %v44 = vld [vmem:[%s1 + $0x28] sm:$0xf]
  %v45 = vld [vmem:[%s1 + $0x2c] sm:$0xf]
  %v46 = vld [vmem:[%s1 + $0x30] sm:$0xf]
  %v47 = vld [vmem:[%s1 + $0x34] sm:$0xf]
  %v48 = vld [vmem:[%s1 + $0x38] sm:$0xf]
  %v49 = vld [vmem:[%s1 + $0x3c] sm:$0xf]
  %v50 = vld [vmem:[%s1 + $0x40] sm:$0xf]
  %v51 = vld [vmem:[%s1 + $0x44] sm:$0xf]
  %v52 = vld [vmem:[%s1 + $0x48] sm:$0xf]
  %v53 = vld [vmem:[%s1 + $0x4c] sm:$0xf]
  %v54 = vld [vmem:[%s1 + $0x50] sm:$0xf]
  %v55 = vld [vmem:[%s1 + $0x54] sm:$0xf]
  %v56 = vld [vmem:[%s1 + $0x58] sm:$0xf]
  %v57 = vld [vmem:[%s1 + $0x5c] sm:$0xf]
  %v58 = vld [vmem:[%s1 + $0x60] sm:$0xf]
  %v59 = vld [vmem:[%s1 + $0x64] sm:$0xf]
  %v60 = vld [vmem:[%s1 + $0x68] sm:$0xf]
  %v61 = vld [vmem:[%s1 + $0x6c] sm:$0xf]
  %v62 = vld [vmem:[%s1 + $0x70] sm:$0xf]
  %v63 = vld [vmem:[%s1 + $0x74] sm:$0xf]
  %v64 = vld [vmem:[%s1 + $0x78] sm:$0xf]
  %v65 = vld [vmem:[%s1 + $0x7c] sm:$0xf]
  %v66 = vld [vmem:[%s1 + $0x80] sm:$0xf]
  %v67 = vld [vmem:[%s1 + $0x84] sm:$0xf]
  %v68 = vld [vmem:[%s1 + $0x88] sm:$0xf]
  %v69 = vld [vmem:[%s1 + $0x8c] sm:$0xf]
  %v70 = vld [vmem:[%s1 + $0x90] sm:$0xf]
  %v71 = vld [vmem:[%s1 + $0x94] sm:$0xf]
  %v72 = vld [vmem:[%s1 + $0x98] sm:$0xf]
  %v73 = vld [vmem:[%s1 + $0x9c] sm:$0xf]
  %v74 = vld [vmem:[%s1 + $0xa0] sm:$0xf]
  %v75 = vld [vmem:[%s1 + $0xa4] sm:$0xf]
  %v76 = vld [vmem:[%s1 + $0xa8] sm:$0xf]
  %v77 = vld [vmem:[%s1 + $0xac] sm:$0xf]
  %v78 = vld [vmem:[%s1 + $0xb0] sm:$0xf]
  %v79 = vld [vmem:[%s1 + $0xb4] sm:$0xf]
  %v80 = vld [vmem:[%s1 + $0xb8] sm:$0xf]
  %v81 = vld [vmem:[%s1 + $0xbc] sm:$0xf]
  %v82 = vld [vmem:[%s1 + $0xc0] sm:$0xf]
  %v83 = vld [vmem:[%s1 + $0xc4] sm:$0xf]
  %v84 = vld [vmem:[%s1 + $0xc8] sm:$0xf]
  %v85 = vld [vmem:[%s1 + $0xcc] sm:$0xf]
  %v86 = vld [vmem:[%s1 + $0xd0] sm:$0xf]
  %v87 = vld [vmem:[%s1 + $0xd4] sm:$0xf]
  %v88 = vld [vmem:[%s1 + $0xd8] sm:$0xf]
  %v89 = vld [vmem:[%s1 + $0xdc] sm:$0xf]
  %v90 = vld [vmem:[%s1 + $0xe0] sm:$0xf]
  %v91 = vld [vmem:[%s1 + $0xe4] sm:$0xf]
  %v92 = vld [vmem:[%s1 + $0xe8] sm:$0xf]
  %v93 = vld [vmem:[%s1 + $0xec] sm:$0xf]
  %v94 = vld [vmem:[%s1 + $0xf0] sm:$0xf]
  %v95 = vld [vmem:[%s1 + $0xf4] sm:$0xf]
  %v96 = vld [vmem:[%s1 + $0xf8] sm:$0xf]
  %v97 = vld [vmem:[%s1 + $0xfc] sm:$0xf]
  %v98 = vld [vmem:[%s1 + $0x100] sm:$0xf]
  %v99 = vld [vmem:[%s1 + $0x104] sm:$0xf]
  %v100 = vld [vmem:[%s1 + $0x108] sm:$0xf]
  %v101 = vld [vmem:[%s1 + $0x10c] sm:$0xf]
  %v102 = vld [vmem:[%s1 + $0x110] sm:$0xf]
  %v103 = vld [vmem:[%s1 + $0x114] sm:$0xf]
  %v104 = vld [vmem:[%s1 + $0x118] sm:$0xf]
  %v105 = vld [vmem:[%s1 + $0x11c] sm:$0xf]
  %v106 = vld [vmem:[%s1 + $0x120] sm:$0xf]
  %v107 = vld [vmem:[%s1 + $0x124] sm:$0xf]
  %v108 = vld [vmem:[%s1 + $0x128] sm:$0xf]
  %v109 = vld [vmem:[%s1 + $0x12c] sm:$0xf]
  %v110 = vld [vmem:[%s1 + $0x130] sm:$0xf]
  %v111 = vld [vmem:[%s1 + $0x134] sm:$0xf]
  %v112 = vld [vmem:[%s1 + $0x138] sm:$0xf]
  %v113 = vld [vmem:[%s1 + $0x13c] sm:$0xf]
  %v114 = vld [vmem:[%s1 + $0x140] sm:$0xf]
  %v115 = vld [vmem:[%s1 + $0x144] sm:$0xf]
  %v116 = vld [vmem:[%s1 + $0x148] sm:$0xf]
  %v117 = vld [vmem:[%s1 + $0x14c] sm:$0xf]
  %v118 = vld [vmem:[%s1 + $0x150] sm:$0xf]
  %v119 = vld [vmem:[%s1 + $0x154] sm:$0xf]
  %v120 = vld [vmem:[%s1 + $0x158] sm:$0xf]
  %v121 = vld [vmem:[%s1 + $0x15c] sm:$0xf]
  %v122 = vld [vmem:[%s1 + $0x160] sm:$0xf]
  %v123 = vld [vmem:[%s1 + $0x164] sm:$0xf]
  %v124 = vld [vmem:[%s1 + $0x168] sm:$0xf]
  %v125 = vld [vmem:[%s1 + $0x16c] sm:$0xf]
  %v126 = vld [vmem:[%s1 + $0x170] sm:$0xf]
  %v127 = vld [vmem:[%s1 + $0x174] sm:$0xf]
  %v128 = vld [vmem:[%s1 + $0x178] sm:$0xf]
  %v129 = vld [vmem:[%s1 + $0x17c] sm:$0xf]
  %v130 = vld [vmem:[%s1 + $0x180] sm:$0xf]
  %v131 = vld [vmem:[%s1 + $0x184] sm:$0xf]
  %v132 = vld [vmem:[%s1 + $0x188] sm:$0xf]
  %v133 = vld [vmem:[%s1 + $0x18c] sm:$0xf]
  %v134 = vld [vmem:[%s1 + $0x190] sm:$0xf]
  %v135 = vld [vmem:[%s1 + $0x194] sm:$0xf]
  %v136 = vld [vmem:[%s1 + $0x198] sm:$0xf]
  %v137 = vld [vmem:[%s1 + $0x19c] sm:$0xf]
  %v138 = vld [vmem:[%s1 + $0x1a0] sm:$0xf]
  %v139 = vld [vmem:[%s1 + $0x1a4] sm:$0xf]
  %v140 = vld [vmem:[%s1 + $0x1a8] sm:$0xf]
  %v141 = vld [vmem:[%s1 + $0x1ac] sm:$0xf]
  %v142 = vld [vmem:[%s1 + $0x1b0] sm:$0xf]
  %v143 = vld [vmem:[%s1 + $0x1b4] sm:$0xf]
  %v144 = vld [vmem:[%s1 + $0x1b8] sm:$0xf]
  %v145 = vld [vmem:[%s1 + $0x1bc] sm:$0xf]
  %v146 = vld [vmem:[%s1 + $0x1c0] sm:$0xf]
  %v147 = vld [vmem:[%s1 + $0x1c4] sm:$0xf]
  %v148 = vld [vmem:[%s1 + $0x1c8] sm:$0xf]
  %v149 = vld [vmem:[%s1 + $0x1cc] sm:$0xf]
  %v150 = vld [vmem:[%s1 + $0x1d0] sm:$0xf]
  %v151 = vld [vmem:[%s1 + $0x1d4] sm:$0xf]
  %v152 = vld [vmem:[%s1 + $0x1d8] sm:$0xf]
  %v153 = vld [vmem:[%s1 + $0x1dc] sm:$0xf]
  %v154 = vld [vmem:[%s1 + $0x1e0] sm:$0xf]
  %v155 = vld [vmem:[%s1 + $0x1e4] sm:$0xf]
  %v156 = vld [vmem:[%s1 + $0x1e8] sm:$0xf]
  %v157 = vld [vmem:[%s1 + $0x1ec] sm:$0xf]
  %v158 = vld [vmem:[%s1 + $0x1f0] sm:$0xf]
  %v159 = vld [vmem:[%s1 + $0x1f4] sm:$0xf]
  %v160 = vld [vmem:[%s1 + $0x1f8] sm:$0xf]
  %v161 = vld [vmem:[%s1 + $0x1fc] sm:$0xf]
  %v162 = vld [vmem:[%s1 + $0x200] sm:$0xf]
  %v163 = vld [vmem:[%s1 + $0x204] sm:$0xf]
  %v164 = vld [vmem:[%s1 + $0x208] sm:$0xf]
  %v165 = vld [vmem:[%s1 + $0x20c] sm:$0xf]
  %v166 = vld [vmem:[%s1 + $0x210] sm:$0xf]
  %v167 = vld [vmem:[%s1 + $0x214] sm:$0xf]
  %v168 = vld [vmem:[%s1 + $0x218] sm:$0xf]
  %v169 = vld [vmem:[%s1 + $0x21c] sm:$0xf]
  %v170 = vld [vmem:[%s1 + $0x220] sm:$0xf]
  %v171 = vld [vmem:[%s1 + $0x224] sm:$0xf]
  %v172 = vld [vmem:[%s1 + $0x228] sm:$0xf]
  %v173 = vld [vmem:[%s1 + $0x22c] sm:$0xf]
  %v174 = vld [vmem:[%s1 + $0x230] sm:$0xf]
  %v175 = vld [vmem:[%s1 + $0x234] sm:$0xf]
  %v176 = vld [vmem:[%s1 + $0x238] sm:$0xf]
  %v177 = vld [vmem:[%s1 + $0x23c] sm:$0xf]
  %v198 = vunpack.c.l.b16 %v14
  %v199 = vunpack.c.h.b16 %v14
  %v200 = vunpack.c.l.b16 %v15
  %v201 = vunpack.c.h.b16 %v15
  %v202 = vunpack.c.l.b16 %v16
  %v203 = vunpack.c.h.b16 %v16
  %v204 = vunpack.c.l.b16 %v17
  %v205 = vunpack.c.h.b16 %v17
  %v206 = vunpack.c.l.b16 %v18
  %v207 = vunpack.c.l.b16 %v19
  %v208 = vunpack.c.h.b16 %v19
  %v209 = vunpack.c.l.b16 %v20
  %v210 = vunpack.c.h.b16 %v20
  %v211 = vunpack.c.l.b16 %v21
  %v212 = vunpack.c.h.b16 %v21
  %v213 = vunpack.c.l.b16 %v22
  %v214 = vunpack.c.h.b16 %v22
  %v215 = vunpack.c.l.b16 %v23
  %v216 = vunpack.c.l.b16 %v24
  %v217 = vunpack.c.h.b16 %v24
  %v218 = vunpack.c.l.b16 %v25
  %v219 = vunpack.c.h.b16 %v25
  %v220 = vunpack.c.l.b16 %v26
  %v221 = vunpack.c.h.b16 %v26
  %v222 = vunpack.c.l.b16 %v27
  %v223 = vunpack.c.h.b16 %v27
  %v224 = vunpack.c.l.b16 %v28
  %v225 = vunpack.c.l.b16 %v29
  %v226 = vunpack.c.h.b16 %v29
  %v227 = vunpack.c.l.b16 %v30
  %v228 = vunpack.c.h.b16 %v30
  %v229 = vunpack.c.l.b16 %v31
  %v230 = vunpack.c.h.b16 %v31
  %v231 = vunpack.c.l.b16 %v32
  %v232 = vunpack.c.h.b16 %v32
  %v233 = vunpack.c.l.b16 %v33
  %v234 = vpack.c.b16 %v207, %v198
  %v235 = vpack.c.b16 %v208, %v199
  %v236 = vpack.c.b16 %v209, %v200
  %v237 = vpack.c.b16 %v210, %v201
  %v238 = vpack.c.b16 %v211, %v202
  %v239 = vpack.c.b16 %v212, %v203
  %v240 = vpack.c.b16 %v213, %v204
  %v241 = vpack.c.b16 %v214, %v205
  %v242 = vpack.c.b16 %v215, %v206
  %v243 = vpack.c.b16 %v225, %v216
  %v244 = vpack.c.b16 %v226, %v217
  %v245 = vpack.c.b16 %v227, %v218
  %v246 = vpack.c.b16 %v228, %v219
  %v247 = vpack.c.b16 %v229, %v220
  %v248 = vpack.c.b16 %v230, %v221
  %v249 = vpack.c.b16 %v231, %v222
  %v250 = vpack.c.b16 %v232, %v223
  %v251 = vpack.c.b16 %v233, %v224
  %v414 = vunpack.c.l.b16 %v34
  %v415 = vunpack.c.l.b16 %v35
  %v416 = vunpack.c.l.b16 %v36
  %v417 = vunpack.c.l.b16 %v37
  %v418 = vunpack.c.l.b16 %v38
  %v419 = vunpack.c.l.b16 %v39
  %v420 = vunpack.c.l.b16 %v40
  %v421 = vunpack.c.l.b16 %v41
  %v422 = vunpack.c.l.b16 %v42
  %v423 = vunpack.c.l.b16 %v43
  %v424 = vunpack.c.l.b16 %v44
  %v425 = vunpack.c.l.b16 %v45
  %v426 = vunpack.c.l.b16 %v46
  %v427 = vunpack.c.l.b16 %v47
  %v428 = vunpack.c.l.b16 %v48
  %v429 = vunpack.c.l.b16 %v49
  %v430 = vunpack.c.l.b16 %v50
  %v431 = vunpack.c.l.b16 %v51
  %v432 = vunpack.c.l.b16 %v52
  %v433 = vunpack.c.l.b16 %v53
  %v434 = vunpack.c.l.b16 %v54
  %v435 = vunpack.c.l.b16 %v55
  %v436 = vunpack.c.l.b16 %v56
  %v437 = vunpack.c.l.b16 %v57
  %v438 = vunpack.c.l.b16 %v58
  %v439 = vunpack.c.l.b16 %v59
  %v440 = vunpack.c.l.b16 %v60
  %v441 = vunpack.c.l.b16 %v61
  %v442 = vunpack.c.l.b16 %v62
  %v443 = vunpack.c.l.b16 %v63
  %v444 = vunpack.c.l.b16 %v64
  %v445 = vunpack.c.l.b16 %v65
  %v446 = vunpack.c.l.b16 %v66
  %v447 = vunpack.c.l.b16 %v67
  %v448 = vunpack.c.l.b16 %v68
  %v449 = vunpack.c.l.b16 %v69
  %v450 = vunpack.c.l.b16 %v70
  %v451 = vunpack.c.l.b16 %v71
  %v452 = vunpack.c.l.b16 %v72
  %v453 = vunpack.c.l.b16 %v73
  %v454 = vunpack.c.l.b16 %v74
  %v455 = vunpack.c.l.b16 %v75
  %v456 = vunpack.c.l.b16 %v76
  %v457 = vunpack.c.l.b16 %v77
  %v458 = vunpack.c.l.b16 %v78
  %v459 = vunpack.c.l.b16 %v79
  %v460 = vunpack.c.l.b16 %v80
  %v461 = vunpack.c.l.b16 %v81
  %v462 = vunpack.c.l.b16 %v82
  %v463 = vunpack.c.l.b16 %v83
  %v464 = vunpack.c.l.b16 %v84
  %v465 = vunpack.c.l.b16 %v85
  %v466 = vunpack.c.l.b16 %v86
  %v467 = vunpack.c.l.b16 %v87
  %v468 = vunpack.c.l.b16 %v88
  %v469 = vunpack.c.l.b16 %v89
  %v470 = vunpack.c.l.b16 %v90
  %v471 = vunpack.c.l.b16 %v91
  %v472 = vunpack.c.l.b16 %v92
  %v473 = vunpack.c.l.b16 %v93
  %v474 = vunpack.c.l.b16 %v94
  %v475 = vunpack.c.l.b16 %v95
  %v476 = vunpack.c.l.b16 %v96
  %v477 = vunpack.c.l.b16 %v97
  %v478 = vunpack.c.l.b16 %v98
  %v479 = vunpack.c.l.b16 %v99
  %v480 = vunpack.c.l.b16 %v100
  %v481 = vunpack.c.l.b16 %v101
  %v482 = vunpack.c.l.b16 %v102
  %v483 = vunpack.c.l.b16 %v103
  %v484 = vunpack.c.l.b16 %v104
  %v485 = vunpack.c.l.b16 %v105
  %v486 = vunpack.c.l.b16 %v106
  %v487 = vunpack.c.l.b16 %v107
  %v488 = vunpack.c.l.b16 %v108
  %v489 = vunpack.c.l.b16 %v109
  %v490 = vunpack.c.l.b16 %v110
  %v491 = vunpack.c.l.b16 %v111
  %v492 = vunpack.c.l.b16 %v112
  %v493 = vunpack.c.l.b16 %v113
  %v494 = vunpack.c.l.b16 %v114
  %v495 = vunpack.c.l.b16 %v115
  %v496 = vunpack.c.l.b16 %v116
  %v497 = vunpack.c.l.b16 %v117
  %v498 = vunpack.c.l.b16 %v118
  %v499 = vunpack.c.l.b16 %v119
  %v500 = vunpack.c.l.b16 %v120
  %v501 = vunpack.c.l.b16 %v121
  %v502 = vunpack.c.l.b16 %v122
  %v503 = vunpack.c.l.b16 %v123
  %v504 = vunpack.c.l.b16 %v124
  %v505 = vunpack.c.l.b16 %v125
  %v506 = vunpack.c.l.b16 %v126
  %v507 = vunpack.c.l.b16 %v127
  %v508 = vunpack.c.l.b16 %v128
  %v509 = vunpack.c.l.b16 %v129
  %v510 = vunpack.c.l.b16 %v130
  %v511 = vunpack.c.l.b16 %v131
  %v512 = vunpack.c.l.b16 %v132
  %v513 = vunpack.c.l.b16 %v133
  %v514 = vunpack.c.l.b16 %v134
  %v515 = vunpack.c.l.b16 %v135
  %v516 = vunpack.c.l.b16 %v136
  %v517 = vunpack.c.l.b16 %v137
  %v518 = vunpack.c.l.b16 %v138
  %v519 = vunpack.c.l.b16 %v139
  %v520 = vunpack.c.l.b16 %v140
  %v521 = vunpack.c.l.b16 %v141
  %v522 = vunpack.c.l.b16 %v142
  %v523 = vunpack.c.l.b16 %v143
  %v524 = vunpack.c.l.b16 %v144
  %v525 = vunpack.c.l.b16 %v145
  %v526 = vunpack.c.l.b16 %v146
  %v527 = vunpack.c.l.b16 %v147
  %v528 = vunpack.c.l.b16 %v148
  %v529 = vunpack.c.l.b16 %v149
  %v530 = vunpack.c.l.b16 %v150
  %v531 = vunpack.c.l.b16 %v151
  %v532 = vunpack.c.l.b16 %v152
  %v533 = vunpack.c.l.b16 %v153
  %v534 = vunpack.c.l.b16 %v154
  %v535 = vunpack.c.l.b16 %v155
  %v536 = vunpack.c.l.b16 %v156
  %v537 = vunpack.c.l.b16 %v157
  %v538 = vunpack.c.l.b16 %v158
  %v539 = vunpack.c.l.b16 %v159
  %v540 = vunpack.c.l.b16 %v160
  %v541 = vunpack.c.l.b16 %v161
  %v542 = vunpack.c.l.b16 %v162
  %v543 = vunpack.c.l.b16 %v163
  %v544 = vunpack.c.l.b16 %v164
  %v545 = vunpack.c.l.b16 %v165
  %v546 = vunpack.c.l.b16 %v166
  %v547 = vunpack.c.l.b16 %v167
  %v548 = vunpack.c.l.b16 %v168
  %v549 = vunpack.c.l.b16 %v169
  %v550 = vunpack.c.l.b16 %v170
  %v551 = vunpack.c.l.b16 %v171
  %v552 = vunpack.c.l.b16 %v172
  %v553 = vunpack.c.l.b16 %v173
  %v554 = vunpack.c.l.b16 %v174
  %v555 = vunpack.c.l.b16 %v175
  %v556 = vunpack.c.l.b16 %v176
  %v557 = vunpack.c.l.b16 %v177
  %v558 = vpack.c.b16 %v415, %v414
  %v559 = vpack.c.b16 %v417, %v416
  %v560 = vpack.c.b16 %v419, %v418
  %v561 = vpack.c.b16 %v421, %v420
  %v562 = vpack.c.b16 %v423, %v422
  %v563 = vpack.c.b16 %v425, %v424
  %v564 = vpack.c.b16 %v427, %v426
  %v565 = vpack.c.b16 %v429, %v428
  %v566 = vpack.c.b16 %v431, %v430
  %v567 = vpack.c.b16 %v433, %v432
  %v568 = vpack.c.b16 %v435, %v434
  %v569 = vpack.c.b16 %v437, %v436
  %v570 = vpack.c.b16 %v439, %v438
  %v571 = vpack.c.b16 %v441, %v440
  %v572 = vpack.c.b16 %v443, %v442
  %v573 = vpack.c.b16 %v445, %v444
  %v574 = vpack.c.b16 %v447, %v446
  %v575 = vpack.c.b16 %v449, %v448
  %v576 = vpack.c.b16 %v451, %v450
  %v577 = vpack.c.b16 %v453, %v452
  %v578 = vpack.c.b16 %v455, %v454
  %v579 = vpack.c.b16 %v457, %v456
  %v580 = vpack.c.b16 %v459, %v458
  %v581 = vpack.c.b16 %v461, %v460
  %v582 = vpack.c.b16 %v463, %v462
  %v583 = vpack.c.b16 %v465, %v464
  %v584 = vpack.c.b16 %v467, %v466
  %v585 = vpack.c.b16 %v469, %v468
  %v586 = vpack.c.b16 %v471, %v470
  %v587 = vpack.c.b16 %v473, %v472
  %v588 = vpack.c.b16 %v475, %v474
  %v589 = vpack.c.b16 %v477, %v476
  %v590 = vpack.c.b16 %v479, %v478
  %v591 = vpack.c.b16 %v481, %v480
  %v592 = vpack.c.b16 %v483, %v482
  %v593 = vpack.c.b16 %v485, %v484
  %v594 = vpack.c.b16 %v487, %v486
  %v595 = vpack.c.b16 %v489, %v488
  %v596 = vpack.c.b16 %v491, %v490
  %v597 = vpack.c.b16 %v493, %v492
  %v598 = vpack.c.b16 %v495, %v494
  %v599 = vpack.c.b16 %v497, %v496
  %v600 = vpack.c.b16 %v499, %v498
  %v601 = vpack.c.b16 %v501, %v500
  %v602 = vpack.c.b16 %v503, %v502
  %v603 = vpack.c.b16 %v505, %v504
  %v604 = vpack.c.b16 %v507, %v506
  %v605 = vpack.c.b16 %v509, %v508
  %v606 = vpack.c.b16 %v511, %v510
  %v607 = vpack.c.b16 %v513, %v512
  %v608 = vpack.c.b16 %v515, %v514
  %v609 = vpack.c.b16 %v517, %v516
  %v610 = vpack.c.b16 %v519, %v518
  %v611 = vpack.c.b16 %v521, %v520
  %v612 = vpack.c.b16 %v523, %v522
  %v613 = vpack.c.b16 %v525, %v524
  %v614 = vpack.c.b16 %v527, %v526
  %v615 = vpack.c.b16 %v529, %v528
  %v616 = vpack.c.b16 %v531, %v530
  %v617 = vpack.c.b16 %v533, %v532
  %v618 = vpack.c.b16 %v535, %v534
  %v619 = vpack.c.b16 %v537, %v536
  %v620 = vpack.c.b16 %v539, %v538
  %v621 = vpack.c.b16 %v541, %v540
  %v622 = vpack.c.b16 %v543, %v542
  %v623 = vpack.c.b16 %v545, %v544
  %v624 = vpack.c.b16 %v547, %v546
  %v625 = vpack.c.b16 %v549, %v548
  %v626 = vpack.c.b16 %v551, %v550
  %v627 = vpack.c.b16 %v553, %v552
  %v628 = vpack.c.b16 %v555, %v554
  %v629 = vpack.c.b16 %v557, %v556
  %702 = vmatprep.subr.bf16.mxu0 0
  %703 = vmatpush1.bf16.msra.mxu0 %v558
  %704 = vmatprep.subr.bf16.mxu0 0
  %705 = vmatpush1.bf16.msra.mxu0 %v559
  %706 = vmatprep.subr.bf16.mxu0 0
  %707 = vmatpush1.bf16.msra.mxu0 %v560
  %708 = vmatprep.subr.bf16.mxu0 0
  %709 = vmatpush1.bf16.msra.mxu0 %v561
  %710 = vmatprep.subr.bf16.mxu0 0
  %711 = vmatpush1.bf16.msra.mxu0 %v562
  %712 = vmatprep.subr.bf16.mxu0 0
  %713 = vmatpush1.bf16.msra.mxu0 %v563
  %714 = vmatprep.subr.bf16.mxu0 0
  %715 = vmatpush1.bf16.msra.mxu0 %v564
  %716 = vmatprep.subr.bf16.mxu0 0
  %717 = vmatpush1.bf16.msra.mxu0 %v565
  %718 = vmatprep.subr.bf16.mxu0 0
  %719 = vmatpush1.bf16.msra.mxu0 %v566
  %720 = vmatprep.subr.bf16.mxu0 0
  %721 = vmatpush1.bf16.msra.mxu0 %v567
  %722 = vmatprep.subr.bf16.mxu0 0
  %723 = vmatpush1.bf16.msra.mxu0 %v568
  %724 = vmatprep.subr.bf16.mxu0 0
  %725 = vmatpush1.bf16.msra.mxu0 %v569
  %726 = vmatprep.subr.bf16.mxu0 0
  %727 = vmatpush1.bf16.msra.mxu0 %v570
  %728 = vmatprep.subr.bf16.mxu0 0
  %729 = vmatpush1.bf16.msra.mxu0 %v571
  %730 = vmatprep.subr.bf16.mxu0 0
  %731 = vmatpush1.bf16.msra.mxu0 %v572
  %732 = vmatprep.subr.bf16.mxu0 0
  %733 = vmatpush1.bf16.msra.mxu0 %v573
  %734 = vmatprep.mubr.bf16.mxu0 %v235
  %735 = vmatmul.mubr.bf16.gmra.mrb[0].mxu0 %v234
  %v736 = vpop.f32.mrb[0].mxu0
  %v737 = vadd.f32 0.0, %v736
  %v738 = vpop.f32.mrb[0].mxu0
  %v739 = vpop.f32.mrb[0].mxu0
  %v740 = vadd.f32 0.0, %v739
  %v741 = vpop.f32.mrb[0].mxu0
  %742 = vmatprep.mubr.bf16.mxu0 %v244
  %743 = vmatmul.mubr.bf16.gmra.mrb[0].mxu0 %v243
  %v744 = vpop.f32.mrb[0].mxu0
  %v745 = vadd.f32 0.0, %v744
  %v746 = vpop.f32.mrb[0].mxu0
  %v747 = vpop.f32.mrb[0].mxu0
  %v748 = vadd.f32 0.0, %v747
  %v749 = vpop.f32.mrb[0].mxu0
  %750 = vdwg.mxu0
  %751 = vmatprep.subr.bf16.mxu0 0
  %752 = vmatpush1.bf16.msra.mxu0 %v574
  %753 = vmatprep.subr.bf16.mxu0 0
  %754 = vmatpush1.bf16.msra.mxu0 %v575
  %755 = vmatprep.subr.bf16.mxu0 0
  %756 = vmatpush1.bf16.msra.mxu0 %v576
  %757 = vmatprep.subr.bf16.mxu0 0
  %758 = vmatpush1.bf16.msra.mxu0 %v577
  %759 = vmatprep.subr.bf16.mxu0 0
  %760 = vmatpush1.bf16.msra.mxu0 %v578
  %761 = vmatprep.subr.bf16.mxu0 0
  %762 = vmatpush1.bf16.msra.mxu0 %v579
  %763 = vmatprep.subr.bf16.mxu0 0
  %764 = vmatpush1.bf16.msra.mxu0 %v580
  %765 = vmatprep.subr.bf16.mxu0 0
  %766 = vmatpush1.bf16.msra.mxu0 %v581
  %767 = vmatprep.subr.bf16.mxu0 0
  %768 = vmatpush1.bf16.msra.mxu0 %v582
  %769 = vmatprep.subr.bf16.mxu0 0
  %770 = vmatpush1.bf16.msra.mxu0 %v583
  %771 = vmatprep.subr.bf16.mxu0 0
  %772 = vmatpush1.bf16.msra.mxu0 %v584
  %773 = vmatprep.subr.bf16.mxu0 0
  %774 = vmatpush1.bf16.msra.mxu0 %v585
  %775 = vmatprep.subr.bf16.mxu0 0
  %776 = vmatpush1.bf16.msra.mxu0 %v586
  %777 = vmatprep.subr.bf16.mxu0 0
  %778 = vmatpush1.bf16.msra.mxu0 %v587
  %779 = vmatprep.subr.bf16.mxu0 0
  %780 = vmatpush1.bf16.msra.mxu0 %v588
  %781 = vmatprep.subr.bf16.mxu0 0
  %782 = vmatpush1.bf16.msra.mxu0 %v589
  %783 = vmatprep.mubr.bf16.mxu0 %v237
  %784 = vmatmul.mubr.bf16.gmra.mrb[0].mxu0 %v236
  %v785 = vpop.f32.mrb[0].mxu0
  %v786 = vadd.f32 %v737, %v785
  %v787 = vpop.f32.mrb[0].mxu0
  %v788 = vpop.f32.mrb[0].mxu0
  %v789 = vadd.f32 %v740, %v788
  %v790 = vpop.f32.mrb[0].mxu0
  %791 = vmatprep.mubr.bf16.mxu0 %v246
  %792 = vmatmul.mubr.bf16.gmra.mrb[0].mxu0 %v245
  %v793 = vpop.f32.mrb[0].mxu0
  %v794 = vadd.f32 %v745, %v793
  %v795 = vpop.f32.mrb[0].mxu0
  %v796 = vpop.f32.mrb[0].mxu0
  %v797 = vadd.f32 %v748, %v796
  %v798 = vpop.f32.mrb[0].mxu0
  %799 = vdwg.mxu0
  %800 = vmatprep.subr.bf16.mxu0 0
  %801 = vmatpush1.bf16.msra.mxu0 %v590
  %802 = vmatprep.subr.bf16.mxu0 0
  %803 = vmatpush1.bf16.msra.mxu0 %v591
  %804 = vmatprep.subr.bf16.mxu0 0
  %805 = vmatpush1.bf16.msra.mxu0 %v592
  %806 = vmatprep.subr.bf16.mxu0 0
  %807 = vmatpush1.bf16.msra.mxu0 %v593
  %808 = vmatprep.subr.bf16.mxu0 0
  %809 = vmatpush1.bf16.msra.mxu0 %v594
  %810 = vmatprep.subr.bf16.mxu0 0
  %811 = vmatpush1.bf16.msra.mxu0 %v595
  %812 = vmatprep.subr.bf16.mxu0 0
  %813 = vmatpush1.bf16.msra.mxu0 %v596
  %814 = vmatprep.subr.bf16.mxu0 0
  %815 = vmatpush1.bf16.msra.mxu0 %v597
  %816 = vmatprep.subr.bf16.mxu0 0
  %817 = vmatpush1.bf16.msra.mxu0 %v598
  %818 = vmatprep.subr.bf16.mxu0 0
  %819 = vmatpush1.bf16.msra.mxu0 %v599
  %820 = vmatprep.subr.bf16.mxu0 0
  %821 = vmatpush1.bf16.msra.mxu0 %v600
  %822 = vmatprep.subr.bf16.mxu0 0
  %823 = vmatpush1.bf16.msra.mxu0 %v601
  %824 = vmatprep.subr.bf16.mxu0 0
  %825 = vmatpush1.bf16.msra.mxu0 %v602
  %826 = vmatprep.subr.bf16.mxu0 0
  %827 = vmatpush1.bf16.msra.mxu0 %v603
  %828 = vmatprep.subr.bf16.mxu0 0
  %829 = vmatpush1.bf16.msra.mxu0 %v604
  %830 = vmatprep.subr.bf16.mxu0 0
  %831 = vmatpush1.bf16.msra.mxu0 %v605
  %832 = vmatprep.mubr.bf16.mxu0 %v239
  %833 = vmatmul.mubr.bf16.gmra.mrb[0].mxu0 %v238
  %v834 = vpop.f32.mrb[0].mxu0
  %v835 = vadd.f32 %v786, %v834
  %v836 = vpop.f32.mrb[0].mxu0
  %v837 = vpop.f32.mrb[0].mxu0
  %v838 = vadd.f32 %v789, %v837
  %v839 = vpop.f32.mrb[0].mxu0
  %840 = vmatprep.mubr.bf16.mxu0 %v248
  %841 = vmatmul.mubr.bf16.gmra.mrb[0].mxu0 %v247
  %v842 = vpop.f32.mrb[0].mxu0
  %v843 = vadd.f32 %v794, %v842
  %v844 = vpop.f32.mrb[0].mxu0
  %v845 = vpop.f32.mrb[0].mxu0
  %v846 = vadd.f32 %v797, %v845
  %v847 = vpop.f32.mrb[0].mxu0
  %848 = vdwg.mxu0
  %849 = vmatprep.subr.bf16.mxu0 0
  %850 = vmatpush1.bf16.msra.mxu0 %v606
  %851 = vmatprep.subr.bf16.mxu0 0
  %852 = vmatpush1.bf16.msra.mxu0 %v607
  %853 = vmatprep.subr.bf16.mxu0 0
  %854 = vmatpush1.bf16.msra.mxu0 %v608
  %855 = vmatprep.subr.bf16.mxu0 0
  %856 = vmatpush1.bf16.msra.mxu0 %v609
  %857 = vmatprep.subr.bf16.mxu0 0
  %858 = vmatpush1.bf16.msra.mxu0 %v610
  %859 = vmatprep.subr.bf16.mxu0 0
  %860 = vmatpush1.bf16.msra.mxu0 %v611
  %861 = vmatprep.subr.bf16.mxu0 0
  %862 = vmatpush1.bf16.msra.mxu0 %v612
  %863 = vmatprep.subr.bf16.mxu0 0
  %864 = vmatpush1.bf16.msra.mxu0 %v613
  %865 = vmatprep.subr.bf16.mxu0 0
  %866 = vmatpush1.bf16.msra.mxu0 %v614
  %867 = vmatprep.subr.bf16.mxu0 0
  %868 = vmatpush1.bf16.msra.mxu0 %v615
  %869 = vmatprep.subr.bf16.mxu0 0
  %870 = vmatpush1.bf16.msra.mxu0 %v616
  %871 = vmatprep.subr.bf16.mxu0 0
  %872 = vmatpush1.bf16.msra.mxu0 %v617
  %873 = vmatprep.subr.bf16.mxu0 0
  %874 = vmatpush1.bf16.msra.mxu0 %v618
  %875 = vmatprep.subr.bf16.mxu0 0
  %876 = vmatpush1.bf16.msra.mxu0 %v619
  %877 = vmatprep.subr.bf16.mxu0 0
  %878 = vmatpush1.bf16.msra.mxu0 %v620
  %879 = vmatprep.subr.bf16.mxu0 0
  %880 = vmatpush1.bf16.msra.mxu0 %v621
  %881 = vmatprep.mubr.bf16.mxu0 %v241
  %882 = vmatmul.mubr.bf16.gmra.mrb[0].mxu0 %v240
  %v883 = vpop.f32.mrb[0].mxu0
  %v884 = vadd.f32 %v835, %v883
  %v885 = vpop.f32.mrb[0].mxu0
  %v886 = vpop.f32.mrb[0].mxu0
  %v887 = vadd.f32 %v838, %v886
  %v888 = vpop.f32.mrb[0].mxu0
  %889 = vmatprep.mubr.bf16.mxu0 %v250
  %890 = vmatmul.mubr.bf16.gmra.mrb[0].mxu0 %v249
  %v891 = vpop.f32.mrb[0].mxu0
  %v892 = vadd.f32 %v843, %v891
  %v893 = vpop.f32.mrb[0].mxu0
  %v894 = vpop.f32.mrb[0].mxu0
  %v895 = vadd.f32 %v846, %v894
  %v896 = vpop.f32.mrb[0].mxu0
  %897 = vdwg.mxu0
  %898 = vmatprep.subr.bf16.mxu0 0
  %899 = vmatpush1.bf16.msra.mxu0 %v622
  %900 = vmatprep.subr.bf16.mxu0 0
  %901 = vmatpush1.bf16.msra.mxu0 %v623
  %902 = vmatprep.subr.bf16.mxu0 0
  %903 = vmatpush1.bf16.msra.mxu0 %v624
  %904 = vmatprep.subr.bf16.mxu0 0
  %905 = vmatpush1.bf16.msra.mxu0 %v625
  %906 = vmatprep.subr.bf16.mxu0 0
  %907 = vmatpush1.bf16.msra.mxu0 %v626
  %908 = vmatprep.subr.bf16.mxu0 0
  %909 = vmatpush1.bf16.msra.mxu0 %v627
  %910 = vmatprep.subr.bf16.mxu0 0
  %911 = vmatpush1.bf16.msra.mxu0 %v628
  %912 = vmatprep.subr.bf16.mxu0 0
  %913 = vmatpush1.bf16.msra.mxu0 %v629
  %914 = vmatprep.subr.bf16.mxu0 0
  %915 = vmatpush1.bf16.msra.mxu0 0
  %916 = vmatprep.subr.bf16.mxu0 0
  %917 = vmatpush1.bf16.msra.mxu0 0
  %918 = vmatprep.subr.bf16.mxu0 0
  %919 = vmatpush1.bf16.msra.mxu0 0
  %920 = vmatprep.subr.bf16.mxu0 0
  %921 = vmatpush1.bf16.msra.mxu0 0
  %922 = vmatprep.subr.bf16.mxu0 0
  %923 = vmatpush1.bf16.msra.mxu0 0
  %924 = vmatprep.subr.bf16.mxu0 0
  %925 = vmatpush1.bf16.msra.mxu0 0
  %926 = vmatprep.subr.bf16.mxu0 0
  %927 = vmatpush1.bf16.msra.mxu0 0
  %928 = vmatprep.subr.bf16.mxu0 0
  %929 = vmatpush1.bf16.msra.mxu0 0
  %930 = vmatprep.mubr.bf16.mxu0 0
  %931 = vmatmul.mubr.bf16.gmra.mrb[0].mxu0 %v242
  %v932 = vpop.f32.mrb[0].mxu0
  %v933 = vadd.f32 %v884, %v932
  %v934 = vpop.f32.mrb[0].mxu0
  %v935 = vpop.f32.mrb[0].mxu0
  %v936 = vadd.f32 %v887, %v935
  %v937 = vpop.f32.mrb[0].mxu0
  %938 = vmatprep.mubr.bf16.mxu0 0
  %939 = vmatmul.mubr.bf16.gmra.mrb[0].mxu0 %v251
  %v940 = vpop.f32.mrb[0].mxu0
  %v941 = vadd.f32 %v892, %v940
  %v942 = vpop.f32.mrb[0].mxu0
  %v943 = vpop.f32.mrb[0].mxu0
  %v944 = vadd.f32 %v895, %v943
  %v945 = vpop.f32.mrb[0].mxu0
  %946 = vdwg.mxu0
  %947 = vst [vmem:[%s2] sm:$0xff] %v933
  %948 = vst [vmem:[%s2 + $0x8] sm:$0xff] %v936
  %949 = vst [vmem:[%s2 + $0x10] sm:$0xff] %v941
  %950 = vst [vmem:[%s2 + $0x18] sm:$0xff] %v944
  %s951 = smul.u32 0, 32
  %v952 = vlaneseq
  %v953 = vshrl.u32 %v952, 7
  %v954 = vadd.s32 %v953, 8
  %v955 = vadd.s32 %v953, 16
  %v956 = vadd.s32 %v953, 24
  %v957 = vstv %s951
  %v958 = vadd.s32 %v957, %v953
  %v959 = vadd.s32 %v957, %v954
  %v960 = vadd.s32 %v957, %v955
  %v961 = vadd.s32 %v957, %v956
  %vm962 = vcmp.lt.s32.totalorder %v958, 32
  %vm963 = vcmp.lt.s32.totalorder %v959, 32
  %vm964 = vcmp.lt.s32.totalorder %v960, 32
  %vm965 = vcmp.lt.s32.totalorder %v961, 32
  %v966 = vsel %vm962, 1, 0
  %v967 = vsel %vm963, 1, 0
  %v968 = vsel %vm964, 1, 0
  %v969 = vsel %vm965, 1, 0
  %v970 = vcvt.s32.f32 %v966
  %v971 = vcvt.s32.f32 %v967
  %v972 = vcvt.s32.f32 %v968
  %v973 = vcvt.s32.f32 %v969
  %v974 = vmul.f32 %v933, %v970
  %v975 = vmul.f32 %v936, %v971
  %v976 = vmul.f32 %v941, %v972
  %v977 = vmul.f32 %v944, %v973
  %v978 = vadd.f32 %v974, %v975
  %v979 = vadd.f32 %v978, %v976
  %v980 = vadd.f32 %v979, %v977
  %v981 = vrot.slane %v980, 4
  %v982 = vadd.f32 %v980, %v981
  %v983 = vrot.slane %v982, 2
  %v984 = vadd.f32 %v982, %v983
  %v985 = vrot.slane %v984, 1
  %v986 = vadd.f32 %v984, %v985
  %v987 = vmul.f32 %v974, %v974
  %v988 = vmul.f32 %v975, %v975
  %v989 = vmul.f32 %v976, %v976
  %v990 = vmul.f32 %v977, %v977
  %v991 = vadd.f32 %v987, %v988
  %v992 = vadd.f32 %v991, %v989
  %v993 = vadd.f32 %v992, %v990
  %v994 = vrot.slane %v993, 4
  %v995 = vadd.f32 %v993, %v994
  %v996 = vrot.slane %v995, 2
  %v997 = vadd.f32 %v995, %v996
  %v998 = vrot.slane %v997, 1
  %v999 = vadd.f32 %v997, %v998
  %vm1000 = vcmask 1040384
  %v1001 = vsel %vm1000, %v986, %v999
  %vm1002 = vcmask 1041408
  %v1003 = vsel %vm1002, %v1001, 0.0
  %1004 = vst [vmem:[%s3] sm:$0xff] %v1003
  // Predicated region
  $region10: #{discriminator_sr_forward.14} parent=0 // pred_check
    _
  $region11: #{discriminator_sr_forward.14} parent=0 // pred_check_branch
    %1006 = sbr.rel (0) target = $region13
  $region12: #{discriminator_sr_forward.14} parent=0 // pred_region
    _
  $region13: #{discriminator_sr_forward.14} parent=0 // pred_fallthru
    _
  // Predicated region
  $region14: #{discriminator_sr_forward.14} parent=0 // pred_check
    _
  $region15: #{discriminator_sr_forward.14} parent=0 // pred_check_branch
    %1008 = sbr.rel (0) target = $region17
  $region16: #{discriminator_sr_forward.14} parent=0 // pred_region
    _
  $region17: #{discriminator_sr_forward.14} parent=0 // pred_fallthru
    _
  // Predicated region
  $region18: #{discriminator_sr_forward.14} parent=0 // pred_check
    _
  $region19: #{discriminator_sr_forward.14} parent=0 // pred_check_branch
    %1010 = sbr.rel (0) target = $region21
  $region20: #{discriminator_sr_forward.14} parent=0 // pred_region
    _
  $region21: #{discriminator_sr_forward.14} parent=0 // pred_fallthru
    _
  // Predicated region
  $region22: #{discriminator_sr_forward.14} parent=0 // pred_check
    _
  $region23: #{discriminator_sr_forward.14} parent=0 // pred_check_branch
    %1012 = sbr.rel (0) target = $region25
  $region24: #{discriminator_sr_forward.14} parent=0 // pred_region
    _
  $region25: #{discriminator_sr_forward.14} parent=0 // pred_fallthru
    _

// kernel: discriminator_sr_forward.15
$region0: #{discriminator_sr_forward.15}
  #allocation0 [shape = 'u32[]', space=smem, size = 0x4, offset = 0x4, fixed_abs, tag = 'smem constant byte address 0x4 - core index']
  #allocation1 [shape = 'u32[144,128]{1,0:T(1,128)}', space=vmem, size = 0x12000, scoped, tag = 'internal scratch']
  %s0 = inlined_call_operand.vmem [shape: bf16[8,1152], index: 0, kind: input, shape index: {}]
  %s1 = inlined_call_operand.vmem [shape: bf16[1152,128], index: 1, kind: input, shape index: {}]
  %s2 = inlined_call_operand.vmem [shape: f32[8,128], index: 2, kind: output, shape index: {0}]
  %s3 = inlined_call_operand.vmem [shape: f32[8,128], index: 3, kind: output, shape index: {1}]
  %4 = xla_tuple %s2, %s3
  %s5 = sld [smem:[#allocation0]]
  $region26: #{discriminator_sr_forward.15} parent=0
    _
  %s7 = ssub.s32 1, %s5
  %s8 = scalar_select 0, %s7, %s5
  // Predicated region
  $region2: #{discriminator_sr_forward.15} parent=0 // pred_check
    _
  $region3: #{discriminator_sr_forward.15} parent=0 // pred_check_branch
    %10 = sbr.rel (0) target = $region5
  $region4: #{discriminator_sr_forward.15} parent=0 // pred_region
    _
  $region5: #{discriminator_sr_forward.15} parent=0 // pred_fallthru
    _
  // Predicated region
  $region6: #{discriminator_sr_forward.15} parent=0 // pred_check
    _
  $region7: #{discriminator_sr_forward.15} parent=0 // pred_check_branch
    %12 = sbr.rel (0) target = $region9
  $region8: #{discriminator_sr_forward.15} parent=0 // pred_region
    _
  $region9: #{discriminator_sr_forward.15} parent=0 // pred_fallthru
    _
  %v14 = vld [vmem:[%s0] sm:$0xff]
  %v15 = vld [vmem:[%s0 + $0x8] sm:$0xff]
  %v16 = vld [vmem:[%s0 + $0x10] sm:$0xff]
  %v17 = vld [vmem:[%s0 + $0x18] sm:$0xff]
  %v18 = vld [vmem:[%s0 + $0x20] sm:$0xf]
  %v19 = vld [vmem:[%s1] sm:$0xf]
  %v20 = vld [vmem:[%s1 + $0x4] sm:$0xf]
  %v21 = vld [vmem:[%s1 + $0x8] sm:$0xf]
  %v22 = vld [vmem:[%s1 + $0xc] sm:$0xf]
  %v23 = vld [vmem:[%s1 + $0x10] sm:$0xf]
  %v24 = vld [vmem:[%s1 + $0x14] sm:$0xf]
  %v25 = vld [vmem:[%s1 + $0x18] sm:$0xf]
  %v26 = vld [vmem:[%s1 + $0x1c] sm:$0xf]
  %v27 = vld [vmem:[%s1 + $0x20] sm:$0xf]
  %v28 = vld [vmem:[%s1 + $0x24] sm:$0xf]
  %v29 = vld [vmem:[%s1 + $0x28] sm:$0xf]
  %v30 = vld [vmem:[%s1 + $0x2c] sm:$0xf]
  %v31 = vld [vmem:[%s1 + $0x30] sm:$0xf]
  %v32 = vld [vmem:[%s1 + $0x34] sm:$0xf]
  %v33 = vld [vmem:[%s1 + $0x38] sm:$0xf]
  %v34 = vld [vmem:[%s1 + $0x3c] sm:$0xf]
  %v35 = vld [vmem:[%s1 + $0x40] sm:$0xf]
  %v36 = vld [vmem:[%s1 + $0x44] sm:$0xf]
  %v37 = vld [vmem:[%s1 + $0x48] sm:$0xf]
  %v38 = vld [vmem:[%s1 + $0x4c] sm:$0xf]
  %v39 = vld [vmem:[%s1 + $0x50] sm:$0xf]
  %v40 = vld [vmem:[%s1 + $0x54] sm:$0xf]
  %v41 = vld [vmem:[%s1 + $0x58] sm:$0xf]
  %v42 = vld [vmem:[%s1 + $0x5c] sm:$0xf]
  %v43 = vld [vmem:[%s1 + $0x60] sm:$0xf]
  %v44 = vld [vmem:[%s1 + $0x64] sm:$0xf]
  %v45 = vld [vmem:[%s1 + $0x68] sm:$0xf]
  %v46 = vld [vmem:[%s1 + $0x6c] sm:$0xf]
  %v47 = vld [vmem:[%s1 + $0x70] sm:$0xf]
  %v48 = vld [vmem:[%s1 + $0x74] sm:$0xf]
  %v49 = vld [vmem:[%s1 + $0x78] sm:$0xf]
  %v50 = vld [vmem:[%s1 + $0x7c] sm:$0xf]
  %v51 = vld [vmem:[%s1 + $0x80] sm:$0xf]
  %v52 = vld [vmem:[%s1 + $0x84] sm:$0xf]
  %v53 = vld [vmem:[%s1 + $0x88] sm:$0xf]
  %v54 = vld [vmem:[%s1 + $0x8c] sm:$0xf]
  %v55 = vld [vmem:[%s1 + $0x90] sm:$0xf]
  %v56 = vld [vmem:[%s1 + $0x94] sm:$0xf]
  %v57 = vld [vmem:[%s1 + $0x98] sm:$0xf]
  %v58 = vld [vmem:[%s1 + $0x9c] sm:$0xf]
  %v59 = vld [vmem:[%s1 + $0xa0] sm:$0xf]
  %v60 = vld [vmem:[%s1 + $0xa4] sm:$0xf]
  %v61 = vld [vmem:[%s1 + $0xa8] sm:$0xf]
  %v62 = vld [vmem:[%s1 + $0xac] sm:$0xf]
  %v63 = vld [vmem:[%s1 + $0xb0] sm:$0xf]
  %v64 = vld [vmem:[%s1 + $0xb4] sm:$0xf]
  %v65 = vld [vmem:[%s1 + $0xb8] sm:$0xf]
  %v66 = vld [vmem:[%s1 + $0xbc] sm:$0xf]
  %v67 = vld [vmem:[%s1 + $0xc0] sm:$0xf]
  %v68 = vld [vmem:[%s1 + $0xc4] sm:$0xf]
  %v69 = vld [vmem:[%s1 + $0xc8] sm:$0xf]
  %v70 = vld [vmem:[%s1 + $0xcc] sm:$0xf]
  %v71 = vld [vmem:[%s1 + $0xd0] sm:$0xf]
  %v72 = vld [vmem:[%s1 + $0xd4] sm:$0xf]
  %v73 = vld [vmem:[%s1 + $0xd8] sm:$0xf]
  %v74 = vld [vmem:[%s1 + $0xdc] sm:$0xf]
  %v75 = vld [vmem:[%s1 + $0xe0] sm:$0xf]
  %v76 = vld [vmem:[%s1 + $0xe4] sm:$0xf]
  %v77 = vld [vmem:[%s1 + $0xe8] sm:$0xf]
  %v78 = vld [vmem:[%s1 + $0xec] sm:$0xf]
  %v79 = vld [vmem:[%s1 + $0xf0] sm:$0xf]
  %v80 = vld [vmem:[%s1 + $0xf4] sm:$0xf]
  %v81 = vld [vmem:[%s1 + $0xf8] sm:$0xf]
  %v82 = vld [vmem:[%s1 + $0xfc] sm:$0xf]
  %v83 = vld [vmem:[%s1 + $0x100] sm:$0xf]
  %v84 = vld [vmem:[%s1 + $0x104] sm:$0xf]
  %v85 = vld [vmem:[%s1 + $0x108] sm:$0xf]
  %v86 = vld [vmem:[%s1 + $0x10c] sm:$0xf]
  %v87 = vld [vmem:[%s1 + $0x110] sm:$0xf]
  %v88 = vld [vmem:[%s1 + $0x114] sm:$0xf]
  %v89 = vld [vmem:[%s1 + $0x118] sm:$0xf]
  %v90 = vld [vmem:[%s1 + $0x11c] sm:$0xf]
  %v91 = vld [vmem:[%s1 + $0x120] sm:$0xf]
  %v92 = vld [vmem:[%s1 + $0x124] sm:$0xf]
  %v93 = vld [vmem:[%s1 + $0x128] sm:$0xf]
  %v94 = vld [vmem:[%s1 + $0x12c] sm:$0xf]
  %v95 = vld [vmem:[%s1 + $0x130] sm:$0xf]
  %v96 = vld [vmem:[%s1 + $0x134] sm:$0xf]
  %v97 = vld [vmem:[%s1 + $0x138] sm:$0xf]
  %v98 = vld [vmem:[%s1 + $0x13c] sm:$0xf]
  %v99 = vld [vmem:[%s1 + $0x140] sm:$0xf]
  %v100 = vld [vmem:[%s1 + $0x144] sm:$0xf]
  %v101 = vld [vmem:[%s1 + $0x148] sm:$0xf]
  %v102 = vld [vmem:[%s1 + $0x14c] sm:$0xf]
  %v103 = vld [vmem:[%s1 + $0x150] sm:$0xf]
  %v104 = vld [vmem:[%s1 + $0x154] sm:$0xf]
  %v105 = vld [vmem:[%s1 + $0x158] sm:$0xf]
  %v106 = vld [vmem:[%s1 + $0x15c] sm:$0xf]
  %v107 = vld [vmem:[%s1 + $0x160] sm:$0xf]
  %v108 = vld [vmem:[%s1 + $0x164] sm:$0xf]
  %v109 = vld [vmem:[%s1 + $0x168] sm:$0xf]
  %v110 = vld [vmem:[%s1 + $0x16c] sm:$0xf]
  %v111 = vld [vmem:[%s1 + $0x170] sm:$0xf]
  %v112 = vld [vmem:[%s1 + $0x174] sm:$0xf]
  %v113 = vld [vmem:[%s1 + $0x178] sm:$0xf]
  %v114 = vld [vmem:[%s1 + $0x17c] sm:$0xf]
  %v115 = vld [vmem:[%s1 + $0x180] sm:$0xf]
  %v116 = vld [vmem:[%s1 + $0x184] sm:$0xf]
  %v117 = vld [vmem:[%s1 + $0x188] sm:$0xf]
  %v118 = vld [vmem:[%s1 + $0x18c] sm:$0xf]
  %v119 = vld [vmem:[%s1 + $0x190] sm:$0xf]
  %v120 = vld [vmem:[%s1 + $0x194] sm:$0xf]
  %v121 = vld [vmem:[%s1 + $0x198] sm:$0xf]
  %v122 = vld [vmem:[%s1 + $0x19c] sm:$0xf]
  %v123 = vld [vmem:[%s1 + $0x1a0] sm:$0xf]
  %v124 = vld [vmem:[%s1 + $0x1a4] sm:$0xf]
  %v125 = vld [vmem:[%s1 + $0x1a8] sm:$0xf]
  %v126 = vld [vmem:[%s1 + $0x1ac] sm:$0xf]
  %v127 = vld [vmem:[%s1 + $0x1b0] sm:$0xf]
  %v128 = vld [vmem:[%s1 + $0x1b4] sm:$0xf]
  %v129 = vld [vmem:[%s1 + $0x1b8] sm:$0xf]
  %v130 = vld [vmem:[%s1 + $0x1bc] sm:$0xf]
  %v131 = vld [vmem:[%s1 + $0x1c0] sm:$0xf]
  %v132 = vld [vmem:[%s1 + $0x1c4] sm:$0xf]
  %v133 = vld [vmem:[%s1 + $0x1c8] sm:$0xf]
  %v134 = vld [vmem:[%s1 + $0x1cc] sm:$0xf]
  %v135 = vld [vmem:[%s1 + $0x1d0] sm:$0xf]
  %v136 = vld [vmem:[%s1 + $0x1d4] sm:$0xf]
  %v137 = vld [vmem:[%s1 + $0x1d8] sm:$0xf]
  %v138 = vld [vmem:[%s1 + $0x1dc] sm:$0xf]
  %v139 = vld [vmem:[%s1 + $0x1e0] sm:$0xf]
  %v140 = vld [vmem:[%s1 + $0x1e4] sm:$0xf]
  %v141 = vld [vmem:[%s1 + $0x1e8] sm:$0xf]
  %v142 = vld [vmem:[%s1 + $0x1ec] sm:$0xf]
  %v143 = vld [vmem:[%s1 + $0x1f0] sm:$0xf]
  %v144 = vld [vmem:[%s1 + $0x1f4] sm:$0xf]
  %v145 = vld [vmem:[%s1 + $0x1f8] sm:$0xf]
  %v146 = vld [vmem:[%s1 + $0x1fc] sm:$0xf]
  %v147 = vld [vmem:[%s1 + $0x200] sm:$0xf]
  %v148 = vld [vmem:[%s1 + $0x204] sm:$0xf]
  %v149 = vld [vmem:[%s1 + $0x208] sm:$0xf]
  %v150 = vld [vmem:[%s1 + $0x20c] sm:$0xf]
  %v151 = vld [vmem:[%s1 + $0x210] sm:$0xf]
  %v152 = vld [vmem:[%s1 + $0x214] sm:$0xf]
  %v153 = vld [vmem:[%s1 + $0x218] sm:$0xf]
  %v154 = vld [vmem:[%s1 + $0x21c] sm:$0xf]
  %v155 = vld [vmem:[%s1 + $0x220] sm:$0xf]
  %v156 = vld [vmem:[%s1 + $0x224] sm:$0xf]
  %v157 = vld [vmem:[%s1 + $0x228] sm:$0xf]
  %v158 = vld [vmem:[%s1 + $0x22c] sm:$0xf]
  %v159 = vld [vmem:[%s1 + $0x230] sm:$0xf]
  %v160 = vld [vmem:[%s1 + $0x234] sm:$0xf]
  %v161 = vld [vmem:[%s1 + $0x238] sm:$0xf]
  %v162 = vld [vmem:[%s1 + $0x23c] sm:$0xf]
  %v168 = vunpack.c.l.b16 %v14
  %v169 = vunpack.c.h.b16 %v14
  %v170 = vunpack.c.l.b16 %v15
  %v171 = vunpack.c.h.b16 %v15
  %v172 = vunpack.c.l.b16 %v16
  %v173 = vunpack.c.h.b16 %v16
  %v174 = vunpack.c.l.b16 %v17
  %v175 = vunpack.c.h.b16 %v17
  %v176 = vunpack.c.l.b16 %v18
  %v177 = vpack.c.b16 %v168, %v168
  %v178 = vpack.c.b16 %v169, %v169
  %v179 = vpack.c.b16 %v170, %v170
  %v180 = vpack.c.b16 %v171, %v171
  %v181 = vpack.c.b16 %v172, %v172
  %v182 = vpack.c.b16 %v173, %v173
  %v183 = vpack.c.b16 %v174, %v174
  %v184 = vpack.c.b16 %v175, %v175
  %v185 = vpack.c.b16 %v176, %v176
  %v339 = vunpack.c.l.b16 %v19
  %v340 = vunpack.c.l.b16 %v20
  %v341 = vunpack.c.l.b16 %v21
  %v342 = vunpack.c.l.b16 %v22
  %v343 = vunpack.c.l.b16 %v23
  %v344 = vunpack.c.l.b16 %v24
  %v345 = vunpack.c.l.b16 %v25
  %v346 = vunpack.c.l.b16 %v26
  %v347 = vunpack.c.l.b16 %v27
  %v348 = vunpack.c.l.b16 %v28
  %v349 = vunpack.c.l.b16 %v29
  %v350 = vunpack.c.l.b16 %v30
  %v351 = vunpack.c.l.b16 %v31
  %v352 = vunpack.c.l.b16 %v32
  %v353 = vunpack.c.l.b16 %v33
  %v354 = vunpack.c.l.b16 %v34
  %v355 = vunpack.c.l.b16 %v35
  %v356 = vunpack.c.l.b16 %v36
  %v357 = vunpack.c.l.b16 %v37
  %v358 = vunpack.c.l.b16 %v38
  %v359 = vunpack.c.l.b16 %v39
  %v360 = vunpack.c.l.b16 %v40
  %v361 = vunpack.c.l.b16 %v41
  %v362 = vunpack.c.l.b16 %v42
  %v363 = vunpack.c.l.b16 %v43
  %v364 = vunpack.c.l.b16 %v44
  %v365 = vunpack.c.l.b16 %v45
  %v366 = vunpack.c.l.b16 %v46
  %v367 = vunpack.c.l.b16 %v47
  %v368 = vunpack.c.l.b16 %v48
  %v369 = vunpack.c.l.b16 %v49
  %v370 = vunpack.c.l.b16 %v50
  %v371 = vunpack.c.l.b16 %v51
  %v372 = vunpack.c.l.b16 %v52
  %v373 = vunpack.c.l.b16 %v53
  %v374 = vunpack.c.l.b16 %v54
  %v375 = vunpack.c.l.b16 %v55
  %v376 = vunpack.c.l.b16 %v56
  %v377 = vunpack.c.l.b16 %v57
  %v378 = vunpack.c.l.b16 %v58
  %v379 = vunpack.c.l.b16 %v59
  %v380 = vunpack.c.l.b16 %v60
  %v381 = vunpack.c.l.b16 %v61
  %v382 = vunpack.c.l.b16 %v62
  %v383 = vunpack.c.l.b16 %v63
  %v384 = vunpack.c.l.b16 %v64
  %v385 = vunpack.c.l.b16 %v65
  %v386 = vunpack.c.l.b16 %v66
  %v387 = vunpack.c.l.b16 %v67
  %v388 = vunpack.c.l.b16 %v68
  %v389 = vunpack.c.l.b16 %v69
  %v390 = vunpack.c.l.b16 %v70
  %v391 = vunpack.c.l.b16 %v71
  %v392 = vunpack.c.l.b16 %v72
  %v393 = vunpack.c.l.b16 %v73
  %v394 = vunpack.c.l.b16 %v74
  %v395 = vunpack.c.l.b16 %v75
  %v396 = vunpack.c.l.b16 %v76
  %v397 = vunpack.c.l.b16 %v77
  %v398 = vunpack.c.l.b16 %v78
  %v399 = vunpack.c.l.b16 %v79
  %v400 = vunpack.c.l.b16 %v80
  %v401 = vunpack.c.l.b16 %v81
  %v402 = vunpack.c.l.b16 %v82
  %v403 = vunpack.c.l.b16 %v83
  %v404 = vunpack.c.l.b16 %v84
  %v405 = vunpack.c.l.b16 %v85
  %v406 = vunpack.c.l.b16 %v86
  %v407 = vunpack.c.l.b16 %v87
  %v408 = vunpack.c.l.b16 %v88
  %v409 = vunpack.c.l.b16 %v89
  %v410 = vunpack.c.l.b16 %v90
  %v411 = vunpack.c.l.b16 %v91
  %v412 = vunpack.c.l.b16 %v92
  %v413 = vunpack.c.l.b16 %v93
  %v414 = vunpack.c.l.b16 %v94
  %v415 = vunpack.c.l.b16 %v95
  %v416 = vunpack.c.l.b16 %v96
  %v417 = vunpack.c.l.b16 %v97
  %v418 = vunpack.c.l.b16 %v98
  %v419 = vunpack.c.l.b16 %v99
  %v420 = vunpack.c.l.b16 %v100
  %v421 = vunpack.c.l.b16 %v101
  %v422 = vunpack.c.l.b16 %v102
  %v423 = vunpack.c.l.b16 %v103
  %v424 = vunpack.c.l.b16 %v104
  %v425 = vunpack.c.l.b16 %v105
  %v426 = vunpack.c.l.b16 %v106
  %v427 = vunpack.c.l.b16 %v107
  %v428 = vunpack.c.l.b16 %v108
  %v429 = vunpack.c.l.b16 %v109
  %v430 = vunpack.c.l.b16 %v110
  %v431 = vunpack.c.l.b16 %v111
  %v432 = vunpack.c.l.b16 %v112
  %v433 = vunpack.c.l.b16 %v113
  %v434 = vunpack.c.l.b16 %v114
  %v435 = vunpack.c.l.b16 %v115
  %v436 = vunpack.c.l.b16 %v116
  %v437 = vunpack.c.l.b16 %v117
  %v438 = vunpack.c.l.b16 %v118
  %v439 = vunpack.c.l.b16 %v119
  %v440 = vunpack.c.l.b16 %v120
  %v441 = vunpack.c.l.b16 %v121
  %v442 = vunpack.c.l.b16 %v122
  %v443 = vunpack.c.l.b16 %v123
  %v444 = vunpack.c.l.b16 %v124
  %v445 = vunpack.c.l.b16 %v125
  %v446 = vunpack.c.l.b16 %v126
  %v447 = vunpack.c.l.b16 %v127
  %v448 = vunpack.c.l.b16 %v128
  %v449 = vunpack.c.l.b16 %v129
  %v450 = vunpack.c.l.b16 %v130
  %v451 = vunpack.c.l.b16 %v131
  %v452 = vunpack.c.l.b16 %v132
  %v453 = vunpack.c.l.b16 %v133
  %v454 = vunpack.c.l.b16 %v134
  %v455 = vunpack.c.l.b16 %v135
  %v456 = vunpack.c.l.b16 %v136
  %v457 = vunpack.c.l.b16 %v137
  %v458 = vunpack.c.l.b16 %v138
  %v459 = vunpack.c.l.b16 %v139
  %v460 = vunpack.c.l.b16 %v140
  %v461 = vunpack.c.l.b16 %v141
  %v462 = vunpack.c.l.b16 %v142
  %v463 = vunpack.c.l.b16 %v143
  %v464 = vunpack.c.l.b16 %v144
  %v465 = vunpack.c.l.b16 %v145
  %v466 = vunpack.c.l.b16 %v146
  %v467 = vunpack.c.l.b16 %v147
  %v468 = vunpack.c.l.b16 %v148
  %v469 = vunpack.c.l.b16 %v149
  %v470 = vunpack.c.l.b16 %v150
  %v471 = vunpack.c.l.b16 %v151
  %v472 = vunpack.c.l.b16 %v152
  %v473 = vunpack.c.l.b16 %v153
  %v474 = vunpack.c.l.b16 %v154
  %v475 = vunpack.c.l.b16 %v155
  %v476 = vunpack.c.l.b16 %v156
  %v477 = vunpack.c.l.b16 %v157
  %v478 = vunpack.c.l.b16 %v158
  %v479 = vunpack.c.l.b16 %v159
  %v480 = vunpack.c.l.b16 %v160
  %v481 = vunpack.c.l.b16 %v161
  %v482 = vunpack.c.l.b16 %v162
  %v483 = vpack.c.b16 %v340, %v339
  %v484 = vpack.c.b16 %v342, %v341
  %v485 = vpack.c.b16 %v344, %v343
  %v486 = vpack.c.b16 %v346, %v345
  %v487 = vpack.c.b16 %v348, %v347
  %v488 = vpack.c.b16 %v350, %v349
  %v489 = vpack.c.b16 %v352, %v351
  %v490 = vpack.c.b16 %v354, %v353
  %v491 = vpack.c.b16 %v356, %v355
  %v492 = vpack.c.b16 %v358, %v357
  %v493 = vpack.c.b16 %v360, %v359
  %v494 = vpack.c.b16 %v362, %v361
  %v495 = vpack.c.b16 %v364, %v363
  %v496 = vpack.c.b16 %v366, %v365
  %v497 = vpack.c.b16 %v368, %v367
  %v498 = vpack.c.b16 %v370, %v369
  %v499 = vpack.c.b16 %v372, %v371
  %v500 = vpack.c.b16 %v374, %v373
  %v501 = vpack.c.b16 %v376, %v375
  %v502 = vpack.c.b16 %v378, %v377
  %v503 = vpack.c.b16 %v380, %v379
  %v504 = vpack.c.b16 %v382, %v381
  %v505 = vpack.c.b16 %v384, %v383
  %v506 = vpack.c.b16 %v386, %v385
  %v507 = vpack.c.b16 %v388, %v387
  %v508 = vpack.c.b16 %v390, %v389
  %v509 = vpack.c.b16 %v392, %v391
  %v510 = vpack.c.b16 %v394, %v393
  %v511 = vpack.c.b16 %v396, %v395
  %v512 = vpack.c.b16 %v398, %v397
  %v513 = vpack.c.b16 %v400, %v399
  %v514 = vpack.c.b16 %v402, %v401
  %v515 = vpack.c.b16 %v404, %v403
  %v516 = vpack.c.b16 %v406, %v405
  %v517 = vpack.c.b16 %v408, %v407
  %v518 = vpack.c.b16 %v410, %v409
  %v519 = vpack.c.b16 %v412, %v411
  %v520 = vpack.c.b16 %v414, %v413
  %v521 = vpack.c.b16 %v416, %v415
  %v522 = vpack.c.b16 %v418, %v417
  %v523 = vpack.c.b16 %v420, %v419
  %v524 = vpack.c.b16 %v422, %v421
  %v525 = vpack.c.b16 %v424, %v423
  %v526 = vpack.c.b16 %v426, %v425
  %v527 = vpack.c.b16 %v428, %v427
  %v528 = vpack.c.b16 %v430, %v429
  %v529 = vpack.c.b16 %v432, %v431
  %v530 = vpack.c.b16 %v434, %v433
  %v531 = vpack.c.b16 %v436, %v435
  %v532 = vpack.c.b16 %v438, %v437
  %v533 = vpack.c.b16 %v440, %v439
  %v534 = vpack.c.b16 %v442, %v441
  %v535 = vpack.c.b16 %v444, %v443
  %v536 = vpack.c.b16 %v446, %v445
  %v537 = vpack.c.b16 %v448, %v447
  %v538 = vpack.c.b16 %v450, %v449
  %v539 = vpack.c.b16 %v452, %v451
  %v540 = vpack.c.b16 %v454, %v453
  %v541 = vpack.c.b16 %v456, %v455
  %v542 = vpack.c.b16 %v458, %v457
  %v543 = vpack.c.b16 %v460, %v459
  %v544 = vpack.c.b16 %v462, %v461
  %v545 = vpack.c.b16 %v464, %v463
  %v546 = vpack.c.b16 %v466, %v465
  %v547 = vpack.c.b16 %v468, %v467
  %v548 = vpack.c.b16 %v470, %v469
  %v549 = vpack.c.b16 %v472, %v471
  %v550 = vpack.c.b16 %v474, %v473
  %v551 = vpack.c.b16 %v476, %v475
  %v552 = vpack.c.b16 %v478, %v477
  %v553 = vpack.c.b16 %v480, %v479
  %v554 = vpack.c.b16 %v482, %v481
  %627 = vmatprep.subr.bf16.mxu0 0
  %628 = vmatpush1.bf16.msra.mxu0 %v483
  %629 = vmatprep.subr.bf16.mxu0 0
  %630 = vmatpush1.bf16.msra.mxu0 %v484
  %631 = vmatprep.subr.bf16.mxu0 0
  %632 = vmatpush1.bf16.msra.mxu0 %v485
  %633 = vmatprep.subr.bf16.mxu0 0
  %634 = vmatpush1.bf16.msra.mxu0 %v486
  %635 = vmatprep.subr.bf16.mxu0 0
  %636 = vmatpush1.bf16.msra.mxu0 %v487
  %637 = vmatprep.subr.bf16.mxu0 0
  %638 = vmatpush1.bf16.msra.mxu0 %v488
  %639 = vmatprep.subr.bf16.mxu0 0
  %640 = vmatpush1.bf16.msra.mxu0 %v489
  %641 = vmatprep.subr.bf16.mxu0 0
  %642 = vmatpush1.bf16.msra.mxu0 %v490
  %643 = vmatprep.subr.bf16.mxu0 0
  %644 = vmatpush1.bf16.msra.mxu0 %v491
  %645 = vmatprep.subr.bf16.mxu0 0
  %646 = vmatpush1.bf16.msra.mxu0 %v492
  %647 = vmatprep.subr.bf16.mxu0 0
  %648 = vmatpush1.bf16.msra.mxu0 %v493
  %649 = vmatprep.subr.bf16.mxu0 0
  %650 = vmatpush1.bf16.msra.mxu0 %v494
  %651 = vmatprep.subr.bf16.mxu0 0
  %652 = vmatpush1.bf16.msra.mxu0 %v495
  %653 = vmatprep.subr.bf16.mxu0 0
  %654 = vmatpush1.bf16.msra.mxu0 %v496
  %655 = vmatprep.subr.bf16.mxu0 0
  %656 = vmatpush1.bf16.msra.mxu0 %v497
  %657 = vmatprep.subr.bf16.mxu0 0
  %658 = vmatpush1.bf16.msra.mxu0 %v498
  %659 = vmatprep.mubr.bf16.mxu0 %v178
  %660 = vmatmul.mubr.bf16.gmra.mrb[0].mxu0 %v177
  %v661 = vpop.f32.mrb[0].mxu0
  %v662 = vadd.f32 0.0, %v661
  %v663 = vpop.f32.mrb[0].mxu0
  %v664 = vpop.f32.mrb[0].mxu0
  %v665 = vpop.f32.mrb[0].mxu0
  %666 = vdwg.mxu0
  %667 = vmatprep.subr.bf16.mxu0 0
  %668 = vmatpush1.bf16.msra.mxu0 %v499
  %669 = vmatprep.subr.bf16.mxu0 0
  %670 = vmatpush1.bf16.msra.mxu0 %v500
  %671 = vmatprep.subr.bf16.mxu0 0
  %672 = vmatpush1.bf16.msra.mxu0 %v501
  %673 = vmatprep.subr.bf16.mxu0 0
  %674 = vmatpush1.bf16.msra.mxu0 %v502
  %675 = vmatprep.subr.bf16.mxu0 0
  %676 = vmatpush1.bf16.msra.mxu0 %v503
  %677 = vmatprep.subr.bf16.mxu0 0
  %678 = vmatpush1.bf16.msra.mxu0 %v504
  %679 = vmatprep.subr.bf16.mxu0 0
  %680 = vmatpush1.bf16.msra.mxu0 %v505
  %681 = vmatprep.subr.bf16.mxu0 0
  %682 = vmatpush1.bf16.msra.mxu0 %v506
  %683 = vmatprep.subr.bf16.mxu0 0
  %684 = vmatpush1.bf16.msra.mxu0 %v507
  %685 = vmatprep.subr.bf16.mxu0 0
  %686 = vmatpush1.bf16.msra.mxu0 %v508
  %687 = vmatprep.subr.bf16.mxu0 0
  %688 = vmatpush1.bf16.msra.mxu0 %v509
  %689 = vmatprep.subr.bf16.mxu0 0
  %690 = vmatpush1.bf16.msra.mxu0 %v510
  %691 = vmatprep.subr.bf16.mxu0 0
  %692 = vmatpush1.bf16.msra.mxu0 %v511
  %693 = vmatprep.subr.bf16.mxu0 0
  %694 = vmatpush1.bf16.msra.mxu0 %v512
  %695 = vmatprep.subr.bf16.mxu0 0
  %696 = vmatpush1.bf16.msra.mxu0 %v513
  %697 = vmatprep.subr.bf16.mxu0 0
  %698 = vmatpush1.bf16.msra.mxu0 %v514
  %699 = vmatprep.mubr.bf16.mxu0 %v180
  %700 = vmatmul.mubr.bf16.gmra.mrb[0].mxu0 %v179
  %v701 = vpop.f32.mrb[0].mxu0
  %v702 = vadd.f32 %v662, %v701
  %v703 = vpop.f32.mrb[0].mxu0
  %v704 = vpop.f32.mrb[0].mxu0
  %v705 = vpop.f32.mrb[0].mxu0
  %706 = vdwg.mxu0
  %707 = vmatprep.subr.bf16.mxu0 0
  %708 = vmatpush1.bf16.msra.mxu0 %v515
  %709 = vmatprep.subr.bf16.mxu0 0
  %710 = vmatpush1.bf16.msra.mxu0 %v516
  %711 = vmatprep.subr.bf16.mxu0 0
  %712 = vmatpush1.bf16.msra.mxu0 %v517
  %713 = vmatprep.subr.bf16.mxu0 0
  %714 = vmatpush1.bf16.msra.mxu0 %v518
  %715 = vmatprep.subr.bf16.mxu0 0
  %716 = vmatpush1.bf16.msra.mxu0 %v519
  %717 = vmatprep.subr.bf16.mxu0 0
  %718 = vmatpush1.bf16.msra.mxu0 %v520
  %719 = vmatprep.subr.bf16.mxu0 0
  %720 = vmatpush1.bf16.msra.mxu0 %v521
  %721 = vmatprep.subr.bf16.mxu0 0
  %722 = vmatpush1.bf16.msra.mxu0 %v522
  %723 = vmatprep.subr.bf16.mxu0 0
  %724 = vmatpush1.bf16.msra.mxu0 %v523
  %725 = vmatprep.subr.bf16.mxu0 0
  %726 = vmatpush1.bf16.msra.mxu0 %v524
  %727 = vmatprep.subr.bf16.mxu0 0
  %728 = vmatpush1.bf16.msra.mxu0 %v525
  %729 = vmatprep.subr.bf16.mxu0 0
  %730 = vmatpush1.bf16.msra.mxu0 %v526
  %731 = vmatprep.subr.bf16.mxu0 0
  %732 = vmatpush1.bf16.msra.mxu0 %v527
  %733 = vmatprep.subr.bf16.mxu0 0
  %734 = vmatpush1.bf16.msra.mxu0 %v528
  %735 = vmatprep.subr.bf16.mxu0 0
  %736 = vmatpush1.bf16.msra.mxu0 %v529
  %737 = vmatprep.subr.bf16.mxu0 0
  %738 = vmatpush1.bf16.msra.mxu0 %v530
  %739 = vmatprep.mubr.bf16.mxu0 %v182
  %740 = vmatmul.mubr.bf16.gmra.mrb[0].mxu0 %v181
  %v741 = vpop.f32.mrb[0].mxu0
  %v742 = vadd.f32 %v702, %v741
  %v743 = vpop.f32.mrb[0].mxu0
  %v744 = vpop.f32.mrb[0].mxu0
  %v745 = vpop.f32.mrb[0].mxu0
  %746 = vdwg.mxu0
  %747 = vmatprep.subr.bf16.mxu0 0
  %748 = vmatpush1.bf16.msra.mxu0 %v531
  %749 = vmatprep.subr.bf16.mxu0 0
  %750 = vmatpush1.bf16.msra.mxu0 %v532
  %751 = vmatprep.subr.bf16.mxu0 0
  %752 = vmatpush1.bf16.msra.mxu0 %v533
  %753 = vmatprep.subr.bf16.mxu0 0
  %754 = vmatpush1.bf16.msra.mxu0 %v534
  %755 = vmatprep.subr.bf16.mxu0 0
  %756 = vmatpush1.bf16.msra.mxu0 %v535
  %757 = vmatprep.subr.bf16.mxu0 0
  %758 = vmatpush1.bf16.msra.mxu0 %v536
  %759 = vmatprep.subr.bf16.mxu0 0
  %760 = vmatpush1.bf16.msra.mxu0 %v537
  %761 = vmatprep.subr.bf16.mxu0 0
  %762 = vmatpush1.bf16.msra.mxu0 %v538
  %763 = vmatprep.subr.bf16.mxu0 0
  %764 = vmatpush1.bf16.msra.mxu0 %v539
  %765 = vmatprep.subr.bf16.mxu0 0
  %766 = vmatpush1.bf16.msra.mxu0 %v540
  %767 = vmatprep.subr.bf16.mxu0 0
  %768 = vmatpush1.bf16.msra.mxu0 %v541
  %769 = vmatprep.subr.bf16.mxu0 0
  %770 = vmatpush1.bf16.msra.mxu0 %v542
  %771 = vmatprep.subr.bf16.mxu0 0
  %772 = vmatpush1.bf16.msra.mxu0 %v543
  %773 = vmatprep.subr.bf16.mxu0 0
  %774 = vmatpush1.bf16.msra.mxu0 %v544
  %775 = vmatprep.subr.bf16.mxu0 0
  %776 = vmatpush1.bf16.msra.mxu0 %v545
  %777 = vmatprep.subr.bf16.mxu0 0
  %778 = vmatpush1.bf16.msra.mxu0 %v546
  %779 = vmatprep.mubr.bf16.mxu0 %v184
  %780 = vmatmul.mubr.bf16.gmra.mrb[0].mxu0 %v183
  %v781 = vpop.f32.mrb[0].mxu0
  %v782 = vadd.f32 %v742, %v781
  %v783 = vpop.f32.mrb[0].mxu0
  %v784 = vpop.f32.mrb[0].mxu0
  %v785 = vpop.f32.mrb[0].mxu0
  %786 = vdwg.mxu0
  %787 = vmatprep.subr.bf16.mxu0 0
  %788 = vmatpush1.bf16.msra.mxu0 %v547
  %789 = vmatprep.subr.bf16.mxu0 0
  %790 = vmatpush1.bf16.msra.mxu0 %v548
  %791 = vmatprep.subr.bf16.mxu0 0
  %792 = vmatpush1.bf16.msra.mxu0 %v549
  %793 = vmatprep.subr.bf16.mxu0 0
  %794 = vmatpush1.bf16.msra.mxu0 %v550
  %795 = vmatprep.subr.bf16.mxu0 0
  %796 = vmatpush1.bf16.msra.mxu0 %v551
  %797 = vmatprep.subr.bf16.mxu0 0
  %798 = vmatpush1.bf16.msra.mxu0 %v552
  %799 = vmatprep.subr.bf16.mxu0 0
  %800 = vmatpush1.bf16.msra.mxu0 %v553
  %801 = vmatprep.subr.bf16.mxu0 0
  %802 = vmatpush1.bf16.msra.mxu0 %v554
  %803 = vmatprep.subr.bf16.mxu0 0
  %804 = vmatpush1.bf16.msra.mxu0 0
  %805 = vmatprep.subr.bf16.mxu0 0
  %806 = vmatpush1.bf16.msra.mxu0 0
  %807 = vmatprep.subr.bf16.mxu0 0
  %808 = vmatpush1.bf16.msra.mxu0 0
  %809 = vmatprep.subr.bf16.mxu0 0
  %810 = vmatpush1.bf16.msra.mxu0 0
  %811 = vmatprep.subr.bf16.mxu0 0
  %812 = vmatpush1.bf16.msra.mxu0 0
  %813 = vmatprep.subr.bf16.mxu0 0
  %814 = vmatpush1.bf16.msra.mxu0 0
  %815 = vmatprep.subr.bf16.mxu0 0
  %816 = vmatpush1.bf16.msra.mxu0 0
  %817 = vmatprep.subr.bf16.mxu0 0
  %818 = vmatpush1.bf16.msra.mxu0 0
  %819 = vmatprep.mubr.bf16.mxu0 0
  %820 = vmatmul.mubr.bf16.gmra.mrb[0].mxu0 %v185
  %v821 = vpop.f32.mrb[0].mxu0
  %v822 = vadd.f32 %v782, %v821
  %v823 = vpop.f32.mrb[0].mxu0
  %v824 = vpop.f32.mrb[0].mxu0
  %v825 = vpop.f32.mrb[0].mxu0
  %826 = vdwg.mxu0
  %827 = vst [vmem:[%s2] sm:$0xff] %v822
  %s828 = smul.u32 0, 8
  %v829 = vlaneseq
  %v830 = vshrl.u32 %v829, 7
  %v831 = vstv %s828
  %v832 = vadd.s32 %v831, %v830
  %vm833 = vcmp.lt.s32.totalorder %v832, 8
  %v834 = vsel %vm833, 1, 0
  %v835 = vcvt.s32.f32 %v834
  %v836 = vmul.f32 %v822, %v835
  %v837 = vrot.slane %v836, 4
  %v838 = vadd.f32 %v836, %v837
  %v839 = vrot.slane %v838, 2
  %v840 = vadd.f32 %v838, %v839
  %v841 = vrot.slane %v840, 1
  %v842 = vadd.f32 %v840, %v841
  %v843 = vmul.f32 %v836, %v836
  %v844 = vrot.slane %v843, 4
  %v845 = vadd.f32 %v843, %v844
  %v846 = vrot.slane %v845, 2
  %v847 = vadd.f32 %v845, %v846
  %v848 = vrot.slane %v847, 1
  %v849 = vadd.f32 %v847, %v848
  %vm850 = vcmask 1040384
  %v851 = vsel %vm850, %v842, %v849
  %vm852 = vcmask 1041408
  %v853 = vsel %vm852, %v851, 0.0
  %854 = vst [vmem:[%s3] sm:$0xff] %v853
  // Predicated region
  $region10: #{discriminator_sr_forward.15} parent=0 // pred_check
    _
  $region11: #{discriminator_sr_forward.15} parent=0 // pred_check_branch
    %856 = sbr.rel (0) target = $region13
  $region12: #{discriminator_sr_forward.15} parent=0 // pred_region
    _
  $region13: #{discriminator_sr_forward.15} parent=0 // pred_fallthru
    _
  // Predicated region
  $region14: #{discriminator_sr_forward.15} parent=0 // pred_check
    _
  $region15: #{discriminator_sr_forward.15} parent=0 // pred_check_branch
    %858 = sbr.rel (0) target = $region17
  $region16: #{discriminator_sr_forward.15} parent=0 // pred_region
    _
  $region17: #{discriminator_sr_forward.15} parent=0 // pred_fallthru
    _
  // Predicated region
  $region18: #{discriminator_sr_forward.15} parent=0 // pred_check
    _
  $region19: #{discriminator_sr_forward.15} parent=0 // pred_check_branch
    %860 = sbr.rel (0) target = $region21
  $region20: #{discriminator_sr_forward.15} parent=0 // pred_region
    _
  $region21: #{discriminator_sr_forward.15} parent=0 // pred_fallthru
    _
  // Predicated region
  $region22: #{discriminator_sr_forward.15} parent=0 // pred_check
    _
  $region23: #{discriminator_sr_forward.15} parent=0 // pred_check_branch
    %862 = sbr.rel (0) target = $region25
  $region24: #{discriminator_sr_forward.15} parent=0 // pred_region
    _
  $region25: #{discriminator_sr_forward.15} parent=0 // pred_fallthru
    _

// kernel: discriminator_sr_forward.17
$region0: #{discriminator_sr_forward.17}
  #allocation0 [shape = 'u32[]', space=smem, size = 0x4, offset = 0x4, fixed_abs, tag = 'smem constant byte address 0x4 - core index']
  #allocation1 [shape = 'u32[144,128]{1,0:T(1,128)}', space=vmem, size = 0x12000, scoped, tag = 'internal scratch']
  #allocation2 [shape = 'f32[1,1]{1,0:T(1,128)S(1)}', space=vmem, size = 0x200, scoped, tag = 'scoped memory for discriminator_sr_forward.17']
  %s0 = inlined_call_operand.vmem [shape: f32[2,4,16], index: 0, kind: input, shape index: {}]
  %s1 = inlined_call_operand.vmem [shape: f32[1,1,16], index: 1, kind: input, shape index: {}]
  %s2 = inlined_call_operand.vmem [shape: f32[1,1,16], index: 2, kind: input, shape index: {}]
  %s3 = inlined_call_operand.vmem [shape: f32[1,1,16], index: 3, kind: input, shape index: {}]
  %s4 = inlined_call_operand.<no memory space> [shape: f32[1,1], index: 4, kind: input, shape index: {}]
  %s5 = inlined_call_operand.vmem [shape: f32[2,1], index: 5, kind: output, shape index: {}]
  %s6 = sld [smem:[#allocation0]]
  $region30: #{discriminator_sr_forward.17} parent=0
    _
  %s8 = ssub.s32 1, %s6
  %s9 = scalar_select 0, %s8, %s6
  %v10 = vstv %s4
  %11 = vst [vmem:[#allocation2] sm:$0x1] %v10
  // Predicated region
  $region2: #{discriminator_sr_forward.17} parent=0 // pred_check
    _
  $region3: #{discriminator_sr_forward.17} parent=0 // pred_check_branch
    %13 = sbr.rel (0) target = $region5
  $region4: #{discriminator_sr_forward.17} parent=0 // pred_region
    _
  $region5: #{discriminator_sr_forward.17} parent=0 // pred_fallthru
    _
  // Predicated region
  $region6: #{discriminator_sr_forward.17} parent=0 // pred_check
    _
  $region7: #{discriminator_sr_forward.17} parent=0 // pred_check_branch
    %15 = sbr.rel (0) target = $region9
  $region8: #{discriminator_sr_forward.17} parent=0 // pred_region
    _
  $region9: #{discriminator_sr_forward.17} parent=0 // pred_fallthru
    _
  // Predicated region
  $region10: #{discriminator_sr_forward.17} parent=0 // pred_check
    _
  $region11: #{discriminator_sr_forward.17} parent=0 // pred_check_branch
    %17 = sbr.rel (0) target = $region13
  $region12: #{discriminator_sr_forward.17} parent=0 // pred_region
    _
  $region13: #{discriminator_sr_forward.17} parent=0 // pred_fallthru
    _
  // Predicated region
  $region14: #{discriminator_sr_forward.17} parent=0 // pred_check
    _
  $region15: #{discriminator_sr_forward.17} parent=0 // pred_check_branch
    %19 = sbr.rel (0) target = $region17
  $region16: #{discriminator_sr_forward.17} parent=0 // pred_region
    _
  $region17: #{discriminator_sr_forward.17} parent=0 // pred_fallthru
    _
  // Predicated region
  $region18: #{discriminator_sr_forward.17} parent=0 // pred_check
    _
  $region19: #{discriminator_sr_forward.17} parent=0 // pred_check_branch
    %21 = sbr.rel (0) target = $region21
  $region20: #{discriminator_sr_forward.17} parent=0 // pred_region
    _
  $region21: #{discriminator_sr_forward.17} parent=0 // pred_fallthru
    _
  %v22 = vld [vmem:[%s0] sm:$0xf]
  %v23 = vld [vmem:[%s0 + $0x4] sm:$0xf]
  %v24 = vld [vmem:[%s1] sm:$0x1]
  %v26 = vlaneseq
  %v27 = vshrl.u32 %v26, 7
  %v28 = vsub.s32 0, %v27
  %v29 = vrot.slane %v24, %v28
  %v31 = vsub.f32 %v22, %v29
  %v32 = vsub.f32 %v23, %v29
  %v33 = vld [vmem:[%s2] sm:$0x1]
  %v35 = vlaneseq
  %v36 = vshrl.u32 %v35, 7
  %v37 = vsub.s32 0, %v36
  %v38 = vrot.slane %v33, %v37
  %v40 = vmul.f32 %v31, %v38
  %v41 = vmul.f32 %v32, %v38
  %v42 = vld [vmem:[%s3] sm:$0x1]
  %v44 = vlaneseq
  %v45 = vshrl.u32 %v44, 7
  %v46 = vsub.s32 0, %v45
  %v47 = vrot.slane %v42, %v46
  %v49 = vmul.f32 %v40, %v47
  %v50 = vmul.f32 %v41, %v47
  %vm51 = vcmask 125952
  %v52 = vsel %vm51, %v49, 0.0
  %53 = vadd.xlane.f32.xlu0 %v52
  %v54 = vpop.xlane.xlu0 %53
  %v55 = vsel %vm51, %v50, 0.0
  %56 = vadd.xlane.f32.xlu0 %v55
  %v57 = vpop.xlane.xlu0 %56
  %v60 = vlaneseq
  %v61 = vand.u32 %v60, 127
  %v62 = vlaneseq
  %v63 = vshrl.u32 %v62, 7
  %v64 = vsub.s32 %v61, %v63
  %v65 = vrot.slane %v54, %v64
  %v66 = vlaneseq
  %v67 = vshrl.u32 %v66, 7
  %v68 = vsub.s32 %v61, %v67
  %v69 = vrot.slane %v57, %v68
  %vm70 = vcmask 1041409
  %v71 = vsel %vm70, %v69, %v65
  %vm73 = vcmask 25600
  %v74 = vsel %vm73, %v71, 0.0
  %75 = vadd.xlane.f32.xlu0 %v74
  %v76 = vpop.xlane.xlu0 %75
  %v77 = vmul.f32 %v76, 0.25
  %v78 = vld [vmem:[#allocation2] sm:$0x1]
  %v80 = vlaneseq
  %v81 = vshrl.u32 %v80, 7
  %v82 = vsub.s32 0, %v81
  %v83 = vrot.slane %v78, %v82
  %v85 = vadd.f32 %v77, %v83
  %vm86 = vcmask 1024
  %87 = vst.msk [vmem:[%s5] sm:$0x3] %vm86, %v85
  // Predicated region
  $region22: #{discriminator_sr_forward.17} parent=0 // pred_check
    _
  $region23: #{discriminator_sr_forward.17} parent=0 // pred_check_branch
    %89 = sbr.rel (0) target = $region25
  $region24: #{discriminator_sr_forward.17} parent=0 // pred_region
    _
  $region25: #{discriminator_sr_forward.17} parent=0 // pred_fallthru
    _
  // Predicated region
  $region26: #{discriminator_sr_forward.17} parent=0 // pred_check
    _
  $region27: #{discriminator_sr_forward.17} parent=0 // pred_check_branch
    %91 = sbr.rel (0) target = $region29
  $region28: #{discriminator_sr_forward.17} parent=0 // pred_region
    _
  $region29: #{discriminator_sr_forward.17} parent=0 // pred_fallthru
    _

// kernel: discriminator_sr_forward.16
$region0: #{discriminator_sr_forward.16}
  #allocation0 [shape = 'u32[]', space=smem, size = 0x4, offset = 0x4, fixed_abs, tag = 'smem constant byte address 0x4 - core index']
  #allocation1 [shape = 'u32[144,128]{1,0:T(1,128)}', space=vmem, size = 0x12000, scoped, tag = 'internal scratch']
  %s0 = inlined_call_operand.vmem [shape: bf16[8,1152], index: 0, kind: input, shape index: {}]
  %s1 = inlined_call_operand.vmem [shape: bf16[1152,16], index: 1, kind: input, shape index: {}]
  %s2 = inlined_call_operand.vmem [shape: f32[8,16], index: 2, kind: output, shape index: {0}]
  %s3 = inlined_call_operand.vmem [shape: f32[8,16], index: 3, kind: output, shape index: {1}]
  %4 = xla_tuple %s2, %s3
  %s5 = sld [smem:[#allocation0]]
  $region26: #{discriminator_sr_forward.16} parent=0
    _
  %s7 = ssub.s32 1, %s5
  %s8 = scalar_select 0, %s7, %s5
  // Predicated region
  $region2: #{discriminator_sr_forward.16} parent=0 // pred_check
    _
  $region3: #{discriminator_sr_forward.16} parent=0 // pred_check_branch
    %10 = sbr.rel (0) target = $region5
  $region4: #{discriminator_sr_forward.16} parent=0 // pred_region
    _
  $region5: #{discriminator_sr_forward.16} parent=0 // pred_fallthru
    _
  // Predicated region
  $region6: #{discriminator_sr_forward.16} parent=0 // pred_check
    _
  $region7: #{discriminator_sr_forward.16} parent=0 // pred_check_branch
    %12 = sbr.rel (0) target = $region9
  $region8: #{discriminator_sr_forward.16} parent=0 // pred_region
    _
  $region9: #{discriminator_sr_forward.16} parent=0 // pred_fallthru
    _
  %v14 = vld [vmem:[%s0] sm:$0xff]
  %v15 = vld [vmem:[%s0 + $0x8] sm:$0xff]
  %v16 = vld [vmem:[%s0 + $0x10] sm:$0xff]
  %v17 = vld [vmem:[%s0 + $0x18] sm:$0xff]
  %v18 = vld [vmem:[%s0 + $0x20] sm:$0xf]
  %v19 = vld [vmem:[%s1] sm:$0xf]
  %v20 = vld [vmem:[%s1 + $0x4] sm:$0xf]
  %v21 = vld [vmem:[%s1 + $0x8] sm:$0xf]
  %v22 = vld [vmem:[%s1 + $0xc] sm:$0xf]
  %v23 = vld [vmem:[%s1 + $0x10] sm:$0xf]
  %v24 = vld [vmem:[%s1 + $0x14] sm:$0xf]
  %v25 = vld [vmem:[%s1 + $0x18] sm:$0xf]
  %v26 = vld [vmem:[%s1 + $0x1c] sm:$0xf]
  %v27 = vld [vmem:[%s1 + $0x20] sm:$0xf]
  %v28 = vld [vmem:[%s1 + $0x24] sm:$0xf]
  %v29 = vld [vmem:[%s1 + $0x28] sm:$0xf]
  %v30 = vld [vmem:[%s1 + $0x2c] sm:$0xf]
  %v31 = vld [vmem:[%s1 + $0x30] sm:$0xf]
  %v32 = vld [vmem:[%s1 + $0x34] sm:$0xf]
  %v33 = vld [vmem:[%s1 + $0x38] sm:$0xf]
  %v34 = vld [vmem:[%s1 + $0x3c] sm:$0xf]
  %v35 = vld [vmem:[%s1 + $0x40] sm:$0xf]
  %v36 = vld [vmem:[%s1 + $0x44] sm:$0xf]
  %v37 = vld [vmem:[%s1 + $0x48] sm:$0xf]
  %v38 = vld [vmem:[%s1 + $0x4c] sm:$0xf]
  %v39 = vld [vmem:[%s1 + $0x50] sm:$0xf]
  %v40 = vld [vmem:[%s1 + $0x54] sm:$0xf]
  %v41 = vld [vmem:[%s1 + $0x58] sm:$0xf]
  %v42 = vld [vmem:[%s1 + $0x5c] sm:$0xf]
  %v43 = vld [vmem:[%s1 + $0x60] sm:$0xf]
  %v44 = vld [vmem:[%s1 + $0x64] sm:$0xf]
  %v45 = vld [vmem:[%s1 + $0x68] sm:$0xf]
  %v46 = vld [vmem:[%s1 + $0x6c] sm:$0xf]
  %v47 = vld [vmem:[%s1 + $0x70] sm:$0xf]
  %v48 = vld [vmem:[%s1 + $0x74] sm:$0xf]
  %v49 = vld [vmem:[%s1 + $0x78] sm:$0xf]
  %v50 = vld [vmem:[%s1 + $0x7c] sm:$0xf]
  %v51 = vld [vmem:[%s1 + $0x80] sm:$0xf]
  %v52 = vld [vmem:[%s1 + $0x84] sm:$0xf]
  %v53 = vld [vmem:[%s1 + $0x88] sm:$0xf]
  %v54 = vld [vmem:[%s1 + $0x8c] sm:$0xf]
  %v55 = vld [vmem:[%s1 + $0x90] sm:$0xf]
  %v56 = vld [vmem:[%s1 + $0x94] sm:$0xf]
  %v57 = vld [vmem:[%s1 + $0x98] sm:$0xf]
  %v58 = vld [vmem:[%s1 + $0x9c] sm:$0xf]
  %v59 = vld [vmem:[%s1 + $0xa0] sm:$0xf]
  %v60 = vld [vmem:[%s1 + $0xa4] sm:$0xf]
  %v61 = vld [vmem:[%s1 + $0xa8] sm:$0xf]
  %v62 = vld [vmem:[%s1 + $0xac] sm:$0xf]
  %v63 = vld [vmem:[%s1 + $0xb0] sm:$0xf]
  %v64 = vld [vmem:[%s1 + $0xb4] sm:$0xf]
  %v65 = vld [vmem:[%s1 + $0xb8] sm:$0xf]
  %v66 = vld [vmem:[%s1 + $0xbc] sm:$0xf]
  %v67 = vld [vmem:[%s1 + $0xc0] sm:$0xf]
  %v68 = vld [vmem:[%s1 + $0xc4] sm:$0xf]
  %v69 = vld [vmem:[%s1 + $0xc8] sm:$0xf]
  %v70 = vld [vmem:[%s1 + $0xcc] sm:$0xf]
  %v71 = vld [vmem:[%s1 + $0xd0] sm:$0xf]
  %v72 = vld [vmem:[%s1 + $0xd4] sm:$0xf]
  %v73 = vld [vmem:[%s1 + $0xd8] sm:$0xf]
  %v74 = vld [vmem:[%s1 + $0xdc] sm:$0xf]
  %v75 = vld [vmem:[%s1 + $0xe0] sm:$0xf]
  %v76 = vld [vmem:[%s1 + $0xe4] sm:$0xf]
  %v77 = vld [vmem:[%s1 + $0xe8] sm:$0xf]
  %v78 = vld [vmem:[%s1 + $0xec] sm:$0xf]
  %v79 = vld [vmem:[%s1 + $0xf0] sm:$0xf]
  %v80 = vld [vmem:[%s1 + $0xf4] sm:$0xf]
  %v81 = vld [vmem:[%s1 + $0xf8] sm:$0xf]
  %v82 = vld [vmem:[%s1 + $0xfc] sm:$0xf]
  %v83 = vld [vmem:[%s1 + $0x100] sm:$0xf]
  %v84 = vld [vmem:[%s1 + $0x104] sm:$0xf]
  %v85 = vld [vmem:[%s1 + $0x108] sm:$0xf]
  %v86 = vld [vmem:[%s1 + $0x10c] sm:$0xf]
  %v87 = vld [vmem:[%s1 + $0x110] sm:$0xf]
  %v88 = vld [vmem:[%s1 + $0x114] sm:$0xf]
  %v89 = vld [vmem:[%s1 + $0x118] sm:$0xf]
  %v90 = vld [vmem:[%s1 + $0x11c] sm:$0xf]
  %v91 = vld [vmem:[%s1 + $0x120] sm:$0xf]
  %v92 = vld [vmem:[%s1 + $0x124] sm:$0xf]
  %v93 = vld [vmem:[%s1 + $0x128] sm:$0xf]
  %v94 = vld [vmem:[%s1 + $0x12c] sm:$0xf]
  %v95 = vld [vmem:[%s1 + $0x130] sm:$0xf]
  %v96 = vld [vmem:[%s1 + $0x134] sm:$0xf]
  %v97 = vld [vmem:[%s1 + $0x138] sm:$0xf]
  %v98 = vld [vmem:[%s1 + $0x13c] sm:$0xf]
  %v99 = vld [vmem:[%s1 + $0x140] sm:$0xf]
  %v100 = vld [vmem:[%s1 + $0x144] sm:$0xf]
  %v101 = vld [vmem:[%s1 + $0x148] sm:$0xf]
  %v102 = vld [vmem:[%s1 + $0x14c] sm:$0xf]
  %v103 = vld [vmem:[%s1 + $0x150] sm:$0xf]
  %v104 = vld [vmem:[%s1 + $0x154] sm:$0xf]
  %v105 = vld [vmem:[%s1 + $0x158] sm:$0xf]
  %v106 = vld [vmem:[%s1 + $0x15c] sm:$0xf]
  %v107 = vld [vmem:[%s1 + $0x160] sm:$0xf]
  %v108 = vld [vmem:[%s1 + $0x164] sm:$0xf]
  %v109 = vld [vmem:[%s1 + $0x168] sm:$0xf]
  %v110 = vld [vmem:[%s1 + $0x16c] sm:$0xf]
  %v111 = vld [vmem:[%s1 + $0x170] sm:$0xf]
  %v112 = vld [vmem:[%s1 + $0x174] sm:$0xf]
  %v113 = vld [vmem:[%s1 + $0x178] sm:$0xf]
  %v114 = vld [vmem:[%s1 + $0x17c] sm:$0xf]
  %v115 = vld [vmem:[%s1 + $0x180] sm:$0xf]
  %v116 = vld [vmem:[%s1 + $0x184] sm:$0xf]
  %v117 = vld [vmem:[%s1 + $0x188] sm:$0xf]
  %v118 = vld [vmem:[%s1 + $0x18c] sm:$0xf]
  %v119 = vld [vmem:[%s1 + $0x190] sm:$0xf]
  %v120 = vld [vmem:[%s1 + $0x194] sm:$0xf]
  %v121 = vld [vmem:[%s1 + $0x198] sm:$0xf]
  %v122 = vld [vmem:[%s1 + $0x19c] sm:$0xf]
  %v123 = vld [vmem:[%s1 + $0x1a0] sm:$0xf]
  %v124 = vld [vmem:[%s1 + $0x1a4] sm:$0xf]
  %v125 = vld [vmem:[%s1 + $0x1a8] sm:$0xf]
  %v126 = vld [vmem:[%s1 + $0x1ac] sm:$0xf]
  %v127 = vld [vmem:[%s1 + $0x1b0] sm:$0xf]
  %v128 = vld [vmem:[%s1 + $0x1b4] sm:$0xf]
  %v129 = vld [vmem:[%s1 + $0x1b8] sm:$0xf]
  %v130 = vld [vmem:[%s1 + $0x1bc] sm:$0xf]
  %v131 = vld [vmem:[%s1 + $0x1c0] sm:$0xf]
  %v132 = vld [vmem:[%s1 + $0x1c4] sm:$0xf]
  %v133 = vld [vmem:[%s1 + $0x1c8] sm:$0xf]
  %v134 = vld [vmem:[%s1 + $0x1cc] sm:$0xf]
  %v135 = vld [vmem:[%s1 + $0x1d0] sm:$0xf]
  %v136 = vld [vmem:[%s1 + $0x1d4] sm:$0xf]
  %v137 = vld [vmem:[%s1 + $0x1d8] sm:$0xf]
  %v138 = vld [vmem:[%s1 + $0x1dc] sm:$0xf]
  %v139 = vld [vmem:[%s1 + $0x1e0] sm:$0xf]
  %v140 = vld [vmem:[%s1 + $0x1e4] sm:$0xf]
  %v141 = vld [vmem:[%s1 + $0x1e8] sm:$0xf]
  %v142 = vld [vmem:[%s1 + $0x1ec] sm:$0xf]
  %v143 = vld [vmem:[%s1 + $0x1f0] sm:$0xf]
  %v144 = vld [vmem:[%s1 + $0x1f4] sm:$0xf]
  %v145 = vld [vmem:[%s1 + $0x1f8] sm:$0xf]
  %v146 = vld [vmem:[%s1 + $0x1fc] sm:$0xf]
  %v147 = vld [vmem:[%s1 + $0x200] sm:$0xf]
  %v148 = vld [vmem:[%s1 + $0x204] sm:$0xf]
  %v149 = vld [vmem:[%s1 + $0x208] sm:$0xf]
  %v150 = vld [vmem:[%s1 + $0x20c] sm:$0xf]
  %v151 = vld [vmem:[%s1 + $0x210] sm:$0xf]
  %v152 = vld [vmem:[%s1 + $0x214] sm:$0xf]
  %v153 = vld [vmem:[%s1 + $0x218] sm:$0xf]
  %v154 = vld [vmem:[%s1 + $0x21c] sm:$0xf]
  %v155 = vld [vmem:[%s1 + $0x220] sm:$0xf]
  %v156 = vld [vmem:[%s1 + $0x224] sm:$0xf]
  %v157 = vld [vmem:[%s1 + $0x228] sm:$0xf]
  %v158 = vld [vmem:[%s1 + $0x22c] sm:$0xf]
  %v159 = vld [vmem:[%s1 + $0x230] sm:$0xf]
  %v160 = vld [vmem:[%s1 + $0x234] sm:$0xf]
  %v161 = vld [vmem:[%s1 + $0x238] sm:$0xf]
  %v162 = vld [vmem:[%s1 + $0x23c] sm:$0xf]
  %v168 = vunpack.c.l.b16 %v14
  %v169 = vunpack.c.h.b16 %v14
  %v170 = vunpack.c.l.b16 %v15
  %v171 = vunpack.c.h.b16 %v15
  %v172 = vunpack.c.l.b16 %v16
  %v173 = vunpack.c.h.b16 %v16
  %v174 = vunpack.c.l.b16 %v17
  %v175 = vunpack.c.h.b16 %v17
  %v176 = vunpack.c.l.b16 %v18
  %v177 = vpack.c.b16 %v168, %v168
  %v178 = vpack.c.b16 %v169, %v169
  %v179 = vpack.c.b16 %v170, %v170
  %v180 = vpack.c.b16 %v171, %v171
  %v181 = vpack.c.b16 %v172, %v172
  %v182 = vpack.c.b16 %v173, %v173
  %v183 = vpack.c.b16 %v174, %v174
  %v184 = vpack.c.b16 %v175, %v175
  %v185 = vpack.c.b16 %v176, %v176
  %v339 = vunpack.c.l.b16 %v19
  %v340 = vunpack.c.l.b16 %v20
  %v341 = vunpack.c.l.b16 %v21
  %v342 = vunpack.c.l.b16 %v22
  %v343 = vunpack.c.l.b16 %v23
  %v344 = vunpack.c.l.b16 %v24
  %v345 = vunpack.c.l.b16 %v25
  %v346 = vunpack.c.l.b16 %v26
  %v347 = vunpack.c.l.b16 %v27
  %v348 = vunpack.c.l.b16 %v28
  %v349 = vunpack.c.l.b16 %v29
  %v350 = vunpack.c.l.b16 %v30
  %v351 = vunpack.c.l.b16 %v31
  %v352 = vunpack.c.l.b16 %v32
  %v353 = vunpack.c.l.b16 %v33
  %v354 = vunpack.c.l.b16 %v34
  %v355 = vunpack.c.l.b16 %v35
  %v356 = vunpack.c.l.b16 %v36
  %v357 = vunpack.c.l.b16 %v37
  %v358 = vunpack.c.l.b16 %v38
  %v359 = vunpack.c.l.b16 %v39
  %v360 = vunpack.c.l.b16 %v40
  %v361 = vunpack.c.l.b16 %v41
  %v362 = vunpack.c.l.b16 %v42
  %v363 = vunpack.c.l.b16 %v43
  %v364 = vunpack.c.l.b16 %v44
  %v365 = vunpack.c.l.b16 %v45
  %v366 = vunpack.c.l.b16 %v46
  %v367 = vunpack.c.l.b16 %v47
  %v368 = vunpack.c.l.b16 %v48
  %v369 = vunpack.c.l.b16 %v49
  %v370 = vunpack.c.l.b16 %v50
  %v371 = vunpack.c.l.b16 %v51
  %v372 = vunpack.c.l.b16 %v52
  %v373 = vunpack.c.l.b16 %v53
  %v374 = vunpack.c.l.b16 %v54
  %v375 = vunpack.c.l.b16 %v55
  %v376 = vunpack.c.l.b16 %v56
  %v377 = vunpack.c.l.b16 %v57
  %v378 = vunpack.c.l.b16 %v58
  %v379 = vunpack.c.l.b16 %v59
  %v380 = vunpack.c.l.b16 %v60
  %v381 = vunpack.c.l.b16 %v61
  %v382 = vunpack.c.l.b16 %v62
  %v383 = vunpack.c.l.b16 %v63
  %v384 = vunpack.c.l.b16 %v64
  %v385 = vunpack.c.l.b16 %v65
  %v386 = vunpack.c.l.b16 %v66
  %v387 = vunpack.c.l.b16 %v67
  %v388 = vunpack.c.l.b16 %v68
  %v389 = vunpack.c.l.b16 %v69
  %v390 = vunpack.c.l.b16 %v70
  %v391 = vunpack.c.l.b16 %v71
  %v392 = vunpack.c.l.b16 %v72
  %v393 = vunpack.c.l.b16 %v73
  %v394 = vunpack.c.l.b16 %v74
  %v395 = vunpack.c.l.b16 %v75
  %v396 = vunpack.c.l.b16 %v76
  %v397 = vunpack.c.l.b16 %v77
  %v398 = vunpack.c.l.b16 %v78
  %v399 = vunpack.c.l.b16 %v79
  %v400 = vunpack.c.l.b16 %v80
  %v401 = vunpack.c.l.b16 %v81
  %v402 = vunpack.c.l.b16 %v82
  %v403 = vunpack.c.l.b16 %v83
  %v404 = vunpack.c.l.b16 %v84
  %v405 = vunpack.c.l.b16 %v85
  %v406 = vunpack.c.l.b16 %v86
  %v407 = vunpack.c.l.b16 %v87
  %v408 = vunpack.c.l.b16 %v88
  %v409 = vunpack.c.l.b16 %v89
  %v410 = vunpack.c.l.b16 %v90
  %v411 = vunpack.c.l.b16 %v91
  %v412 = vunpack.c.l.b16 %v92
  %v413 = vunpack.c.l.b16 %v93
  %v414 = vunpack.c.l.b16 %v94
  %v415 = vunpack.c.l.b16 %v95
  %v416 = vunpack.c.l.b16 %v96
  %v417 = vunpack.c.l.b16 %v97
  %v418 = vunpack.c.l.b16 %v98
  %v419 = vunpack.c.l.b16 %v99
  %v420 = vunpack.c.l.b16 %v100
  %v421 = vunpack.c.l.b16 %v101
  %v422 = vunpack.c.l.b16 %v102
  %v423 = vunpack.c.l.b16 %v103
  %v424 = vunpack.c.l.b16 %v104
  %v425 = vunpack.c.l.b16 %v105
  %v426 = vunpack.c.l.b16 %v106
  %v427 = vunpack.c.l.b16 %v107
  %v428 = vunpack.c.l.b16 %v108
  %v429 = vunpack.c.l.b16 %v109
  %v430 = vunpack.c.l.b16 %v110
  %v431 = vunpack.c.l.b16 %v111
  %v432 = vunpack.c.l.b16 %v112
  %v433 = vunpack.c.l.b16 %v113
  %v434 = vunpack.c.l.b16 %v114
  %v435 = vunpack.c.l.b16 %v115
  %v436 = vunpack.c.l.b16 %v116
  %v437 = vunpack.c.l.b16 %v117
  %v438 = vunpack.c.l.b16 %v118
  %v439 = vunpack.c.l.b16 %v119
  %v440 = vunpack.c.l.b16 %v120
  %v441 = vunpack.c.l.b16 %v121
  %v442 = vunpack.c.l.b16 %v122
  %v443 = vunpack.c.l.b16 %v123
  %v444 = vunpack.c.l.b16 %v124
  %v445 = vunpack.c.l.b16 %v125
  %v446 = vunpack.c.l.b16 %v126
  %v447 = vunpack.c.l.b16 %v127
  %v448 = vunpack.c.l.b16 %v128
  %v449 = vunpack.c.l.b16 %v129
  %v450 = vunpack.c.l.b16 %v130
  %v451 = vunpack.c.l.b16 %v131
  %v452 = vunpack.c.l.b16 %v132
  %v453 = vunpack.c.l.b16 %v133
  %v454 = vunpack.c.l.b16 %v134
  %v455 = vunpack.c.l.b16 %v135
  %v456 = vunpack.c.l.b16 %v136
  %v457 = vunpack.c.l.b16 %v137
  %v458 = vunpack.c.l.b16 %v138
  %v459 = vunpack.c.l.b16 %v139
  %v460 = vunpack.c.l.b16 %v140
  %v461 = vunpack.c.l.b16 %v141
  %v462 = vunpack.c.l.b16 %v142
  %v463 = vunpack.c.l.b16 %v143
  %v464 = vunpack.c.l.b16 %v144
  %v465 = vunpack.c.l.b16 %v145
  %v466 = vunpack.c.l.b16 %v146
  %v467 = vunpack.c.l.b16 %v147
  %v468 = vunpack.c.l.b16 %v148
  %v469 = vunpack.c.l.b16 %v149
  %v470 = vunpack.c.l.b16 %v150
  %v471 = vunpack.c.l.b16 %v151
  %v472 = vunpack.c.l.b16 %v152
  %v473 = vunpack.c.l.b16 %v153
  %v474 = vunpack.c.l.b16 %v154
  %v475 = vunpack.c.l.b16 %v155
  %v476 = vunpack.c.l.b16 %v156
  %v477 = vunpack.c.l.b16 %v157
  %v478 = vunpack.c.l.b16 %v158
  %v479 = vunpack.c.l.b16 %v159
  %v480 = vunpack.c.l.b16 %v160
  %v481 = vunpack.c.l.b16 %v161
  %v482 = vunpack.c.l.b16 %v162
  %v483 = vpack.c.b16 %v340, %v339
  %v484 = vpack.c.b16 %v342, %v341
  %v485 = vpack.c.b16 %v344, %v343
  %v486 = vpack.c.b16 %v346, %v345
  %v487 = vpack.c.b16 %v348, %v347
  %v488 = vpack.c.b16 %v350, %v349
  %v489 = vpack.c.b16 %v352, %v351
  %v490 = vpack.c.b16 %v354, %v353
  %v491 = vpack.c.b16 %v356, %v355
  %v492 = vpack.c.b16 %v358, %v357
  %v493 = vpack.c.b16 %v360, %v359
  %v494 = vpack.c.b16 %v362, %v361
  %v495 = vpack.c.b16 %v364, %v363
  %v496 = vpack.c.b16 %v366, %v365
  %v497 = vpack.c.b16 %v368, %v367
  %v498 = vpack.c.b16 %v370, %v369
  %v499 = vpack.c.b16 %v372, %v371
  %v500 = vpack.c.b16 %v374, %v373
  %v501 = vpack.c.b16 %v376, %v375
  %v502 = vpack.c.b16 %v378, %v377
  %v503 = vpack.c.b16 %v380, %v379
  %v504 = vpack.c.b16 %v382, %v381
  %v505 = vpack.c.b16 %v384, %v383
  %v506 = vpack.c.b16 %v386, %v385
  %v507 = vpack.c.b16 %v388, %v387
  %v508 = vpack.c.b16 %v390, %v389
  %v509 = vpack.c.b16 %v392, %v391
  %v510 = vpack.c.b16 %v394, %v393
  %v511 = vpack.c.b16 %v396, %v395
  %v512 = vpack.c.b16 %v398, %v397
  %v513 = vpack.c.b16 %v400, %v399
  %v514 = vpack.c.b16 %v402, %v401
  %v515 = vpack.c.b16 %v404, %v403
  %v516 = vpack.c.b16 %v406, %v405
  %v517 = vpack.c.b16 %v408, %v407
  %v518 = vpack.c.b16 %v410, %v409
  %v519 = vpack.c.b16 %v412, %v411
  %v520 = vpack.c.b16 %v414, %v413
  %v521 = vpack.c.b16 %v416, %v415
  %v522 = vpack.c.b16 %v418, %v417
  %v523 = vpack.c.b16 %v420, %v419
  %v524 = vpack.c.b16 %v422, %v421
  %v525 = vpack.c.b16 %v424, %v423
  %v526 = vpack.c.b16 %v426, %v425
  %v527 = vpack.c.b16 %v428, %v427
  %v528 = vpack.c.b16 %v430, %v429
  %v529 = vpack.c.b16 %v432, %v431
  %v530 = vpack.c.b16 %v434, %v433
  %v531 = vpack.c.b16 %v436, %v435
  %v532 = vpack.c.b16 %v438, %v437
  %v533 = vpack.c.b16 %v440, %v439
  %v534 = vpack.c.b16 %v442, %v441
  %v535 = vpack.c.b16 %v444, %v443
  %v536 = vpack.c.b16 %v446, %v445
  %v537 = vpack.c.b16 %v448, %v447
  %v538 = vpack.c.b16 %v450, %v449
  %v539 = vpack.c.b16 %v452, %v451
  %v540 = vpack.c.b16 %v454, %v453
  %v541 = vpack.c.b16 %v456, %v455
  %v542 = vpack.c.b16 %v458, %v457
  %v543 = vpack.c.b16 %v460, %v459
  %v544 = vpack.c.b16 %v462, %v461
  %v545 = vpack.c.b16 %v464, %v463
  %v546 = vpack.c.b16 %v466, %v465
  %v547 = vpack.c.b16 %v468, %v467
  %v548 = vpack.c.b16 %v470, %v469
  %v549 = vpack.c.b16 %v472, %v471
  %v550 = vpack.c.b16 %v474, %v473
  %v551 = vpack.c.b16 %v476, %v475
  %v552 = vpack.c.b16 %v478, %v477
  %v553 = vpack.c.b16 %v480, %v479
  %v554 = vpack.c.b16 %v482, %v481
  %627 = vmatprep.subr.bf16.mxu0 0
  %628 = vmatpush1.bf16.msra.mxu0 %v483
  %629 = vmatprep.subr.bf16.mxu0 0
  %630 = vmatpush1.bf16.msra.mxu0 %v484
  %631 = vmatprep.subr.bf16.mxu0 0
  %632 = vmatpush1.bf16.msra.mxu0 %v485
  %633 = vmatprep.subr.bf16.mxu0 0
  %634 = vmatpush1.bf16.msra.mxu0 %v486
  %635 = vmatprep.subr.bf16.mxu0 0
  %636 = vmatpush1.bf16.msra.mxu0 %v487
  %637 = vmatprep.subr.bf16.mxu0 0
  %638 = vmatpush1.bf16.msra.mxu0 %v488
  %639 = vmatprep.subr.bf16.mxu0 0
  %640 = vmatpush1.bf16.msra.mxu0 %v489
  %641 = vmatprep.subr.bf16.mxu0 0
  %642 = vmatpush1.bf16.msra.mxu0 %v490
  %643 = vmatprep.subr.bf16.mxu0 0
  %644 = vmatpush1.bf16.msra.mxu0 %v491
  %645 = vmatprep.subr.bf16.mxu0 0
  %646 = vmatpush1.bf16.msra.mxu0 %v492
  %647 = vmatprep.subr.bf16.mxu0 0
  %648 = vmatpush1.bf16.msra.mxu0 %v493
  %649 = vmatprep.subr.bf16.mxu0 0
  %650 = vmatpush1.bf16.msra.mxu0 %v494
  %651 = vmatprep.subr.bf16.mxu0 0
  %652 = vmatpush1.bf16.msra.mxu0 %v495
  %653 = vmatprep.subr.bf16.mxu0 0
  %654 = vmatpush1.bf16.msra.mxu0 %v496
  %655 = vmatprep.subr.bf16.mxu0 0
  %656 = vmatpush1.bf16.msra.mxu0 %v497
  %657 = vmatprep.subr.bf16.mxu0 0
  %658 = vmatpush1.bf16.msra.mxu0 %v498
  %659 = vmatprep.mubr.bf16.mxu0 %v178
  %660 = vmatmul.mubr.bf16.gmra.mrb[0].mxu0 %v177
  %v661 = vpop.f32.mrb[0].mxu0
  %v662 = vadd.f32 0.0, %v661
  %v663 = vpop.f32.mrb[0].mxu0
  %v664 = vpop.f32.mrb[0].mxu0
  %v665 = vpop.f32.mrb[0].mxu0
  %666 = vdwg.mxu0
  %667 = vmatprep.subr.bf16.mxu0 0
  %668 = vmatpush1.bf16.msra.mxu0 %v499
  %669 = vmatprep.subr.bf16.mxu0 0
  %670 = vmatpush1.bf16.msra.mxu0 %v500
  %671 = vmatprep.subr.bf16.mxu0 0
  %672 = vmatpush1.bf16.msra.mxu0 %v501
  %673 = vmatprep.subr.bf16.mxu0 0
  %674 = vmatpush1.bf16.msra.mxu0 %v502
  %675 = vmatprep.subr.bf16.mxu0 0
  %676 = vmatpush1.bf16.msra.mxu0 %v503
  %677 = vmatprep.subr.bf16.mxu0 0
  %678 = vmatpush1.bf16.msra.mxu0 %v504
  %679 = vmatprep.subr.bf16.mxu0 0
  %680 = vmatpush1.bf16.msra.mxu0 %v505
  %681 = vmatprep.subr.bf16.mxu0 0
  %682 = vmatpush1.bf16.msra.mxu0 %v506
  %683 = vmatprep.subr.bf16.mxu0 0
  %684 = vmatpush1.bf16.msra.mxu0 %v507
  %685 = vmatprep.subr.bf16.mxu0 0
  %686 = vmatpush1.bf16.msra.mxu0 %v508
  %687 = vmatprep.subr.bf16.mxu0 0
  %688 = vmatpush1.bf16.msra.mxu0 %v509
  %689 = vmatprep.subr.bf16.mxu0 0
  %690 = vmatpush1.bf16.msra.mxu0 %v510
  %691 = vmatprep.subr.bf16.mxu0 0
  %692 = vmatpush1.bf16.msra.mxu0 %v511
  %693 = vmatprep.subr.bf16.mxu0 0
  %694 = vmatpush1.bf16.msra.mxu0 %v512
  %695 = vmatprep.subr.bf16.mxu0 0
  %696 = vmatpush1.bf16.msra.mxu0 %v513
  %697 = vmatprep.subr.bf16.mxu0 0
  %698 = vmatpush1.bf16.msra.mxu0 %v514
  %699 = vmatprep.mubr.bf16.mxu0 %v180
  %700 = vmatmul.mubr.bf16.gmra.mrb[0].mxu0 %v179
  %v701 = vpop.f32.mrb[0].mxu0
  %v702 = vadd.f32 %v662, %v701
  %v703 = vpop.f32.mrb[0].mxu0
  %v704 = vpop.f32.mrb[0].mxu0
  %v705 = vpop.f32.mrb[0].mxu0
  %706 = vdwg.mxu0
  %707 = vmatprep.subr.bf16.mxu0 0
  %708 = vmatpush1.bf16.msra.mxu0 %v515
  %709 = vmatprep.subr.bf16.mxu0 0
  %710 = vmatpush1.bf16.msra.mxu0 %v516
  %711 = vmatprep.subr.bf16.mxu0 0
  %712 = vmatpush1.bf16.msra.mxu0 %v517
  %713 = vmatprep.subr.bf16.mxu0 0
  %714 = vmatpush1.bf16.msra.mxu0 %v518
  %715 = vmatprep.subr.bf16.mxu0 0
  %716 = vmatpush1.bf16.msra.mxu0 %v519
  %717 = vmatprep.subr.bf16.mxu0 0
  %718 = vmatpush1.bf16.msra.mxu0 %v520
  %719 = vmatprep.subr.bf16.mxu0 0
  %720 = vmatpush1.bf16.msra.mxu0 %v521
  %721 = vmatprep.subr.bf16.mxu0 0
  %722 = vmatpush1.bf16.msra.mxu0 %v522
  %723 = vmatprep.subr.bf16.mxu0 0
  %724 = vmatpush1.bf16.msra.mxu0 %v523
  %725 = vmatprep.subr.bf16.mxu0 0
  %726 = vmatpush1.bf16.msra.mxu0 %v524
  %727 = vmatprep.subr.bf16.mxu0 0
  %728 = vmatpush1.bf16.msra.mxu0 %v525
  %729 = vmatprep.subr.bf16.mxu0 0
  %730 = vmatpush1.bf16.msra.mxu0 %v526
  %731 = vmatprep.subr.bf16.mxu0 0
  %732 = vmatpush1.bf16.msra.mxu0 %v527
  %733 = vmatprep.subr.bf16.mxu0 0
  %734 = vmatpush1.bf16.msra.mxu0 %v528
  %735 = vmatprep.subr.bf16.mxu0 0
  %736 = vmatpush1.bf16.msra.mxu0 %v529
  %737 = vmatprep.subr.bf16.mxu0 0
  %738 = vmatpush1.bf16.msra.mxu0 %v530
  %739 = vmatprep.mubr.bf16.mxu0 %v182
  %740 = vmatmul.mubr.bf16.gmra.mrb[0].mxu0 %v181
  %v741 = vpop.f32.mrb[0].mxu0
  %v742 = vadd.f32 %v702, %v741
  %v743 = vpop.f32.mrb[0].mxu0
  %v744 = vpop.f32.mrb[0].mxu0
  %v745 = vpop.f32.mrb[0].mxu0
  %746 = vdwg.mxu0
  %747 = vmatprep.subr.bf16.mxu0 0
  %748 = vmatpush1.bf16.msra.mxu0 %v531
  %749 = vmatprep.subr.bf16.mxu0 0
  %750 = vmatpush1.bf16.msra.mxu0 %v532
  %751 = vmatprep.subr.bf16.mxu0 0
  %752 = vmatpush1.bf16.msra.mxu0 %v533
  %753 = vmatprep.subr.bf16.mxu0 0
  %754 = vmatpush1.bf16.msra.mxu0 %v534
  %755 = vmatprep.subr.bf16.mxu0 0
  %756 = vmatpush1.bf16.msra.mxu0 %v535
  %757 = vmatprep.subr.bf16.mxu0 0
  %758 = vmatpush1.bf16.msra.mxu0 %v536
  %759 = vmatprep.subr.bf16.mxu0 0
  %760 = vmatpush1.bf16.msra.mxu0 %v537
  %761 = vmatprep.subr.bf16.mxu0 0
  %762 = vmatpush1.bf16.msra.mxu0 %v538
  %763 = vmatprep.subr.bf16.mxu0 0
  %764 = vmatpush1.bf16.msra.mxu0 %v539
  %765 = vmatprep.subr.bf16.mxu0 0
  %766 = vmatpush1.bf16.msra.mxu0 %v540
  %767 = vmatprep.subr.bf16.mxu0 0
  %768 = vmatpush1.bf16.msra.mxu0 %v541
  %769 = vmatprep.subr.bf16.mxu0 0
  %770 = vmatpush1.bf16.msra.mxu0 %v542
  %771 = vmatprep.subr.bf16.mxu0 0
  %772 = vmatpush1.bf16.msra.mxu0 %v543
  %773 = vmatprep.subr.bf16.mxu0 0
  %774 = vmatpush1.bf16.msra.mxu0 %v544
  %775 = vmatprep.subr.bf16.mxu0 0
  %776 = vmatpush1.bf16.msra.mxu0 %v545
  %777 = vmatprep.subr.bf16.mxu0 0
  %778 = vmatpush1.bf16.msra.mxu0 %v546
  %779 = vmatprep.mubr.bf16.mxu0 %v184
  %780 = vmatmul.mubr.bf16.gmra.mrb[0].mxu0 %v183
  %v781 = vpop.f32.mrb[0].mxu0
  %v782 = vadd.f32 %v742, %v781
  %v783 = vpop.f32.mrb[0].mxu0
  %v784 = vpop.f32.mrb[0].mxu0
  %v785 = vpop.f32.mrb[0].mxu0
  %786 = vdwg.mxu0
  %787 = vmatprep.subr.bf16.mxu0 0
  %788 = vmatpush1.bf16.msra.mxu0 %v547
  %789 = vmatprep.subr.bf16.mxu0 0
  %790 = vmatpush1.bf16.msra.mxu0 %v548
  %791 = vmatprep.subr.bf16.mxu0 0
  %792 = vmatpush1.bf16.msra.mxu0 %v549
  %793 = vmatprep.subr.bf16.mxu0 0
  %794 = vmatpush1.bf16.msra.mxu0 %v550
  %795 = vmatprep.subr.bf16.mxu0 0
  %796 = vmatpush1.bf16.msra.mxu0 %v551
  %797 = vmatprep.subr.bf16.mxu0 0
  %798 = vmatpush1.bf16.msra.mxu0 %v552
  %799 = vmatprep.subr.bf16.mxu0 0
  %800 = vmatpush1.bf16.msra.mxu0 %v553
  %801 = vmatprep.subr.bf16.mxu0 0
  %802 = vmatpush1.bf16.msra.mxu0 %v554
  %803 = vmatprep.subr.bf16.mxu0 0
  %804 = vmatpush1.bf16.msra.mxu0 0
  %805 = vmatprep.subr.bf16.mxu0 0
  %806 = vmatpush1.bf16.msra.mxu0 0
  %807 = vmatprep.subr.bf16.mxu0 0
  %808 = vmatpush1.bf16.msra.mxu0 0
  %809 = vmatprep.subr.bf16.mxu0 0
  %810 = vmatpush1.bf16.msra.mxu0 0
  %811 = vmatprep.subr.bf16.mxu0 0
  %812 = vmatpush1.bf16.msra.mxu0 0
  %813 = vmatprep.subr.bf16.mxu0 0
  %814 = vmatpush1.bf16.msra.mxu0 0
  %815 = vmatprep.subr.bf16.mxu0 0
  %816 = vmatpush1.bf16.msra.mxu0 0
  %817 = vmatprep.subr.bf16.mxu0 0
  %818 = vmatpush1.bf16.msra.mxu0 0
  %819 = vmatprep.mubr.bf16.mxu0 0
  %820 = vmatmul.mubr.bf16.gmra.mrb[0].mxu0 %v185
  %v821 = vpop.f32.mrb[0].mxu0
  %v822 = vadd.f32 %v782, %v821
  %v823 = vpop.f32.mrb[0].mxu0
  %v824 = vpop.f32.mrb[0].mxu0
  %v825 = vpop.f32.mrb[0].mxu0
  %826 = vdwg.mxu0
  %vm827 = vcmask 130048
  %828 = vst.msk [vmem:[%s2] sm:$0xff] %vm827, %v822
  %s829 = smul.u32 0, 8
  %v830 = vlaneseq
  %v831 = vshrl.u32 %v830, 7
  %v832 = vstv %s829
  %v833 = vadd.s32 %v832, %v831
  %vm834 = vcmp.lt.s32.totalorder %v833, 8
  %v835 = vsel %vm834, 1, 0
  %v836 = vcvt.s32.f32 %v835
  %v837 = vmul.f32 %v822, %v836
  %v838 = vsel %vm827, %v837, 0.0
  %v839 = vrot.slane %v838, 4
  %v840 = vadd.f32 %v838, %v839
  %v841 = vrot.slane %v840, 2
  %v842 = vadd.f32 %v840, %v841
  %v843 = vrot.slane %v842, 1
  %v844 = vadd.f32 %v842, %v843
  %v845 = vmul.f32 %v837, %v837
  %v846 = vsel %vm827, %v845, 0.0
  %v847 = vrot.slane %v846, 4
  %v848 = vadd.f32 %v846, %v847
  %v849 = vrot.slane %v848, 2
  %v850 = vadd.f32 %v848, %v849
  %v851 = vrot.slane %v850, 1
  %v852 = vadd.f32 %v850, %v851
  %vm853 = vcmask 1040384
  %v854 = vsel %vm853, %v844, %v852
  %vm855 = vcmask 1041408
  %v856 = vsel %vm855, %v854, 0.0
  %857 = vst.msk [vmem:[%s3] sm:$0xff] %vm827, %v856
  // Predicated region
  $region10: #{discriminator_sr_forward.16} parent=0 // pred_check
    _
  $region11: #{discriminator_sr_forward.16} parent=0 // pred_check_branch
    %859 = sbr.rel (0) target = $region13
  $region12: #{discriminator_sr_forward.16} parent=0 // pred_region
    _
  $region13: #{discriminator_sr_forward.16} parent=0 // pred_fallthru
    _
  // Predicated region
  $region14: #{discriminator_sr_forward.16} parent=0 // pred_check
    _
  $region15: #{discriminator_sr_forward.16} parent=0 // pred_check_branch
    %861 = sbr.rel (0) target = $region17
  $region16: #{discriminator_sr_forward.16} parent=0 // pred_region
    _
  $region17: #{discriminator_sr_forward.16} parent=0 // pred_fallthru
    _
  // Predicated region
  $region18: #{discriminator_sr_forward.16} parent=0 // pred_check
    _
  $region19: #{discriminator_sr_forward.16} parent=0 // pred_check_branch
    %863 = sbr.rel (0) target = $region21
  $region20: #{discriminator_sr_forward.16} parent=0 // pred_region
    _
  $region21: #{discriminator_sr_forward.16} parent=0 // pred_fallthru
    _
  // Predicated region
  $region22: #{discriminator_sr_forward.16} parent=0 // pred_check
    _
  $region23: #{discriminator_sr_forward.16} parent=0 // pred_check_branch
    %865 = sbr.rel (0) target = $region25
  $region24: #{discriminator_sr_forward.16} parent=0 // pred_region
    _
  $region25: #{discriminator_sr_forward.16} parent=0 // pred_fallthru
    _

</llo_original>
